<compile_context>
chip_gen: v6e
topology: v6e:2x2x1
jax: 0.10.0
libtpu: 0.0.40
codegen_flags: <defaults>
</compile_context>

<pallas_src>
import functools

import jax
import jax.numpy as jnp
from jax.experimental import pallas as pl
from jax.experimental.pallas import tpu as pltpu


# ----------------------------------------------------------------------------
# Pallas kernel: tiled  y = relu(x @ W + b)   (ReLU optional, fused epilogue)
# x, W are bf16 tiles; accumulation and bias/ReLU epilogue are f32.
# ----------------------------------------------------------------------------
def _linear_kernel(x_ref, w_ref, b_ref, o_ref, acc_ref, *, apply_relu):
    k = pl.program_id(2)

    @pl.when(k == 0)
    def _():
        acc_ref[...] = jnp.zeros_like(acc_ref)

    acc_ref[...] += jnp.dot(
        x_ref[...], w_ref[...], preferred_element_type=jnp.float32
    )

    @pl.when(k == pl.num_programs(2) - 1)
    def _():
        out = acc_ref[...] + b_ref[...]
        if apply_relu:
            out = jnp.maximum(out, 0.0)
        o_ref[...] = out.astype(o_ref.dtype)


def pallas_linear(x, w, b, *, relu, tk, tn=2048, tm_cap=256):
    """x: [M, K] (any float), w: [K, N] bf16, b: [1, N] f32  ->  [M, N] f32."""
    M, K = x.shape
    K2, N = w.shape
    assert K == K2 and K % tk == 0 and N % tn == 0

    # bf16 operands for the MXU + halved HBM weight traffic.
    x = x.astype(jnp.bfloat16)
    w = w.astype(jnp.bfloat16)
    b = b.astype(jnp.float32).reshape(1, N)

    # One M tile covers all ROIs (padded to a multiple of 16 for bf16 sublane
    # packing) so the weights stream exactly once; cap tm for huge ROI counts.
    if M <= tm_cap:
        tm = max(16, ((M + 15) // 16) * 16)
    else:
        tm = tm_cap
    Mp = ((M + tm - 1) // tm) * tm
    if Mp != M:
        x = jnp.pad(x, ((0, Mp - M), (0, 0)))

    cost = pl.CostEstimate(
        flops=2 * Mp * K * N,
        transcendentals=0,
        bytes_accessed=int(Mp * K * 2 + K * N * 2 + N * 4 + Mp * N * 4),
    )

    kernel = functools.partial(_linear_kernel, apply_relu=relu)
    out = pl.pallas_call(
        kernel,
        out_shape=jax.ShapeDtypeStruct((Mp, N), jnp.float32),
        grid_spec=pltpu.PrefetchScalarGridSpec(
            num_scalar_prefetch=0,
            grid=(Mp // tm, N // tn, K // tk),
            in_specs=[
                pl.BlockSpec((tm, tk), lambda i, j, k: (i, k)),
                pl.BlockSpec((tk, tn), lambda i, j, k: (k, j)),
                pl.BlockSpec((1, tn), lambda i, j, k: (0, j)),
            ],
            out_specs=pl.BlockSpec((tm, tn), lambda i, j, k: (i, j)),
            scratch_shapes=[pltpu.VMEM((tm, tn), jnp.float32)],
        ),
        compiler_params=pltpu.CompilerParams(
            dimension_semantics=("parallel", "parallel", "arbitrary"),
            vmem_limit_bytes=48 * 1024 * 1024,
        ),
        cost_estimate=cost,
    )(x, w, b)
    return out[:M]


# ----------------------------------------------------------------------------
# ROI Align pooler (single scale), matching torchvision/maskrcnn-benchmark
# semantics (aligned=False).  Channels-last gather so every bilinear sample
# reads 512 contiguous channels.
# TODO(synk): ROI-Align gather stays in JAX glue; only the FC head is a kernel.
# ----------------------------------------------------------------------------
def roi_align_nhwc(features_nhwc, rois, *, output_size=7,
                   spatial_scale=1.0 / 16.0, sampling_ratio=2):
    """features_nhwc: [N, H, W, C]; rois: [R, 5] = (batch_idx, x1, y1, x2, y2).

    Returns pooled features in NCHW order [R, C, output_size, output_size].
    """
    N, H, W, C = features_nhwc.shape
    ph = pw = output_size
    sg = sampling_ratio

    batch_idx = rois[:, 0].astype(jnp.int32)
    x1 = rois[:, 1] * spatial_scale
    y1 = rois[:, 2] * spatial_scale
    x2 = rois[:, 3] * spatial_scale
    y2 = rois[:, 4] * spatial_scale
    roi_w = jnp.maximum(x2 - x1, 1.0)
    roi_h = jnp.maximum(y2 - y1, 1.0)
    bin_w = roi_w / pw
    bin_h = roi_h / ph

    # per-roi sample coordinates (separable in y / x)
    frac = (jnp.arange(sg, dtype=jnp.float32) + 0.5) / sg           # [sg]
    py = jnp.arange(ph, dtype=jnp.float32)                          # [ph]
    px = jnp.arange(pw, dtype=jnp.float32)                          # [pw]
    ys = y1[:, None] + ((py[None, :, None] + frac[None, None, :])
                        .reshape(1, ph * sg)) * bin_h[:, None]      # [R, ph*sg]
    xs = x1[:, None] + ((px[None, :, None] + frac[None, None, :])
                        .reshape(1, pw * sg)) * bin_w[:, None]      # [R, pw*sg]

    def one_roi(b, ys_r, xs_r):
        feat = features_nhwc[b]                                     # [H, W, C]
        valid_y = (ys_r >= -1.0) & (ys_r <= H)
        valid_x = (xs_r >= -1.0) & (xs_r <= W)
        y = jnp.clip(ys_r, 0.0, H - 1.0)
        x = jnp.clip(xs_r, 0.0, W - 1.0)
        y0 = jnp.floor(y).astype(jnp.int32)
        x0 = jnp.floor(x).astype(jnp.int32)
        y1i = jnp.minimum(y0 + 1, H - 1)
        x1i = jnp.minimum(x0 + 1, W - 1)
        ly = y - y0.astype(jnp.float32)
        lx = x - x0.astype(jnp.float32)

        fy0 = feat[y0]                                              # [Py, W, C]
        fy1 = feat[y1i]
        v00 = fy0[:, x0]                                            # [Py, Px, C]
        v01 = fy0[:, x1i]
        v10 = fy1[:, x0]
        v11 = fy1[:, x1i]

        wy1 = ly[:, None, None]
        wy0 = 1.0 - wy1
        wx1 = lx[None, :, None]
        wx0 = 1.0 - wx1
        val = wy0 * (wx0 * v00 + wx1 * v01) + wy1 * (wx0 * v10 + wx1 * v11)
        mask = (valid_y[:, None, None] & valid_x[None, :, None]).astype(val.dtype)
        return val * mask                                           # [Py, Px, C]

    samples = jax.vmap(one_roi)(batch_idx, ys, xs)                  # [R,Py,Px,C]
    R = rois.shape[0]
    samples = samples.reshape(R, ph, sg, pw, sg, C)
    pooled = samples.mean(axis=(2, 4))                              # [R, ph, pw, C]
    return jnp.transpose(pooled, (0, 3, 1, 2))                      # [R, C, 7, 7]


# ----------------------------------------------------------------------------
# VGG16FC67ROIFeatureExtractor forward
# ----------------------------------------------------------------------------
def vgg16_fc67_roi_forward(x, rois, params):
    # channels-last once so the pooler's gathers are lane-dense
    x_nhwc = jnp.transpose(x, (0, 2, 3, 1))                         # [N,H,W,512]
    pooled = roi_align_nhwc(x_nhwc, rois, output_size=7,
                            spatial_scale=1.0 / 16.0,
                            sampling_ratio=2)                       # [R,512,7,7]
    flat = pooled.reshape(pooled.shape[0], -1)                      # [R, 25088]
    # Linear(25088->4096) + ReLU ; K = 25088 = 1792 * 14
    h = pallas_linear(flat, params["w1"], params["b1"], relu=True, tk=1792)
    # Dropout (eval) -> identity
    # Linear(4096->4096) + ReLU ; K = 4096 = 2048 * 2
    out = pallas_linear(h, params["w2"], params["b2"], relu=True, tk=2048)
    # Dropout (eval) -> identity
    return out                                                      # [R, 4096]


def init_params(key):
    # matches nn.init.normal_(weight, 0, 0.01); bias = 0
    # weights stored transposed [K, N] and in bf16 (streamed weights dominate
    # HBM traffic for this skinny-M head); biases stay f32.
    k1, k2 = jax.random.split(key)
    in_dim = 512 * 7 * 7
    hid = 4096
    w1 = 0.01 * jax.random.normal(k1, (in_dim, hid), dtype=jnp.float32)
    w2 = 0.01 * jax.random.normal(k2, (hid, hid), dtype=jnp.float32)
    return {
        "w1": w1.astype(jnp.bfloat16),
        "b1": jnp.zeros((1, hid), dtype=jnp.float32),
        "w2": w2.astype(jnp.bfloat16),
        "b2": jnp.zeros((1, hid), dtype=jnp.float32),
    }


if __name__ == "__main__":
    key = jax.random.PRNGKey(0)
    kx, kp = jax.random.split(key)

    # small backbone feature map (in_channels must be 512 per the module assert)
    N, C, H, W = 2, 512, 16, 16
    x = jax.random.normal(kx, (N, C, H, W), dtype=jnp.float32)

    # proposals as (batch_idx, x1, y1, x2, y2) in image coordinates (scale 1/16)
    rois = jnp.array(
        [
            [0, 0.0, 0.0, 112.0, 112.0],
            [0, 32.0, 48.0, 200.0, 180.0],
            [0, 10.0, 10.0, 60.0, 90.0],
            [1, 0.0, 0.0, 255.0, 255.0],
            [1, 100.0, 20.0, 240.0, 200.0],
            [1, 5.0, 5.0, 120.0, 64.0],
        ],
        dtype=jnp.float32,
    )

    params = init_params(kp)
    out = vgg16_fc67_roi_forward(x, rois, params)
    out = jax.block_until_ready(out)
    assert out.shape == (rois.shape[0], 4096), out.shape
    assert bool(jnp.all(jnp.isfinite(out)))
    print("KERNEL_OK")
</pallas_src>

<mosaic_0001>
module attributes {stable_mosaic.version = 11 : i64} {
  func.func @_linear_kernel(%arg0: i32, %arg1: i32, %arg2: i32, %arg3: memref<16x1792xbf16, #tpu.memory_space<vmem>>, %arg4: memref<1792x2048xbf16, #tpu.memory_space<vmem>>, %arg5: memref<1x2048xf32, #tpu.memory_space<vmem>>, %arg6: memref<16x2048xf32, #tpu.memory_space<vmem>>, %arg7: memref<16x2048xf32, #tpu.memory_space<vmem>>) attributes {dimension_semantics = [#tpu.dimension_semantics<parallel>, #tpu.dimension_semantics<parallel>, #tpu.dimension_semantics<arbitrary>], iteration_bounds = array<i64: 1, 2, 14>, scalar_prefetch = 0 : i64, scratch_operands = 1 : i64, tpu.core_type = #tpu.core_type<tc>, window_params = [{transform_indices = @transform_0, window_bounds = array<i64: 16, 1792>}, {transform_indices = @transform_1, window_bounds = array<i64: 1792, 2048>}, {transform_indices = @transform_2, window_bounds = array<i64: 1, 2048>}, {transform_indices = @transform_3, window_bounds = array<i64: 16, 2048>}]} {
    %c0_i32 = arith.constant 0 : i32
    %0 = arith.cmpi eq, %arg2, %c0_i32 : i32
    %1 = arith.extui %0 : i1 to i32
    %c0_i32_0 = arith.constant 0 : i32
    %2 = arith.cmpi ne, %1, %c0_i32_0 : i32
    scf.if %2 {
      %cst_9 = arith.constant 0.000000e+00 : f32
      %12 = vector.broadcast %cst_9 : f32 to vector<16x2048xf32>
      %c0_10 = arith.constant 0 : index
      %c0_11 = arith.constant 0 : index
      %13 = vector.load %arg7[%c0_10, %c0_11] : memref<16x2048xf32, #tpu.memory_space<vmem>>, vector<16x2048xf32>
      tpu.vector_store %arg7[%c0_10, %c0_11], %12 {strides = array<i32>} : memref<16x2048xf32, #tpu.memory_space<vmem>>, vector<16x2048xf32>,
    } else {
    }
    %c0 = arith.constant 0 : index
    %c0_1 = arith.constant 0 : index
    %3 = vector.load %arg7[%c0, %c0_1] : memref<16x2048xf32, #tpu.memory_space<vmem>>, vector<16x2048xf32>
    %c0_2 = arith.constant 0 : index
    %c0_3 = arith.constant 0 : index
    %4 = vector.load %arg3[%c0_2, %c0_3] : memref<16x1792xbf16, #tpu.memory_space<vmem>>, vector<16x1792xbf16>
    %c0_4 = arith.constant 0 : index
    %c0_5 = arith.constant 0 : index
    %5 = vector.load %arg4[%c0_4, %c0_5] : memref<1792x2048xbf16, #tpu.memory_space<vmem>>, vector<1792x2048xbf16>
    %cst = arith.constant dense<0.000000e+00> : vector<16x2048xf32>
    %6 = tpu.matmul %4, %5, %cst {dimension_numbers = #tpu.dot_dimension_numbers<[1], [0], [0], [1], [0, 0, 1, 1], [], []>} : vector<16x1792xbf16>, vector<1792x2048xbf16>, vector<16x2048xf32> -> vector<16x2048xf32>
    %7 = arith.addf %3, %6 : vector<16x2048xf32>
    %c0_6 = arith.constant 0 : index
    %c0_7 = arith.constant 0 : index
    %8 = vector.load %arg7[%c0_6, %c0_7] : memref<16x2048xf32, #tpu.memory_space<vmem>>, vector<16x2048xf32>
    tpu.vector_store %arg7[%c0_6, %c0_7], %7 {strides = array<i32>} : memref<16x2048xf32, #tpu.memory_space<vmem>>, vector<16x2048xf32>,
    %c13_i32 = arith.constant 13 : i32
    %9 = arith.cmpi eq, %arg2, %c13_i32 : i32
    %10 = arith.extui %9 : i1 to i32
    %c0_i32_8 = arith.constant 0 : i32
    %11 = arith.cmpi ne, %10, %c0_i32_8 : i32
    scf.if %11 {
      %c0_9 = arith.constant 0 : index
      %c0_10 = arith.constant 0 : index
      %12 = vector.load %arg7[%c0_9, %c0_10] : memref<16x2048xf32, #tpu.memory_space<vmem>>, vector<16x2048xf32>
      %c0_11 = arith.constant 0 : index
      %c0_12 = arith.constant 0 : index
      %13 = vector.load %arg5[%c0_11, %c0_12] : memref<1x2048xf32, #tpu.memory_space<vmem>>, vector<1x2048xf32>
      %14 = vector.broadcast %13 : vector<1x2048xf32> to vector<16x2048xf32>
      %15 = arith.addf %12, %14 : vector<16x2048xf32>
      %cst_13 = arith.constant 0.000000e+00 : f32
      %16 = vector.broadcast %cst_13 : f32 to vector<16x2048xf32>
      %17 = arith.maximumf %15, %16 : vector<16x2048xf32>
      %c0_14 = arith.constant 0 : index
      %c0_15 = arith.constant 0 : index
      %18 = vector.load %arg6[%c0_14, %c0_15] : memref<16x2048xf32, #tpu.memory_space<vmem>>, vector<16x2048xf32>
      tpu.vector_store %arg6[%c0_14, %c0_15], %17 {strides = array<i32>} : memref<16x2048xf32, #tpu.memory_space<vmem>>, vector<16x2048xf32>,
    } else {
    }
    return
  }
  func.func @transform_0(%arg0: i32, %arg1: i32, %arg2: i32) -> (i32, i32) {
    %c0_i32 = arith.constant 0 : i32
    return %arg0, %arg2 : i32, i32
  }
  func.func @transform_1(%arg0: i32, %arg1: i32, %arg2: i32) -> (i32, i32) {
    %c0_i32 = arith.constant 0 : i32
    return %arg2, %arg1 : i32, i32
  }
  func.func @transform_2(%arg0: i32, %arg1: i32, %arg2: i32) -> (i32, i32) {
    %c0_i32 = arith.constant 0 : i32
    %c0_i32_0 = arith.constant 0 : i32
    return %c0_i32, %arg1 : i32, i32
  }
  func.func @transform_3(%arg0: i32, %arg1: i32, %arg2: i32) -> (i32, i32) {
    %c0_i32 = arith.constant 0 : i32
    return %arg0, %arg1 : i32, i32
  }
}

</mosaic_0001>

<llo_original>
// kernel: tpu_custom_call.1
$region0: #{tpu_custom_call.1}
  #allocation0 [shape = 'u32[]', space=smem, size = 0x4, offset = 0x4, fixed_abs, tag = 'smem constant byte address 0x4 - core index']
  #allocation1 [shape = 'u32[144,128]{1,0:T(1,128)}', space=vmem, size = 0x12000, scoped, tag = 'internal scratch']
  #allocation2 [shape = 'f32[16,2048]{1,0:T(8,128)}', space=vmem, size = 0x20000, scoped, tag = 'scratch operand']
  %s0 = inlined_call_operand.hbm [shape: bf16[16,25088], index: 0, kind: input, shape index: {}]
  %s1 = inlined_call_operand.hbm [shape: bf16[25088,4096], index: 1, kind: input, shape index: {}]
  %s2 = inlined_call_operand.hbm [shape: f32[1,4096], index: 2, kind: input, shape index: {}]
  %s3 = inlined_call_operand.hbm [shape: f32[16,4096], index: 3, kind: output, shape index: {}]
  %s4 = sld [smem:[#allocation0]]
  $region65: #{tpu_custom_call.1} parent=0
    _
  %s6 = ssub.s32 1, %s4
  %s7 = scalar_select 0, %s6, %s4
  $region1: #{tpu_custom_call.1} parent=0
    #allocation3 [shape = 'u8[114688]{0}', space=vmem, size = 0x1c000, scoped, tag = 'input window, operand 0']
    #allocation4 [shape = 's32[2]{0}', space=sflag, size = 0x8, scoped, tag = 'scoped memory for tpu_custom_call.1']
    #allocation5 [shape = 's32[2]{0}', space=sflag, size = 0x8, scoped, tag = 'scoped memory for tpu_custom_call.1']
    #allocation6 [shape = 'u8[14680064]{0}', space=vmem, size = 0xe00000, scoped, tag = 'input window, operand 1']
    #allocation7 [shape = 's32[2]{0}', space=sflag, size = 0x8, scoped, tag = 'scoped memory for tpu_custom_call.1']
    #allocation8 [shape = 'u8[16384]{0}', space=vmem, size = 0x4000, scoped, tag = 'input window, operand 2']
    #allocation9 [shape = 'u8[262144]{0}', space=vmem, size = 0x40000, scoped, tag = 'output window, operand 0']
    %8 = vsyncpa [#allocation4], 0
    %s9 = scalar_lea.sflag [#allocation4], 1
    %10 = vsyncpa %s9, 0
    %11 = vsyncpa [#allocation7], 0
    %s12 = scalar_lea.sflag [#allocation7], 1
    %13 = vsyncpa %s12, 0
    %14 = vsyncpa [#allocation5], 0
    %s15 = scalar_lea.sflag [#allocation5], 1
    %16 = vsyncpa %s15, 0
    loop: start=0, step=1, limit=30
    $region2: #{tpu_custom_call.1} parent=1 // loop_pre_header
      _
    $region3: #{tpu_custom_call.1} parent=1 // loop_header
      %s18 = sphi 0, %s22
      %p19 = scmp.ge.s32.totalorder %s18, 30
      %s25 = sphi 0, %s44
      %s26 = sphi 0, %s40
      %s27 = sphi 0, %s36
      %s28 = sphi 0, %s25
      %s29 = sphi 0, %s26
      %s30 = sphi 0, %s27
      %s31 = sphi 0, %s28
      %s32 = sphi 0, %s29
      %s33 = sphi 0, %s30
      %s49 = sphi 0, %s51
      %s52 = sphi 0, %s49
      %s53 = sphi 0, %s52
      %s69 = sphi 0, %s53
      %s77 = sphi 0, %s79
      %s80 = sphi 0, %s77
      %s81 = sphi 0, %s80
      %s97 = sphi 0, %s81
      %s103 = sphi 0, %s105
      %s106 = sphi 0, %s103
      %s107 = sphi 0, %s106
      %s123 = sphi 0, %s107
      %s131 = sphi 0, %s133
      %s134 = sphi 0, %s131
      %s135 = sphi 0, %s134
      %s151 = sphi 0, %s135
    $region4: #{tpu_custom_call.1} parent=1 // loop_header_branch
      %21 = sbr.rel (%p19) target = $region8
    $region5: #{tpu_custom_call.1} parent=1 // loop_body
      %s23 = ssub.s32 %s18, 1
      %s24 = ssub.s32 %s18, 2
      %s34 = sadd.s32 1, %s27
      %p35 = scmp.ge.s32.totalorder %s34, 14
      %s36 = scalar_select %p35, 0, %s34
      %s37 = sadd.s32 1, %s26
      %s38 = scalar_select %p35, %s37, %s26
      %p39 = scmp.ge.s32.totalorder %s38, 2
      %s40 = scalar_select %p39, 0, %s38
      %s41 = sadd.s32 1, %s25
      %s42 = scalar_select %p39, %s41, %s25
      %p43 = scmp.ge.s32.totalorder %s42, 1
      %s44 = scalar_select %p43, 0, %s42
      %s45 = ssub.s32 %s25, %s44
      %s46 = ssub.s32 %s27, %s36
      %s47 = sor.u32 %s45, %s46
      %p48 = scmp.eq.s32.totalorder %s47, 0
      %s50 = sadd.s32 %s49, 1
      %s51 = scalar_select %p48, %s49, %s50
      %p54 = pneg %p48
      %p55 = scmp.eq.s32.totalorder %s18, 27
      %p56 = por %p54, %p55
      %p57 = scmp.ne.s32.totalorder %s49, %s52
      %p58 = scmp.eq.s32.totalorder %s18, 0
      %p59 = por %p57, %p58
      %p60 = scmp.ne.s32.totalorder %s49, %s52
      %p61 = scmp.eq.s32.totalorder %s23, 27
      %p62 = por %p60, %p61
      %p63 = scmp.ne.s32.totalorder %s52, %s53
      %p64 = scmp.eq.s32.totalorder %s23, 0
      %p65 = por %p63, %p64
      %p66 = scmp.ne.s32.totalorder %s52, %s53
      %p67 = scmp.eq.s32.totalorder %s24, 27
      %p68 = por %p66, %p67
      %p70 = scmp.ne.s32.totalorder %s53, %s69
      %p71 = scmp.eq.s32.totalorder %s24, 0
      %p72 = por %p70, %p71
      %s73 = ssub.s32 %s27, %s36
      %s74 = ssub.s32 %s26, %s40
      %s75 = sor.u32 %s73, %s74
      %p76 = scmp.eq.s32.totalorder %s75, 0
      %s78 = sadd.s32 %s77, 1
      %s79 = scalar_select %p76, %s77, %s78
      %p82 = pneg %p76
      %p83 = scmp.eq.s32.totalorder %s18, 27
      %p84 = por %p82, %p83
      %p85 = scmp.ne.s32.totalorder %s77, %s80
      %p86 = scmp.eq.s32.totalorder %s18, 0
      %p87 = por %p85, %p86
      %p88 = scmp.ne.s32.totalorder %s77, %s80
      %p89 = scmp.eq.s32.totalorder %s23, 27
      %p90 = por %p88, %p89
      %p91 = scmp.ne.s32.totalorder %s80, %s81
      %p92 = scmp.eq.s32.totalorder %s23, 0
      %p93 = por %p91, %p92
      %p94 = scmp.ne.s32.totalorder %s80, %s81
      %p95 = scmp.eq.s32.totalorder %s24, 27
      %p96 = por %p94, %p95
      %p98 = scmp.ne.s32.totalorder %s81, %s97
      %p99 = scmp.eq.s32.totalorder %s24, 0
      %p100 = por %p98, %p99
      %s101 = ssub.s32 %s26, %s40
      %p102 = scmp.eq.s32.totalorder %s101, 0
      %s104 = sadd.s32 %s103, 1
      %s105 = scalar_select %p102, %s103, %s104
      %p108 = pneg %p102
      %p109 = scmp.eq.s32.totalorder %s18, 27
      %p110 = por %p108, %p109
      %p111 = scmp.ne.s32.totalorder %s103, %s106
      %p112 = scmp.eq.s32.totalorder %s18, 0
      %p113 = por %p111, %p112
      %p114 = scmp.ne.s32.totalorder %s103, %s106
      %p115 = scmp.eq.s32.totalorder %s23, 27
      %p116 = por %p114, %p115
      %p117 = scmp.ne.s32.totalorder %s106, %s107
      %p118 = scmp.eq.s32.totalorder %s23, 0
      %p119 = por %p117, %p118
      %p120 = scmp.ne.s32.totalorder %s106, %s107
      %p121 = scmp.eq.s32.totalorder %s24, 27
      %p122 = por %p120, %p121
      %p124 = scmp.ne.s32.totalorder %s107, %s123
      %p125 = scmp.eq.s32.totalorder %s24, 0
      %p126 = por %p124, %p125
      %s127 = ssub.s32 %s25, %s44
      %s128 = ssub.s32 %s26, %s40
      %s129 = sor.u32 %s127, %s128
      %p130 = scmp.eq.s32.totalorder %s129, 0
      %s132 = sadd.s32 %s131, 1
      %s133 = scalar_select %p130, %s131, %s132
      %p136 = pneg %p130
      %p137 = scmp.eq.s32.totalorder %s18, 27
      %p138 = por %p136, %p137
      %p139 = scmp.ne.s32.totalorder %s131, %s134
      %p140 = scmp.eq.s32.totalorder %s18, 0
      %p141 = por %p139, %p140
      %p142 = scmp.ne.s32.totalorder %s131, %s134
      %p143 = scmp.eq.s32.totalorder %s23, 27
      %p144 = por %p142, %p143
      %p145 = scmp.ne.s32.totalorder %s134, %s135
      %p146 = scmp.eq.s32.totalorder %s23, 0
      %p147 = por %p145, %p146
      %p148 = scmp.ne.s32.totalorder %s134, %s135
      %p149 = scmp.eq.s32.totalorder %s24, 27
      %p150 = por %p148, %p149
      %p152 = scmp.ne.s32.totalorder %s135, %s151
      %p153 = scmp.eq.s32.totalorder %s24, 0
      %p154 = por %p152, %p153
      %p155 = scmp.le.s32.totalorder 1, %s18
      %p156 = scmp.lt.s32.totalorder %s18, 29
      %p157 = pnand %p155, %p156
      %p158 = pneg %p157
      // Predicated region
      $region9: #{tpu_custom_call.1} parent=5 // pred_check
        _
      $region10: #{tpu_custom_call.1} parent=5 // pred_check_branch
        %160 = sbr.rel (%p157) target = $region12
      $region11: #{tpu_custom_call.1} parent=5 // pred_region
        %s161 = ssub.s32 %s18, 1
      $region12: #{tpu_custom_call.1} parent=5 // pred_fallthru
        _
      %p162 = scmp.lt.s32.totalorder %s18, 28
      // Predicated region
      $region13: #{tpu_custom_call.1} parent=5 // pred_check
        %p163 = pneg %p162
      $region14: #{tpu_custom_call.1} parent=5 // pred_check_branch
        %165 = sbr.rel (%p163) target = $region16
      $region15: #{tpu_custom_call.1} parent=5 // pred_region
        // Predicated region
        $region17: #{tpu_custom_call.1} parent=15 // pred_check
          %p166 = pneg %p59
        $region18: #{tpu_custom_call.1} parent=15 // pred_check_branch
          %168 = sbr.rel (%p166) target = $region20
        $region19: #{tpu_custom_call.1} parent=15 // pred_region
          %s169 = sand.u32 %s49, 1
          %s170 = scalar_lea.sflag [#allocation4], %s169
          %s171 = sand.u32 %s49, 1
          %s172 = smul.addr %s171, 112
          %s173 = scalar_lea.vmem [#allocation3], %s172
          %s174 = smul.u32 2, %s25
          %s175 = smul.u32 14, %s27
          %s177 = ssub.s32 1792, 1792
          %178 = vsyncadd %s170, %s177
          %s179 = smul.addr %s174, 196
          %s180 = sadd.s32 %s175, %s179
          %s181 = smul.addr %s180, 64
          %s182 = scalar_lea.hbm %s0, %s181
          %s183 = sshll.u32 %s173, 4
          %s184 = int_to_ptr.vmem [resolvable:$true] %s183
          %189 = dma.hbm_to_vmem [thread:$0]  %s182, 1792, %s184, %s170, 12544, 896, 56
        $region20: #{tpu_custom_call.1} parent=15 // pred_fallthru
          _
        // Predicated region
        $region21: #{tpu_custom_call.1} parent=15 // pred_check
          %p190 = pneg %p87
        $region22: #{tpu_custom_call.1} parent=15 // pred_check_branch
          %192 = sbr.rel (%p190) target = $region24
        $region23: #{tpu_custom_call.1} parent=15 // pred_region
          %s193 = sand.u32 %s18, 1
          %s194 = scalar_lea.sflag [#allocation7], %s193
          %s195 = sand.u32 %s77, 1
          %s196 = smul.addr %s195, 14336
          %s197 = scalar_lea.vmem [#allocation6], %s196
          %s198 = smul.u32 224, %s27
          %s199 = smul.u32 16, %s26
          %s201 = ssub.s32 229376, 229376
          %202 = vsyncadd %s194, %s201
          %s203 = smul.addr %s198, 32
          %s204 = sadd.s32 %s199, %s203
          %s205 = smul.addr %s204, 64
          %s206 = scalar_lea.hbm %s1, %s205
          %s207 = sshll.u32 %s197, 4
          %s208 = int_to_ptr.vmem [resolvable:$true] %s207
          %213 = dma.hbm_to_vmem [thread:$0]  %s206, 229376, %s208, %s194, 2048, 1024, 64
        $region24: #{tpu_custom_call.1} parent=15 // pred_fallthru
          _
        // Predicated region
        $region25: #{tpu_custom_call.1} parent=15 // pred_check
          %p214 = pneg %p113
        $region26: #{tpu_custom_call.1} parent=15 // pred_check_branch
          %216 = sbr.rel (%p214) target = $region28
        $region27: #{tpu_custom_call.1} parent=15 // pred_region
          %s217 = sand.u32 %s18, 1
          %s218 = scalar_lea.sflag [#allocation7], %s217
          %s219 = sand.u32 %s103, 1
          %s220 = smul.addr %s219, 16
          %s221 = scalar_lea.vmem [#allocation8], %s220
          %s222 = smul.u32 16, %s26
          %s224 = ssub.s32 256, 256
          %225 = vsyncadd %s218, %s224
          %s226 = smul.addr %s222, 16
          %s227 = scalar_lea.hbm %s2, %s226
          %s229 = sshll.u32 %s221, 4
          %s230 = int_to_ptr.vmem [resolvable:$true] %s229
          %232 = dma.hbm_to_vmem [thread:$0]  %s227, 256, %s230, %s218
        $region28: #{tpu_custom_call.1} parent=15 // pred_fallthru
          _
      $region16: #{tpu_custom_call.1} parent=5 // pred_fallthru
        _
      %p233 = scmp.le.s32.totalorder 1, %s18
      %p234 = scmp.lt.s32.totalorder %s18, 29
      %p235 = pnand %p233, %p234
      %p236 = pneg %p235
      // Predicated region
      $region29: #{tpu_custom_call.1} parent=5 // pred_check
        _
      $region30: #{tpu_custom_call.1} parent=5 // pred_check_branch
        %238 = sbr.rel (%p235) target = $region32
      $region31: #{tpu_custom_call.1} parent=5 // pred_region
        %s239 = ssub.s32 %s18, 1
        %s240 = sand.u32 %s52, 1
        %s241 = scalar_lea.sflag [#allocation4], %s240
        %s242 = sand.u32 %s52, 1
        %s243 = smul.addr %s242, 112
        %s244 = scalar_lea.vmem [#allocation3], %s243
        // Predicated region
        $region33: #{tpu_custom_call.1} parent=31 // pred_check
          %p245 = pneg %p65
        $region34: #{tpu_custom_call.1} parent=31 // pred_check_branch
          %247 = sbr.rel (%p245) target = $region36
        $region35: #{tpu_custom_call.1} parent=31 // pred_region
          %248 = dma.done %s241, 1792
        $region36: #{tpu_custom_call.1} parent=31 // pred_fallthru
          _
        %s249 = sand.u32 %s23, 1
        %s250 = scalar_lea.sflag [#allocation7], %s249
        %s251 = sand.u32 %s80, 1
        %s252 = smul.addr %s251, 14336
        %s253 = scalar_lea.vmem [#allocation6], %s252
        // Predicated region
        $region37: #{tpu_custom_call.1} parent=31 // pred_check
          %p254 = pneg %p93
        $region38: #{tpu_custom_call.1} parent=31 // pred_check_branch
          %256 = sbr.rel (%p254) target = $region40
        $region39: #{tpu_custom_call.1} parent=31 // pred_region
          %257 = dma.done %s250, 229376
        $region40: #{tpu_custom_call.1} parent=31 // pred_fallthru
          _
        %s258 = sand.u32 %s23, 1
        %s259 = scalar_lea.sflag [#allocation7], %s258
        %s260 = sand.u32 %s106, 1
        %s261 = smul.addr %s260, 16
        %s262 = scalar_lea.vmem [#allocation8], %s261
        // Predicated region
        $region41: #{tpu_custom_call.1} parent=31 // pred_check
          %p263 = pneg %p119
        $region42: #{tpu_custom_call.1} parent=31 // pred_check_branch
          %265 = sbr.rel (%p263) target = $region44
        $region43: #{tpu_custom_call.1} parent=31 // pred_region
          %266 = dma.done %s259, 256
        $region44: #{tpu_custom_call.1} parent=31 // pred_fallthru
          _
        %s267 = sand.u32 %s52, 1
        %s268 = scalar_lea.sflag [#allocation4], %s267
        %s269 = sand.u32 %s52, 1
        %s270 = smul.addr %s269, 112
        %s271 = scalar_lea.vmem [#allocation3], %s270
        %p272 = pneg %p65
        %p273 = pneg %p62
        %s274 = sand.u32 %s23, 1
        %s275 = scalar_lea.sflag [#allocation7], %s274
        %s276 = sand.u32 %s80, 1
        %s277 = smul.addr %s276, 14336
        %s278 = scalar_lea.vmem [#allocation6], %s277
        %p279 = pneg %p93
        %p280 = pneg %p90
        %s281 = sand.u32 %s23, 1
        %s282 = scalar_lea.sflag [#allocation7], %s281
        %s283 = sand.u32 %s106, 1
        %s284 = smul.addr %s283, 16
        %s285 = scalar_lea.vmem [#allocation8], %s284
        %p286 = pneg %p119
        %p287 = pneg %p116
        %p288 = pneg %p147
        %p289 = pneg %p144
        %s290 = sand.u32 %s134, 1
        %s291 = scalar_lea.sflag [#allocation5], %s290
        %s292 = sand.u32 %s134, 1
        %s293 = smul.addr %s292, 256
        %s294 = scalar_lea.vmem [#allocation9], %s293
        %s295 = smul.u32 2, %s28
        %s296 = smul.u32 14, %s30
        %s297 = smul.u32 224, %s30
        %s298 = smul.u32 16, %s29
        %s299 = smul.u32 16, %s29
        %s300 = smul.u32 2, %s28
        %s301 = smul.u32 16, %s29
        %p302 = scmp.eq.s32.totalorder %s30, 0
        // Predicated region
        $region45: #{tpu_custom_call.1} parent=31 // pred_check
          %p303 = pneg %p302
        $region46: #{tpu_custom_call.1} parent=31 // pred_check_branch
          %305 = sbr.rel (%p303) target = $region48
        $region47: #{tpu_custom_call.1} parent=31 // pred_region
          %306 = vst [vmem:[#allocation2] sm:$0xff] 0.0
          %307 = vst [vmem:[#allocation2 + $0x8] sm:$0xff] 0.0
          %308 = vst [vmem:[#allocation2 + $0x10] sm:$0xff] 0.0
          %309 = vst [vmem:[#allocation2 + $0x18] sm:$0xff] 0.0
          %310 = vst [vmem:[#allocation2 + $0x20] sm:$0xff] 0.0
          %311 = vst [vmem:[#allocation2 + $0x28] sm:$0xff] 0.0
          %312 = vst [vmem:[#allocation2 + $0x30] sm:$0xff] 0.0
          %313 = vst [vmem:[#allocation2 + $0x38] sm:$0xff] 0.0
          %314 = vst [vmem:[#allocation2 + $0x40] sm:$0xff] 0.0
          %315 = vst [vmem:[#allocation2 + $0x48] sm:$0xff] 0.0
          %316 = vst [vmem:[#allocation2 + $0x50] sm:$0xff] 0.0
          %317 = vst [vmem:[#allocation2 + $0x58] sm:$0xff] 0.0
          %318 = vst [vmem:[#allocation2 + $0x60] sm:$0xff] 0.0
          %319 = vst [vmem:[#allocation2 + $0x68] sm:$0xff] 0.0
          %320 = vst [vmem:[#allocation2 + $0x70] sm:$0xff] 0.0
          %321 = vst [vmem:[#allocation2 + $0x78] sm:$0xff] 0.0
          %322 = vst [vmem:[#allocation2 + $0x80] sm:$0xff] 0.0
          %323 = vst [vmem:[#allocation2 + $0x88] sm:$0xff] 0.0
          %324 = vst [vmem:[#allocation2 + $0x90] sm:$0xff] 0.0
          %325 = vst [vmem:[#allocation2 + $0x98] sm:$0xff] 0.0
          %326 = vst [vmem:[#allocation2 + $0xa0] sm:$0xff] 0.0
          %327 = vst [vmem:[#allocation2 + $0xa8] sm:$0xff] 0.0
          %328 = vst [vmem:[#allocation2 + $0xb0] sm:$0xff] 0.0
          %329 = vst [vmem:[#allocation2 + $0xb8] sm:$0xff] 0.0
          %330 = vst [vmem:[#allocation2 + $0xc0] sm:$0xff] 0.0
          %331 = vst [vmem:[#allocation2 + $0xc8] sm:$0xff] 0.0
          %332 = vst [vmem:[#allocation2 + $0xd0] sm:$0xff] 0.0
          %333 = vst [vmem:[#allocation2 + $0xd8] sm:$0xff] 0.0
          %334 = vst [vmem:[#allocation2 + $0xe0] sm:$0xff] 0.0
          %335 = vst [vmem:[#allocation2 + $0xe8] sm:$0xff] 0.0
          %336 = vst [vmem:[#allocation2 + $0xf0] sm:$0xff] 0.0
          %337 = vst [vmem:[#allocation2 + $0xf8] sm:$0xff] 0.0
        $region48: #{tpu_custom_call.1} parent=31 // pred_fallthru
          _
        %v338 = vld [vmem:[#allocation2] sm:$0xff]
        %v339 = vld [vmem:[#allocation2 + $0x8] sm:$0xff]
        %v340 = vld [vmem:[#allocation2 + $0x10] sm:$0xff]
        %v341 = vld [vmem:[#allocation2 + $0x18] sm:$0xff]
        %v342 = vld [vmem:[#allocation2 + $0x20] sm:$0xff]
        %v343 = vld [vmem:[#allocation2 + $0x28] sm:$0xff]
        %v344 = vld [vmem:[#allocation2 + $0x30] sm:$0xff]
        %v345 = vld [vmem:[#allocation2 + $0x38] sm:$0xff]
        %v346 = vld [vmem:[#allocation2 + $0x40] sm:$0xff]
        %v347 = vld [vmem:[#allocation2 + $0x48] sm:$0xff]
        %v348 = vld [vmem:[#allocation2 + $0x50] sm:$0xff]
        %v349 = vld [vmem:[#allocation2 + $0x58] sm:$0xff]
        %v350 = vld [vmem:[#allocation2 + $0x60] sm:$0xff]
        %v351 = vld [vmem:[#allocation2 + $0x68] sm:$0xff]
        %v352 = vld [vmem:[#allocation2 + $0x70] sm:$0xff]
        %v353 = vld [vmem:[#allocation2 + $0x78] sm:$0xff]
        %v354 = vld [vmem:[#allocation2 + $0x80] sm:$0xff]
        %v355 = vld [vmem:[#allocation2 + $0x88] sm:$0xff]
        %v356 = vld [vmem:[#allocation2 + $0x90] sm:$0xff]
        %v357 = vld [vmem:[#allocation2 + $0x98] sm:$0xff]
        %v358 = vld [vmem:[#allocation2 + $0xa0] sm:$0xff]
        %v359 = vld [vmem:[#allocation2 + $0xa8] sm:$0xff]
        %v360 = vld [vmem:[#allocation2 + $0xb0] sm:$0xff]
        %v361 = vld [vmem:[#allocation2 + $0xb8] sm:$0xff]
        %v362 = vld [vmem:[#allocation2 + $0xc0] sm:$0xff]
        %v363 = vld [vmem:[#allocation2 + $0xc8] sm:$0xff]
        %v364 = vld [vmem:[#allocation2 + $0xd0] sm:$0xff]
        %v365 = vld [vmem:[#allocation2 + $0xd8] sm:$0xff]
        %v366 = vld [vmem:[#allocation2 + $0xe0] sm:$0xff]
        %v367 = vld [vmem:[#allocation2 + $0xe8] sm:$0xff]
        %v368 = vld [vmem:[#allocation2 + $0xf0] sm:$0xff]
        %v369 = vld [vmem:[#allocation2 + $0xf8] sm:$0xff]
        %v370 = vld [vmem:[%s244] sm:$0xff]
        %v371 = vld [vmem:[%s244 + $0x8] sm:$0xff]
        %v372 = vld [vmem:[%s244 + $0x10] sm:$0xff]
        %v373 = vld [vmem:[%s244 + $0x18] sm:$0xff]
        %v374 = vld [vmem:[%s244 + $0x20] sm:$0xff]
        %v375 = vld [vmem:[%s244 + $0x28] sm:$0xff]
        %v376 = vld [vmem:[%s244 + $0x30] sm:$0xff]
        %v377 = vld [vmem:[%s244 + $0x38] sm:$0xff]
        %v378 = vld [vmem:[%s244 + $0x40] sm:$0xff]
        %v379 = vld [vmem:[%s244 + $0x48] sm:$0xff]
        %v380 = vld [vmem:[%s244 + $0x50] sm:$0xff]
        %v381 = vld [vmem:[%s244 + $0x58] sm:$0xff]
        %v382 = vld [vmem:[%s244 + $0x60] sm:$0xff]
        %v383 = vld [vmem:[%s244 + $0x68] sm:$0xff]
        %v384 = vld [vmem:[%s253] sm:$0xff]
        %v385 = vld [vmem:[%s253 + $0x8] sm:$0xff]
        %v386 = vld [vmem:[%s253 + $0x10] sm:$0xff]
        %v387 = vld [vmem:[%s253 + $0x18] sm:$0xff]
        %v388 = vld [vmem:[%s253 + $0x20] sm:$0xff]
        %v389 = vld [vmem:[%s253 + $0x28] sm:$0xff]
        %v390 = vld [vmem:[%s253 + $0x30] sm:$0xff]
        %v391 = vld [vmem:[%s253 + $0x38] sm:$0xff]
        %v392 = vld [vmem:[%s253 + $0x40] sm:$0xff]
        %v393 = vld [vmem:[%s253 + $0x48] sm:$0xff]
        %v394 = vld [vmem:[%s253 + $0x50] sm:$0xff]
        %v395 = vld [vmem:[%s253 + $0x58] sm:$0xff]
        %v396 = vld [vmem:[%s253 + $0x60] sm:$0xff]
        %v397 = vld [vmem:[%s253 + $0x68] sm:$0xff]
        %v398 = vld [vmem:[%s253 + $0x70] sm:$0xff]
        %v399 = vld [vmem:[%s253 + $0x78] sm:$0xff]
        %v400 = vld [vmem:[%s253 + $0x80] sm:$0xff]
        %v401 = vld [vmem:[%s253 + $0x88] sm:$0xff]
        %v402 = vld [vmem:[%s253 + $0x90] sm:$0xff]
        %v403 = vld [vmem:[%s253 + $0x98] sm:$0xff]
        %v404 = vld [vmem:[%s253 + $0xa0] sm:$0xff]
        %v405 = vld [vmem:[%s253 + $0xa8] sm:$0xff]
        %v406 = vld [vmem:[%s253 + $0xb0] sm:$0xff]
        %v407 = vld [vmem:[%s253 + $0xb8] sm:$0xff]
        %v408 = vld [vmem:[%s253 + $0xc0] sm:$0xff]
        %v409 = vld [vmem:[%s253 + $0xc8] sm:$0xff]
        %v410 = vld [vmem:[%s253 + $0xd0] sm:$0xff]
        %v411 = vld [vmem:[%s253 + $0xd8] sm:$0xff]
        %v412 = vld [vmem:[%s253 + $0xe0] sm:$0xff]
        %v413 = vld [vmem:[%s253 + $0xe8] sm:$0xff]
        %v414 = vld [vmem:[%s253 + $0xf0] sm:$0xff]
        %v415 = vld [vmem:[%s253 + $0xf8] sm:$0xff]
        %v416 = vld [vmem:[%s253 + $0x100] sm:$0xff]
        %v417 = vld [vmem:[%s253 + $0x108] sm:$0xff]
        %v418 = vld [vmem:[%s253 + $0x110] sm:$0xff]
        %v419 = vld [vmem:[%s253 + $0x118] sm:$0xff]
        %v420 = vld [vmem:[%s253 + $0x120] sm:$0xff]
        %v421 = vld [vmem:[%s253 + $0x128] sm:$0xff]
        %v422 = vld [vmem:[%s253 + $0x130] sm:$0xff]
        %v423 = vld [vmem:[%s253 + $0x138] sm:$0xff]
        %v424 = vld [vmem:[%s253 + $0x140] sm:$0xff]
        %v425 = vld [vmem:[%s253 + $0x148] sm:$0xff]
        %v426 = vld [vmem:[%s253 + $0x150] sm:$0xff]
        %v427 = vld [vmem:[%s253 + $0x158] sm:$0xff]
        %v428 = vld [vmem:[%s253 + $0x160] sm:$0xff]
        %v429 = vld [vmem:[%s253 + $0x168] sm:$0xff]
        %v430 = vld [vmem:[%s253 + $0x170] sm:$0xff]
        %v431 = vld [vmem:[%s253 + $0x178] sm:$0xff]
        %v432 = vld [vmem:[%s253 + $0x180] sm:$0xff]
        %v433 = vld [vmem:[%s253 + $0x188] sm:$0xff]
        %v434 = vld [vmem:[%s253 + $0x190] sm:$0xff]
        %v435 = vld [vmem:[%s253 + $0x198] sm:$0xff]
        %v436 = vld [vmem:[%s253 + $0x1a0] sm:$0xff]
        %v437 = vld [vmem:[%s253 + $0x1a8] sm:$0xff]
        %v438 = vld [vmem:[%s253 + $0x1b0] sm:$0xff]
        %v439 = vld [vmem:[%s253 + $0x1b8] sm:$0xff]
        %v440 = vld [vmem:[%s253 + $0x1c0] sm:$0xff]
        %v441 = vld [vmem:[%s253 + $0x1c8] sm:$0xff]
        %v442 = vld [vmem:[%s253 + $0x1d0] sm:$0xff]
        %v443 = vld [vmem:[%s253 + $0x1d8] sm:$0xff]
        %v444 = vld [vmem:[%s253 + $0x1e0] sm:$0xff]
        %v445 = vld [vmem:[%s253 + $0x1e8] sm:$0xff]
        %v446 = vld [vmem:[%s253 + $0x1f0] sm:$0xff]
        %v447 = vld [vmem:[%s253 + $0x1f8] sm:$0xff]
        %v448 = vld [vmem:[%s253 + $0x200] sm:$0xff]
        %v449 = vld [vmem:[%s253 + $0x208] sm:$0xff]
        %v450 = vld [vmem:[%s253 + $0x210] sm:$0xff]
        %v451 = vld [vmem:[%s253 + $0x218] sm:$0xff]
        %v452 = vld [vmem:[%s253 + $0x220] sm:$0xff]
        %v453 = vld [vmem:[%s253 + $0x228] sm:$0xff]
        %v454 = vld [vmem:[%s253 + $0x230] sm:$0xff]
        %v455 = vld [vmem:[%s253 + $0x238] sm:$0xff]
        %v456 = vld [vmem:[%s253 + $0x240] sm:$0xff]
        %v457 = vld [vmem:[%s253 + $0x248] sm:$0xff]
        %v458 = vld [vmem:[%s253 + $0x250] sm:$0xff]
        %v459 = vld [vmem:[%s253 + $0x258] sm:$0xff]
        %v460 = vld [vmem:[%s253 + $0x260] sm:$0xff]
        %v461 = vld [vmem:[%s253 + $0x268] sm:$0xff]
        %v462 = vld [vmem:[%s253 + $0x270] sm:$0xff]
        %v463 = vld [vmem:[%s253 + $0x278] sm:$0xff]
        %v464 = vld [vmem:[%s253 + $0x280] sm:$0xff]
        %v465 = vld [vmem:[%s253 + $0x288] sm:$0xff]
        %v466 = vld [vmem:[%s253 + $0x290] sm:$0xff]
        %v467 = vld [vmem:[%s253 + $0x298] sm:$0xff]
        %v468 = vld [vmem:[%s253 + $0x2a0] sm:$0xff]
        %v469 = vld [vmem:[%s253 + $0x2a8] sm:$0xff]
        %v470 = vld [vmem:[%s253 + $0x2b0] sm:$0xff]
        %v471 = vld [vmem:[%s253 + $0x2b8] sm:$0xff]
        %v472 = vld [vmem:[%s253 + $0x2c0] sm:$0xff]
        %v473 = vld [vmem:[%s253 + $0x2c8] sm:$0xff]
        %v474 = vld [vmem:[%s253 + $0x2d0] sm:$0xff]
        %v475 = vld [vmem:[%s253 + $0x2d8] sm:$0xff]
        %v476 = vld [vmem:[%s253 + $0x2e0] sm:$0xff]
        %v477 = vld [vmem:[%s253 + $0x2e8] sm:$0xff]
        %v478 = vld [vmem:[%s253 + $0x2f0] sm:$0xff]
        %v479 = vld [vmem:[%s253 + $0x2f8] sm:$0xff]
        %v480 = vld [vmem:[%s253 + $0x300] sm:$0xff]
        %v481 = vld [vmem:[%s253 + $0x308] sm:$0xff]
        %v482 = vld [vmem:[%s253 + $0x310] sm:$0xff]
        %v483 = vld [vmem:[%s253 + $0x318] sm:$0xff]
        %v484 = vld [vmem:[%s253 + $0x320] sm:$0xff]
        %v485 = vld [vmem:[%s253 + $0x328] sm:$0xff]
        %v486 = vld [vmem:[%s253 + $0x330] sm:$0xff]
        %v487 = vld [vmem:[%s253 + $0x338] sm:$0xff]
        %v488 = vld [vmem:[%s253 + $0x340] sm:$0xff]
        %v489 = vld [vmem:[%s253 + $0x348] sm:$0xff]
        %v490 = vld [vmem:[%s253 + $0x350] sm:$0xff]
        %v491 = vld [vmem:[%s253 + $0x358] sm:$0xff]
        %v492 = vld [vmem:[%s253 + $0x360] sm:$0xff]
        %v493 = vld [vmem:[%s253 + $0x368] sm:$0xff]
        %v494 = vld [vmem:[%s253 + $0x370] sm:$0xff]
        %v495 = vld [vmem:[%s253 + $0x378] sm:$0xff]
        %v496 = vld [vmem:[%s253 + $0x380] sm:$0xff]
        %v497 = vld [vmem:[%s253 + $0x388] sm:$0xff]
        %v498 = vld [vmem:[%s253 + $0x390] sm:$0xff]
        %v499 = vld [vmem:[%s253 + $0x398] sm:$0xff]
        %v500 = vld [vmem:[%s253 + $0x3a0] sm:$0xff]
        %v501 = vld [vmem:[%s253 + $0x3a8] sm:$0xff]
        %v502 = vld [vmem:[%s253 + $0x3b0] sm:$0xff]
        %v503 = vld [vmem:[%s253 + $0x3b8] sm:$0xff]
        %v504 = vld [vmem:[%s253 + $0x3c0] sm:$0xff]
        %v505 = vld [vmem:[%s253 + $0x3c8] sm:$0xff]
        %v506 = vld [vmem:[%s253 + $0x3d0] sm:$0xff]
        %v507 = vld [vmem:[%s253 + $0x3d8] sm:$0xff]
        %v508 = vld [vmem:[%s253 + $0x3e0] sm:$0xff]
        %v509 = vld [vmem:[%s253 + $0x3e8] sm:$0xff]
        %v510 = vld [vmem:[%s253 + $0x3f0] sm:$0xff]
        %v511 = vld [vmem:[%s253 + $0x3f8] sm:$0xff]
        %v512 = vld [vmem:[%s253 + $0x400] sm:$0xff]
        %v513 = vld [vmem:[%s253 + $0x408] sm:$0xff]
        %v514 = vld [vmem:[%s253 + $0x410] sm:$0xff]
        %v515 = vld [vmem:[%s253 + $0x418] sm:$0xff]
        %v516 = vld [vmem:[%s253 + $0x420] sm:$0xff]
        %v517 = vld [vmem:[%s253 + $0x428] sm:$0xff]
        %v518 = vld [vmem:[%s253 + $0x430] sm:$0xff]
        %v519 = vld [vmem:[%s253 + $0x438] sm:$0xff]
        %v520 = vld [vmem:[%s253 + $0x440] sm:$0xff]
        %v521 = vld [vmem:[%s253 + $0x448] sm:$0xff]
        %v522 = vld [vmem:[%s253 + $0x450] sm:$0xff]
        %v523 = vld [vmem:[%s253 + $0x458] sm:$0xff]
        %v524 = vld [vmem:[%s253 + $0x460] sm:$0xff]
        %v525 = vld [vmem:[%s253 + $0x468] sm:$0xff]
        %v526 = vld [vmem:[%s253 + $0x470] sm:$0xff]
        %v527 = vld [vmem:[%s253 + $0x478] sm:$0xff]
        %v528 = vld [vmem:[%s253 + $0x480] sm:$0xff]
        %v529 = vld [vmem:[%s253 + $0x488] sm:$0xff]
        %v530 = vld [vmem:[%s253 + $0x490] sm:$0xff]
        %v531 = vld [vmem:[%s253 + $0x498] sm:$0xff]
        %v532 = vld [vmem:[%s253 + $0x4a0] sm:$0xff]
        %v533 = vld [vmem:[%s253 + $0x4a8] sm:$0xff]
        %v534 = vld [vmem:[%s253 + $0x4b0] sm:$0xff]
        %v535 = vld [vmem:[%s253 + $0x4b8] sm:$0xff]
        %v536 = vld [vmem:[%s253 + $0x4c0] sm:$0xff]
        %v537 = vld [vmem:[%s253 + $0x4c8] sm:$0xff]
        %v538 = vld [vmem:[%s253 + $0x4d0] sm:$0xff]
        %v539 = vld [vmem:[%s253 + $0x4d8] sm:$0xff]
        %v540 = vld [vmem:[%s253 + $0x4e0] sm:$0xff]
        %v541 = vld [vmem:[%s253 + $0x4e8] sm:$0xff]
        %v542 = vld [vmem:[%s253 + $0x4f0] sm:$0xff]
        %v543 = vld [vmem:[%s253 + $0x4f8] sm:$0xff]
        %v544 = vld [vmem:[%s253 + $0x500] sm:$0xff]
        %v545 = vld [vmem:[%s253 + $0x508] sm:$0xff]
        %v546 = vld [vmem:[%s253 + $0x510] sm:$0xff]
        %v547 = vld [vmem:[%s253 + $0x518] sm:$0xff]
        %v548 = vld [vmem:[%s253 + $0x520] sm:$0xff]
        %v549 = vld [vmem:[%s253 + $0x528] sm:$0xff]
        %v550 = vld [vmem:[%s253 + $0x530] sm:$0xff]
        %v551 = vld [vmem:[%s253 + $0x538] sm:$0xff]
        %v552 = vld [vmem:[%s253 + $0x540] sm:$0xff]
        %v553 = vld [vmem:[%s253 + $0x548] sm:$0xff]
        %v554 = vld [vmem:[%s253 + $0x550] sm:$0xff]
        %v555 = vld [vmem:[%s253 + $0x558] sm:$0xff]
        %v556 = vld [vmem:[%s253 + $0x560] sm:$0xff]
        %v557 = vld [vmem:[%s253 + $0x568] sm:$0xff]
        %v558 = vld [vmem:[%s253 + $0x570] sm:$0xff]
        %v559 = vld [vmem:[%s253 + $0x578] sm:$0xff]
        %v560 = vld [vmem:[%s253 + $0x580] sm:$0xff]
        %v561 = vld [vmem:[%s253 + $0x588] sm:$0xff]
        %v562 = vld [vmem:[%s253 + $0x590] sm:$0xff]
        %v563 = vld [vmem:[%s253 + $0x598] sm:$0xff]
        %v564 = vld [vmem:[%s253 + $0x5a0] sm:$0xff]
        %v565 = vld [vmem:[%s253 + $0x5a8] sm:$0xff]
        %v566 = vld [vmem:[%s253 + $0x5b0] sm:$0xff]
        %v567 = vld [vmem:[%s253 + $0x5b8] sm:$0xff]
        %v568 = vld [vmem:[%s253 + $0x5c0] sm:$0xff]
        %v569 = vld [vmem:[%s253 + $0x5c8] sm:$0xff]
        %v570 = vld [vmem:[%s253 + $0x5d0] sm:$0xff]
        %v571 = vld [vmem:[%s253 + $0x5d8] sm:$0xff]
        %v572 = vld [vmem:[%s253 + $0x5e0] sm:$0xff]
        %v573 = vld [vmem:[%s253 + $0x5e8] sm:$0xff]
        %v574 = vld [vmem:[%s253 + $0x5f0] sm:$0xff]
        %v575 = vld [vmem:[%s253 + $0x5f8] sm:$0xff]
        %v576 = vld [vmem:[%s253 + $0x600] sm:$0xff]
        %v577 = vld [vmem:[%s253 + $0x608] sm:$0xff]
        %v578 = vld [vmem:[%s253 + $0x610] sm:$0xff]
        %v579 = vld [vmem:[%s253 + $0x618] sm:$0xff]
        %v580 = vld [vmem:[%s253 + $0x620] sm:$0xff]
        %v581 = vld [vmem:[%s253 + $0x628] sm:$0xff]
        %v582 = vld [vmem:[%s253 + $0x630] sm:$0xff]
        %v583 = vld [vmem:[%s253 + $0x638] sm:$0xff]
        %v584 = vld [vmem:[%s253 + $0x640] sm:$0xff]
        %v585 = vld [vmem:[%s253 + $0x648] sm:$0xff]
        %v586 = vld [vmem:[%s253 + $0x650] sm:$0xff]
        %v587 = vld [vmem:[%s253 + $0x658] sm:$0xff]
        %v588 = vld [vmem:[%s253 + $0x660] sm:$0xff]
        %v589 = vld [vmem:[%s253 + $0x668] sm:$0xff]
        %v590 = vld [vmem:[%s253 + $0x670] sm:$0xff]
        %v591 = vld [vmem:[%s253 + $0x678] sm:$0xff]
        %v592 = vld [vmem:[%s253 + $0x680] sm:$0xff]
        %v593 = vld [vmem:[%s253 + $0x688] sm:$0xff]
        %v594 = vld [vmem:[%s253 + $0x690] sm:$0xff]
        %v595 = vld [vmem:[%s253 + $0x698] sm:$0xff]
        %v596 = vld [vmem:[%s253 + $0x6a0] sm:$0xff]
        %v597 = vld [vmem:[%s253 + $0x6a8] sm:$0xff]
        %v598 = vld [vmem:[%s253 + $0x6b0] sm:$0xff]
        %v599 = vld [vmem:[%s253 + $0x6b8] sm:$0xff]
        %v600 = vld [vmem:[%s253 + $0x6c0] sm:$0xff]
        %v601 = vld [vmem:[%s253 + $0x6c8] sm:$0xff]
        %v602 = vld [vmem:[%s253 + $0x6d0] sm:$0xff]
        %v603 = vld [vmem:[%s253 + $0x6d8] sm:$0xff]
        %v604 = vld [vmem:[%s253 + $0x6e0] sm:$0xff]
        %v605 = vld [vmem:[%s253 + $0x6e8] sm:$0xff]
        %v606 = vld [vmem:[%s253 + $0x6f0] sm:$0xff]
        %v607 = vld [vmem:[%s253 + $0x6f8] sm:$0xff]
        %v608 = vld [vmem:[%s253 + $0x700] sm:$0xff]
        %v609 = vld [vmem:[%s253 + $0x708] sm:$0xff]
        %v610 = vld [vmem:[%s253 + $0x710] sm:$0xff]
        %v611 = vld [vmem:[%s253 + $0x718] sm:$0xff]
        %v612 = vld [vmem:[%s253 + $0x720] sm:$0xff]
        %v613 = vld [vmem:[%s253 + $0x728] sm:$0xff]
        %v614 = vld [vmem:[%s253 + $0x730] sm:$0xff]
        %v615 = vld [vmem:[%s253 + $0x738] sm:$0xff]
        %v616 = vld [vmem:[%s253 + $0x740] sm:$0xff]
        %v617 = vld [vmem:[%s253 + $0x748] sm:$0xff]
        %v618 = vld [vmem:[%s253 + $0x750] sm:$0xff]
        %v619 = vld [vmem:[%s253 + $0x758] sm:$0xff]
        %v620 = vld [vmem:[%s253 + $0x760] sm:$0xff]
        %v621 = vld [vmem:[%s253 + $0x768] sm:$0xff]
        %v622 = vld [vmem:[%s253 + $0x770] sm:$0xff]
        %v623 = vld [vmem:[%s253 + $0x778] sm:$0xff]
        %v624 = vld [vmem:[%s253 + $0x780] sm:$0xff]
        %v625 = vld [vmem:[%s253 + $0x788] sm:$0xff]
        %v626 = vld [vmem:[%s253 + $0x790] sm:$0xff]
        %v627 = vld [vmem:[%s253 + $0x798] sm:$0xff]
        %v628 = vld [vmem:[%s253 + $0x7a0] sm:$0xff]
        %v629 = vld [vmem:[%s253 + $0x7a8] sm:$0xff]
        %v630 = vld [vmem:[%s253 + $0x7b0] sm:$0xff]
        %v631 = vld [vmem:[%s253 + $0x7b8] sm:$0xff]
        %v632 = vld [vmem:[%s253 + $0x7c0] sm:$0xff]
        %v633 = vld [vmem:[%s253 + $0x7c8] sm:$0xff]
        %v634 = vld [vmem:[%s253 + $0x7d0] sm:$0xff]
        %v635 = vld [vmem:[%s253 + $0x7d8] sm:$0xff]
        %v636 = vld [vmem:[%s253 + $0x7e0] sm:$0xff]
        %v637 = vld [vmem:[%s253 + $0x7e8] sm:$0xff]
        %v638 = vld [vmem:[%s253 + $0x7f0] sm:$0xff]
        %v639 = vld [vmem:[%s253 + $0x7f8] sm:$0xff]
        %v640 = vld [vmem:[%s253 + $0x800] sm:$0xff]
        %v641 = vld [vmem:[%s253 + $0x808] sm:$0xff]
        %v642 = vld [vmem:[%s253 + $0x810] sm:$0xff]
        %v643 = vld [vmem:[%s253 + $0x818] sm:$0xff]
        %v644 = vld [vmem:[%s253 + $0x820] sm:$0xff]
        %v645 = vld [vmem:[%s253 + $0x828] sm:$0xff]
        %v646 = vld [vmem:[%s253 + $0x830] sm:$0xff]
        %v647 = vld [vmem:[%s253 + $0x838] sm:$0xff]
        %v648 = vld [vmem:[%s253 + $0x840] sm:$0xff]
        %v649 = vld [vmem:[%s253 + $0x848] sm:$0xff]
        %v650 = vld [vmem:[%s253 + $0x850] sm:$0xff]
        %v651 = vld [vmem:[%s253 + $0x858] sm:$0xff]
        %v652 = vld [vmem:[%s253 + $0x860] sm:$0xff]
        %v653 = vld [vmem:[%s253 + $0x868] sm:$0xff]
        %v654 = vld [vmem:[%s253 + $0x870] sm:$0xff]
        %v655 = vld [vmem:[%s253 + $0x878] sm:$0xff]
        %v656 = vld [vmem:[%s253 + $0x880] sm:$0xff]
        %v657 = vld [vmem:[%s253 + $0x888] sm:$0xff]
        %v658 = vld [vmem:[%s253 + $0x890] sm:$0xff]
        %v659 = vld [vmem:[%s253 + $0x898] sm:$0xff]
        %v660 = vld [vmem:[%s253 + $0x8a0] sm:$0xff]
        %v661 = vld [vmem:[%s253 + $0x8a8] sm:$0xff]
        %v662 = vld [vmem:[%s253 + $0x8b0] sm:$0xff]
        %v663 = vld [vmem:[%s253 + $0x8b8] sm:$0xff]
        %v664 = vld [vmem:[%s253 + $0x8c0] sm:$0xff]
        %v665 = vld [vmem:[%s253 + $0x8c8] sm:$0xff]
        %v666 = vld [vmem:[%s253 + $0x8d0] sm:$0xff]
        %v667 = vld [vmem:[%s253 + $0x8d8] sm:$0xff]
        %v668 = vld [vmem:[%s253 + $0x8e0] sm:$0xff]
        %v669 = vld [vmem:[%s253 + $0x8e8] sm:$0xff]
        %v670 = vld [vmem:[%s253 + $0x8f0] sm:$0xff]
        %v671 = vld [vmem:[%s253 + $0x8f8] sm:$0xff]
        %v672 = vld [vmem:[%s253 + $0x900] sm:$0xff]
        %v673 = vld [vmem:[%s253 + $0x908] sm:$0xff]
        %v674 = vld [vmem:[%s253 + $0x910] sm:$0xff]
        %v675 = vld [vmem:[%s253 + $0x918] sm:$0xff]
        %v676 = vld [vmem:[%s253 + $0x920] sm:$0xff]
        %v677 = vld [vmem:[%s253 + $0x928] sm:$0xff]
        %v678 = vld [vmem:[%s253 + $0x930] sm:$0xff]
        %v679 = vld [vmem:[%s253 + $0x938] sm:$0xff]
        %v680 = vld [vmem:[%s253 + $0x940] sm:$0xff]
        %v681 = vld [vmem:[%s253 + $0x948] sm:$0xff]
        %v682 = vld [vmem:[%s253 + $0x950] sm:$0xff]
        %v683 = vld [vmem:[%s253 + $0x958] sm:$0xff]
        %v684 = vld [vmem:[%s253 + $0x960] sm:$0xff]
        %v685 = vld [vmem:[%s253 + $0x968] sm:$0xff]
        %v686 = vld [vmem:[%s253 + $0x970] sm:$0xff]
        %v687 = vld [vmem:[%s253 + $0x978] sm:$0xff]
        %v688 = vld [vmem:[%s253 + $0x980] sm:$0xff]
        %v689 = vld [vmem:[%s253 + $0x988] sm:$0xff]
        %v690 = vld [vmem:[%s253 + $0x990] sm:$0xff]
        %v691 = vld [vmem:[%s253 + $0x998] sm:$0xff]
        %v692 = vld [vmem:[%s253 + $0x9a0] sm:$0xff]
        %v693 = vld [vmem:[%s253 + $0x9a8] sm:$0xff]
        %v694 = vld [vmem:[%s253 + $0x9b0] sm:$0xff]
        %v695 = vld [vmem:[%s253 + $0x9b8] sm:$0xff]
        %v696 = vld [vmem:[%s253 + $0x9c0] sm:$0xff]
        %v697 = vld [vmem:[%s253 + $0x9c8] sm:$0xff]
        %v698 = vld [vmem:[%s253 + $0x9d0] sm:$0xff]
        %v699 = vld [vmem:[%s253 + $0x9d8] sm:$0xff]
        %v700 = vld [vmem:[%s253 + $0x9e0] sm:$0xff]
        %v701 = vld [vmem:[%s253 + $0x9e8] sm:$0xff]
        %v702 = vld [vmem:[%s253 + $0x9f0] sm:$0xff]
        %v703 = vld [vmem:[%s253 + $0x9f8] sm:$0xff]
        %v704 = vld [vmem:[%s253 + $0xa00] sm:$0xff]
        %v705 = vld [vmem:[%s253 + $0xa08] sm:$0xff]
        %v706 = vld [vmem:[%s253 + $0xa10] sm:$0xff]
        %v707 = vld [vmem:[%s253 + $0xa18] sm:$0xff]
        %v708 = vld [vmem:[%s253 + $0xa20] sm:$0xff]
        %v709 = vld [vmem:[%s253 + $0xa28] sm:$0xff]
        %v710 = vld [vmem:[%s253 + $0xa30] sm:$0xff]
        %v711 = vld [vmem:[%s253 + $0xa38] sm:$0xff]
        %v712 = vld [vmem:[%s253 + $0xa40] sm:$0xff]
        %v713 = vld [vmem:[%s253 + $0xa48] sm:$0xff]
        %v714 = vld [vmem:[%s253 + $0xa50] sm:$0xff]
        %v715 = vld [vmem:[%s253 + $0xa58] sm:$0xff]
        %v716 = vld [vmem:[%s253 + $0xa60] sm:$0xff]
        %v717 = vld [vmem:[%s253 + $0xa68] sm:$0xff]
        %v718 = vld [vmem:[%s253 + $0xa70] sm:$0xff]
        %v719 = vld [vmem:[%s253 + $0xa78] sm:$0xff]
        %v720 = vld [vmem:[%s253 + $0xa80] sm:$0xff]
        %v721 = vld [vmem:[%s253 + $0xa88] sm:$0xff]
        %v722 = vld [vmem:[%s253 + $0xa90] sm:$0xff]
        %v723 = vld [vmem:[%s253 + $0xa98] sm:$0xff]
        %v724 = vld [vmem:[%s253 + $0xaa0] sm:$0xff]
        %v725 = vld [vmem:[%s253 + $0xaa8] sm:$0xff]
        %v726 = vld [vmem:[%s253 + $0xab0] sm:$0xff]
        %v727 = vld [vmem:[%s253 + $0xab8] sm:$0xff]
        %v728 = vld [vmem:[%s253 + $0xac0] sm:$0xff]
        %v729 = vld [vmem:[%s253 + $0xac8] sm:$0xff]
        %v730 = vld [vmem:[%s253 + $0xad0] sm:$0xff]
        %v731 = vld [vmem:[%s253 + $0xad8] sm:$0xff]
        %v732 = vld [vmem:[%s253 + $0xae0] sm:$0xff]
        %v733 = vld [vmem:[%s253 + $0xae8] sm:$0xff]
        %v734 = vld [vmem:[%s253 + $0xaf0] sm:$0xff]
        %v735 = vld [vmem:[%s253 + $0xaf8] sm:$0xff]
        %v736 = vld [vmem:[%s253 + $0xb00] sm:$0xff]
        %v737 = vld [vmem:[%s253 + $0xb08] sm:$0xff]
        %v738 = vld [vmem:[%s253 + $0xb10] sm:$0xff]
        %v739 = vld [vmem:[%s253 + $0xb18] sm:$0xff]
        %v740 = vld [vmem:[%s253 + $0xb20] sm:$0xff]
        %v741 = vld [vmem:[%s253 + $0xb28] sm:$0xff]
        %v742 = vld [vmem:[%s253 + $0xb30] sm:$0xff]
        %v743 = vld [vmem:[%s253 + $0xb38] sm:$0xff]
        %v744 = vld [vmem:[%s253 + $0xb40] sm:$0xff]
        %v745 = vld [vmem:[%s253 + $0xb48] sm:$0xff]
        %v746 = vld [vmem:[%s253 + $0xb50] sm:$0xff]
        %v747 = vld [vmem:[%s253 + $0xb58] sm:$0xff]
        %v748 = vld [vmem:[%s253 + $0xb60] sm:$0xff]
        %v749 = vld [vmem:[%s253 + $0xb68] sm:$0xff]
        %v750 = vld [vmem:[%s253 + $0xb70] sm:$0xff]
        %v751 = vld [vmem:[%s253 + $0xb78] sm:$0xff]
        %v752 = vld [vmem:[%s253 + $0xb80] sm:$0xff]
        %v753 = vld [vmem:[%s253 + $0xb88] sm:$0xff]
        %v754 = vld [vmem:[%s253 + $0xb90] sm:$0xff]
        %v755 = vld [vmem:[%s253 + $0xb98] sm:$0xff]
        %v756 = vld [vmem:[%s253 + $0xba0] sm:$0xff]
        %v757 = vld [vmem:[%s253 + $0xba8] sm:$0xff]
        %v758 = vld [vmem:[%s253 + $0xbb0] sm:$0xff]
        %v759 = vld [vmem:[%s253 + $0xbb8] sm:$0xff]
        %v760 = vld [vmem:[%s253 + $0xbc0] sm:$0xff]
        %v761 = vld [vmem:[%s253 + $0xbc8] sm:$0xff]
        %v762 = vld [vmem:[%s253 + $0xbd0] sm:$0xff]
        %v763 = vld [vmem:[%s253 + $0xbd8] sm:$0xff]
        %v764 = vld [vmem:[%s253 + $0xbe0] sm:$0xff]
        %v765 = vld [vmem:[%s253 + $0xbe8] sm:$0xff]
        %v766 = vld [vmem:[%s253 + $0xbf0] sm:$0xff]
        %v767 = vld [vmem:[%s253 + $0xbf8] sm:$0xff]
        %v768 = vld [vmem:[%s253 + $0xc00] sm:$0xff]
        %v769 = vld [vmem:[%s253 + $0xc08] sm:$0xff]
        %v770 = vld [vmem:[%s253 + $0xc10] sm:$0xff]
        %v771 = vld [vmem:[%s253 + $0xc18] sm:$0xff]
        %v772 = vld [vmem:[%s253 + $0xc20] sm:$0xff]
        %v773 = vld [vmem:[%s253 + $0xc28] sm:$0xff]
        %v774 = vld [vmem:[%s253 + $0xc30] sm:$0xff]
        %v775 = vld [vmem:[%s253 + $0xc38] sm:$0xff]
        %v776 = vld [vmem:[%s253 + $0xc40] sm:$0xff]
        %v777 = vld [vmem:[%s253 + $0xc48] sm:$0xff]
        %v778 = vld [vmem:[%s253 + $0xc50] sm:$0xff]
        %v779 = vld [vmem:[%s253 + $0xc58] sm:$0xff]
        %v780 = vld [vmem:[%s253 + $0xc60] sm:$0xff]
        %v781 = vld [vmem:[%s253 + $0xc68] sm:$0xff]
        %v782 = vld [vmem:[%s253 + $0xc70] sm:$0xff]
        %v783 = vld [vmem:[%s253 + $0xc78] sm:$0xff]
        %v784 = vld [vmem:[%s253 + $0xc80] sm:$0xff]
        %v785 = vld [vmem:[%s253 + $0xc88] sm:$0xff]
        %v786 = vld [vmem:[%s253 + $0xc90] sm:$0xff]
        %v787 = vld [vmem:[%s253 + $0xc98] sm:$0xff]
        %v788 = vld [vmem:[%s253 + $0xca0] sm:$0xff]
        %v789 = vld [vmem:[%s253 + $0xca8] sm:$0xff]
        %v790 = vld [vmem:[%s253 + $0xcb0] sm:$0xff]
        %v791 = vld [vmem:[%s253 + $0xcb8] sm:$0xff]
        %v792 = vld [vmem:[%s253 + $0xcc0] sm:$0xff]
        %v793 = vld [vmem:[%s253 + $0xcc8] sm:$0xff]
        %v794 = vld [vmem:[%s253 + $0xcd0] sm:$0xff]
        %v795 = vld [vmem:[%s253 + $0xcd8] sm:$0xff]
        %v796 = vld [vmem:[%s253 + $0xce0] sm:$0xff]
        %v797 = vld [vmem:[%s253 + $0xce8] sm:$0xff]
        %v798 = vld [vmem:[%s253 + $0xcf0] sm:$0xff]
        %v799 = vld [vmem:[%s253 + $0xcf8] sm:$0xff]
        %v800 = vld [vmem:[%s253 + $0xd00] sm:$0xff]
        %v801 = vld [vmem:[%s253 + $0xd08] sm:$0xff]
        %v802 = vld [vmem:[%s253 + $0xd10] sm:$0xff]
        %v803 = vld [vmem:[%s253 + $0xd18] sm:$0xff]
        %v804 = vld [vmem:[%s253 + $0xd20] sm:$0xff]
        %v805 = vld [vmem:[%s253 + $0xd28] sm:$0xff]
        %v806 = vld [vmem:[%s253 + $0xd30] sm:$0xff]
        %v807 = vld [vmem:[%s253 + $0xd38] sm:$0xff]
        %v808 = vld [vmem:[%s253 + $0xd40] sm:$0xff]
        %v809 = vld [vmem:[%s253 + $0xd48] sm:$0xff]
        %v810 = vld [vmem:[%s253 + $0xd50] sm:$0xff]
        %v811 = vld [vmem:[%s253 + $0xd58] sm:$0xff]
        %v812 = vld [vmem:[%s253 + $0xd60] sm:$0xff]
        %v813 = vld [vmem:[%s253 + $0xd68] sm:$0xff]
        %v814 = vld [vmem:[%s253 + $0xd70] sm:$0xff]
        %v815 = vld [vmem:[%s253 + $0xd78] sm:$0xff]
        %v816 = vld [vmem:[%s253 + $0xd80] sm:$0xff]
        %v817 = vld [vmem:[%s253 + $0xd88] sm:$0xff]
        %v818 = vld [vmem:[%s253 + $0xd90] sm:$0xff]
        %v819 = vld [vmem:[%s253 + $0xd98] sm:$0xff]
        %v820 = vld [vmem:[%s253 + $0xda0] sm:$0xff]
        %v821 = vld [vmem:[%s253 + $0xda8] sm:$0xff]
        %v822 = vld [vmem:[%s253 + $0xdb0] sm:$0xff]
        %v823 = vld [vmem:[%s253 + $0xdb8] sm:$0xff]
        %v824 = vld [vmem:[%s253 + $0xdc0] sm:$0xff]
        %v825 = vld [vmem:[%s253 + $0xdc8] sm:$0xff]
        %v826 = vld [vmem:[%s253 + $0xdd0] sm:$0xff]
        %v827 = vld [vmem:[%s253 + $0xdd8] sm:$0xff]
        %v828 = vld [vmem:[%s253 + $0xde0] sm:$0xff]
        %v829 = vld [vmem:[%s253 + $0xde8] sm:$0xff]
        %v830 = vld [vmem:[%s253 + $0xdf0] sm:$0xff]
        %v831 = vld [vmem:[%s253 + $0xdf8] sm:$0xff]
        %v832 = vld [vmem:[%s253 + $0xe00] sm:$0xff]
        %v833 = vld [vmem:[%s253 + $0xe08] sm:$0xff]
        %v834 = vld [vmem:[%s253 + $0xe10] sm:$0xff]
        %v835 = vld [vmem:[%s253 + $0xe18] sm:$0xff]
        %v836 = vld [vmem:[%s253 + $0xe20] sm:$0xff]
        %v837 = vld [vmem:[%s253 + $0xe28] sm:$0xff]
        %v838 = vld [vmem:[%s253 + $0xe30] sm:$0xff]
        %v839 = vld [vmem:[%s253 + $0xe38] sm:$0xff]
        %v840 = vld [vmem:[%s253 + $0xe40] sm:$0xff]
        %v841 = vld [vmem:[%s253 + $0xe48] sm:$0xff]
        %v842 = vld [vmem:[%s253 + $0xe50] sm:$0xff]
        %v843 = vld [vmem:[%s253 + $0xe58] sm:$0xff]
        %v844 = vld [vmem:[%s253 + $0xe60] sm:$0xff]
        %v845 = vld [vmem:[%s253 + $0xe68] sm:$0xff]
        %v846 = vld [vmem:[%s253 + $0xe70] sm:$0xff]
        %v847 = vld [vmem:[%s253 + $0xe78] sm:$0xff]
        %v848 = vld [vmem:[%s253 + $0xe80] sm:$0xff]
        %v849 = vld [vmem:[%s253 + $0xe88] sm:$0xff]
        %v850 = vld [vmem:[%s253 + $0xe90] sm:$0xff]
        %v851 = vld [vmem:[%s253 + $0xe98] sm:$0xff]
        %v852 = vld [vmem:[%s253 + $0xea0] sm:$0xff]
        %v853 = vld [vmem:[%s253 + $0xea8] sm:$0xff]
        %v854 = vld [vmem:[%s253 + $0xeb0] sm:$0xff]
        %v855 = vld [vmem:[%s253 + $0xeb8] sm:$0xff]
        %v856 = vld [vmem:[%s253 + $0xec0] sm:$0xff]
        %v857 = vld [vmem:[%s253 + $0xec8] sm:$0xff]
        %v858 = vld [vmem:[%s253 + $0xed0] sm:$0xff]
        %v859 = vld [vmem:[%s253 + $0xed8] sm:$0xff]
        %v860 = vld [vmem:[%s253 + $0xee0] sm:$0xff]
        %v861 = vld [vmem:[%s253 + $0xee8] sm:$0xff]
        %v862 = vld [vmem:[%s253 + $0xef0] sm:$0xff]
        %v863 = vld [vmem:[%s253 + $0xef8] sm:$0xff]
        %v864 = vld [vmem:[%s253 + $0xf00] sm:$0xff]
        %v865 = vld [vmem:[%s253 + $0xf08] sm:$0xff]
        %v866 = vld [vmem:[%s253 + $0xf10] sm:$0xff]
        %v867 = vld [vmem:[%s253 + $0xf18] sm:$0xff]
        %v868 = vld [vmem:[%s253 + $0xf20] sm:$0xff]
        %v869 = vld [vmem:[%s253 + $0xf28] sm:$0xff]
        %v870 = vld [vmem:[%s253 + $0xf30] sm:$0xff]
        %v871 = vld [vmem:[%s253 + $0xf38] sm:$0xff]
        %v872 = vld [vmem:[%s253 + $0xf40] sm:$0xff]
        %v873 = vld [vmem:[%s253 + $0xf48] sm:$0xff]
        %v874 = vld [vmem:[%s253 + $0xf50] sm:$0xff]
        %v875 = vld [vmem:[%s253 + $0xf58] sm:$0xff]
        %v876 = vld [vmem:[%s253 + $0xf60] sm:$0xff]
        %v877 = vld [vmem:[%s253 + $0xf68] sm:$0xff]
        %v878 = vld [vmem:[%s253 + $0xf70] sm:$0xff]
        %v879 = vld [vmem:[%s253 + $0xf78] sm:$0xff]
        %v880 = vld [vmem:[%s253 + $0xf80] sm:$0xff]
        %v881 = vld [vmem:[%s253 + $0xf88] sm:$0xff]
        %v882 = vld [vmem:[%s253 + $0xf90] sm:$0xff]
        %v883 = vld [vmem:[%s253 + $0xf98] sm:$0xff]
        %v884 = vld [vmem:[%s253 + $0xfa0] sm:$0xff]
        %v885 = vld [vmem:[%s253 + $0xfa8] sm:$0xff]
        %v886 = vld [vmem:[%s253 + $0xfb0] sm:$0xff]
        %v887 = vld [vmem:[%s253 + $0xfb8] sm:$0xff]
        %v888 = vld [vmem:[%s253 + $0xfc0] sm:$0xff]
        %v889 = vld [vmem:[%s253 + $0xfc8] sm:$0xff]
        %v890 = vld [vmem:[%s253 + $0xfd0] sm:$0xff]
        %v891 = vld [vmem:[%s253 + $0xfd8] sm:$0xff]
        %v892 = vld [vmem:[%s253 + $0xfe0] sm:$0xff]
        %v893 = vld [vmem:[%s253 + $0xfe8] sm:$0xff]
        %v894 = vld [vmem:[%s253 + $0xff0] sm:$0xff]
        %v895 = vld [vmem:[%s253 + $0xff8] sm:$0xff]
        %v896 = vld [vmem:[%s253 + $0x1000] sm:$0xff]
        %v897 = vld [vmem:[%s253 + $0x1008] sm:$0xff]
        %v898 = vld [vmem:[%s253 + $0x1010] sm:$0xff]
        %v899 = vld [vmem:[%s253 + $0x1018] sm:$0xff]
        %v900 = vld [vmem:[%s253 + $0x1020] sm:$0xff]
        %v901 = vld [vmem:[%s253 + $0x1028] sm:$0xff]
        %v902 = vld [vmem:[%s253 + $0x1030] sm:$0xff]
        %v903 = vld [vmem:[%s253 + $0x1038] sm:$0xff]
        %v904 = vld [vmem:[%s253 + $0x1040] sm:$0xff]
        %v905 = vld [vmem:[%s253 + $0x1048] sm:$0xff]
        %v906 = vld [vmem:[%s253 + $0x1050] sm:$0xff]
        %v907 = vld [vmem:[%s253 + $0x1058] sm:$0xff]
        %v908 = vld [vmem:[%s253 + $0x1060] sm:$0xff]
        %v909 = vld [vmem:[%s253 + $0x1068] sm:$0xff]
        %v910 = vld [vmem:[%s253 + $0x1070] sm:$0xff]
        %v911 = vld [vmem:[%s253 + $0x1078] sm:$0xff]
        %v912 = vld [vmem:[%s253 + $0x1080] sm:$0xff]
        %v913 = vld [vmem:[%s253 + $0x1088] sm:$0xff]
        %v914 = vld [vmem:[%s253 + $0x1090] sm:$0xff]
        %v915 = vld [vmem:[%s253 + $0x1098] sm:$0xff]
        %v916 = vld [vmem:[%s253 + $0x10a0] sm:$0xff]
        %v917 = vld [vmem:[%s253 + $0x10a8] sm:$0xff]
        %v918 = vld [vmem:[%s253 + $0x10b0] sm:$0xff]
        %v919 = vld [vmem:[%s253 + $0x10b8] sm:$0xff]
        %v920 = vld [vmem:[%s253 + $0x10c0] sm:$0xff]
        %v921 = vld [vmem:[%s253 + $0x10c8] sm:$0xff]
        %v922 = vld [vmem:[%s253 + $0x10d0] sm:$0xff]
        %v923 = vld [vmem:[%s253 + $0x10d8] sm:$0xff]
        %v924 = vld [vmem:[%s253 + $0x10e0] sm:$0xff]
        %v925 = vld [vmem:[%s253 + $0x10e8] sm:$0xff]
        %v926 = vld [vmem:[%s253 + $0x10f0] sm:$0xff]
        %v927 = vld [vmem:[%s253 + $0x10f8] sm:$0xff]
        %v928 = vld [vmem:[%s253 + $0x1100] sm:$0xff]
        %v929 = vld [vmem:[%s253 + $0x1108] sm:$0xff]
        %v930 = vld [vmem:[%s253 + $0x1110] sm:$0xff]
        %v931 = vld [vmem:[%s253 + $0x1118] sm:$0xff]
        %v932 = vld [vmem:[%s253 + $0x1120] sm:$0xff]
        %v933 = vld [vmem:[%s253 + $0x1128] sm:$0xff]
        %v934 = vld [vmem:[%s253 + $0x1130] sm:$0xff]
        %v935 = vld [vmem:[%s253 + $0x1138] sm:$0xff]
        %v936 = vld [vmem:[%s253 + $0x1140] sm:$0xff]
        %v937 = vld [vmem:[%s253 + $0x1148] sm:$0xff]
        %v938 = vld [vmem:[%s253 + $0x1150] sm:$0xff]
        %v939 = vld [vmem:[%s253 + $0x1158] sm:$0xff]
        %v940 = vld [vmem:[%s253 + $0x1160] sm:$0xff]
        %v941 = vld [vmem:[%s253 + $0x1168] sm:$0xff]
        %v942 = vld [vmem:[%s253 + $0x1170] sm:$0xff]
        %v943 = vld [vmem:[%s253 + $0x1178] sm:$0xff]
        %v944 = vld [vmem:[%s253 + $0x1180] sm:$0xff]
        %v945 = vld [vmem:[%s253 + $0x1188] sm:$0xff]
        %v946 = vld [vmem:[%s253 + $0x1190] sm:$0xff]
        %v947 = vld [vmem:[%s253 + $0x1198] sm:$0xff]
        %v948 = vld [vmem:[%s253 + $0x11a0] sm:$0xff]
        %v949 = vld [vmem:[%s253 + $0x11a8] sm:$0xff]
        %v950 = vld [vmem:[%s253 + $0x11b0] sm:$0xff]
        %v951 = vld [vmem:[%s253 + $0x11b8] sm:$0xff]
        %v952 = vld [vmem:[%s253 + $0x11c0] sm:$0xff]
        %v953 = vld [vmem:[%s253 + $0x11c8] sm:$0xff]
        %v954 = vld [vmem:[%s253 + $0x11d0] sm:$0xff]
        %v955 = vld [vmem:[%s253 + $0x11d8] sm:$0xff]
        %v956 = vld [vmem:[%s253 + $0x11e0] sm:$0xff]
        %v957 = vld [vmem:[%s253 + $0x11e8] sm:$0xff]
        %v958 = vld [vmem:[%s253 + $0x11f0] sm:$0xff]
        %v959 = vld [vmem:[%s253 + $0x11f8] sm:$0xff]
        %v960 = vld [vmem:[%s253 + $0x1200] sm:$0xff]
        %v961 = vld [vmem:[%s253 + $0x1208] sm:$0xff]
        %v962 = vld [vmem:[%s253 + $0x1210] sm:$0xff]
        %v963 = vld [vmem:[%s253 + $0x1218] sm:$0xff]
        %v964 = vld [vmem:[%s253 + $0x1220] sm:$0xff]
        %v965 = vld [vmem:[%s253 + $0x1228] sm:$0xff]
        %v966 = vld [vmem:[%s253 + $0x1230] sm:$0xff]
        %v967 = vld [vmem:[%s253 + $0x1238] sm:$0xff]
        %v968 = vld [vmem:[%s253 + $0x1240] sm:$0xff]
        %v969 = vld [vmem:[%s253 + $0x1248] sm:$0xff]
        %v970 = vld [vmem:[%s253 + $0x1250] sm:$0xff]
        %v971 = vld [vmem:[%s253 + $0x1258] sm:$0xff]
        %v972 = vld [vmem:[%s253 + $0x1260] sm:$0xff]
        %v973 = vld [vmem:[%s253 + $0x1268] sm:$0xff]
        %v974 = vld [vmem:[%s253 + $0x1270] sm:$0xff]
        %v975 = vld [vmem:[%s253 + $0x1278] sm:$0xff]
        %v976 = vld [vmem:[%s253 + $0x1280] sm:$0xff]
        %v977 = vld [vmem:[%s253 + $0x1288] sm:$0xff]
        %v978 = vld [vmem:[%s253 + $0x1290] sm:$0xff]
        %v979 = vld [vmem:[%s253 + $0x1298] sm:$0xff]
        %v980 = vld [vmem:[%s253 + $0x12a0] sm:$0xff]
        %v981 = vld [vmem:[%s253 + $0x12a8] sm:$0xff]
        %v982 = vld [vmem:[%s253 + $0x12b0] sm:$0xff]
        %v983 = vld [vmem:[%s253 + $0x12b8] sm:$0xff]
        %v984 = vld [vmem:[%s253 + $0x12c0] sm:$0xff]
        %v985 = vld [vmem:[%s253 + $0x12c8] sm:$0xff]
        %v986 = vld [vmem:[%s253 + $0x12d0] sm:$0xff]
        %v987 = vld [vmem:[%s253 + $0x12d8] sm:$0xff]
        %v988 = vld [vmem:[%s253 + $0x12e0] sm:$0xff]
        %v989 = vld [vmem:[%s253 + $0x12e8] sm:$0xff]
        %v990 = vld [vmem:[%s253 + $0x12f0] sm:$0xff]
        %v991 = vld [vmem:[%s253 + $0x12f8] sm:$0xff]
        %v992 = vld [vmem:[%s253 + $0x1300] sm:$0xff]
        %v993 = vld [vmem:[%s253 + $0x1308] sm:$0xff]
        %v994 = vld [vmem:[%s253 + $0x1310] sm:$0xff]
        %v995 = vld [vmem:[%s253 + $0x1318] sm:$0xff]
        %v996 = vld [vmem:[%s253 + $0x1320] sm:$0xff]
        %v997 = vld [vmem:[%s253 + $0x1328] sm:$0xff]
        %v998 = vld [vmem:[%s253 + $0x1330] sm:$0xff]
        %v999 = vld [vmem:[%s253 + $0x1338] sm:$0xff]
        %v1000 = vld [vmem:[%s253 + $0x1340] sm:$0xff]
        %v1001 = vld [vmem:[%s253 + $0x1348] sm:$0xff]
        %v1002 = vld [vmem:[%s253 + $0x1350] sm:$0xff]
        %v1003 = vld [vmem:[%s253 + $0x1358] sm:$0xff]
        %v1004 = vld [vmem:[%s253 + $0x1360] sm:$0xff]
        %v1005 = vld [vmem:[%s253 + $0x1368] sm:$0xff]
        %v1006 = vld [vmem:[%s253 + $0x1370] sm:$0xff]
        %v1007 = vld [vmem:[%s253 + $0x1378] sm:$0xff]
        %v1008 = vld [vmem:[%s253 + $0x1380] sm:$0xff]
        %v1009 = vld [vmem:[%s253 + $0x1388] sm:$0xff]
        %v1010 = vld [vmem:[%s253 + $0x1390] sm:$0xff]
        %v1011 = vld [vmem:[%s253 + $0x1398] sm:$0xff]
        %v1012 = vld [vmem:[%s253 + $0x13a0] sm:$0xff]
        %v1013 = vld [vmem:[%s253 + $0x13a8] sm:$0xff]
        %v1014 = vld [vmem:[%s253 + $0x13b0] sm:$0xff]
        %v1015 = vld [vmem:[%s253 + $0x13b8] sm:$0xff]
        %v1016 = vld [vmem:[%s253 + $0x13c0] sm:$0xff]
        %v1017 = vld [vmem:[%s253 + $0x13c8] sm:$0xff]
        %v1018 = vld [vmem:[%s253 + $0x13d0] sm:$0xff]
        %v1019 = vld [vmem:[%s253 + $0x13d8] sm:$0xff]
        %v1020 = vld [vmem:[%s253 + $0x13e0] sm:$0xff]
        %v1021 = vld [vmem:[%s253 + $0x13e8] sm:$0xff]
        %v1022 = vld [vmem:[%s253 + $0x13f0] sm:$0xff]
        %v1023 = vld [vmem:[%s253 + $0x13f8] sm:$0xff]
        %v1024 = vld [vmem:[%s253 + $0x1400] sm:$0xff]
        %v1025 = vld [vmem:[%s253 + $0x1408] sm:$0xff]
        %v1026 = vld [vmem:[%s253 + $0x1410] sm:$0xff]
        %v1027 = vld [vmem:[%s253 + $0x1418] sm:$0xff]
        %v1028 = vld [vmem:[%s253 + $0x1420] sm:$0xff]
        %v1029 = vld [vmem:[%s253 + $0x1428] sm:$0xff]
        %v1030 = vld [vmem:[%s253 + $0x1430] sm:$0xff]
        %v1031 = vld [vmem:[%s253 + $0x1438] sm:$0xff]
        %v1032 = vld [vmem:[%s253 + $0x1440] sm:$0xff]
        %v1033 = vld [vmem:[%s253 + $0x1448] sm:$0xff]
        %v1034 = vld [vmem:[%s253 + $0x1450] sm:$0xff]
        %v1035 = vld [vmem:[%s253 + $0x1458] sm:$0xff]
        %v1036 = vld [vmem:[%s253 + $0x1460] sm:$0xff]
        %v1037 = vld [vmem:[%s253 + $0x1468] sm:$0xff]
        %v1038 = vld [vmem:[%s253 + $0x1470] sm:$0xff]
        %v1039 = vld [vmem:[%s253 + $0x1478] sm:$0xff]
        %v1040 = vld [vmem:[%s253 + $0x1480] sm:$0xff]
        %v1041 = vld [vmem:[%s253 + $0x1488] sm:$0xff]
        %v1042 = vld [vmem:[%s253 + $0x1490] sm:$0xff]
        %v1043 = vld [vmem:[%s253 + $0x1498] sm:$0xff]
        %v1044 = vld [vmem:[%s253 + $0x14a0] sm:$0xff]
        %v1045 = vld [vmem:[%s253 + $0x14a8] sm:$0xff]
        %v1046 = vld [vmem:[%s253 + $0x14b0] sm:$0xff]
        %v1047 = vld [vmem:[%s253 + $0x14b8] sm:$0xff]
        %v1048 = vld [vmem:[%s253 + $0x14c0] sm:$0xff]
        %v1049 = vld [vmem:[%s253 + $0x14c8] sm:$0xff]
        %v1050 = vld [vmem:[%s253 + $0x14d0] sm:$0xff]
        %v1051 = vld [vmem:[%s253 + $0x14d8] sm:$0xff]
        %v1052 = vld [vmem:[%s253 + $0x14e0] sm:$0xff]
        %v1053 = vld [vmem:[%s253 + $0x14e8] sm:$0xff]
        %v1054 = vld [vmem:[%s253 + $0x14f0] sm:$0xff]
        %v1055 = vld [vmem:[%s253 + $0x14f8] sm:$0xff]
        %v1056 = vld [vmem:[%s253 + $0x1500] sm:$0xff]
        %v1057 = vld [vmem:[%s253 + $0x1508] sm:$0xff]
        %v1058 = vld [vmem:[%s253 + $0x1510] sm:$0xff]
        %v1059 = vld [vmem:[%s253 + $0x1518] sm:$0xff]
        %v1060 = vld [vmem:[%s253 + $0x1520] sm:$0xff]
        %v1061 = vld [vmem:[%s253 + $0x1528] sm:$0xff]
        %v1062 = vld [vmem:[%s253 + $0x1530] sm:$0xff]
        %v1063 = vld [vmem:[%s253 + $0x1538] sm:$0xff]
        %v1064 = vld [vmem:[%s253 + $0x1540] sm:$0xff]
        %v1065 = vld [vmem:[%s253 + $0x1548] sm:$0xff]
        %v1066 = vld [vmem:[%s253 + $0x1550] sm:$0xff]
        %v1067 = vld [vmem:[%s253 + $0x1558] sm:$0xff]
        %v1068 = vld [vmem:[%s253 + $0x1560] sm:$0xff]
        %v1069 = vld [vmem:[%s253 + $0x1568] sm:$0xff]
        %v1070 = vld [vmem:[%s253 + $0x1570] sm:$0xff]
        %v1071 = vld [vmem:[%s253 + $0x1578] sm:$0xff]
        %v1072 = vld [vmem:[%s253 + $0x1580] sm:$0xff]
        %v1073 = vld [vmem:[%s253 + $0x1588] sm:$0xff]
        %v1074 = vld [vmem:[%s253 + $0x1590] sm:$0xff]
        %v1075 = vld [vmem:[%s253 + $0x1598] sm:$0xff]
        %v1076 = vld [vmem:[%s253 + $0x15a0] sm:$0xff]
        %v1077 = vld [vmem:[%s253 + $0x15a8] sm:$0xff]
        %v1078 = vld [vmem:[%s253 + $0x15b0] sm:$0xff]
        %v1079 = vld [vmem:[%s253 + $0x15b8] sm:$0xff]
        %v1080 = vld [vmem:[%s253 + $0x15c0] sm:$0xff]
        %v1081 = vld [vmem:[%s253 + $0x15c8] sm:$0xff]
        %v1082 = vld [vmem:[%s253 + $0x15d0] sm:$0xff]
        %v1083 = vld [vmem:[%s253 + $0x15d8] sm:$0xff]
        %v1084 = vld [vmem:[%s253 + $0x15e0] sm:$0xff]
        %v1085 = vld [vmem:[%s253 + $0x15e8] sm:$0xff]
        %v1086 = vld [vmem:[%s253 + $0x15f0] sm:$0xff]
        %v1087 = vld [vmem:[%s253 + $0x15f8] sm:$0xff]
        %v1088 = vld [vmem:[%s253 + $0x1600] sm:$0xff]
        %v1089 = vld [vmem:[%s253 + $0x1608] sm:$0xff]
        %v1090 = vld [vmem:[%s253 + $0x1610] sm:$0xff]
        %v1091 = vld [vmem:[%s253 + $0x1618] sm:$0xff]
        %v1092 = vld [vmem:[%s253 + $0x1620] sm:$0xff]
        %v1093 = vld [vmem:[%s253 + $0x1628] sm:$0xff]
        %v1094 = vld [vmem:[%s253 + $0x1630] sm:$0xff]
        %v1095 = vld [vmem:[%s253 + $0x1638] sm:$0xff]
        %v1096 = vld [vmem:[%s253 + $0x1640] sm:$0xff]
        %v1097 = vld [vmem:[%s253 + $0x1648] sm:$0xff]
        %v1098 = vld [vmem:[%s253 + $0x1650] sm:$0xff]
        %v1099 = vld [vmem:[%s253 + $0x1658] sm:$0xff]
        %v1100 = vld [vmem:[%s253 + $0x1660] sm:$0xff]
        %v1101 = vld [vmem:[%s253 + $0x1668] sm:$0xff]
        %v1102 = vld [vmem:[%s253 + $0x1670] sm:$0xff]
        %v1103 = vld [vmem:[%s253 + $0x1678] sm:$0xff]
        %v1104 = vld [vmem:[%s253 + $0x1680] sm:$0xff]
        %v1105 = vld [vmem:[%s253 + $0x1688] sm:$0xff]
        %v1106 = vld [vmem:[%s253 + $0x1690] sm:$0xff]
        %v1107 = vld [vmem:[%s253 + $0x1698] sm:$0xff]
        %v1108 = vld [vmem:[%s253 + $0x16a0] sm:$0xff]
        %v1109 = vld [vmem:[%s253 + $0x16a8] sm:$0xff]
        %v1110 = vld [vmem:[%s253 + $0x16b0] sm:$0xff]
        %v1111 = vld [vmem:[%s253 + $0x16b8] sm:$0xff]
        %v1112 = vld [vmem:[%s253 + $0x16c0] sm:$0xff]
        %v1113 = vld [vmem:[%s253 + $0x16c8] sm:$0xff]
        %v1114 = vld [vmem:[%s253 + $0x16d0] sm:$0xff]
        %v1115 = vld [vmem:[%s253 + $0x16d8] sm:$0xff]
        %v1116 = vld [vmem:[%s253 + $0x16e0] sm:$0xff]
        %v1117 = vld [vmem:[%s253 + $0x16e8] sm:$0xff]
        %v1118 = vld [vmem:[%s253 + $0x16f0] sm:$0xff]
        %v1119 = vld [vmem:[%s253 + $0x16f8] sm:$0xff]
        %v1120 = vld [vmem:[%s253 + $0x1700] sm:$0xff]
        %v1121 = vld [vmem:[%s253 + $0x1708] sm:$0xff]
        %v1122 = vld [vmem:[%s253 + $0x1710] sm:$0xff]
        %v1123 = vld [vmem:[%s253 + $0x1718] sm:$0xff]
        %v1124 = vld [vmem:[%s253 + $0x1720] sm:$0xff]
        %v1125 = vld [vmem:[%s253 + $0x1728] sm:$0xff]
        %v1126 = vld [vmem:[%s253 + $0x1730] sm:$0xff]
        %v1127 = vld [vmem:[%s253 + $0x1738] sm:$0xff]
        %v1128 = vld [vmem:[%s253 + $0x1740] sm:$0xff]
        %v1129 = vld [vmem:[%s253 + $0x1748] sm:$0xff]
        %v1130 = vld [vmem:[%s253 + $0x1750] sm:$0xff]
        %v1131 = vld [vmem:[%s253 + $0x1758] sm:$0xff]
        %v1132 = vld [vmem:[%s253 + $0x1760] sm:$0xff]
        %v1133 = vld [vmem:[%s253 + $0x1768] sm:$0xff]
        %v1134 = vld [vmem:[%s253 + $0x1770] sm:$0xff]
        %v1135 = vld [vmem:[%s253 + $0x1778] sm:$0xff]
        %v1136 = vld [vmem:[%s253 + $0x1780] sm:$0xff]
        %v1137 = vld [vmem:[%s253 + $0x1788] sm:$0xff]
        %v1138 = vld [vmem:[%s253 + $0x1790] sm:$0xff]
        %v1139 = vld [vmem:[%s253 + $0x1798] sm:$0xff]
        %v1140 = vld [vmem:[%s253 + $0x17a0] sm:$0xff]
        %v1141 = vld [vmem:[%s253 + $0x17a8] sm:$0xff]
        %v1142 = vld [vmem:[%s253 + $0x17b0] sm:$0xff]
        %v1143 = vld [vmem:[%s253 + $0x17b8] sm:$0xff]
        %v1144 = vld [vmem:[%s253 + $0x17c0] sm:$0xff]
        %v1145 = vld [vmem:[%s253 + $0x17c8] sm:$0xff]
        %v1146 = vld [vmem:[%s253 + $0x17d0] sm:$0xff]
        %v1147 = vld [vmem:[%s253 + $0x17d8] sm:$0xff]
        %v1148 = vld [vmem:[%s253 + $0x17e0] sm:$0xff]
        %v1149 = vld [vmem:[%s253 + $0x17e8] sm:$0xff]
        %v1150 = vld [vmem:[%s253 + $0x17f0] sm:$0xff]
        %v1151 = vld [vmem:[%s253 + $0x17f8] sm:$0xff]
        %v1152 = vld [vmem:[%s253 + $0x1800] sm:$0xff]
        %v1153 = vld [vmem:[%s253 + $0x1808] sm:$0xff]
        %v1154 = vld [vmem:[%s253 + $0x1810] sm:$0xff]
        %v1155 = vld [vmem:[%s253 + $0x1818] sm:$0xff]
        %v1156 = vld [vmem:[%s253 + $0x1820] sm:$0xff]
        %v1157 = vld [vmem:[%s253 + $0x1828] sm:$0xff]
        %v1158 = vld [vmem:[%s253 + $0x1830] sm:$0xff]
        %v1159 = vld [vmem:[%s253 + $0x1838] sm:$0xff]
        %v1160 = vld [vmem:[%s253 + $0x1840] sm:$0xff]
        %v1161 = vld [vmem:[%s253 + $0x1848] sm:$0xff]
        %v1162 = vld [vmem:[%s253 + $0x1850] sm:$0xff]
        %v1163 = vld [vmem:[%s253 + $0x1858] sm:$0xff]
        %v1164 = vld [vmem:[%s253 + $0x1860] sm:$0xff]
        %v1165 = vld [vmem:[%s253 + $0x1868] sm:$0xff]
        %v1166 = vld [vmem:[%s253 + $0x1870] sm:$0xff]
        %v1167 = vld [vmem:[%s253 + $0x1878] sm:$0xff]
        %v1168 = vld [vmem:[%s253 + $0x1880] sm:$0xff]
        %v1169 = vld [vmem:[%s253 + $0x1888] sm:$0xff]
        %v1170 = vld [vmem:[%s253 + $0x1890] sm:$0xff]
        %v1171 = vld [vmem:[%s253 + $0x1898] sm:$0xff]
        %v1172 = vld [vmem:[%s253 + $0x18a0] sm:$0xff]
        %v1173 = vld [vmem:[%s253 + $0x18a8] sm:$0xff]
        %v1174 = vld [vmem:[%s253 + $0x18b0] sm:$0xff]
        %v1175 = vld [vmem:[%s253 + $0x18b8] sm:$0xff]
        %v1176 = vld [vmem:[%s253 + $0x18c0] sm:$0xff]
        %v1177 = vld [vmem:[%s253 + $0x18c8] sm:$0xff]
        %v1178 = vld [vmem:[%s253 + $0x18d0] sm:$0xff]
        %v1179 = vld [vmem:[%s253 + $0x18d8] sm:$0xff]
        %v1180 = vld [vmem:[%s253 + $0x18e0] sm:$0xff]
        %v1181 = vld [vmem:[%s253 + $0x18e8] sm:$0xff]
        %v1182 = vld [vmem:[%s253 + $0x18f0] sm:$0xff]
        %v1183 = vld [vmem:[%s253 + $0x18f8] sm:$0xff]
        %v1184 = vld [vmem:[%s253 + $0x1900] sm:$0xff]
        %v1185 = vld [vmem:[%s253 + $0x1908] sm:$0xff]
        %v1186 = vld [vmem:[%s253 + $0x1910] sm:$0xff]
        %v1187 = vld [vmem:[%s253 + $0x1918] sm:$0xff]
        %v1188 = vld [vmem:[%s253 + $0x1920] sm:$0xff]
        %v1189 = vld [vmem:[%s253 + $0x1928] sm:$0xff]
        %v1190 = vld [vmem:[%s253 + $0x1930] sm:$0xff]
        %v1191 = vld [vmem:[%s253 + $0x1938] sm:$0xff]
        %v1192 = vld [vmem:[%s253 + $0x1940] sm:$0xff]
        %v1193 = vld [vmem:[%s253 + $0x1948] sm:$0xff]
        %v1194 = vld [vmem:[%s253 + $0x1950] sm:$0xff]
        %v1195 = vld [vmem:[%s253 + $0x1958] sm:$0xff]
        %v1196 = vld [vmem:[%s253 + $0x1960] sm:$0xff]
        %v1197 = vld [vmem:[%s253 + $0x1968] sm:$0xff]
        %v1198 = vld [vmem:[%s253 + $0x1970] sm:$0xff]
        %v1199 = vld [vmem:[%s253 + $0x1978] sm:$0xff]
        %v1200 = vld [vmem:[%s253 + $0x1980] sm:$0xff]
        %v1201 = vld [vmem:[%s253 + $0x1988] sm:$0xff]
        %v1202 = vld [vmem:[%s253 + $0x1990] sm:$0xff]
        %v1203 = vld [vmem:[%s253 + $0x1998] sm:$0xff]
        %v1204 = vld [vmem:[%s253 + $0x19a0] sm:$0xff]
        %v1205 = vld [vmem:[%s253 + $0x19a8] sm:$0xff]
        %v1206 = vld [vmem:[%s253 + $0x19b0] sm:$0xff]
        %v1207 = vld [vmem:[%s253 + $0x19b8] sm:$0xff]
        %v1208 = vld [vmem:[%s253 + $0x19c0] sm:$0xff]
        %v1209 = vld [vmem:[%s253 + $0x19c8] sm:$0xff]
        %v1210 = vld [vmem:[%s253 + $0x19d0] sm:$0xff]
        %v1211 = vld [vmem:[%s253 + $0x19d8] sm:$0xff]
        %v1212 = vld [vmem:[%s253 + $0x19e0] sm:$0xff]
        %v1213 = vld [vmem:[%s253 + $0x19e8] sm:$0xff]
        %v1214 = vld [vmem:[%s253 + $0x19f0] sm:$0xff]
        %v1215 = vld [vmem:[%s253 + $0x19f8] sm:$0xff]
        %v1216 = vld [vmem:[%s253 + $0x1a00] sm:$0xff]
        %v1217 = vld [vmem:[%s253 + $0x1a08] sm:$0xff]
        %v1218 = vld [vmem:[%s253 + $0x1a10] sm:$0xff]
        %v1219 = vld [vmem:[%s253 + $0x1a18] sm:$0xff]
        %v1220 = vld [vmem:[%s253 + $0x1a20] sm:$0xff]
        %v1221 = vld [vmem:[%s253 + $0x1a28] sm:$0xff]
        %v1222 = vld [vmem:[%s253 + $0x1a30] sm:$0xff]
        %v1223 = vld [vmem:[%s253 + $0x1a38] sm:$0xff]
        %v1224 = vld [vmem:[%s253 + $0x1a40] sm:$0xff]
        %v1225 = vld [vmem:[%s253 + $0x1a48] sm:$0xff]
        %v1226 = vld [vmem:[%s253 + $0x1a50] sm:$0xff]
        %v1227 = vld [vmem:[%s253 + $0x1a58] sm:$0xff]
        %v1228 = vld [vmem:[%s253 + $0x1a60] sm:$0xff]
        %v1229 = vld [vmem:[%s253 + $0x1a68] sm:$0xff]
        %v1230 = vld [vmem:[%s253 + $0x1a70] sm:$0xff]
        %v1231 = vld [vmem:[%s253 + $0x1a78] sm:$0xff]
        %v1232 = vld [vmem:[%s253 + $0x1a80] sm:$0xff]
        %v1233 = vld [vmem:[%s253 + $0x1a88] sm:$0xff]
        %v1234 = vld [vmem:[%s253 + $0x1a90] sm:$0xff]
        %v1235 = vld [vmem:[%s253 + $0x1a98] sm:$0xff]
        %v1236 = vld [vmem:[%s253 + $0x1aa0] sm:$0xff]
        %v1237 = vld [vmem:[%s253 + $0x1aa8] sm:$0xff]
        %v1238 = vld [vmem:[%s253 + $0x1ab0] sm:$0xff]
        %v1239 = vld [vmem:[%s253 + $0x1ab8] sm:$0xff]
        %v1240 = vld [vmem:[%s253 + $0x1ac0] sm:$0xff]
        %v1241 = vld [vmem:[%s253 + $0x1ac8] sm:$0xff]
        %v1242 = vld [vmem:[%s253 + $0x1ad0] sm:$0xff]
        %v1243 = vld [vmem:[%s253 + $0x1ad8] sm:$0xff]
        %v1244 = vld [vmem:[%s253 + $0x1ae0] sm:$0xff]
        %v1245 = vld [vmem:[%s253 + $0x1ae8] sm:$0xff]
        %v1246 = vld [vmem:[%s253 + $0x1af0] sm:$0xff]
        %v1247 = vld [vmem:[%s253 + $0x1af8] sm:$0xff]
        %v1248 = vld [vmem:[%s253 + $0x1b00] sm:$0xff]
        %v1249 = vld [vmem:[%s253 + $0x1b08] sm:$0xff]
        %v1250 = vld [vmem:[%s253 + $0x1b10] sm:$0xff]
        %v1251 = vld [vmem:[%s253 + $0x1b18] sm:$0xff]
        %v1252 = vld [vmem:[%s253 + $0x1b20] sm:$0xff]
        %v1253 = vld [vmem:[%s253 + $0x1b28] sm:$0xff]
        %v1254 = vld [vmem:[%s253 + $0x1b30] sm:$0xff]
        %v1255 = vld [vmem:[%s253 + $0x1b38] sm:$0xff]
        %v1256 = vld [vmem:[%s253 + $0x1b40] sm:$0xff]
        %v1257 = vld [vmem:[%s253 + $0x1b48] sm:$0xff]
        %v1258 = vld [vmem:[%s253 + $0x1b50] sm:$0xff]
        %v1259 = vld [vmem:[%s253 + $0x1b58] sm:$0xff]
        %v1260 = vld [vmem:[%s253 + $0x1b60] sm:$0xff]
        %v1261 = vld [vmem:[%s253 + $0x1b68] sm:$0xff]
        %v1262 = vld [vmem:[%s253 + $0x1b70] sm:$0xff]
        %v1263 = vld [vmem:[%s253 + $0x1b78] sm:$0xff]
        %v1264 = vld [vmem:[%s253 + $0x1b80] sm:$0xff]
        %v1265 = vld [vmem:[%s253 + $0x1b88] sm:$0xff]
        %v1266 = vld [vmem:[%s253 + $0x1b90] sm:$0xff]
        %v1267 = vld [vmem:[%s253 + $0x1b98] sm:$0xff]
        %v1268 = vld [vmem:[%s253 + $0x1ba0] sm:$0xff]
        %v1269 = vld [vmem:[%s253 + $0x1ba8] sm:$0xff]
        %v1270 = vld [vmem:[%s253 + $0x1bb0] sm:$0xff]
        %v1271 = vld [vmem:[%s253 + $0x1bb8] sm:$0xff]
        %v1272 = vld [vmem:[%s253 + $0x1bc0] sm:$0xff]
        %v1273 = vld [vmem:[%s253 + $0x1bc8] sm:$0xff]
        %v1274 = vld [vmem:[%s253 + $0x1bd0] sm:$0xff]
        %v1275 = vld [vmem:[%s253 + $0x1bd8] sm:$0xff]
        %v1276 = vld [vmem:[%s253 + $0x1be0] sm:$0xff]
        %v1277 = vld [vmem:[%s253 + $0x1be8] sm:$0xff]
        %v1278 = vld [vmem:[%s253 + $0x1bf0] sm:$0xff]
        %v1279 = vld [vmem:[%s253 + $0x1bf8] sm:$0xff]
        %v1280 = vld [vmem:[%s253 + $0x1c00] sm:$0xff]
        %v1281 = vld [vmem:[%s253 + $0x1c08] sm:$0xff]
        %v1282 = vld [vmem:[%s253 + $0x1c10] sm:$0xff]
        %v1283 = vld [vmem:[%s253 + $0x1c18] sm:$0xff]
        %v1284 = vld [vmem:[%s253 + $0x1c20] sm:$0xff]
        %v1285 = vld [vmem:[%s253 + $0x1c28] sm:$0xff]
        %v1286 = vld [vmem:[%s253 + $0x1c30] sm:$0xff]
        %v1287 = vld [vmem:[%s253 + $0x1c38] sm:$0xff]
        %v1288 = vld [vmem:[%s253 + $0x1c40] sm:$0xff]
        %v1289 = vld [vmem:[%s253 + $0x1c48] sm:$0xff]
        %v1290 = vld [vmem:[%s253 + $0x1c50] sm:$0xff]
        %v1291 = vld [vmem:[%s253 + $0x1c58] sm:$0xff]
        %v1292 = vld [vmem:[%s253 + $0x1c60] sm:$0xff]
        %v1293 = vld [vmem:[%s253 + $0x1c68] sm:$0xff]
        %v1294 = vld [vmem:[%s253 + $0x1c70] sm:$0xff]
        %v1295 = vld [vmem:[%s253 + $0x1c78] sm:$0xff]
        %v1296 = vld [vmem:[%s253 + $0x1c80] sm:$0xff]
        %v1297 = vld [vmem:[%s253 + $0x1c88] sm:$0xff]
        %v1298 = vld [vmem:[%s253 + $0x1c90] sm:$0xff]
        %v1299 = vld [vmem:[%s253 + $0x1c98] sm:$0xff]
        %v1300 = vld [vmem:[%s253 + $0x1ca0] sm:$0xff]
        %v1301 = vld [vmem:[%s253 + $0x1ca8] sm:$0xff]
        %v1302 = vld [vmem:[%s253 + $0x1cb0] sm:$0xff]
        %v1303 = vld [vmem:[%s253 + $0x1cb8] sm:$0xff]
        %v1304 = vld [vmem:[%s253 + $0x1cc0] sm:$0xff]
        %v1305 = vld [vmem:[%s253 + $0x1cc8] sm:$0xff]
        %v1306 = vld [vmem:[%s253 + $0x1cd0] sm:$0xff]
        %v1307 = vld [vmem:[%s253 + $0x1cd8] sm:$0xff]
        %v1308 = vld [vmem:[%s253 + $0x1ce0] sm:$0xff]
        %v1309 = vld [vmem:[%s253 + $0x1ce8] sm:$0xff]
        %v1310 = vld [vmem:[%s253 + $0x1cf0] sm:$0xff]
        %v1311 = vld [vmem:[%s253 + $0x1cf8] sm:$0xff]
        %v1312 = vld [vmem:[%s253 + $0x1d00] sm:$0xff]
        %v1313 = vld [vmem:[%s253 + $0x1d08] sm:$0xff]
        %v1314 = vld [vmem:[%s253 + $0x1d10] sm:$0xff]
        %v1315 = vld [vmem:[%s253 + $0x1d18] sm:$0xff]
        %v1316 = vld [vmem:[%s253 + $0x1d20] sm:$0xff]
        %v1317 = vld [vmem:[%s253 + $0x1d28] sm:$0xff]
        %v1318 = vld [vmem:[%s253 + $0x1d30] sm:$0xff]
        %v1319 = vld [vmem:[%s253 + $0x1d38] sm:$0xff]
        %v1320 = vld [vmem:[%s253 + $0x1d40] sm:$0xff]
        %v1321 = vld [vmem:[%s253 + $0x1d48] sm:$0xff]
        %v1322 = vld [vmem:[%s253 + $0x1d50] sm:$0xff]
        %v1323 = vld [vmem:[%s253 + $0x1d58] sm:$0xff]
        %v1324 = vld [vmem:[%s253 + $0x1d60] sm:$0xff]
        %v1325 = vld [vmem:[%s253 + $0x1d68] sm:$0xff]
        %v1326 = vld [vmem:[%s253 + $0x1d70] sm:$0xff]
        %v1327 = vld [vmem:[%s253 + $0x1d78] sm:$0xff]
        %v1328 = vld [vmem:[%s253 + $0x1d80] sm:$0xff]
        %v1329 = vld [vmem:[%s253 + $0x1d88] sm:$0xff]
        %v1330 = vld [vmem:[%s253 + $0x1d90] sm:$0xff]
        %v1331 = vld [vmem:[%s253 + $0x1d98] sm:$0xff]
        %v1332 = vld [vmem:[%s253 + $0x1da0] sm:$0xff]
        %v1333 = vld [vmem:[%s253 + $0x1da8] sm:$0xff]
        %v1334 = vld [vmem:[%s253 + $0x1db0] sm:$0xff]
        %v1335 = vld [vmem:[%s253 + $0x1db8] sm:$0xff]
        %v1336 = vld [vmem:[%s253 + $0x1dc0] sm:$0xff]
        %v1337 = vld [vmem:[%s253 + $0x1dc8] sm:$0xff]
        %v1338 = vld [vmem:[%s253 + $0x1dd0] sm:$0xff]
        %v1339 = vld [vmem:[%s253 + $0x1dd8] sm:$0xff]
        %v1340 = vld [vmem:[%s253 + $0x1de0] sm:$0xff]
        %v1341 = vld [vmem:[%s253 + $0x1de8] sm:$0xff]
        %v1342 = vld [vmem:[%s253 + $0x1df0] sm:$0xff]
        %v1343 = vld [vmem:[%s253 + $0x1df8] sm:$0xff]
        %v1344 = vld [vmem:[%s253 + $0x1e00] sm:$0xff]
        %v1345 = vld [vmem:[%s253 + $0x1e08] sm:$0xff]
        %v1346 = vld [vmem:[%s253 + $0x1e10] sm:$0xff]
        %v1347 = vld [vmem:[%s253 + $0x1e18] sm:$0xff]
        %v1348 = vld [vmem:[%s253 + $0x1e20] sm:$0xff]
        %v1349 = vld [vmem:[%s253 + $0x1e28] sm:$0xff]
        %v1350 = vld [vmem:[%s253 + $0x1e30] sm:$0xff]
        %v1351 = vld [vmem:[%s253 + $0x1e38] sm:$0xff]
        %v1352 = vld [vmem:[%s253 + $0x1e40] sm:$0xff]
        %v1353 = vld [vmem:[%s253 + $0x1e48] sm:$0xff]
        %v1354 = vld [vmem:[%s253 + $0x1e50] sm:$0xff]
        %v1355 = vld [vmem:[%s253 + $0x1e58] sm:$0xff]
        %v1356 = vld [vmem:[%s253 + $0x1e60] sm:$0xff]
        %v1357 = vld [vmem:[%s253 + $0x1e68] sm:$0xff]
        %v1358 = vld [vmem:[%s253 + $0x1e70] sm:$0xff]
        %v1359 = vld [vmem:[%s253 + $0x1e78] sm:$0xff]
        %v1360 = vld [vmem:[%s253 + $0x1e80] sm:$0xff]
        %v1361 = vld [vmem:[%s253 + $0x1e88] sm:$0xff]
        %v1362 = vld [vmem:[%s253 + $0x1e90] sm:$0xff]
        %v1363 = vld [vmem:[%s253 + $0x1e98] sm:$0xff]
        %v1364 = vld [vmem:[%s253 + $0x1ea0] sm:$0xff]
        %v1365 = vld [vmem:[%s253 + $0x1ea8] sm:$0xff]
        %v1366 = vld [vmem:[%s253 + $0x1eb0] sm:$0xff]
        %v1367 = vld [vmem:[%s253 + $0x1eb8] sm:$0xff]
        %v1368 = vld [vmem:[%s253 + $0x1ec0] sm:$0xff]
        %v1369 = vld [vmem:[%s253 + $0x1ec8] sm:$0xff]
        %v1370 = vld [vmem:[%s253 + $0x1ed0] sm:$0xff]
        %v1371 = vld [vmem:[%s253 + $0x1ed8] sm:$0xff]
        %v1372 = vld [vmem:[%s253 + $0x1ee0] sm:$0xff]
        %v1373 = vld [vmem:[%s253 + $0x1ee8] sm:$0xff]
        %v1374 = vld [vmem:[%s253 + $0x1ef0] sm:$0xff]
        %v1375 = vld [vmem:[%s253 + $0x1ef8] sm:$0xff]
        %v1376 = vld [vmem:[%s253 + $0x1f00] sm:$0xff]
        %v1377 = vld [vmem:[%s253 + $0x1f08] sm:$0xff]
        %v1378 = vld [vmem:[%s253 + $0x1f10] sm:$0xff]
        %v1379 = vld [vmem:[%s253 + $0x1f18] sm:$0xff]
        %v1380 = vld [vmem:[%s253 + $0x1f20] sm:$0xff]
        %v1381 = vld [vmem:[%s253 + $0x1f28] sm:$0xff]
        %v1382 = vld [vmem:[%s253 + $0x1f30] sm:$0xff]
        %v1383 = vld [vmem:[%s253 + $0x1f38] sm:$0xff]
        %v1384 = vld [vmem:[%s253 + $0x1f40] sm:$0xff]
        %v1385 = vld [vmem:[%s253 + $0x1f48] sm:$0xff]
        %v1386 = vld [vmem:[%s253 + $0x1f50] sm:$0xff]
        %v1387 = vld [vmem:[%s253 + $0x1f58] sm:$0xff]
        %v1388 = vld [vmem:[%s253 + $0x1f60] sm:$0xff]
        %v1389 = vld [vmem:[%s253 + $0x1f68] sm:$0xff]
        %v1390 = vld [vmem:[%s253 + $0x1f70] sm:$0xff]
        %v1391 = vld [vmem:[%s253 + $0x1f78] sm:$0xff]
        %v1392 = vld [vmem:[%s253 + $0x1f80] sm:$0xff]
        %v1393 = vld [vmem:[%s253 + $0x1f88] sm:$0xff]
        %v1394 = vld [vmem:[%s253 + $0x1f90] sm:$0xff]
        %v1395 = vld [vmem:[%s253 + $0x1f98] sm:$0xff]
        %v1396 = vld [vmem:[%s253 + $0x1fa0] sm:$0xff]
        %v1397 = vld [vmem:[%s253 + $0x1fa8] sm:$0xff]
        %v1398 = vld [vmem:[%s253 + $0x1fb0] sm:$0xff]
        %v1399 = vld [vmem:[%s253 + $0x1fb8] sm:$0xff]
        %v1400 = vld [vmem:[%s253 + $0x1fc0] sm:$0xff]
        %v1401 = vld [vmem:[%s253 + $0x1fc8] sm:$0xff]
        %v1402 = vld [vmem:[%s253 + $0x1fd0] sm:$0xff]
        %v1403 = vld [vmem:[%s253 + $0x1fd8] sm:$0xff]
        %v1404 = vld [vmem:[%s253 + $0x1fe0] sm:$0xff]
        %v1405 = vld [vmem:[%s253 + $0x1fe8] sm:$0xff]
        %v1406 = vld [vmem:[%s253 + $0x1ff0] sm:$0xff]
        %v1407 = vld [vmem:[%s253 + $0x1ff8] sm:$0xff]
        %v1408 = vld [vmem:[%s253 + $0x2000] sm:$0xff]
        %v1409 = vld [vmem:[%s253 + $0x2008] sm:$0xff]
        %v1410 = vld [vmem:[%s253 + $0x2010] sm:$0xff]
        %v1411 = vld [vmem:[%s253 + $0x2018] sm:$0xff]
        %v1412 = vld [vmem:[%s253 + $0x2020] sm:$0xff]
        %v1413 = vld [vmem:[%s253 + $0x2028] sm:$0xff]
        %v1414 = vld [vmem:[%s253 + $0x2030] sm:$0xff]
        %v1415 = vld [vmem:[%s253 + $0x2038] sm:$0xff]
        %v1416 = vld [vmem:[%s253 + $0x2040] sm:$0xff]
        %v1417 = vld [vmem:[%s253 + $0x2048] sm:$0xff]
        %v1418 = vld [vmem:[%s253 + $0x2050] sm:$0xff]
        %v1419 = vld [vmem:[%s253 + $0x2058] sm:$0xff]
        %v1420 = vld [vmem:[%s253 + $0x2060] sm:$0xff]
        %v1421 = vld [vmem:[%s253 + $0x2068] sm:$0xff]
        %v1422 = vld [vmem:[%s253 + $0x2070] sm:$0xff]
        %v1423 = vld [vmem:[%s253 + $0x2078] sm:$0xff]
        %v1424 = vld [vmem:[%s253 + $0x2080] sm:$0xff]
        %v1425 = vld [vmem:[%s253 + $0x2088] sm:$0xff]
        %v1426 = vld [vmem:[%s253 + $0x2090] sm:$0xff]
        %v1427 = vld [vmem:[%s253 + $0x2098] sm:$0xff]
        %v1428 = vld [vmem:[%s253 + $0x20a0] sm:$0xff]
        %v1429 = vld [vmem:[%s253 + $0x20a8] sm:$0xff]
        %v1430 = vld [vmem:[%s253 + $0x20b0] sm:$0xff]
        %v1431 = vld [vmem:[%s253 + $0x20b8] sm:$0xff]
        %v1432 = vld [vmem:[%s253 + $0x20c0] sm:$0xff]
        %v1433 = vld [vmem:[%s253 + $0x20c8] sm:$0xff]
        %v1434 = vld [vmem:[%s253 + $0x20d0] sm:$0xff]
        %v1435 = vld [vmem:[%s253 + $0x20d8] sm:$0xff]
        %v1436 = vld [vmem:[%s253 + $0x20e0] sm:$0xff]
        %v1437 = vld [vmem:[%s253 + $0x20e8] sm:$0xff]
        %v1438 = vld [vmem:[%s253 + $0x20f0] sm:$0xff]
        %v1439 = vld [vmem:[%s253 + $0x20f8] sm:$0xff]
        %v1440 = vld [vmem:[%s253 + $0x2100] sm:$0xff]
        %v1441 = vld [vmem:[%s253 + $0x2108] sm:$0xff]
        %v1442 = vld [vmem:[%s253 + $0x2110] sm:$0xff]
        %v1443 = vld [vmem:[%s253 + $0x2118] sm:$0xff]
        %v1444 = vld [vmem:[%s253 + $0x2120] sm:$0xff]
        %v1445 = vld [vmem:[%s253 + $0x2128] sm:$0xff]
        %v1446 = vld [vmem:[%s253 + $0x2130] sm:$0xff]
        %v1447 = vld [vmem:[%s253 + $0x2138] sm:$0xff]
        %v1448 = vld [vmem:[%s253 + $0x2140] sm:$0xff]
        %v1449 = vld [vmem:[%s253 + $0x2148] sm:$0xff]
        %v1450 = vld [vmem:[%s253 + $0x2150] sm:$0xff]
        %v1451 = vld [vmem:[%s253 + $0x2158] sm:$0xff]
        %v1452 = vld [vmem:[%s253 + $0x2160] sm:$0xff]
        %v1453 = vld [vmem:[%s253 + $0x2168] sm:$0xff]
        %v1454 = vld [vmem:[%s253 + $0x2170] sm:$0xff]
        %v1455 = vld [vmem:[%s253 + $0x2178] sm:$0xff]
        %v1456 = vld [vmem:[%s253 + $0x2180] sm:$0xff]
        %v1457 = vld [vmem:[%s253 + $0x2188] sm:$0xff]
        %v1458 = vld [vmem:[%s253 + $0x2190] sm:$0xff]
        %v1459 = vld [vmem:[%s253 + $0x2198] sm:$0xff]
        %v1460 = vld [vmem:[%s253 + $0x21a0] sm:$0xff]
        %v1461 = vld [vmem:[%s253 + $0x21a8] sm:$0xff]
        %v1462 = vld [vmem:[%s253 + $0x21b0] sm:$0xff]
        %v1463 = vld [vmem:[%s253 + $0x21b8] sm:$0xff]
        %v1464 = vld [vmem:[%s253 + $0x21c0] sm:$0xff]
        %v1465 = vld [vmem:[%s253 + $0x21c8] sm:$0xff]
        %v1466 = vld [vmem:[%s253 + $0x21d0] sm:$0xff]
        %v1467 = vld [vmem:[%s253 + $0x21d8] sm:$0xff]
        %v1468 = vld [vmem:[%s253 + $0x21e0] sm:$0xff]
        %v1469 = vld [vmem:[%s253 + $0x21e8] sm:$0xff]
        %v1470 = vld [vmem:[%s253 + $0x21f0] sm:$0xff]
        %v1471 = vld [vmem:[%s253 + $0x21f8] sm:$0xff]
        %v1472 = vld [vmem:[%s253 + $0x2200] sm:$0xff]
        %v1473 = vld [vmem:[%s253 + $0x2208] sm:$0xff]
        %v1474 = vld [vmem:[%s253 + $0x2210] sm:$0xff]
        %v1475 = vld [vmem:[%s253 + $0x2218] sm:$0xff]
        %v1476 = vld [vmem:[%s253 + $0x2220] sm:$0xff]
        %v1477 = vld [vmem:[%s253 + $0x2228] sm:$0xff]
        %v1478 = vld [vmem:[%s253 + $0x2230] sm:$0xff]
        %v1479 = vld [vmem:[%s253 + $0x2238] sm:$0xff]
        %v1480 = vld [vmem:[%s253 + $0x2240] sm:$0xff]
        %v1481 = vld [vmem:[%s253 + $0x2248] sm:$0xff]
        %v1482 = vld [vmem:[%s253 + $0x2250] sm:$0xff]
        %v1483 = vld [vmem:[%s253 + $0x2258] sm:$0xff]
        %v1484 = vld [vmem:[%s253 + $0x2260] sm:$0xff]
        %v1485 = vld [vmem:[%s253 + $0x2268] sm:$0xff]
        %v1486 = vld [vmem:[%s253 + $0x2270] sm:$0xff]
        %v1487 = vld [vmem:[%s253 + $0x2278] sm:$0xff]
        %v1488 = vld [vmem:[%s253 + $0x2280] sm:$0xff]
        %v1489 = vld [vmem:[%s253 + $0x2288] sm:$0xff]
        %v1490 = vld [vmem:[%s253 + $0x2290] sm:$0xff]
        %v1491 = vld [vmem:[%s253 + $0x2298] sm:$0xff]
        %v1492 = vld [vmem:[%s253 + $0x22a0] sm:$0xff]
        %v1493 = vld [vmem:[%s253 + $0x22a8] sm:$0xff]
        %v1494 = vld [vmem:[%s253 + $0x22b0] sm:$0xff]
        %v1495 = vld [vmem:[%s253 + $0x22b8] sm:$0xff]
        %v1496 = vld [vmem:[%s253 + $0x22c0] sm:$0xff]
        %v1497 = vld [vmem:[%s253 + $0x22c8] sm:$0xff]
        %v1498 = vld [vmem:[%s253 + $0x22d0] sm:$0xff]
        %v1499 = vld [vmem:[%s253 + $0x22d8] sm:$0xff]
        %v1500 = vld [vmem:[%s253 + $0x22e0] sm:$0xff]
        %v1501 = vld [vmem:[%s253 + $0x22e8] sm:$0xff]
        %v1502 = vld [vmem:[%s253 + $0x22f0] sm:$0xff]
        %v1503 = vld [vmem:[%s253 + $0x22f8] sm:$0xff]
        %v1504 = vld [vmem:[%s253 + $0x2300] sm:$0xff]
        %v1505 = vld [vmem:[%s253 + $0x2308] sm:$0xff]
        %v1506 = vld [vmem:[%s253 + $0x2310] sm:$0xff]
        %v1507 = vld [vmem:[%s253 + $0x2318] sm:$0xff]
        %v1508 = vld [vmem:[%s253 + $0x2320] sm:$0xff]
        %v1509 = vld [vmem:[%s253 + $0x2328] sm:$0xff]
        %v1510 = vld [vmem:[%s253 + $0x2330] sm:$0xff]
        %v1511 = vld [vmem:[%s253 + $0x2338] sm:$0xff]
        %v1512 = vld [vmem:[%s253 + $0x2340] sm:$0xff]
        %v1513 = vld [vmem:[%s253 + $0x2348] sm:$0xff]
        %v1514 = vld [vmem:[%s253 + $0x2350] sm:$0xff]
        %v1515 = vld [vmem:[%s253 + $0x2358] sm:$0xff]
        %v1516 = vld [vmem:[%s253 + $0x2360] sm:$0xff]
        %v1517 = vld [vmem:[%s253 + $0x2368] sm:$0xff]
        %v1518 = vld [vmem:[%s253 + $0x2370] sm:$0xff]
        %v1519 = vld [vmem:[%s253 + $0x2378] sm:$0xff]
        %v1520 = vld [vmem:[%s253 + $0x2380] sm:$0xff]
        %v1521 = vld [vmem:[%s253 + $0x2388] sm:$0xff]
        %v1522 = vld [vmem:[%s253 + $0x2390] sm:$0xff]
        %v1523 = vld [vmem:[%s253 + $0x2398] sm:$0xff]
        %v1524 = vld [vmem:[%s253 + $0x23a0] sm:$0xff]
        %v1525 = vld [vmem:[%s253 + $0x23a8] sm:$0xff]
        %v1526 = vld [vmem:[%s253 + $0x23b0] sm:$0xff]
        %v1527 = vld [vmem:[%s253 + $0x23b8] sm:$0xff]
        %v1528 = vld [vmem:[%s253 + $0x23c0] sm:$0xff]
        %v1529 = vld [vmem:[%s253 + $0x23c8] sm:$0xff]
        %v1530 = vld [vmem:[%s253 + $0x23d0] sm:$0xff]
        %v1531 = vld [vmem:[%s253 + $0x23d8] sm:$0xff]
        %v1532 = vld [vmem:[%s253 + $0x23e0] sm:$0xff]
        %v1533 = vld [vmem:[%s253 + $0x23e8] sm:$0xff]
        %v1534 = vld [vmem:[%s253 + $0x23f0] sm:$0xff]
        %v1535 = vld [vmem:[%s253 + $0x23f8] sm:$0xff]
        %v1536 = vld [vmem:[%s253 + $0x2400] sm:$0xff]
        %v1537 = vld [vmem:[%s253 + $0x2408] sm:$0xff]
        %v1538 = vld [vmem:[%s253 + $0x2410] sm:$0xff]
        %v1539 = vld [vmem:[%s253 + $0x2418] sm:$0xff]
        %v1540 = vld [vmem:[%s253 + $0x2420] sm:$0xff]
        %v1541 = vld [vmem:[%s253 + $0x2428] sm:$0xff]
        %v1542 = vld [vmem:[%s253 + $0x2430] sm:$0xff]
        %v1543 = vld [vmem:[%s253 + $0x2438] sm:$0xff]
        %v1544 = vld [vmem:[%s253 + $0x2440] sm:$0xff]
        %v1545 = vld [vmem:[%s253 + $0x2448] sm:$0xff]
        %v1546 = vld [vmem:[%s253 + $0x2450] sm:$0xff]
        %v1547 = vld [vmem:[%s253 + $0x2458] sm:$0xff]
        %v1548 = vld [vmem:[%s253 + $0x2460] sm:$0xff]
        %v1549 = vld [vmem:[%s253 + $0x2468] sm:$0xff]
        %v1550 = vld [vmem:[%s253 + $0x2470] sm:$0xff]
        %v1551 = vld [vmem:[%s253 + $0x2478] sm:$0xff]
        %v1552 = vld [vmem:[%s253 + $0x2480] sm:$0xff]
        %v1553 = vld [vmem:[%s253 + $0x2488] sm:$0xff]
        %v1554 = vld [vmem:[%s253 + $0x2490] sm:$0xff]
        %v1555 = vld [vmem:[%s253 + $0x2498] sm:$0xff]
        %v1556 = vld [vmem:[%s253 + $0x24a0] sm:$0xff]
        %v1557 = vld [vmem:[%s253 + $0x24a8] sm:$0xff]
        %v1558 = vld [vmem:[%s253 + $0x24b0] sm:$0xff]
        %v1559 = vld [vmem:[%s253 + $0x24b8] sm:$0xff]
        %v1560 = vld [vmem:[%s253 + $0x24c0] sm:$0xff]
        %v1561 = vld [vmem:[%s253 + $0x24c8] sm:$0xff]
        %v1562 = vld [vmem:[%s253 + $0x24d0] sm:$0xff]
        %v1563 = vld [vmem:[%s253 + $0x24d8] sm:$0xff]
        %v1564 = vld [vmem:[%s253 + $0x24e0] sm:$0xff]
        %v1565 = vld [vmem:[%s253 + $0x24e8] sm:$0xff]
        %v1566 = vld [vmem:[%s253 + $0x24f0] sm:$0xff]
        %v1567 = vld [vmem:[%s253 + $0x24f8] sm:$0xff]
        %v1568 = vld [vmem:[%s253 + $0x2500] sm:$0xff]
        %v1569 = vld [vmem:[%s253 + $0x2508] sm:$0xff]
        %v1570 = vld [vmem:[%s253 + $0x2510] sm:$0xff]
        %v1571 = vld [vmem:[%s253 + $0x2518] sm:$0xff]
        %v1572 = vld [vmem:[%s253 + $0x2520] sm:$0xff]
        %v1573 = vld [vmem:[%s253 + $0x2528] sm:$0xff]
        %v1574 = vld [vmem:[%s253 + $0x2530] sm:$0xff]
        %v1575 = vld [vmem:[%s253 + $0x2538] sm:$0xff]
        %v1576 = vld [vmem:[%s253 + $0x2540] sm:$0xff]
        %v1577 = vld [vmem:[%s253 + $0x2548] sm:$0xff]
        %v1578 = vld [vmem:[%s253 + $0x2550] sm:$0xff]
        %v1579 = vld [vmem:[%s253 + $0x2558] sm:$0xff]
        %v1580 = vld [vmem:[%s253 + $0x2560] sm:$0xff]
        %v1581 = vld [vmem:[%s253 + $0x2568] sm:$0xff]
        %v1582 = vld [vmem:[%s253 + $0x2570] sm:$0xff]
        %v1583 = vld [vmem:[%s253 + $0x2578] sm:$0xff]
        %v1584 = vld [vmem:[%s253 + $0x2580] sm:$0xff]
        %v1585 = vld [vmem:[%s253 + $0x2588] sm:$0xff]
        %v1586 = vld [vmem:[%s253 + $0x2590] sm:$0xff]
        %v1587 = vld [vmem:[%s253 + $0x2598] sm:$0xff]
        %v1588 = vld [vmem:[%s253 + $0x25a0] sm:$0xff]
        %v1589 = vld [vmem:[%s253 + $0x25a8] sm:$0xff]
        %v1590 = vld [vmem:[%s253 + $0x25b0] sm:$0xff]
        %v1591 = vld [vmem:[%s253 + $0x25b8] sm:$0xff]
        %v1592 = vld [vmem:[%s253 + $0x25c0] sm:$0xff]
        %v1593 = vld [vmem:[%s253 + $0x25c8] sm:$0xff]
        %v1594 = vld [vmem:[%s253 + $0x25d0] sm:$0xff]
        %v1595 = vld [vmem:[%s253 + $0x25d8] sm:$0xff]
        %v1596 = vld [vmem:[%s253 + $0x25e0] sm:$0xff]
        %v1597 = vld [vmem:[%s253 + $0x25e8] sm:$0xff]
        %v1598 = vld [vmem:[%s253 + $0x25f0] sm:$0xff]
        %v1599 = vld [vmem:[%s253 + $0x25f8] sm:$0xff]
        %v1600 = vld [vmem:[%s253 + $0x2600] sm:$0xff]
        %v1601 = vld [vmem:[%s253 + $0x2608] sm:$0xff]
        %v1602 = vld [vmem:[%s253 + $0x2610] sm:$0xff]
        %v1603 = vld [vmem:[%s253 + $0x2618] sm:$0xff]
        %v1604 = vld [vmem:[%s253 + $0x2620] sm:$0xff]
        %v1605 = vld [vmem:[%s253 + $0x2628] sm:$0xff]
        %v1606 = vld [vmem:[%s253 + $0x2630] sm:$0xff]
        %v1607 = vld [vmem:[%s253 + $0x2638] sm:$0xff]
        %v1608 = vld [vmem:[%s253 + $0x2640] sm:$0xff]
        %v1609 = vld [vmem:[%s253 + $0x2648] sm:$0xff]
        %v1610 = vld [vmem:[%s253 + $0x2650] sm:$0xff]
        %v1611 = vld [vmem:[%s253 + $0x2658] sm:$0xff]
        %v1612 = vld [vmem:[%s253 + $0x2660] sm:$0xff]
        %v1613 = vld [vmem:[%s253 + $0x2668] sm:$0xff]
        %v1614 = vld [vmem:[%s253 + $0x2670] sm:$0xff]
        %v1615 = vld [vmem:[%s253 + $0x2678] sm:$0xff]
        %v1616 = vld [vmem:[%s253 + $0x2680] sm:$0xff]
        %v1617 = vld [vmem:[%s253 + $0x2688] sm:$0xff]
        %v1618 = vld [vmem:[%s253 + $0x2690] sm:$0xff]
        %v1619 = vld [vmem:[%s253 + $0x2698] sm:$0xff]
        %v1620 = vld [vmem:[%s253 + $0x26a0] sm:$0xff]
        %v1621 = vld [vmem:[%s253 + $0x26a8] sm:$0xff]
        %v1622 = vld [vmem:[%s253 + $0x26b0] sm:$0xff]
        %v1623 = vld [vmem:[%s253 + $0x26b8] sm:$0xff]
        %v1624 = vld [vmem:[%s253 + $0x26c0] sm:$0xff]
        %v1625 = vld [vmem:[%s253 + $0x26c8] sm:$0xff]
        %v1626 = vld [vmem:[%s253 + $0x26d0] sm:$0xff]
        %v1627 = vld [vmem:[%s253 + $0x26d8] sm:$0xff]
        %v1628 = vld [vmem:[%s253 + $0x26e0] sm:$0xff]
        %v1629 = vld [vmem:[%s253 + $0x26e8] sm:$0xff]
        %v1630 = vld [vmem:[%s253 + $0x26f0] sm:$0xff]
        %v1631 = vld [vmem:[%s253 + $0x26f8] sm:$0xff]
        %v1632 = vld [vmem:[%s253 + $0x2700] sm:$0xff]
        %v1633 = vld [vmem:[%s253 + $0x2708] sm:$0xff]
        %v1634 = vld [vmem:[%s253 + $0x2710] sm:$0xff]
        %v1635 = vld [vmem:[%s253 + $0x2718] sm:$0xff]
        %v1636 = vld [vmem:[%s253 + $0x2720] sm:$0xff]
        %v1637 = vld [vmem:[%s253 + $0x2728] sm:$0xff]
        %v1638 = vld [vmem:[%s253 + $0x2730] sm:$0xff]
        %v1639 = vld [vmem:[%s253 + $0x2738] sm:$0xff]
        %v1640 = vld [vmem:[%s253 + $0x2740] sm:$0xff]
        %v1641 = vld [vmem:[%s253 + $0x2748] sm:$0xff]
        %v1642 = vld [vmem:[%s253 + $0x2750] sm:$0xff]
        %v1643 = vld [vmem:[%s253 + $0x2758] sm:$0xff]
        %v1644 = vld [vmem:[%s253 + $0x2760] sm:$0xff]
        %v1645 = vld [vmem:[%s253 + $0x2768] sm:$0xff]
        %v1646 = vld [vmem:[%s253 + $0x2770] sm:$0xff]
        %v1647 = vld [vmem:[%s253 + $0x2778] sm:$0xff]
        %v1648 = vld [vmem:[%s253 + $0x2780] sm:$0xff]
        %v1649 = vld [vmem:[%s253 + $0x2788] sm:$0xff]
        %v1650 = vld [vmem:[%s253 + $0x2790] sm:$0xff]
        %v1651 = vld [vmem:[%s253 + $0x2798] sm:$0xff]
        %v1652 = vld [vmem:[%s253 + $0x27a0] sm:$0xff]
        %v1653 = vld [vmem:[%s253 + $0x27a8] sm:$0xff]
        %v1654 = vld [vmem:[%s253 + $0x27b0] sm:$0xff]
        %v1655 = vld [vmem:[%s253 + $0x27b8] sm:$0xff]
        %v1656 = vld [vmem:[%s253 + $0x27c0] sm:$0xff]
        %v1657 = vld [vmem:[%s253 + $0x27c8] sm:$0xff]
        %v1658 = vld [vmem:[%s253 + $0x27d0] sm:$0xff]
        %v1659 = vld [vmem:[%s253 + $0x27d8] sm:$0xff]
        %v1660 = vld [vmem:[%s253 + $0x27e0] sm:$0xff]
        %v1661 = vld [vmem:[%s253 + $0x27e8] sm:$0xff]
        %v1662 = vld [vmem:[%s253 + $0x27f0] sm:$0xff]
        %v1663 = vld [vmem:[%s253 + $0x27f8] sm:$0xff]
        %v1664 = vld [vmem:[%s253 + $0x2800] sm:$0xff]
        %v1665 = vld [vmem:[%s253 + $0x2808] sm:$0xff]
        %v1666 = vld [vmem:[%s253 + $0x2810] sm:$0xff]
        %v1667 = vld [vmem:[%s253 + $0x2818] sm:$0xff]
        %v1668 = vld [vmem:[%s253 + $0x2820] sm:$0xff]
        %v1669 = vld [vmem:[%s253 + $0x2828] sm:$0xff]
        %v1670 = vld [vmem:[%s253 + $0x2830] sm:$0xff]
        %v1671 = vld [vmem:[%s253 + $0x2838] sm:$0xff]
        %v1672 = vld [vmem:[%s253 + $0x2840] sm:$0xff]
        %v1673 = vld [vmem:[%s253 + $0x2848] sm:$0xff]
        %v1674 = vld [vmem:[%s253 + $0x2850] sm:$0xff]
        %v1675 = vld [vmem:[%s253 + $0x2858] sm:$0xff]
        %v1676 = vld [vmem:[%s253 + $0x2860] sm:$0xff]
        %v1677 = vld [vmem:[%s253 + $0x2868] sm:$0xff]
        %v1678 = vld [vmem:[%s253 + $0x2870] sm:$0xff]
        %v1679 = vld [vmem:[%s253 + $0x2878] sm:$0xff]
        %v1680 = vld [vmem:[%s253 + $0x2880] sm:$0xff]
        %v1681 = vld [vmem:[%s253 + $0x2888] sm:$0xff]
        %v1682 = vld [vmem:[%s253 + $0x2890] sm:$0xff]
        %v1683 = vld [vmem:[%s253 + $0x2898] sm:$0xff]
        %v1684 = vld [vmem:[%s253 + $0x28a0] sm:$0xff]
        %v1685 = vld [vmem:[%s253 + $0x28a8] sm:$0xff]
        %v1686 = vld [vmem:[%s253 + $0x28b0] sm:$0xff]
        %v1687 = vld [vmem:[%s253 + $0x28b8] sm:$0xff]
        %v1688 = vld [vmem:[%s253 + $0x28c0] sm:$0xff]
        %v1689 = vld [vmem:[%s253 + $0x28c8] sm:$0xff]
        %v1690 = vld [vmem:[%s253 + $0x28d0] sm:$0xff]
        %v1691 = vld [vmem:[%s253 + $0x28d8] sm:$0xff]
        %v1692 = vld [vmem:[%s253 + $0x28e0] sm:$0xff]
        %v1693 = vld [vmem:[%s253 + $0x28e8] sm:$0xff]
        %v1694 = vld [vmem:[%s253 + $0x28f0] sm:$0xff]
        %v1695 = vld [vmem:[%s253 + $0x28f8] sm:$0xff]
        %v1696 = vld [vmem:[%s253 + $0x2900] sm:$0xff]
        %v1697 = vld [vmem:[%s253 + $0x2908] sm:$0xff]
        %v1698 = vld [vmem:[%s253 + $0x2910] sm:$0xff]
        %v1699 = vld [vmem:[%s253 + $0x2918] sm:$0xff]
        %v1700 = vld [vmem:[%s253 + $0x2920] sm:$0xff]
        %v1701 = vld [vmem:[%s253 + $0x2928] sm:$0xff]
        %v1702 = vld [vmem:[%s253 + $0x2930] sm:$0xff]
        %v1703 = vld [vmem:[%s253 + $0x2938] sm:$0xff]
        %v1704 = vld [vmem:[%s253 + $0x2940] sm:$0xff]
        %v1705 = vld [vmem:[%s253 + $0x2948] sm:$0xff]
        %v1706 = vld [vmem:[%s253 + $0x2950] sm:$0xff]
        %v1707 = vld [vmem:[%s253 + $0x2958] sm:$0xff]
        %v1708 = vld [vmem:[%s253 + $0x2960] sm:$0xff]
        %v1709 = vld [vmem:[%s253 + $0x2968] sm:$0xff]
        %v1710 = vld [vmem:[%s253 + $0x2970] sm:$0xff]
        %v1711 = vld [vmem:[%s253 + $0x2978] sm:$0xff]
        %v1712 = vld [vmem:[%s253 + $0x2980] sm:$0xff]
        %v1713 = vld [vmem:[%s253 + $0x2988] sm:$0xff]
        %v1714 = vld [vmem:[%s253 + $0x2990] sm:$0xff]
        %v1715 = vld [vmem:[%s253 + $0x2998] sm:$0xff]
        %v1716 = vld [vmem:[%s253 + $0x29a0] sm:$0xff]
        %v1717 = vld [vmem:[%s253 + $0x29a8] sm:$0xff]
        %v1718 = vld [vmem:[%s253 + $0x29b0] sm:$0xff]
        %v1719 = vld [vmem:[%s253 + $0x29b8] sm:$0xff]
        %v1720 = vld [vmem:[%s253 + $0x29c0] sm:$0xff]
        %v1721 = vld [vmem:[%s253 + $0x29c8] sm:$0xff]
        %v1722 = vld [vmem:[%s253 + $0x29d0] sm:$0xff]
        %v1723 = vld [vmem:[%s253 + $0x29d8] sm:$0xff]
        %v1724 = vld [vmem:[%s253 + $0x29e0] sm:$0xff]
        %v1725 = vld [vmem:[%s253 + $0x29e8] sm:$0xff]
        %v1726 = vld [vmem:[%s253 + $0x29f0] sm:$0xff]
        %v1727 = vld [vmem:[%s253 + $0x29f8] sm:$0xff]
        %v1728 = vld [vmem:[%s253 + $0x2a00] sm:$0xff]
        %v1729 = vld [vmem:[%s253 + $0x2a08] sm:$0xff]
        %v1730 = vld [vmem:[%s253 + $0x2a10] sm:$0xff]
        %v1731 = vld [vmem:[%s253 + $0x2a18] sm:$0xff]
        %v1732 = vld [vmem:[%s253 + $0x2a20] sm:$0xff]
        %v1733 = vld [vmem:[%s253 + $0x2a28] sm:$0xff]
        %v1734 = vld [vmem:[%s253 + $0x2a30] sm:$0xff]
        %v1735 = vld [vmem:[%s253 + $0x2a38] sm:$0xff]
        %v1736 = vld [vmem:[%s253 + $0x2a40] sm:$0xff]
        %v1737 = vld [vmem:[%s253 + $0x2a48] sm:$0xff]
        %v1738 = vld [vmem:[%s253 + $0x2a50] sm:$0xff]
        %v1739 = vld [vmem:[%s253 + $0x2a58] sm:$0xff]
        %v1740 = vld [vmem:[%s253 + $0x2a60] sm:$0xff]
        %v1741 = vld [vmem:[%s253 + $0x2a68] sm:$0xff]
        %v1742 = vld [vmem:[%s253 + $0x2a70] sm:$0xff]
        %v1743 = vld [vmem:[%s253 + $0x2a78] sm:$0xff]
        %v1744 = vld [vmem:[%s253 + $0x2a80] sm:$0xff]
        %v1745 = vld [vmem:[%s253 + $0x2a88] sm:$0xff]
        %v1746 = vld [vmem:[%s253 + $0x2a90] sm:$0xff]
        %v1747 = vld [vmem:[%s253 + $0x2a98] sm:$0xff]
        %v1748 = vld [vmem:[%s253 + $0x2aa0] sm:$0xff]
        %v1749 = vld [vmem:[%s253 + $0x2aa8] sm:$0xff]
        %v1750 = vld [vmem:[%s253 + $0x2ab0] sm:$0xff]
        %v1751 = vld [vmem:[%s253 + $0x2ab8] sm:$0xff]
        %v1752 = vld [vmem:[%s253 + $0x2ac0] sm:$0xff]
        %v1753 = vld [vmem:[%s253 + $0x2ac8] sm:$0xff]
        %v1754 = vld [vmem:[%s253 + $0x2ad0] sm:$0xff]
        %v1755 = vld [vmem:[%s253 + $0x2ad8] sm:$0xff]
        %v1756 = vld [vmem:[%s253 + $0x2ae0] sm:$0xff]
        %v1757 = vld [vmem:[%s253 + $0x2ae8] sm:$0xff]
        %v1758 = vld [vmem:[%s253 + $0x2af0] sm:$0xff]
        %v1759 = vld [vmem:[%s253 + $0x2af8] sm:$0xff]
        %v1760 = vld [vmem:[%s253 + $0x2b00] sm:$0xff]
        %v1761 = vld [vmem:[%s253 + $0x2b08] sm:$0xff]
        %v1762 = vld [vmem:[%s253 + $0x2b10] sm:$0xff]
        %v1763 = vld [vmem:[%s253 + $0x2b18] sm:$0xff]
        %v1764 = vld [vmem:[%s253 + $0x2b20] sm:$0xff]
        %v1765 = vld [vmem:[%s253 + $0x2b28] sm:$0xff]
        %v1766 = vld [vmem:[%s253 + $0x2b30] sm:$0xff]
        %v1767 = vld [vmem:[%s253 + $0x2b38] sm:$0xff]
        %v1768 = vld [vmem:[%s253 + $0x2b40] sm:$0xff]
        %v1769 = vld [vmem:[%s253 + $0x2b48] sm:$0xff]
        %v1770 = vld [vmem:[%s253 + $0x2b50] sm:$0xff]
        %v1771 = vld [vmem:[%s253 + $0x2b58] sm:$0xff]
        %v1772 = vld [vmem:[%s253 + $0x2b60] sm:$0xff]
        %v1773 = vld [vmem:[%s253 + $0x2b68] sm:$0xff]
        %v1774 = vld [vmem:[%s253 + $0x2b70] sm:$0xff]
        %v1775 = vld [vmem:[%s253 + $0x2b78] sm:$0xff]
        %v1776 = vld [vmem:[%s253 + $0x2b80] sm:$0xff]
        %v1777 = vld [vmem:[%s253 + $0x2b88] sm:$0xff]
        %v1778 = vld [vmem:[%s253 + $0x2b90] sm:$0xff]
        %v1779 = vld [vmem:[%s253 + $0x2b98] sm:$0xff]
        %v1780 = vld [vmem:[%s253 + $0x2ba0] sm:$0xff]
        %v1781 = vld [vmem:[%s253 + $0x2ba8] sm:$0xff]
        %v1782 = vld [vmem:[%s253 + $0x2bb0] sm:$0xff]
        %v1783 = vld [vmem:[%s253 + $0x2bb8] sm:$0xff]
        %v1784 = vld [vmem:[%s253 + $0x2bc0] sm:$0xff]
        %v1785 = vld [vmem:[%s253 + $0x2bc8] sm:$0xff]
        %v1786 = vld [vmem:[%s253 + $0x2bd0] sm:$0xff]
        %v1787 = vld [vmem:[%s253 + $0x2bd8] sm:$0xff]
        %v1788 = vld [vmem:[%s253 + $0x2be0] sm:$0xff]
        %v1789 = vld [vmem:[%s253 + $0x2be8] sm:$0xff]
        %v1790 = vld [vmem:[%s253 + $0x2bf0] sm:$0xff]
        %v1791 = vld [vmem:[%s253 + $0x2bf8] sm:$0xff]
        %v1792 = vld [vmem:[%s253 + $0x2c00] sm:$0xff]
        %v1793 = vld [vmem:[%s253 + $0x2c08] sm:$0xff]
        %v1794 = vld [vmem:[%s253 + $0x2c10] sm:$0xff]
        %v1795 = vld [vmem:[%s253 + $0x2c18] sm:$0xff]
        %v1796 = vld [vmem:[%s253 + $0x2c20] sm:$0xff]
        %v1797 = vld [vmem:[%s253 + $0x2c28] sm:$0xff]
        %v1798 = vld [vmem:[%s253 + $0x2c30] sm:$0xff]
        %v1799 = vld [vmem:[%s253 + $0x2c38] sm:$0xff]
        %v1800 = vld [vmem:[%s253 + $0x2c40] sm:$0xff]
        %v1801 = vld [vmem:[%s253 + $0x2c48] sm:$0xff]
        %v1802 = vld [vmem:[%s253 + $0x2c50] sm:$0xff]
        %v1803 = vld [vmem:[%s253 + $0x2c58] sm:$0xff]
        %v1804 = vld [vmem:[%s253 + $0x2c60] sm:$0xff]
        %v1805 = vld [vmem:[%s253 + $0x2c68] sm:$0xff]
        %v1806 = vld [vmem:[%s253 + $0x2c70] sm:$0xff]
        %v1807 = vld [vmem:[%s253 + $0x2c78] sm:$0xff]
        %v1808 = vld [vmem:[%s253 + $0x2c80] sm:$0xff]
        %v1809 = vld [vmem:[%s253 + $0x2c88] sm:$0xff]
        %v1810 = vld [vmem:[%s253 + $0x2c90] sm:$0xff]
        %v1811 = vld [vmem:[%s253 + $0x2c98] sm:$0xff]
        %v1812 = vld [vmem:[%s253 + $0x2ca0] sm:$0xff]
        %v1813 = vld [vmem:[%s253 + $0x2ca8] sm:$0xff]
        %v1814 = vld [vmem:[%s253 + $0x2cb0] sm:$0xff]
        %v1815 = vld [vmem:[%s253 + $0x2cb8] sm:$0xff]
        %v1816 = vld [vmem:[%s253 + $0x2cc0] sm:$0xff]
        %v1817 = vld [vmem:[%s253 + $0x2cc8] sm:$0xff]
        %v1818 = vld [vmem:[%s253 + $0x2cd0] sm:$0xff]
        %v1819 = vld [vmem:[%s253 + $0x2cd8] sm:$0xff]
        %v1820 = vld [vmem:[%s253 + $0x2ce0] sm:$0xff]
        %v1821 = vld [vmem:[%s253 + $0x2ce8] sm:$0xff]
        %v1822 = vld [vmem:[%s253 + $0x2cf0] sm:$0xff]
        %v1823 = vld [vmem:[%s253 + $0x2cf8] sm:$0xff]
        %v1824 = vld [vmem:[%s253 + $0x2d00] sm:$0xff]
        %v1825 = vld [vmem:[%s253 + $0x2d08] sm:$0xff]
        %v1826 = vld [vmem:[%s253 + $0x2d10] sm:$0xff]
        %v1827 = vld [vmem:[%s253 + $0x2d18] sm:$0xff]
        %v1828 = vld [vmem:[%s253 + $0x2d20] sm:$0xff]
        %v1829 = vld [vmem:[%s253 + $0x2d28] sm:$0xff]
        %v1830 = vld [vmem:[%s253 + $0x2d30] sm:$0xff]
        %v1831 = vld [vmem:[%s253 + $0x2d38] sm:$0xff]
        %v1832 = vld [vmem:[%s253 + $0x2d40] sm:$0xff]
        %v1833 = vld [vmem:[%s253 + $0x2d48] sm:$0xff]
        %v1834 = vld [vmem:[%s253 + $0x2d50] sm:$0xff]
        %v1835 = vld [vmem:[%s253 + $0x2d58] sm:$0xff]
        %v1836 = vld [vmem:[%s253 + $0x2d60] sm:$0xff]
        %v1837 = vld [vmem:[%s253 + $0x2d68] sm:$0xff]
        %v1838 = vld [vmem:[%s253 + $0x2d70] sm:$0xff]
        %v1839 = vld [vmem:[%s253 + $0x2d78] sm:$0xff]
        %v1840 = vld [vmem:[%s253 + $0x2d80] sm:$0xff]
        %v1841 = vld [vmem:[%s253 + $0x2d88] sm:$0xff]
        %v1842 = vld [vmem:[%s253 + $0x2d90] sm:$0xff]
        %v1843 = vld [vmem:[%s253 + $0x2d98] sm:$0xff]
        %v1844 = vld [vmem:[%s253 + $0x2da0] sm:$0xff]
        %v1845 = vld [vmem:[%s253 + $0x2da8] sm:$0xff]
        %v1846 = vld [vmem:[%s253 + $0x2db0] sm:$0xff]
        %v1847 = vld [vmem:[%s253 + $0x2db8] sm:$0xff]
        %v1848 = vld [vmem:[%s253 + $0x2dc0] sm:$0xff]
        %v1849 = vld [vmem:[%s253 + $0x2dc8] sm:$0xff]
        %v1850 = vld [vmem:[%s253 + $0x2dd0] sm:$0xff]
        %v1851 = vld [vmem:[%s253 + $0x2dd8] sm:$0xff]
        %v1852 = vld [vmem:[%s253 + $0x2de0] sm:$0xff]
        %v1853 = vld [vmem:[%s253 + $0x2de8] sm:$0xff]
        %v1854 = vld [vmem:[%s253 + $0x2df0] sm:$0xff]
        %v1855 = vld [vmem:[%s253 + $0x2df8] sm:$0xff]
        %v1856 = vld [vmem:[%s253 + $0x2e00] sm:$0xff]
        %v1857 = vld [vmem:[%s253 + $0x2e08] sm:$0xff]
        %v1858 = vld [vmem:[%s253 + $0x2e10] sm:$0xff]
        %v1859 = vld [vmem:[%s253 + $0x2e18] sm:$0xff]
        %v1860 = vld [vmem:[%s253 + $0x2e20] sm:$0xff]
        %v1861 = vld [vmem:[%s253 + $0x2e28] sm:$0xff]
        %v1862 = vld [vmem:[%s253 + $0x2e30] sm:$0xff]
        %v1863 = vld [vmem:[%s253 + $0x2e38] sm:$0xff]
        %v1864 = vld [vmem:[%s253 + $0x2e40] sm:$0xff]
        %v1865 = vld [vmem:[%s253 + $0x2e48] sm:$0xff]
        %v1866 = vld [vmem:[%s253 + $0x2e50] sm:$0xff]
        %v1867 = vld [vmem:[%s253 + $0x2e58] sm:$0xff]
        %v1868 = vld [vmem:[%s253 + $0x2e60] sm:$0xff]
        %v1869 = vld [vmem:[%s253 + $0x2e68] sm:$0xff]
        %v1870 = vld [vmem:[%s253 + $0x2e70] sm:$0xff]
        %v1871 = vld [vmem:[%s253 + $0x2e78] sm:$0xff]
        %v1872 = vld [vmem:[%s253 + $0x2e80] sm:$0xff]
        %v1873 = vld [vmem:[%s253 + $0x2e88] sm:$0xff]
        %v1874 = vld [vmem:[%s253 + $0x2e90] sm:$0xff]
        %v1875 = vld [vmem:[%s253 + $0x2e98] sm:$0xff]
        %v1876 = vld [vmem:[%s253 + $0x2ea0] sm:$0xff]
        %v1877 = vld [vmem:[%s253 + $0x2ea8] sm:$0xff]
        %v1878 = vld [vmem:[%s253 + $0x2eb0] sm:$0xff]
        %v1879 = vld [vmem:[%s253 + $0x2eb8] sm:$0xff]
        %v1880 = vld [vmem:[%s253 + $0x2ec0] sm:$0xff]
        %v1881 = vld [vmem:[%s253 + $0x2ec8] sm:$0xff]
        %v1882 = vld [vmem:[%s253 + $0x2ed0] sm:$0xff]
        %v1883 = vld [vmem:[%s253 + $0x2ed8] sm:$0xff]
        %v1884 = vld [vmem:[%s253 + $0x2ee0] sm:$0xff]
        %v1885 = vld [vmem:[%s253 + $0x2ee8] sm:$0xff]
        %v1886 = vld [vmem:[%s253 + $0x2ef0] sm:$0xff]
        %v1887 = vld [vmem:[%s253 + $0x2ef8] sm:$0xff]
        %v1888 = vld [vmem:[%s253 + $0x2f00] sm:$0xff]
        %v1889 = vld [vmem:[%s253 + $0x2f08] sm:$0xff]
        %v1890 = vld [vmem:[%s253 + $0x2f10] sm:$0xff]
        %v1891 = vld [vmem:[%s253 + $0x2f18] sm:$0xff]
        %v1892 = vld [vmem:[%s253 + $0x2f20] sm:$0xff]
        %v1893 = vld [vmem:[%s253 + $0x2f28] sm:$0xff]
        %v1894 = vld [vmem:[%s253 + $0x2f30] sm:$0xff]
        %v1895 = vld [vmem:[%s253 + $0x2f38] sm:$0xff]
        %v1896 = vld [vmem:[%s253 + $0x2f40] sm:$0xff]
        %v1897 = vld [vmem:[%s253 + $0x2f48] sm:$0xff]
        %v1898 = vld [vmem:[%s253 + $0x2f50] sm:$0xff]
        %v1899 = vld [vmem:[%s253 + $0x2f58] sm:$0xff]
        %v1900 = vld [vmem:[%s253 + $0x2f60] sm:$0xff]
        %v1901 = vld [vmem:[%s253 + $0x2f68] sm:$0xff]
        %v1902 = vld [vmem:[%s253 + $0x2f70] sm:$0xff]
        %v1903 = vld [vmem:[%s253 + $0x2f78] sm:$0xff]
        %v1904 = vld [vmem:[%s253 + $0x2f80] sm:$0xff]
        %v1905 = vld [vmem:[%s253 + $0x2f88] sm:$0xff]
        %v1906 = vld [vmem:[%s253 + $0x2f90] sm:$0xff]
        %v1907 = vld [vmem:[%s253 + $0x2f98] sm:$0xff]
        %v1908 = vld [vmem:[%s253 + $0x2fa0] sm:$0xff]
        %v1909 = vld [vmem:[%s253 + $0x2fa8] sm:$0xff]
        %v1910 = vld [vmem:[%s253 + $0x2fb0] sm:$0xff]
        %v1911 = vld [vmem:[%s253 + $0x2fb8] sm:$0xff]
        %v1912 = vld [vmem:[%s253 + $0x2fc0] sm:$0xff]
        %v1913 = vld [vmem:[%s253 + $0x2fc8] sm:$0xff]
        %v1914 = vld [vmem:[%s253 + $0x2fd0] sm:$0xff]
        %v1915 = vld [vmem:[%s253 + $0x2fd8] sm:$0xff]
        %v1916 = vld [vmem:[%s253 + $0x2fe0] sm:$0xff]
        %v1917 = vld [vmem:[%s253 + $0x2fe8] sm:$0xff]
        %v1918 = vld [vmem:[%s253 + $0x2ff0] sm:$0xff]
        %v1919 = vld [vmem:[%s253 + $0x2ff8] sm:$0xff]
        %v1920 = vld [vmem:[%s253 + $0x3000] sm:$0xff]
        %v1921 = vld [vmem:[%s253 + $0x3008] sm:$0xff]
        %v1922 = vld [vmem:[%s253 + $0x3010] sm:$0xff]
        %v1923 = vld [vmem:[%s253 + $0x3018] sm:$0xff]
        %v1924 = vld [vmem:[%s253 + $0x3020] sm:$0xff]
        %v1925 = vld [vmem:[%s253 + $0x3028] sm:$0xff]
        %v1926 = vld [vmem:[%s253 + $0x3030] sm:$0xff]
        %v1927 = vld [vmem:[%s253 + $0x3038] sm:$0xff]
        %v1928 = vld [vmem:[%s253 + $0x3040] sm:$0xff]
        %v1929 = vld [vmem:[%s253 + $0x3048] sm:$0xff]
        %v1930 = vld [vmem:[%s253 + $0x3050] sm:$0xff]
        %v1931 = vld [vmem:[%s253 + $0x3058] sm:$0xff]
        %v1932 = vld [vmem:[%s253 + $0x3060] sm:$0xff]
        %v1933 = vld [vmem:[%s253 + $0x3068] sm:$0xff]
        %v1934 = vld [vmem:[%s253 + $0x3070] sm:$0xff]
        %v1935 = vld [vmem:[%s253 + $0x3078] sm:$0xff]
        %v1936 = vld [vmem:[%s253 + $0x3080] sm:$0xff]
        %v1937 = vld [vmem:[%s253 + $0x3088] sm:$0xff]
        %v1938 = vld [vmem:[%s253 + $0x3090] sm:$0xff]
        %v1939 = vld [vmem:[%s253 + $0x3098] sm:$0xff]
        %v1940 = vld [vmem:[%s253 + $0x30a0] sm:$0xff]
        %v1941 = vld [vmem:[%s253 + $0x30a8] sm:$0xff]
        %v1942 = vld [vmem:[%s253 + $0x30b0] sm:$0xff]
        %v1943 = vld [vmem:[%s253 + $0x30b8] sm:$0xff]
        %v1944 = vld [vmem:[%s253 + $0x30c0] sm:$0xff]
        %v1945 = vld [vmem:[%s253 + $0x30c8] sm:$0xff]
        %v1946 = vld [vmem:[%s253 + $0x30d0] sm:$0xff]
        %v1947 = vld [vmem:[%s253 + $0x30d8] sm:$0xff]
        %v1948 = vld [vmem:[%s253 + $0x30e0] sm:$0xff]
        %v1949 = vld [vmem:[%s253 + $0x30e8] sm:$0xff]
        %v1950 = vld [vmem:[%s253 + $0x30f0] sm:$0xff]
        %v1951 = vld [vmem:[%s253 + $0x30f8] sm:$0xff]
        %v1952 = vld [vmem:[%s253 + $0x3100] sm:$0xff]
        %v1953 = vld [vmem:[%s253 + $0x3108] sm:$0xff]
        %v1954 = vld [vmem:[%s253 + $0x3110] sm:$0xff]
        %v1955 = vld [vmem:[%s253 + $0x3118] sm:$0xff]
        %v1956 = vld [vmem:[%s253 + $0x3120] sm:$0xff]
        %v1957 = vld [vmem:[%s253 + $0x3128] sm:$0xff]
        %v1958 = vld [vmem:[%s253 + $0x3130] sm:$0xff]
        %v1959 = vld [vmem:[%s253 + $0x3138] sm:$0xff]
        %v1960 = vld [vmem:[%s253 + $0x3140] sm:$0xff]
        %v1961 = vld [vmem:[%s253 + $0x3148] sm:$0xff]
        %v1962 = vld [vmem:[%s253 + $0x3150] sm:$0xff]
        %v1963 = vld [vmem:[%s253 + $0x3158] sm:$0xff]
        %v1964 = vld [vmem:[%s253 + $0x3160] sm:$0xff]
        %v1965 = vld [vmem:[%s253 + $0x3168] sm:$0xff]
        %v1966 = vld [vmem:[%s253 + $0x3170] sm:$0xff]
        %v1967 = vld [vmem:[%s253 + $0x3178] sm:$0xff]
        %v1968 = vld [vmem:[%s253 + $0x3180] sm:$0xff]
        %v1969 = vld [vmem:[%s253 + $0x3188] sm:$0xff]
        %v1970 = vld [vmem:[%s253 + $0x3190] sm:$0xff]
        %v1971 = vld [vmem:[%s253 + $0x3198] sm:$0xff]
        %v1972 = vld [vmem:[%s253 + $0x31a0] sm:$0xff]
        %v1973 = vld [vmem:[%s253 + $0x31a8] sm:$0xff]
        %v1974 = vld [vmem:[%s253 + $0x31b0] sm:$0xff]
        %v1975 = vld [vmem:[%s253 + $0x31b8] sm:$0xff]
        %v1976 = vld [vmem:[%s253 + $0x31c0] sm:$0xff]
        %v1977 = vld [vmem:[%s253 + $0x31c8] sm:$0xff]
        %v1978 = vld [vmem:[%s253 + $0x31d0] sm:$0xff]
        %v1979 = vld [vmem:[%s253 + $0x31d8] sm:$0xff]
        %v1980 = vld [vmem:[%s253 + $0x31e0] sm:$0xff]
        %v1981 = vld [vmem:[%s253 + $0x31e8] sm:$0xff]
        %v1982 = vld [vmem:[%s253 + $0x31f0] sm:$0xff]
        %v1983 = vld [vmem:[%s253 + $0x31f8] sm:$0xff]
        %v1984 = vld [vmem:[%s253 + $0x3200] sm:$0xff]
        %v1985 = vld [vmem:[%s253 + $0x3208] sm:$0xff]
        %v1986 = vld [vmem:[%s253 + $0x3210] sm:$0xff]
        %v1987 = vld [vmem:[%s253 + $0x3218] sm:$0xff]
        %v1988 = vld [vmem:[%s253 + $0x3220] sm:$0xff]
        %v1989 = vld [vmem:[%s253 + $0x3228] sm:$0xff]
        %v1990 = vld [vmem:[%s253 + $0x3230] sm:$0xff]
        %v1991 = vld [vmem:[%s253 + $0x3238] sm:$0xff]
        %v1992 = vld [vmem:[%s253 + $0x3240] sm:$0xff]
        %v1993 = vld [vmem:[%s253 + $0x3248] sm:$0xff]
        %v1994 = vld [vmem:[%s253 + $0x3250] sm:$0xff]
        %v1995 = vld [vmem:[%s253 + $0x3258] sm:$0xff]
        %v1996 = vld [vmem:[%s253 + $0x3260] sm:$0xff]
        %v1997 = vld [vmem:[%s253 + $0x3268] sm:$0xff]
        %v1998 = vld [vmem:[%s253 + $0x3270] sm:$0xff]
        %v1999 = vld [vmem:[%s253 + $0x3278] sm:$0xff]
        %v2000 = vld [vmem:[%s253 + $0x3280] sm:$0xff]
        %v2001 = vld [vmem:[%s253 + $0x3288] sm:$0xff]
        %v2002 = vld [vmem:[%s253 + $0x3290] sm:$0xff]
        %v2003 = vld [vmem:[%s253 + $0x3298] sm:$0xff]
        %v2004 = vld [vmem:[%s253 + $0x32a0] sm:$0xff]
        %v2005 = vld [vmem:[%s253 + $0x32a8] sm:$0xff]
        %v2006 = vld [vmem:[%s253 + $0x32b0] sm:$0xff]
        %v2007 = vld [vmem:[%s253 + $0x32b8] sm:$0xff]
        %v2008 = vld [vmem:[%s253 + $0x32c0] sm:$0xff]
        %v2009 = vld [vmem:[%s253 + $0x32c8] sm:$0xff]
        %v2010 = vld [vmem:[%s253 + $0x32d0] sm:$0xff]
        %v2011 = vld [vmem:[%s253 + $0x32d8] sm:$0xff]
        %v2012 = vld [vmem:[%s253 + $0x32e0] sm:$0xff]
        %v2013 = vld [vmem:[%s253 + $0x32e8] sm:$0xff]
        %v2014 = vld [vmem:[%s253 + $0x32f0] sm:$0xff]
        %v2015 = vld [vmem:[%s253 + $0x32f8] sm:$0xff]
        %v2016 = vld [vmem:[%s253 + $0x3300] sm:$0xff]
        %v2017 = vld [vmem:[%s253 + $0x3308] sm:$0xff]
        %v2018 = vld [vmem:[%s253 + $0x3310] sm:$0xff]
        %v2019 = vld [vmem:[%s253 + $0x3318] sm:$0xff]
        %v2020 = vld [vmem:[%s253 + $0x3320] sm:$0xff]
        %v2021 = vld [vmem:[%s253 + $0x3328] sm:$0xff]
        %v2022 = vld [vmem:[%s253 + $0x3330] sm:$0xff]
        %v2023 = vld [vmem:[%s253 + $0x3338] sm:$0xff]
        %v2024 = vld [vmem:[%s253 + $0x3340] sm:$0xff]
        %v2025 = vld [vmem:[%s253 + $0x3348] sm:$0xff]
        %v2026 = vld [vmem:[%s253 + $0x3350] sm:$0xff]
        %v2027 = vld [vmem:[%s253 + $0x3358] sm:$0xff]
        %v2028 = vld [vmem:[%s253 + $0x3360] sm:$0xff]
        %v2029 = vld [vmem:[%s253 + $0x3368] sm:$0xff]
        %v2030 = vld [vmem:[%s253 + $0x3370] sm:$0xff]
        %v2031 = vld [vmem:[%s253 + $0x3378] sm:$0xff]
        %v2032 = vld [vmem:[%s253 + $0x3380] sm:$0xff]
        %v2033 = vld [vmem:[%s253 + $0x3388] sm:$0xff]
        %v2034 = vld [vmem:[%s253 + $0x3390] sm:$0xff]
        %v2035 = vld [vmem:[%s253 + $0x3398] sm:$0xff]
        %v2036 = vld [vmem:[%s253 + $0x33a0] sm:$0xff]
        %v2037 = vld [vmem:[%s253 + $0x33a8] sm:$0xff]
        %v2038 = vld [vmem:[%s253 + $0x33b0] sm:$0xff]
        %v2039 = vld [vmem:[%s253 + $0x33b8] sm:$0xff]
        %v2040 = vld [vmem:[%s253 + $0x33c0] sm:$0xff]
        %v2041 = vld [vmem:[%s253 + $0x33c8] sm:$0xff]
        %v2042 = vld [vmem:[%s253 + $0x33d0] sm:$0xff]
        %v2043 = vld [vmem:[%s253 + $0x33d8] sm:$0xff]
        %v2044 = vld [vmem:[%s253 + $0x33e0] sm:$0xff]
        %v2045 = vld [vmem:[%s253 + $0x33e8] sm:$0xff]
        %v2046 = vld [vmem:[%s253 + $0x33f0] sm:$0xff]
        %v2047 = vld [vmem:[%s253 + $0x33f8] sm:$0xff]
        %v2048 = vld [vmem:[%s253 + $0x3400] sm:$0xff]
        %v2049 = vld [vmem:[%s253 + $0x3408] sm:$0xff]
        %v2050 = vld [vmem:[%s253 + $0x3410] sm:$0xff]
        %v2051 = vld [vmem:[%s253 + $0x3418] sm:$0xff]
        %v2052 = vld [vmem:[%s253 + $0x3420] sm:$0xff]
        %v2053 = vld [vmem:[%s253 + $0x3428] sm:$0xff]
        %v2054 = vld [vmem:[%s253 + $0x3430] sm:$0xff]
        %v2055 = vld [vmem:[%s253 + $0x3438] sm:$0xff]
        %v2056 = vld [vmem:[%s253 + $0x3440] sm:$0xff]
        %v2057 = vld [vmem:[%s253 + $0x3448] sm:$0xff]
        %v2058 = vld [vmem:[%s253 + $0x3450] sm:$0xff]
        %v2059 = vld [vmem:[%s253 + $0x3458] sm:$0xff]
        %v2060 = vld [vmem:[%s253 + $0x3460] sm:$0xff]
        %v2061 = vld [vmem:[%s253 + $0x3468] sm:$0xff]
        %v2062 = vld [vmem:[%s253 + $0x3470] sm:$0xff]
        %v2063 = vld [vmem:[%s253 + $0x3478] sm:$0xff]
        %v2064 = vld [vmem:[%s253 + $0x3480] sm:$0xff]
        %v2065 = vld [vmem:[%s253 + $0x3488] sm:$0xff]
        %v2066 = vld [vmem:[%s253 + $0x3490] sm:$0xff]
        %v2067 = vld [vmem:[%s253 + $0x3498] sm:$0xff]
        %v2068 = vld [vmem:[%s253 + $0x34a0] sm:$0xff]
        %v2069 = vld [vmem:[%s253 + $0x34a8] sm:$0xff]
        %v2070 = vld [vmem:[%s253 + $0x34b0] sm:$0xff]
        %v2071 = vld [vmem:[%s253 + $0x34b8] sm:$0xff]
        %v2072 = vld [vmem:[%s253 + $0x34c0] sm:$0xff]
        %v2073 = vld [vmem:[%s253 + $0x34c8] sm:$0xff]
        %v2074 = vld [vmem:[%s253 + $0x34d0] sm:$0xff]
        %v2075 = vld [vmem:[%s253 + $0x34d8] sm:$0xff]
        %v2076 = vld [vmem:[%s253 + $0x34e0] sm:$0xff]
        %v2077 = vld [vmem:[%s253 + $0x34e8] sm:$0xff]
        %v2078 = vld [vmem:[%s253 + $0x34f0] sm:$0xff]
        %v2079 = vld [vmem:[%s253 + $0x34f8] sm:$0xff]
        %v2080 = vld [vmem:[%s253 + $0x3500] sm:$0xff]
        %v2081 = vld [vmem:[%s253 + $0x3508] sm:$0xff]
        %v2082 = vld [vmem:[%s253 + $0x3510] sm:$0xff]
        %v2083 = vld [vmem:[%s253 + $0x3518] sm:$0xff]
        %v2084 = vld [vmem:[%s253 + $0x3520] sm:$0xff]
        %v2085 = vld [vmem:[%s253 + $0x3528] sm:$0xff]
        %v2086 = vld [vmem:[%s253 + $0x3530] sm:$0xff]
        %v2087 = vld [vmem:[%s253 + $0x3538] sm:$0xff]
        %v2088 = vld [vmem:[%s253 + $0x3540] sm:$0xff]
        %v2089 = vld [vmem:[%s253 + $0x3548] sm:$0xff]
        %v2090 = vld [vmem:[%s253 + $0x3550] sm:$0xff]
        %v2091 = vld [vmem:[%s253 + $0x3558] sm:$0xff]
        %v2092 = vld [vmem:[%s253 + $0x3560] sm:$0xff]
        %v2093 = vld [vmem:[%s253 + $0x3568] sm:$0xff]
        %v2094 = vld [vmem:[%s253 + $0x3570] sm:$0xff]
        %v2095 = vld [vmem:[%s253 + $0x3578] sm:$0xff]
        %v2096 = vld [vmem:[%s253 + $0x3580] sm:$0xff]
        %v2097 = vld [vmem:[%s253 + $0x3588] sm:$0xff]
        %v2098 = vld [vmem:[%s253 + $0x3590] sm:$0xff]
        %v2099 = vld [vmem:[%s253 + $0x3598] sm:$0xff]
        %v2100 = vld [vmem:[%s253 + $0x35a0] sm:$0xff]
        %v2101 = vld [vmem:[%s253 + $0x35a8] sm:$0xff]
        %v2102 = vld [vmem:[%s253 + $0x35b0] sm:$0xff]
        %v2103 = vld [vmem:[%s253 + $0x35b8] sm:$0xff]
        %v2104 = vld [vmem:[%s253 + $0x35c0] sm:$0xff]
        %v2105 = vld [vmem:[%s253 + $0x35c8] sm:$0xff]
        %v2106 = vld [vmem:[%s253 + $0x35d0] sm:$0xff]
        %v2107 = vld [vmem:[%s253 + $0x35d8] sm:$0xff]
        %v2108 = vld [vmem:[%s253 + $0x35e0] sm:$0xff]
        %v2109 = vld [vmem:[%s253 + $0x35e8] sm:$0xff]
        %v2110 = vld [vmem:[%s253 + $0x35f0] sm:$0xff]
        %v2111 = vld [vmem:[%s253 + $0x35f8] sm:$0xff]
        %v2112 = vld [vmem:[%s253 + $0x3600] sm:$0xff]
        %v2113 = vld [vmem:[%s253 + $0x3608] sm:$0xff]
        %v2114 = vld [vmem:[%s253 + $0x3610] sm:$0xff]
        %v2115 = vld [vmem:[%s253 + $0x3618] sm:$0xff]
        %v2116 = vld [vmem:[%s253 + $0x3620] sm:$0xff]
        %v2117 = vld [vmem:[%s253 + $0x3628] sm:$0xff]
        %v2118 = vld [vmem:[%s253 + $0x3630] sm:$0xff]
        %v2119 = vld [vmem:[%s253 + $0x3638] sm:$0xff]
        %v2120 = vld [vmem:[%s253 + $0x3640] sm:$0xff]
        %v2121 = vld [vmem:[%s253 + $0x3648] sm:$0xff]
        %v2122 = vld [vmem:[%s253 + $0x3650] sm:$0xff]
        %v2123 = vld [vmem:[%s253 + $0x3658] sm:$0xff]
        %v2124 = vld [vmem:[%s253 + $0x3660] sm:$0xff]
        %v2125 = vld [vmem:[%s253 + $0x3668] sm:$0xff]
        %v2126 = vld [vmem:[%s253 + $0x3670] sm:$0xff]
        %v2127 = vld [vmem:[%s253 + $0x3678] sm:$0xff]
        %v2128 = vld [vmem:[%s253 + $0x3680] sm:$0xff]
        %v2129 = vld [vmem:[%s253 + $0x3688] sm:$0xff]
        %v2130 = vld [vmem:[%s253 + $0x3690] sm:$0xff]
        %v2131 = vld [vmem:[%s253 + $0x3698] sm:$0xff]
        %v2132 = vld [vmem:[%s253 + $0x36a0] sm:$0xff]
        %v2133 = vld [vmem:[%s253 + $0x36a8] sm:$0xff]
        %v2134 = vld [vmem:[%s253 + $0x36b0] sm:$0xff]
        %v2135 = vld [vmem:[%s253 + $0x36b8] sm:$0xff]
        %v2136 = vld [vmem:[%s253 + $0x36c0] sm:$0xff]
        %v2137 = vld [vmem:[%s253 + $0x36c8] sm:$0xff]
        %v2138 = vld [vmem:[%s253 + $0x36d0] sm:$0xff]
        %v2139 = vld [vmem:[%s253 + $0x36d8] sm:$0xff]
        %v2140 = vld [vmem:[%s253 + $0x36e0] sm:$0xff]
        %v2141 = vld [vmem:[%s253 + $0x36e8] sm:$0xff]
        %v2142 = vld [vmem:[%s253 + $0x36f0] sm:$0xff]
        %v2143 = vld [vmem:[%s253 + $0x36f8] sm:$0xff]
        %v2144 = vld [vmem:[%s253 + $0x3700] sm:$0xff]
        %v2145 = vld [vmem:[%s253 + $0x3708] sm:$0xff]
        %v2146 = vld [vmem:[%s253 + $0x3710] sm:$0xff]
        %v2147 = vld [vmem:[%s253 + $0x3718] sm:$0xff]
        %v2148 = vld [vmem:[%s253 + $0x3720] sm:$0xff]
        %v2149 = vld [vmem:[%s253 + $0x3728] sm:$0xff]
        %v2150 = vld [vmem:[%s253 + $0x3730] sm:$0xff]
        %v2151 = vld [vmem:[%s253 + $0x3738] sm:$0xff]
        %v2152 = vld [vmem:[%s253 + $0x3740] sm:$0xff]
        %v2153 = vld [vmem:[%s253 + $0x3748] sm:$0xff]
        %v2154 = vld [vmem:[%s253 + $0x3750] sm:$0xff]
        %v2155 = vld [vmem:[%s253 + $0x3758] sm:$0xff]
        %v2156 = vld [vmem:[%s253 + $0x3760] sm:$0xff]
        %v2157 = vld [vmem:[%s253 + $0x3768] sm:$0xff]
        %v2158 = vld [vmem:[%s253 + $0x3770] sm:$0xff]
        %v2159 = vld [vmem:[%s253 + $0x3778] sm:$0xff]
        %v2160 = vld [vmem:[%s253 + $0x3780] sm:$0xff]
        %v2161 = vld [vmem:[%s253 + $0x3788] sm:$0xff]
        %v2162 = vld [vmem:[%s253 + $0x3790] sm:$0xff]
        %v2163 = vld [vmem:[%s253 + $0x3798] sm:$0xff]
        %v2164 = vld [vmem:[%s253 + $0x37a0] sm:$0xff]
        %v2165 = vld [vmem:[%s253 + $0x37a8] sm:$0xff]
        %v2166 = vld [vmem:[%s253 + $0x37b0] sm:$0xff]
        %v2167 = vld [vmem:[%s253 + $0x37b8] sm:$0xff]
        %v2168 = vld [vmem:[%s253 + $0x37c0] sm:$0xff]
        %v2169 = vld [vmem:[%s253 + $0x37c8] sm:$0xff]
        %v2170 = vld [vmem:[%s253 + $0x37d0] sm:$0xff]
        %v2171 = vld [vmem:[%s253 + $0x37d8] sm:$0xff]
        %v2172 = vld [vmem:[%s253 + $0x37e0] sm:$0xff]
        %v2173 = vld [vmem:[%s253 + $0x37e8] sm:$0xff]
        %v2174 = vld [vmem:[%s253 + $0x37f0] sm:$0xff]
        %v2175 = vld [vmem:[%s253 + $0x37f8] sm:$0xff]
        %v2190 = vunpack.c.l.b16 %v370
        %v2191 = vunpack.c.h.b16 %v370
        %v2192 = vunpack.c.l.b16 %v371
        %v2193 = vunpack.c.h.b16 %v371
        %v2194 = vunpack.c.l.b16 %v372
        %v2195 = vunpack.c.h.b16 %v372
        %v2196 = vunpack.c.l.b16 %v373
        %v2197 = vunpack.c.h.b16 %v373
        %v2198 = vunpack.c.l.b16 %v374
        %v2199 = vunpack.c.h.b16 %v374
        %v2200 = vunpack.c.l.b16 %v375
        %v2201 = vunpack.c.h.b16 %v375
        %v2202 = vunpack.c.l.b16 %v376
        %v2203 = vunpack.c.h.b16 %v376
        %v2204 = vunpack.c.l.b16 %v377
        %v2205 = vunpack.c.h.b16 %v377
        %v2206 = vunpack.c.l.b16 %v378
        %v2207 = vunpack.c.h.b16 %v378
        %v2208 = vunpack.c.l.b16 %v379
        %v2209 = vunpack.c.h.b16 %v379
        %v2210 = vunpack.c.l.b16 %v380
        %v2211 = vunpack.c.h.b16 %v380
        %v2212 = vunpack.c.l.b16 %v381
        %v2213 = vunpack.c.h.b16 %v381
        %v2214 = vunpack.c.l.b16 %v382
        %v2215 = vunpack.c.h.b16 %v382
        %v2216 = vunpack.c.l.b16 %v383
        %v2217 = vunpack.c.h.b16 %v383
        %v2218 = vpack.c.b16 %v2204, %v2190
        %v2219 = vpack.c.b16 %v2205, %v2191
        %v2220 = vpack.c.b16 %v2206, %v2192
        %v2221 = vpack.c.b16 %v2207, %v2193
        %v2222 = vpack.c.b16 %v2208, %v2194
        %v2223 = vpack.c.b16 %v2209, %v2195
        %v2224 = vpack.c.b16 %v2210, %v2196
        %v2225 = vpack.c.b16 %v2211, %v2197
        %v2226 = vpack.c.b16 %v2212, %v2198
        %v2227 = vpack.c.b16 %v2213, %v2199
        %v2228 = vpack.c.b16 %v2214, %v2200
        %v2229 = vpack.c.b16 %v2215, %v2201
        %v2230 = vpack.c.b16 %v2216, %v2202
        %v2231 = vpack.c.b16 %v2217, %v2203
        %v4038 = vunpack.c.l.b16 %v384
        %v4039 = vunpack.c.h.b16 %v384
        %v4040 = vunpack.c.l.b16 %v385
        %v4041 = vunpack.c.h.b16 %v385
        %v4042 = vunpack.c.l.b16 %v386
        %v4043 = vunpack.c.h.b16 %v386
        %v4044 = vunpack.c.l.b16 %v387
        %v4045 = vunpack.c.h.b16 %v387
        %v4046 = vunpack.c.l.b16 %v388
        %v4047 = vunpack.c.h.b16 %v388
        %v4048 = vunpack.c.l.b16 %v389
        %v4049 = vunpack.c.h.b16 %v389
        %v4050 = vunpack.c.l.b16 %v390
        %v4051 = vunpack.c.h.b16 %v390
        %v4052 = vunpack.c.l.b16 %v391
        %v4053 = vunpack.c.h.b16 %v391
        %v4054 = vunpack.c.l.b16 %v392
        %v4055 = vunpack.c.h.b16 %v392
        %v4056 = vunpack.c.l.b16 %v393
        %v4057 = vunpack.c.h.b16 %v393
        %v4058 = vunpack.c.l.b16 %v394
        %v4059 = vunpack.c.h.b16 %v394
        %v4060 = vunpack.c.l.b16 %v395
        %v4061 = vunpack.c.h.b16 %v395
        %v4062 = vunpack.c.l.b16 %v396
        %v4063 = vunpack.c.h.b16 %v396
        %v4064 = vunpack.c.l.b16 %v397
        %v4065 = vunpack.c.h.b16 %v397
        %v4066 = vunpack.c.l.b16 %v398
        %v4067 = vunpack.c.h.b16 %v398
        %v4068 = vunpack.c.l.b16 %v399
        %v4069 = vunpack.c.h.b16 %v399
        %v4070 = vunpack.c.l.b16 %v400
        %v4071 = vunpack.c.h.b16 %v400
        %v4072 = vunpack.c.l.b16 %v401
        %v4073 = vunpack.c.h.b16 %v401
        %v4074 = vunpack.c.l.b16 %v402
        %v4075 = vunpack.c.h.b16 %v402
        %v4076 = vunpack.c.l.b16 %v403
        %v4077 = vunpack.c.h.b16 %v403
        %v4078 = vunpack.c.l.b16 %v404
        %v4079 = vunpack.c.h.b16 %v404
        %v4080 = vunpack.c.l.b16 %v405
        %v4081 = vunpack.c.h.b16 %v405
        %v4082 = vunpack.c.l.b16 %v406
        %v4083 = vunpack.c.h.b16 %v406
        %v4084 = vunpack.c.l.b16 %v407
        %v4085 = vunpack.c.h.b16 %v407
        %v4086 = vunpack.c.l.b16 %v408
        %v4087 = vunpack.c.h.b16 %v408
        %v4088 = vunpack.c.l.b16 %v409
        %v4089 = vunpack.c.h.b16 %v409
        %v4090 = vunpack.c.l.b16 %v410
        %v4091 = vunpack.c.h.b16 %v410
        %v4092 = vunpack.c.l.b16 %v411
        %v4093 = vunpack.c.h.b16 %v411
        %v4094 = vunpack.c.l.b16 %v412
        %v4095 = vunpack.c.h.b16 %v412
        %v4096 = vunpack.c.l.b16 %v413
        %v4097 = vunpack.c.h.b16 %v413
        %v4098 = vunpack.c.l.b16 %v414
        %v4099 = vunpack.c.h.b16 %v414
        %v4100 = vunpack.c.l.b16 %v415
        %v4101 = vunpack.c.h.b16 %v415
        %v4102 = vunpack.c.l.b16 %v416
        %v4103 = vunpack.c.h.b16 %v416
        %v4104 = vunpack.c.l.b16 %v417
        %v4105 = vunpack.c.h.b16 %v417
        %v4106 = vunpack.c.l.b16 %v418
        %v4107 = vunpack.c.h.b16 %v418
        %v4108 = vunpack.c.l.b16 %v419
        %v4109 = vunpack.c.h.b16 %v419
        %v4110 = vunpack.c.l.b16 %v420
        %v4111 = vunpack.c.h.b16 %v420
        %v4112 = vunpack.c.l.b16 %v421
        %v4113 = vunpack.c.h.b16 %v421
        %v4114 = vunpack.c.l.b16 %v422
        %v4115 = vunpack.c.h.b16 %v422
        %v4116 = vunpack.c.l.b16 %v423
        %v4117 = vunpack.c.h.b16 %v423
        %v4118 = vunpack.c.l.b16 %v424
        %v4119 = vunpack.c.h.b16 %v424
        %v4120 = vunpack.c.l.b16 %v425
        %v4121 = vunpack.c.h.b16 %v425
        %v4122 = vunpack.c.l.b16 %v426
        %v4123 = vunpack.c.h.b16 %v426
        %v4124 = vunpack.c.l.b16 %v427
        %v4125 = vunpack.c.h.b16 %v427
        %v4126 = vunpack.c.l.b16 %v428
        %v4127 = vunpack.c.h.b16 %v428
        %v4128 = vunpack.c.l.b16 %v429
        %v4129 = vunpack.c.h.b16 %v429
        %v4130 = vunpack.c.l.b16 %v430
        %v4131 = vunpack.c.h.b16 %v430
        %v4132 = vunpack.c.l.b16 %v431
        %v4133 = vunpack.c.h.b16 %v431
        %v4134 = vunpack.c.l.b16 %v432
        %v4135 = vunpack.c.h.b16 %v432
        %v4136 = vunpack.c.l.b16 %v433
        %v4137 = vunpack.c.h.b16 %v433
        %v4138 = vunpack.c.l.b16 %v434
        %v4139 = vunpack.c.h.b16 %v434
        %v4140 = vunpack.c.l.b16 %v435
        %v4141 = vunpack.c.h.b16 %v435
        %v4142 = vunpack.c.l.b16 %v436
        %v4143 = vunpack.c.h.b16 %v436
        %v4144 = vunpack.c.l.b16 %v437
        %v4145 = vunpack.c.h.b16 %v437
        %v4146 = vunpack.c.l.b16 %v438
        %v4147 = vunpack.c.h.b16 %v438
        %v4148 = vunpack.c.l.b16 %v439
        %v4149 = vunpack.c.h.b16 %v439
        %v4150 = vunpack.c.l.b16 %v440
        %v4151 = vunpack.c.h.b16 %v440
        %v4152 = vunpack.c.l.b16 %v441
        %v4153 = vunpack.c.h.b16 %v441
        %v4154 = vunpack.c.l.b16 %v442
        %v4155 = vunpack.c.h.b16 %v442
        %v4156 = vunpack.c.l.b16 %v443
        %v4157 = vunpack.c.h.b16 %v443
        %v4158 = vunpack.c.l.b16 %v444
        %v4159 = vunpack.c.h.b16 %v444
        %v4160 = vunpack.c.l.b16 %v445
        %v4161 = vunpack.c.h.b16 %v445
        %v4162 = vunpack.c.l.b16 %v446
        %v4163 = vunpack.c.h.b16 %v446
        %v4164 = vunpack.c.l.b16 %v447
        %v4165 = vunpack.c.h.b16 %v447
        %v4166 = vunpack.c.l.b16 %v448
        %v4167 = vunpack.c.h.b16 %v448
        %v4168 = vunpack.c.l.b16 %v449
        %v4169 = vunpack.c.h.b16 %v449
        %v4170 = vunpack.c.l.b16 %v450
        %v4171 = vunpack.c.h.b16 %v450
        %v4172 = vunpack.c.l.b16 %v451
        %v4173 = vunpack.c.h.b16 %v451
        %v4174 = vunpack.c.l.b16 %v452
        %v4175 = vunpack.c.h.b16 %v452
        %v4176 = vunpack.c.l.b16 %v453
        %v4177 = vunpack.c.h.b16 %v453
        %v4178 = vunpack.c.l.b16 %v454
        %v4179 = vunpack.c.h.b16 %v454
        %v4180 = vunpack.c.l.b16 %v455
        %v4181 = vunpack.c.h.b16 %v455
        %v4182 = vunpack.c.l.b16 %v456
        %v4183 = vunpack.c.h.b16 %v456
        %v4184 = vunpack.c.l.b16 %v457
        %v4185 = vunpack.c.h.b16 %v457
        %v4186 = vunpack.c.l.b16 %v458
        %v4187 = vunpack.c.h.b16 %v458
        %v4188 = vunpack.c.l.b16 %v459
        %v4189 = vunpack.c.h.b16 %v459
        %v4190 = vunpack.c.l.b16 %v460
        %v4191 = vunpack.c.h.b16 %v460
        %v4192 = vunpack.c.l.b16 %v461
        %v4193 = vunpack.c.h.b16 %v461
        %v4194 = vunpack.c.l.b16 %v462
        %v4195 = vunpack.c.h.b16 %v462
        %v4196 = vunpack.c.l.b16 %v463
        %v4197 = vunpack.c.h.b16 %v463
        %v4198 = vunpack.c.l.b16 %v464
        %v4199 = vunpack.c.h.b16 %v464
        %v4200 = vunpack.c.l.b16 %v465
        %v4201 = vunpack.c.h.b16 %v465
        %v4202 = vunpack.c.l.b16 %v466
        %v4203 = vunpack.c.h.b16 %v466
        %v4204 = vunpack.c.l.b16 %v467
        %v4205 = vunpack.c.h.b16 %v467
        %v4206 = vunpack.c.l.b16 %v468
        %v4207 = vunpack.c.h.b16 %v468
        %v4208 = vunpack.c.l.b16 %v469
        %v4209 = vunpack.c.h.b16 %v469
        %v4210 = vunpack.c.l.b16 %v470
        %v4211 = vunpack.c.h.b16 %v470
        %v4212 = vunpack.c.l.b16 %v471
        %v4213 = vunpack.c.h.b16 %v471
        %v4214 = vunpack.c.l.b16 %v472
        %v4215 = vunpack.c.h.b16 %v472
        %v4216 = vunpack.c.l.b16 %v473
        %v4217 = vunpack.c.h.b16 %v473
        %v4218 = vunpack.c.l.b16 %v474
        %v4219 = vunpack.c.h.b16 %v474
        %v4220 = vunpack.c.l.b16 %v475
        %v4221 = vunpack.c.h.b16 %v475
        %v4222 = vunpack.c.l.b16 %v476
        %v4223 = vunpack.c.h.b16 %v476
        %v4224 = vunpack.c.l.b16 %v477
        %v4225 = vunpack.c.h.b16 %v477
        %v4226 = vunpack.c.l.b16 %v478
        %v4227 = vunpack.c.h.b16 %v478
        %v4228 = vunpack.c.l.b16 %v479
        %v4229 = vunpack.c.h.b16 %v479
        %v4230 = vunpack.c.l.b16 %v480
        %v4231 = vunpack.c.h.b16 %v480
        %v4232 = vunpack.c.l.b16 %v481
        %v4233 = vunpack.c.h.b16 %v481
        %v4234 = vunpack.c.l.b16 %v482
        %v4235 = vunpack.c.h.b16 %v482
        %v4236 = vunpack.c.l.b16 %v483
        %v4237 = vunpack.c.h.b16 %v483
        %v4238 = vunpack.c.l.b16 %v484
        %v4239 = vunpack.c.h.b16 %v484
        %v4240 = vunpack.c.l.b16 %v485
        %v4241 = vunpack.c.h.b16 %v485
        %v4242 = vunpack.c.l.b16 %v486
        %v4243 = vunpack.c.h.b16 %v486
        %v4244 = vunpack.c.l.b16 %v487
        %v4245 = vunpack.c.h.b16 %v487
        %v4246 = vunpack.c.l.b16 %v488
        %v4247 = vunpack.c.h.b16 %v488
        %v4248 = vunpack.c.l.b16 %v489
        %v4249 = vunpack.c.h.b16 %v489
        %v4250 = vunpack.c.l.b16 %v490
        %v4251 = vunpack.c.h.b16 %v490
        %v4252 = vunpack.c.l.b16 %v491
        %v4253 = vunpack.c.h.b16 %v491
        %v4254 = vunpack.c.l.b16 %v492
        %v4255 = vunpack.c.h.b16 %v492
        %v4256 = vunpack.c.l.b16 %v493
        %v4257 = vunpack.c.h.b16 %v493
        %v4258 = vunpack.c.l.b16 %v494
        %v4259 = vunpack.c.h.b16 %v494
        %v4260 = vunpack.c.l.b16 %v495
        %v4261 = vunpack.c.h.b16 %v495
        %v4262 = vunpack.c.l.b16 %v496
        %v4263 = vunpack.c.h.b16 %v496
        %v4264 = vunpack.c.l.b16 %v497
        %v4265 = vunpack.c.h.b16 %v497
        %v4266 = vunpack.c.l.b16 %v498
        %v4267 = vunpack.c.h.b16 %v498
        %v4268 = vunpack.c.l.b16 %v499
        %v4269 = vunpack.c.h.b16 %v499
        %v4270 = vunpack.c.l.b16 %v500
        %v4271 = vunpack.c.h.b16 %v500
        %v4272 = vunpack.c.l.b16 %v501
        %v4273 = vunpack.c.h.b16 %v501
        %v4274 = vunpack.c.l.b16 %v502
        %v4275 = vunpack.c.h.b16 %v502
        %v4276 = vunpack.c.l.b16 %v503
        %v4277 = vunpack.c.h.b16 %v503
        %v4278 = vunpack.c.l.b16 %v504
        %v4279 = vunpack.c.h.b16 %v504
        %v4280 = vunpack.c.l.b16 %v505
        %v4281 = vunpack.c.h.b16 %v505
        %v4282 = vunpack.c.l.b16 %v506
        %v4283 = vunpack.c.h.b16 %v506
        %v4284 = vunpack.c.l.b16 %v507
        %v4285 = vunpack.c.h.b16 %v507
        %v4286 = vunpack.c.l.b16 %v508
        %v4287 = vunpack.c.h.b16 %v508
        %v4288 = vunpack.c.l.b16 %v509
        %v4289 = vunpack.c.h.b16 %v509
        %v4290 = vunpack.c.l.b16 %v510
        %v4291 = vunpack.c.h.b16 %v510
        %v4292 = vunpack.c.l.b16 %v511
        %v4293 = vunpack.c.h.b16 %v511
        %v4294 = vunpack.c.l.b16 %v512
        %v4295 = vunpack.c.h.b16 %v512
        %v4296 = vunpack.c.l.b16 %v513
        %v4297 = vunpack.c.h.b16 %v513
        %v4298 = vunpack.c.l.b16 %v514
        %v4299 = vunpack.c.h.b16 %v514
        %v4300 = vunpack.c.l.b16 %v515
        %v4301 = vunpack.c.h.b16 %v515
        %v4302 = vunpack.c.l.b16 %v516
        %v4303 = vunpack.c.h.b16 %v516
        %v4304 = vunpack.c.l.b16 %v517
        %v4305 = vunpack.c.h.b16 %v517
        %v4306 = vunpack.c.l.b16 %v518
        %v4307 = vunpack.c.h.b16 %v518
        %v4308 = vunpack.c.l.b16 %v519
        %v4309 = vunpack.c.h.b16 %v519
        %v4310 = vunpack.c.l.b16 %v520
        %v4311 = vunpack.c.h.b16 %v520
        %v4312 = vunpack.c.l.b16 %v521
        %v4313 = vunpack.c.h.b16 %v521
        %v4314 = vunpack.c.l.b16 %v522
        %v4315 = vunpack.c.h.b16 %v522
        %v4316 = vunpack.c.l.b16 %v523
        %v4317 = vunpack.c.h.b16 %v523
        %v4318 = vunpack.c.l.b16 %v524
        %v4319 = vunpack.c.h.b16 %v524
        %v4320 = vunpack.c.l.b16 %v525
        %v4321 = vunpack.c.h.b16 %v525
        %v4322 = vunpack.c.l.b16 %v526
        %v4323 = vunpack.c.h.b16 %v526
        %v4324 = vunpack.c.l.b16 %v527
        %v4325 = vunpack.c.h.b16 %v527
        %v4326 = vunpack.c.l.b16 %v528
        %v4327 = vunpack.c.h.b16 %v528
        %v4328 = vunpack.c.l.b16 %v529
        %v4329 = vunpack.c.h.b16 %v529
        %v4330 = vunpack.c.l.b16 %v530
        %v4331 = vunpack.c.h.b16 %v530
        %v4332 = vunpack.c.l.b16 %v531
        %v4333 = vunpack.c.h.b16 %v531
        %v4334 = vunpack.c.l.b16 %v532
        %v4335 = vunpack.c.h.b16 %v532
        %v4336 = vunpack.c.l.b16 %v533
        %v4337 = vunpack.c.h.b16 %v533
        %v4338 = vunpack.c.l.b16 %v534
        %v4339 = vunpack.c.h.b16 %v534
        %v4340 = vunpack.c.l.b16 %v535
        %v4341 = vunpack.c.h.b16 %v535
        %v4342 = vunpack.c.l.b16 %v536
        %v4343 = vunpack.c.h.b16 %v536
        %v4344 = vunpack.c.l.b16 %v537
        %v4345 = vunpack.c.h.b16 %v537
        %v4346 = vunpack.c.l.b16 %v538
        %v4347 = vunpack.c.h.b16 %v538
        %v4348 = vunpack.c.l.b16 %v539
        %v4349 = vunpack.c.h.b16 %v539
        %v4350 = vunpack.c.l.b16 %v540
        %v4351 = vunpack.c.h.b16 %v540
        %v4352 = vunpack.c.l.b16 %v541
        %v4353 = vunpack.c.h.b16 %v541
        %v4354 = vunpack.c.l.b16 %v542
        %v4355 = vunpack.c.h.b16 %v542
        %v4356 = vunpack.c.l.b16 %v543
        %v4357 = vunpack.c.h.b16 %v543
        %v4358 = vunpack.c.l.b16 %v544
        %v4359 = vunpack.c.h.b16 %v544
        %v4360 = vunpack.c.l.b16 %v545
        %v4361 = vunpack.c.h.b16 %v545
        %v4362 = vunpack.c.l.b16 %v546
        %v4363 = vunpack.c.h.b16 %v546
        %v4364 = vunpack.c.l.b16 %v547
        %v4365 = vunpack.c.h.b16 %v547
        %v4366 = vunpack.c.l.b16 %v548
        %v4367 = vunpack.c.h.b16 %v548
        %v4368 = vunpack.c.l.b16 %v549
        %v4369 = vunpack.c.h.b16 %v549
        %v4370 = vunpack.c.l.b16 %v550
        %v4371 = vunpack.c.h.b16 %v550
        %v4372 = vunpack.c.l.b16 %v551
        %v4373 = vunpack.c.h.b16 %v551
        %v4374 = vunpack.c.l.b16 %v552
        %v4375 = vunpack.c.h.b16 %v552
        %v4376 = vunpack.c.l.b16 %v553
        %v4377 = vunpack.c.h.b16 %v553
        %v4378 = vunpack.c.l.b16 %v554
        %v4379 = vunpack.c.h.b16 %v554
        %v4380 = vunpack.c.l.b16 %v555
        %v4381 = vunpack.c.h.b16 %v555
        %v4382 = vunpack.c.l.b16 %v556
        %v4383 = vunpack.c.h.b16 %v556
        %v4384 = vunpack.c.l.b16 %v557
        %v4385 = vunpack.c.h.b16 %v557
        %v4386 = vunpack.c.l.b16 %v558
        %v4387 = vunpack.c.h.b16 %v558
        %v4388 = vunpack.c.l.b16 %v559
        %v4389 = vunpack.c.h.b16 %v559
        %v4390 = vunpack.c.l.b16 %v560
        %v4391 = vunpack.c.h.b16 %v560
        %v4392 = vunpack.c.l.b16 %v561
        %v4393 = vunpack.c.h.b16 %v561
        %v4394 = vunpack.c.l.b16 %v562
        %v4395 = vunpack.c.h.b16 %v562
        %v4396 = vunpack.c.l.b16 %v563
        %v4397 = vunpack.c.h.b16 %v563
        %v4398 = vunpack.c.l.b16 %v564
        %v4399 = vunpack.c.h.b16 %v564
        %v4400 = vunpack.c.l.b16 %v565
        %v4401 = vunpack.c.h.b16 %v565
        %v4402 = vunpack.c.l.b16 %v566
        %v4403 = vunpack.c.h.b16 %v566
        %v4404 = vunpack.c.l.b16 %v567
        %v4405 = vunpack.c.h.b16 %v567
        %v4406 = vunpack.c.l.b16 %v568
        %v4407 = vunpack.c.h.b16 %v568
        %v4408 = vunpack.c.l.b16 %v569
        %v4409 = vunpack.c.h.b16 %v569
        %v4410 = vunpack.c.l.b16 %v570
        %v4411 = vunpack.c.h.b16 %v570
        %v4412 = vunpack.c.l.b16 %v571
        %v4413 = vunpack.c.h.b16 %v571
        %v4414 = vunpack.c.l.b16 %v572
        %v4415 = vunpack.c.h.b16 %v572
        %v4416 = vunpack.c.l.b16 %v573
        %v4417 = vunpack.c.h.b16 %v573
        %v4418 = vunpack.c.l.b16 %v574
        %v4419 = vunpack.c.h.b16 %v574
        %v4420 = vunpack.c.l.b16 %v575
        %v4421 = vunpack.c.h.b16 %v575
        %v4422 = vunpack.c.l.b16 %v576
        %v4423 = vunpack.c.h.b16 %v576
        %v4424 = vunpack.c.l.b16 %v577
        %v4425 = vunpack.c.h.b16 %v577
        %v4426 = vunpack.c.l.b16 %v578
        %v4427 = vunpack.c.h.b16 %v578
        %v4428 = vunpack.c.l.b16 %v579
        %v4429 = vunpack.c.h.b16 %v579
        %v4430 = vunpack.c.l.b16 %v580
        %v4431 = vunpack.c.h.b16 %v580
        %v4432 = vunpack.c.l.b16 %v581
        %v4433 = vunpack.c.h.b16 %v581
        %v4434 = vunpack.c.l.b16 %v582
        %v4435 = vunpack.c.h.b16 %v582
        %v4436 = vunpack.c.l.b16 %v583
        %v4437 = vunpack.c.h.b16 %v583
        %v4438 = vunpack.c.l.b16 %v584
        %v4439 = vunpack.c.h.b16 %v584
        %v4440 = vunpack.c.l.b16 %v585
        %v4441 = vunpack.c.h.b16 %v585
        %v4442 = vunpack.c.l.b16 %v586
        %v4443 = vunpack.c.h.b16 %v586
        %v4444 = vunpack.c.l.b16 %v587
        %v4445 = vunpack.c.h.b16 %v587
        %v4446 = vunpack.c.l.b16 %v588
        %v4447 = vunpack.c.h.b16 %v588
        %v4448 = vunpack.c.l.b16 %v589
        %v4449 = vunpack.c.h.b16 %v589
        %v4450 = vunpack.c.l.b16 %v590
        %v4451 = vunpack.c.h.b16 %v590
        %v4452 = vunpack.c.l.b16 %v591
        %v4453 = vunpack.c.h.b16 %v591
        %v4454 = vunpack.c.l.b16 %v592
        %v4455 = vunpack.c.h.b16 %v592
        %v4456 = vunpack.c.l.b16 %v593
        %v4457 = vunpack.c.h.b16 %v593
        %v4458 = vunpack.c.l.b16 %v594
        %v4459 = vunpack.c.h.b16 %v594
        %v4460 = vunpack.c.l.b16 %v595
        %v4461 = vunpack.c.h.b16 %v595
        %v4462 = vunpack.c.l.b16 %v596
        %v4463 = vunpack.c.h.b16 %v596
        %v4464 = vunpack.c.l.b16 %v597
        %v4465 = vunpack.c.h.b16 %v597
        %v4466 = vunpack.c.l.b16 %v598
        %v4467 = vunpack.c.h.b16 %v598
        %v4468 = vunpack.c.l.b16 %v599
        %v4469 = vunpack.c.h.b16 %v599
        %v4470 = vunpack.c.l.b16 %v600
        %v4471 = vunpack.c.h.b16 %v600
        %v4472 = vunpack.c.l.b16 %v601
        %v4473 = vunpack.c.h.b16 %v601
        %v4474 = vunpack.c.l.b16 %v602
        %v4475 = vunpack.c.h.b16 %v602
        %v4476 = vunpack.c.l.b16 %v603
        %v4477 = vunpack.c.h.b16 %v603
        %v4478 = vunpack.c.l.b16 %v604
        %v4479 = vunpack.c.h.b16 %v604
        %v4480 = vunpack.c.l.b16 %v605
        %v4481 = vunpack.c.h.b16 %v605
        %v4482 = vunpack.c.l.b16 %v606
        %v4483 = vunpack.c.h.b16 %v606
        %v4484 = vunpack.c.l.b16 %v607
        %v4485 = vunpack.c.h.b16 %v607
        %v4486 = vunpack.c.l.b16 %v608
        %v4487 = vunpack.c.h.b16 %v608
        %v4488 = vunpack.c.l.b16 %v609
        %v4489 = vunpack.c.h.b16 %v609
        %v4490 = vunpack.c.l.b16 %v610
        %v4491 = vunpack.c.h.b16 %v610
        %v4492 = vunpack.c.l.b16 %v611
        %v4493 = vunpack.c.h.b16 %v611
        %v4494 = vunpack.c.l.b16 %v612
        %v4495 = vunpack.c.h.b16 %v612
        %v4496 = vunpack.c.l.b16 %v613
        %v4497 = vunpack.c.h.b16 %v613
        %v4498 = vunpack.c.l.b16 %v614
        %v4499 = vunpack.c.h.b16 %v614
        %v4500 = vunpack.c.l.b16 %v615
        %v4501 = vunpack.c.h.b16 %v615
        %v4502 = vunpack.c.l.b16 %v616
        %v4503 = vunpack.c.h.b16 %v616
        %v4504 = vunpack.c.l.b16 %v617
        %v4505 = vunpack.c.h.b16 %v617
        %v4506 = vunpack.c.l.b16 %v618
        %v4507 = vunpack.c.h.b16 %v618
        %v4508 = vunpack.c.l.b16 %v619
        %v4509 = vunpack.c.h.b16 %v619
        %v4510 = vunpack.c.l.b16 %v620
        %v4511 = vunpack.c.h.b16 %v620
        %v4512 = vunpack.c.l.b16 %v621
        %v4513 = vunpack.c.h.b16 %v621
        %v4514 = vunpack.c.l.b16 %v622
        %v4515 = vunpack.c.h.b16 %v622
        %v4516 = vunpack.c.l.b16 %v623
        %v4517 = vunpack.c.h.b16 %v623
        %v4518 = vunpack.c.l.b16 %v624
        %v4519 = vunpack.c.h.b16 %v624
        %v4520 = vunpack.c.l.b16 %v625
        %v4521 = vunpack.c.h.b16 %v625
        %v4522 = vunpack.c.l.b16 %v626
        %v4523 = vunpack.c.h.b16 %v626
        %v4524 = vunpack.c.l.b16 %v627
        %v4525 = vunpack.c.h.b16 %v627
        %v4526 = vunpack.c.l.b16 %v628
        %v4527 = vunpack.c.h.b16 %v628
        %v4528 = vunpack.c.l.b16 %v629
        %v4529 = vunpack.c.h.b16 %v629
        %v4530 = vunpack.c.l.b16 %v630
        %v4531 = vunpack.c.h.b16 %v630
        %v4532 = vunpack.c.l.b16 %v631
        %v4533 = vunpack.c.h.b16 %v631
        %v4534 = vunpack.c.l.b16 %v632
        %v4535 = vunpack.c.h.b16 %v632
        %v4536 = vunpack.c.l.b16 %v633
        %v4537 = vunpack.c.h.b16 %v633
        %v4538 = vunpack.c.l.b16 %v634
        %v4539 = vunpack.c.h.b16 %v634
        %v4540 = vunpack.c.l.b16 %v635
        %v4541 = vunpack.c.h.b16 %v635
        %v4542 = vunpack.c.l.b16 %v636
        %v4543 = vunpack.c.h.b16 %v636
        %v4544 = vunpack.c.l.b16 %v637
        %v4545 = vunpack.c.h.b16 %v637
        %v4546 = vunpack.c.l.b16 %v638
        %v4547 = vunpack.c.h.b16 %v638
        %v4548 = vunpack.c.l.b16 %v639
        %v4549 = vunpack.c.h.b16 %v639
        %v4550 = vunpack.c.l.b16 %v640
        %v4551 = vunpack.c.h.b16 %v640
        %v4552 = vunpack.c.l.b16 %v641
        %v4553 = vunpack.c.h.b16 %v641
        %v4554 = vunpack.c.l.b16 %v642
        %v4555 = vunpack.c.h.b16 %v642
        %v4556 = vunpack.c.l.b16 %v643
        %v4557 = vunpack.c.h.b16 %v643
        %v4558 = vunpack.c.l.b16 %v644
        %v4559 = vunpack.c.h.b16 %v644
        %v4560 = vunpack.c.l.b16 %v645
        %v4561 = vunpack.c.h.b16 %v645
        %v4562 = vunpack.c.l.b16 %v646
        %v4563 = vunpack.c.h.b16 %v646
        %v4564 = vunpack.c.l.b16 %v647
        %v4565 = vunpack.c.h.b16 %v647
        %v4566 = vunpack.c.l.b16 %v648
        %v4567 = vunpack.c.h.b16 %v648
        %v4568 = vunpack.c.l.b16 %v649
        %v4569 = vunpack.c.h.b16 %v649
        %v4570 = vunpack.c.l.b16 %v650
        %v4571 = vunpack.c.h.b16 %v650
        %v4572 = vunpack.c.l.b16 %v651
        %v4573 = vunpack.c.h.b16 %v651
        %v4574 = vunpack.c.l.b16 %v652
        %v4575 = vunpack.c.h.b16 %v652
        %v4576 = vunpack.c.l.b16 %v653
        %v4577 = vunpack.c.h.b16 %v653
        %v4578 = vunpack.c.l.b16 %v654
        %v4579 = vunpack.c.h.b16 %v654
        %v4580 = vunpack.c.l.b16 %v655
        %v4581 = vunpack.c.h.b16 %v655
        %v4582 = vunpack.c.l.b16 %v656
        %v4583 = vunpack.c.h.b16 %v656
        %v4584 = vunpack.c.l.b16 %v657
        %v4585 = vunpack.c.h.b16 %v657
        %v4586 = vunpack.c.l.b16 %v658
        %v4587 = vunpack.c.h.b16 %v658
        %v4588 = vunpack.c.l.b16 %v659
        %v4589 = vunpack.c.h.b16 %v659
        %v4590 = vunpack.c.l.b16 %v660
        %v4591 = vunpack.c.h.b16 %v660
        %v4592 = vunpack.c.l.b16 %v661
        %v4593 = vunpack.c.h.b16 %v661
        %v4594 = vunpack.c.l.b16 %v662
        %v4595 = vunpack.c.h.b16 %v662
        %v4596 = vunpack.c.l.b16 %v663
        %v4597 = vunpack.c.h.b16 %v663
        %v4598 = vunpack.c.l.b16 %v664
        %v4599 = vunpack.c.h.b16 %v664
        %v4600 = vunpack.c.l.b16 %v665
        %v4601 = vunpack.c.h.b16 %v665
        %v4602 = vunpack.c.l.b16 %v666
        %v4603 = vunpack.c.h.b16 %v666
        %v4604 = vunpack.c.l.b16 %v667
        %v4605 = vunpack.c.h.b16 %v667
        %v4606 = vunpack.c.l.b16 %v668
        %v4607 = vunpack.c.h.b16 %v668
        %v4608 = vunpack.c.l.b16 %v669
        %v4609 = vunpack.c.h.b16 %v669
        %v4610 = vunpack.c.l.b16 %v670
        %v4611 = vunpack.c.h.b16 %v670
        %v4612 = vunpack.c.l.b16 %v671
        %v4613 = vunpack.c.h.b16 %v671
        %v4614 = vunpack.c.l.b16 %v672
        %v4615 = vunpack.c.h.b16 %v672
        %v4616 = vunpack.c.l.b16 %v673
        %v4617 = vunpack.c.h.b16 %v673
        %v4618 = vunpack.c.l.b16 %v674
        %v4619 = vunpack.c.h.b16 %v674
        %v4620 = vunpack.c.l.b16 %v675
        %v4621 = vunpack.c.h.b16 %v675
        %v4622 = vunpack.c.l.b16 %v676
        %v4623 = vunpack.c.h.b16 %v676
        %v4624 = vunpack.c.l.b16 %v677
        %v4625 = vunpack.c.h.b16 %v677
        %v4626 = vunpack.c.l.b16 %v678
        %v4627 = vunpack.c.h.b16 %v678
        %v4628 = vunpack.c.l.b16 %v679
        %v4629 = vunpack.c.h.b16 %v679
        %v4630 = vunpack.c.l.b16 %v680
        %v4631 = vunpack.c.h.b16 %v680
        %v4632 = vunpack.c.l.b16 %v681
        %v4633 = vunpack.c.h.b16 %v681
        %v4634 = vunpack.c.l.b16 %v682
        %v4635 = vunpack.c.h.b16 %v682
        %v4636 = vunpack.c.l.b16 %v683
        %v4637 = vunpack.c.h.b16 %v683
        %v4638 = vunpack.c.l.b16 %v684
        %v4639 = vunpack.c.h.b16 %v684
        %v4640 = vunpack.c.l.b16 %v685
        %v4641 = vunpack.c.h.b16 %v685
        %v4642 = vunpack.c.l.b16 %v686
        %v4643 = vunpack.c.h.b16 %v686
        %v4644 = vunpack.c.l.b16 %v687
        %v4645 = vunpack.c.h.b16 %v687
        %v4646 = vunpack.c.l.b16 %v688
        %v4647 = vunpack.c.h.b16 %v688
        %v4648 = vunpack.c.l.b16 %v689
        %v4649 = vunpack.c.h.b16 %v689
        %v4650 = vunpack.c.l.b16 %v690
        %v4651 = vunpack.c.h.b16 %v690
        %v4652 = vunpack.c.l.b16 %v691
        %v4653 = vunpack.c.h.b16 %v691
        %v4654 = vunpack.c.l.b16 %v692
        %v4655 = vunpack.c.h.b16 %v692
        %v4656 = vunpack.c.l.b16 %v693
        %v4657 = vunpack.c.h.b16 %v693
        %v4658 = vunpack.c.l.b16 %v694
        %v4659 = vunpack.c.h.b16 %v694
        %v4660 = vunpack.c.l.b16 %v695
        %v4661 = vunpack.c.h.b16 %v695
        %v4662 = vunpack.c.l.b16 %v696
        %v4663 = vunpack.c.h.b16 %v696
        %v4664 = vunpack.c.l.b16 %v697
        %v4665 = vunpack.c.h.b16 %v697
        %v4666 = vunpack.c.l.b16 %v698
        %v4667 = vunpack.c.h.b16 %v698
        %v4668 = vunpack.c.l.b16 %v699
        %v4669 = vunpack.c.h.b16 %v699
        %v4670 = vunpack.c.l.b16 %v700
        %v4671 = vunpack.c.h.b16 %v700
        %v4672 = vunpack.c.l.b16 %v701
        %v4673 = vunpack.c.h.b16 %v701
        %v4674 = vunpack.c.l.b16 %v702
        %v4675 = vunpack.c.h.b16 %v702
        %v4676 = vunpack.c.l.b16 %v703
        %v4677 = vunpack.c.h.b16 %v703
        %v4678 = vunpack.c.l.b16 %v704
        %v4679 = vunpack.c.h.b16 %v704
        %v4680 = vunpack.c.l.b16 %v705
        %v4681 = vunpack.c.h.b16 %v705
        %v4682 = vunpack.c.l.b16 %v706
        %v4683 = vunpack.c.h.b16 %v706
        %v4684 = vunpack.c.l.b16 %v707
        %v4685 = vunpack.c.h.b16 %v707
        %v4686 = vunpack.c.l.b16 %v708
        %v4687 = vunpack.c.h.b16 %v708
        %v4688 = vunpack.c.l.b16 %v709
        %v4689 = vunpack.c.h.b16 %v709
        %v4690 = vunpack.c.l.b16 %v710
        %v4691 = vunpack.c.h.b16 %v710
        %v4692 = vunpack.c.l.b16 %v711
        %v4693 = vunpack.c.h.b16 %v711
        %v4694 = vunpack.c.l.b16 %v712
        %v4695 = vunpack.c.h.b16 %v712
        %v4696 = vunpack.c.l.b16 %v713
        %v4697 = vunpack.c.h.b16 %v713
        %v4698 = vunpack.c.l.b16 %v714
        %v4699 = vunpack.c.h.b16 %v714
        %v4700 = vunpack.c.l.b16 %v715
        %v4701 = vunpack.c.h.b16 %v715
        %v4702 = vunpack.c.l.b16 %v716
        %v4703 = vunpack.c.h.b16 %v716
        %v4704 = vunpack.c.l.b16 %v717
        %v4705 = vunpack.c.h.b16 %v717
        %v4706 = vunpack.c.l.b16 %v718
        %v4707 = vunpack.c.h.b16 %v718
        %v4708 = vunpack.c.l.b16 %v719
        %v4709 = vunpack.c.h.b16 %v719
        %v4710 = vunpack.c.l.b16 %v720
        %v4711 = vunpack.c.h.b16 %v720
        %v4712 = vunpack.c.l.b16 %v721
        %v4713 = vunpack.c.h.b16 %v721
        %v4714 = vunpack.c.l.b16 %v722
        %v4715 = vunpack.c.h.b16 %v722
        %v4716 = vunpack.c.l.b16 %v723
        %v4717 = vunpack.c.h.b16 %v723
        %v4718 = vunpack.c.l.b16 %v724
        %v4719 = vunpack.c.h.b16 %v724
        %v4720 = vunpack.c.l.b16 %v725
        %v4721 = vunpack.c.h.b16 %v725
        %v4722 = vunpack.c.l.b16 %v726
        %v4723 = vunpack.c.h.b16 %v726
        %v4724 = vunpack.c.l.b16 %v727
        %v4725 = vunpack.c.h.b16 %v727
        %v4726 = vunpack.c.l.b16 %v728
        %v4727 = vunpack.c.h.b16 %v728
        %v4728 = vunpack.c.l.b16 %v729
        %v4729 = vunpack.c.h.b16 %v729
        %v4730 = vunpack.c.l.b16 %v730
        %v4731 = vunpack.c.h.b16 %v730
        %v4732 = vunpack.c.l.b16 %v731
        %v4733 = vunpack.c.h.b16 %v731
        %v4734 = vunpack.c.l.b16 %v732
        %v4735 = vunpack.c.h.b16 %v732
        %v4736 = vunpack.c.l.b16 %v733
        %v4737 = vunpack.c.h.b16 %v733
        %v4738 = vunpack.c.l.b16 %v734
        %v4739 = vunpack.c.h.b16 %v734
        %v4740 = vunpack.c.l.b16 %v735
        %v4741 = vunpack.c.h.b16 %v735
        %v4742 = vunpack.c.l.b16 %v736
        %v4743 = vunpack.c.h.b16 %v736
        %v4744 = vunpack.c.l.b16 %v737
        %v4745 = vunpack.c.h.b16 %v737
        %v4746 = vunpack.c.l.b16 %v738
        %v4747 = vunpack.c.h.b16 %v738
        %v4748 = vunpack.c.l.b16 %v739
        %v4749 = vunpack.c.h.b16 %v739
        %v4750 = vunpack.c.l.b16 %v740
        %v4751 = vunpack.c.h.b16 %v740
        %v4752 = vunpack.c.l.b16 %v741
        %v4753 = vunpack.c.h.b16 %v741
        %v4754 = vunpack.c.l.b16 %v742
        %v4755 = vunpack.c.h.b16 %v742
        %v4756 = vunpack.c.l.b16 %v743
        %v4757 = vunpack.c.h.b16 %v743
        %v4758 = vunpack.c.l.b16 %v744
        %v4759 = vunpack.c.h.b16 %v744
        %v4760 = vunpack.c.l.b16 %v745
        %v4761 = vunpack.c.h.b16 %v745
        %v4762 = vunpack.c.l.b16 %v746
        %v4763 = vunpack.c.h.b16 %v746
        %v4764 = vunpack.c.l.b16 %v747
        %v4765 = vunpack.c.h.b16 %v747
        %v4766 = vunpack.c.l.b16 %v748
        %v4767 = vunpack.c.h.b16 %v748
        %v4768 = vunpack.c.l.b16 %v749
        %v4769 = vunpack.c.h.b16 %v749
        %v4770 = vunpack.c.l.b16 %v750
        %v4771 = vunpack.c.h.b16 %v750
        %v4772 = vunpack.c.l.b16 %v751
        %v4773 = vunpack.c.h.b16 %v751
        %v4774 = vunpack.c.l.b16 %v752
        %v4775 = vunpack.c.h.b16 %v752
        %v4776 = vunpack.c.l.b16 %v753
        %v4777 = vunpack.c.h.b16 %v753
        %v4778 = vunpack.c.l.b16 %v754
        %v4779 = vunpack.c.h.b16 %v754
        %v4780 = vunpack.c.l.b16 %v755
        %v4781 = vunpack.c.h.b16 %v755
        %v4782 = vunpack.c.l.b16 %v756
        %v4783 = vunpack.c.h.b16 %v756
        %v4784 = vunpack.c.l.b16 %v757
        %v4785 = vunpack.c.h.b16 %v757
        %v4786 = vunpack.c.l.b16 %v758
        %v4787 = vunpack.c.h.b16 %v758
        %v4788 = vunpack.c.l.b16 %v759
        %v4789 = vunpack.c.h.b16 %v759
        %v4790 = vunpack.c.l.b16 %v760
        %v4791 = vunpack.c.h.b16 %v760
        %v4792 = vunpack.c.l.b16 %v761
        %v4793 = vunpack.c.h.b16 %v761
        %v4794 = vunpack.c.l.b16 %v762
        %v4795 = vunpack.c.h.b16 %v762
        %v4796 = vunpack.c.l.b16 %v763
        %v4797 = vunpack.c.h.b16 %v763
        %v4798 = vunpack.c.l.b16 %v764
        %v4799 = vunpack.c.h.b16 %v764
        %v4800 = vunpack.c.l.b16 %v765
        %v4801 = vunpack.c.h.b16 %v765
        %v4802 = vunpack.c.l.b16 %v766
        %v4803 = vunpack.c.h.b16 %v766
        %v4804 = vunpack.c.l.b16 %v767
        %v4805 = vunpack.c.h.b16 %v767
        %v4806 = vunpack.c.l.b16 %v768
        %v4807 = vunpack.c.h.b16 %v768
        %v4808 = vunpack.c.l.b16 %v769
        %v4809 = vunpack.c.h.b16 %v769
        %v4810 = vunpack.c.l.b16 %v770
        %v4811 = vunpack.c.h.b16 %v770
        %v4812 = vunpack.c.l.b16 %v771
        %v4813 = vunpack.c.h.b16 %v771
        %v4814 = vunpack.c.l.b16 %v772
        %v4815 = vunpack.c.h.b16 %v772
        %v4816 = vunpack.c.l.b16 %v773
        %v4817 = vunpack.c.h.b16 %v773
        %v4818 = vunpack.c.l.b16 %v774
        %v4819 = vunpack.c.h.b16 %v774
        %v4820 = vunpack.c.l.b16 %v775
        %v4821 = vunpack.c.h.b16 %v775
        %v4822 = vunpack.c.l.b16 %v776
        %v4823 = vunpack.c.h.b16 %v776
        %v4824 = vunpack.c.l.b16 %v777
        %v4825 = vunpack.c.h.b16 %v777
        %v4826 = vunpack.c.l.b16 %v778
        %v4827 = vunpack.c.h.b16 %v778
        %v4828 = vunpack.c.l.b16 %v779
        %v4829 = vunpack.c.h.b16 %v779
        %v4830 = vunpack.c.l.b16 %v780
        %v4831 = vunpack.c.h.b16 %v780
        %v4832 = vunpack.c.l.b16 %v781
        %v4833 = vunpack.c.h.b16 %v781
        %v4834 = vunpack.c.l.b16 %v782
        %v4835 = vunpack.c.h.b16 %v782
        %v4836 = vunpack.c.l.b16 %v783
        %v4837 = vunpack.c.h.b16 %v783
        %v4838 = vunpack.c.l.b16 %v784
        %v4839 = vunpack.c.h.b16 %v784
        %v4840 = vunpack.c.l.b16 %v785
        %v4841 = vunpack.c.h.b16 %v785
        %v4842 = vunpack.c.l.b16 %v786
        %v4843 = vunpack.c.h.b16 %v786
        %v4844 = vunpack.c.l.b16 %v787
        %v4845 = vunpack.c.h.b16 %v787
        %v4846 = vunpack.c.l.b16 %v788
        %v4847 = vunpack.c.h.b16 %v788
        %v4848 = vunpack.c.l.b16 %v789
        %v4849 = vunpack.c.h.b16 %v789
        %v4850 = vunpack.c.l.b16 %v790
        %v4851 = vunpack.c.h.b16 %v790
        %v4852 = vunpack.c.l.b16 %v791
        %v4853 = vunpack.c.h.b16 %v791
        %v4854 = vunpack.c.l.b16 %v792
        %v4855 = vunpack.c.h.b16 %v792
        %v4856 = vunpack.c.l.b16 %v793
        %v4857 = vunpack.c.h.b16 %v793
        %v4858 = vunpack.c.l.b16 %v794
        %v4859 = vunpack.c.h.b16 %v794
        %v4860 = vunpack.c.l.b16 %v795
        %v4861 = vunpack.c.h.b16 %v795
        %v4862 = vunpack.c.l.b16 %v796
        %v4863 = vunpack.c.h.b16 %v796
        %v4864 = vunpack.c.l.b16 %v797
        %v4865 = vunpack.c.h.b16 %v797
        %v4866 = vunpack.c.l.b16 %v798
        %v4867 = vunpack.c.h.b16 %v798
        %v4868 = vunpack.c.l.b16 %v799
        %v4869 = vunpack.c.h.b16 %v799
        %v4870 = vunpack.c.l.b16 %v800
        %v4871 = vunpack.c.h.b16 %v800
        %v4872 = vunpack.c.l.b16 %v801
        %v4873 = vunpack.c.h.b16 %v801
        %v4874 = vunpack.c.l.b16 %v802
        %v4875 = vunpack.c.h.b16 %v802
        %v4876 = vunpack.c.l.b16 %v803
        %v4877 = vunpack.c.h.b16 %v803
        %v4878 = vunpack.c.l.b16 %v804
        %v4879 = vunpack.c.h.b16 %v804
        %v4880 = vunpack.c.l.b16 %v805
        %v4881 = vunpack.c.h.b16 %v805
        %v4882 = vunpack.c.l.b16 %v806
        %v4883 = vunpack.c.h.b16 %v806
        %v4884 = vunpack.c.l.b16 %v807
        %v4885 = vunpack.c.h.b16 %v807
        %v4886 = vunpack.c.l.b16 %v808
        %v4887 = vunpack.c.h.b16 %v808
        %v4888 = vunpack.c.l.b16 %v809
        %v4889 = vunpack.c.h.b16 %v809
        %v4890 = vunpack.c.l.b16 %v810
        %v4891 = vunpack.c.h.b16 %v810
        %v4892 = vunpack.c.l.b16 %v811
        %v4893 = vunpack.c.h.b16 %v811
        %v4894 = vunpack.c.l.b16 %v812
        %v4895 = vunpack.c.h.b16 %v812
        %v4896 = vunpack.c.l.b16 %v813
        %v4897 = vunpack.c.h.b16 %v813
        %v4898 = vunpack.c.l.b16 %v814
        %v4899 = vunpack.c.h.b16 %v814
        %v4900 = vunpack.c.l.b16 %v815
        %v4901 = vunpack.c.h.b16 %v815
        %v4902 = vunpack.c.l.b16 %v816
        %v4903 = vunpack.c.h.b16 %v816
        %v4904 = vunpack.c.l.b16 %v817
        %v4905 = vunpack.c.h.b16 %v817
        %v4906 = vunpack.c.l.b16 %v818
        %v4907 = vunpack.c.h.b16 %v818
        %v4908 = vunpack.c.l.b16 %v819
        %v4909 = vunpack.c.h.b16 %v819
        %v4910 = vunpack.c.l.b16 %v820
        %v4911 = vunpack.c.h.b16 %v820
        %v4912 = vunpack.c.l.b16 %v821
        %v4913 = vunpack.c.h.b16 %v821
        %v4914 = vunpack.c.l.b16 %v822
        %v4915 = vunpack.c.h.b16 %v822
        %v4916 = vunpack.c.l.b16 %v823
        %v4917 = vunpack.c.h.b16 %v823
        %v4918 = vunpack.c.l.b16 %v824
        %v4919 = vunpack.c.h.b16 %v824
        %v4920 = vunpack.c.l.b16 %v825
        %v4921 = vunpack.c.h.b16 %v825
        %v4922 = vunpack.c.l.b16 %v826
        %v4923 = vunpack.c.h.b16 %v826
        %v4924 = vunpack.c.l.b16 %v827
        %v4925 = vunpack.c.h.b16 %v827
        %v4926 = vunpack.c.l.b16 %v828
        %v4927 = vunpack.c.h.b16 %v828
        %v4928 = vunpack.c.l.b16 %v829
        %v4929 = vunpack.c.h.b16 %v829
        %v4930 = vunpack.c.l.b16 %v830
        %v4931 = vunpack.c.h.b16 %v830
        %v4932 = vunpack.c.l.b16 %v831
        %v4933 = vunpack.c.h.b16 %v831
        %v4934 = vunpack.c.l.b16 %v832
        %v4935 = vunpack.c.h.b16 %v832
        %v4936 = vunpack.c.l.b16 %v833
        %v4937 = vunpack.c.h.b16 %v833
        %v4938 = vunpack.c.l.b16 %v834
        %v4939 = vunpack.c.h.b16 %v834
        %v4940 = vunpack.c.l.b16 %v835
        %v4941 = vunpack.c.h.b16 %v835
        %v4942 = vunpack.c.l.b16 %v836
        %v4943 = vunpack.c.h.b16 %v836
        %v4944 = vunpack.c.l.b16 %v837
        %v4945 = vunpack.c.h.b16 %v837
        %v4946 = vunpack.c.l.b16 %v838
        %v4947 = vunpack.c.h.b16 %v838
        %v4948 = vunpack.c.l.b16 %v839
        %v4949 = vunpack.c.h.b16 %v839
        %v4950 = vunpack.c.l.b16 %v840
        %v4951 = vunpack.c.h.b16 %v840
        %v4952 = vunpack.c.l.b16 %v841
        %v4953 = vunpack.c.h.b16 %v841
        %v4954 = vunpack.c.l.b16 %v842
        %v4955 = vunpack.c.h.b16 %v842
        %v4956 = vunpack.c.l.b16 %v843
        %v4957 = vunpack.c.h.b16 %v843
        %v4958 = vunpack.c.l.b16 %v844
        %v4959 = vunpack.c.h.b16 %v844
        %v4960 = vunpack.c.l.b16 %v845
        %v4961 = vunpack.c.h.b16 %v845
        %v4962 = vunpack.c.l.b16 %v846
        %v4963 = vunpack.c.h.b16 %v846
        %v4964 = vunpack.c.l.b16 %v847
        %v4965 = vunpack.c.h.b16 %v847
        %v4966 = vunpack.c.l.b16 %v848
        %v4967 = vunpack.c.h.b16 %v848
        %v4968 = vunpack.c.l.b16 %v849
        %v4969 = vunpack.c.h.b16 %v849
        %v4970 = vunpack.c.l.b16 %v850
        %v4971 = vunpack.c.h.b16 %v850
        %v4972 = vunpack.c.l.b16 %v851
        %v4973 = vunpack.c.h.b16 %v851
        %v4974 = vunpack.c.l.b16 %v852
        %v4975 = vunpack.c.h.b16 %v852
        %v4976 = vunpack.c.l.b16 %v853
        %v4977 = vunpack.c.h.b16 %v853
        %v4978 = vunpack.c.l.b16 %v854
        %v4979 = vunpack.c.h.b16 %v854
        %v4980 = vunpack.c.l.b16 %v855
        %v4981 = vunpack.c.h.b16 %v855
        %v4982 = vunpack.c.l.b16 %v856
        %v4983 = vunpack.c.h.b16 %v856
        %v4984 = vunpack.c.l.b16 %v857
        %v4985 = vunpack.c.h.b16 %v857
        %v4986 = vunpack.c.l.b16 %v858
        %v4987 = vunpack.c.h.b16 %v858
        %v4988 = vunpack.c.l.b16 %v859
        %v4989 = vunpack.c.h.b16 %v859
        %v4990 = vunpack.c.l.b16 %v860
        %v4991 = vunpack.c.h.b16 %v860
        %v4992 = vunpack.c.l.b16 %v861
        %v4993 = vunpack.c.h.b16 %v861
        %v4994 = vunpack.c.l.b16 %v862
        %v4995 = vunpack.c.h.b16 %v862
        %v4996 = vunpack.c.l.b16 %v863
        %v4997 = vunpack.c.h.b16 %v863
        %v4998 = vunpack.c.l.b16 %v864
        %v4999 = vunpack.c.h.b16 %v864
        %v5000 = vunpack.c.l.b16 %v865
        %v5001 = vunpack.c.h.b16 %v865
        %v5002 = vunpack.c.l.b16 %v866
        %v5003 = vunpack.c.h.b16 %v866
        %v5004 = vunpack.c.l.b16 %v867
        %v5005 = vunpack.c.h.b16 %v867
        %v5006 = vunpack.c.l.b16 %v868
        %v5007 = vunpack.c.h.b16 %v868
        %v5008 = vunpack.c.l.b16 %v869
        %v5009 = vunpack.c.h.b16 %v869
        %v5010 = vunpack.c.l.b16 %v870
        %v5011 = vunpack.c.h.b16 %v870
        %v5012 = vunpack.c.l.b16 %v871
        %v5013 = vunpack.c.h.b16 %v871
        %v5014 = vunpack.c.l.b16 %v872
        %v5015 = vunpack.c.h.b16 %v872
        %v5016 = vunpack.c.l.b16 %v873
        %v5017 = vunpack.c.h.b16 %v873
        %v5018 = vunpack.c.l.b16 %v874
        %v5019 = vunpack.c.h.b16 %v874
        %v5020 = vunpack.c.l.b16 %v875
        %v5021 = vunpack.c.h.b16 %v875
        %v5022 = vunpack.c.l.b16 %v876
        %v5023 = vunpack.c.h.b16 %v876
        %v5024 = vunpack.c.l.b16 %v877
        %v5025 = vunpack.c.h.b16 %v877
        %v5026 = vunpack.c.l.b16 %v878
        %v5027 = vunpack.c.h.b16 %v878
        %v5028 = vunpack.c.l.b16 %v879
        %v5029 = vunpack.c.h.b16 %v879
        %v5030 = vunpack.c.l.b16 %v880
        %v5031 = vunpack.c.h.b16 %v880
        %v5032 = vunpack.c.l.b16 %v881
        %v5033 = vunpack.c.h.b16 %v881
        %v5034 = vunpack.c.l.b16 %v882
        %v5035 = vunpack.c.h.b16 %v882
        %v5036 = vunpack.c.l.b16 %v883
        %v5037 = vunpack.c.h.b16 %v883
        %v5038 = vunpack.c.l.b16 %v884
        %v5039 = vunpack.c.h.b16 %v884
        %v5040 = vunpack.c.l.b16 %v885
        %v5041 = vunpack.c.h.b16 %v885
        %v5042 = vunpack.c.l.b16 %v886
        %v5043 = vunpack.c.h.b16 %v886
        %v5044 = vunpack.c.l.b16 %v887
        %v5045 = vunpack.c.h.b16 %v887
        %v5046 = vunpack.c.l.b16 %v888
        %v5047 = vunpack.c.h.b16 %v888
        %v5048 = vunpack.c.l.b16 %v889
        %v5049 = vunpack.c.h.b16 %v889
        %v5050 = vunpack.c.l.b16 %v890
        %v5051 = vunpack.c.h.b16 %v890
        %v5052 = vunpack.c.l.b16 %v891
        %v5053 = vunpack.c.h.b16 %v891
        %v5054 = vunpack.c.l.b16 %v892
        %v5055 = vunpack.c.h.b16 %v892
        %v5056 = vunpack.c.l.b16 %v893
        %v5057 = vunpack.c.h.b16 %v893
        %v5058 = vunpack.c.l.b16 %v894
        %v5059 = vunpack.c.h.b16 %v894
        %v5060 = vunpack.c.l.b16 %v895
        %v5061 = vunpack.c.h.b16 %v895
        %v5062 = vunpack.c.l.b16 %v896
        %v5063 = vunpack.c.h.b16 %v896
        %v5064 = vunpack.c.l.b16 %v897
        %v5065 = vunpack.c.h.b16 %v897
        %v5066 = vunpack.c.l.b16 %v898
        %v5067 = vunpack.c.h.b16 %v898
        %v5068 = vunpack.c.l.b16 %v899
        %v5069 = vunpack.c.h.b16 %v899
        %v5070 = vunpack.c.l.b16 %v900
        %v5071 = vunpack.c.h.b16 %v900
        %v5072 = vunpack.c.l.b16 %v901
        %v5073 = vunpack.c.h.b16 %v901
        %v5074 = vunpack.c.l.b16 %v902
        %v5075 = vunpack.c.h.b16 %v902
        %v5076 = vunpack.c.l.b16 %v903
        %v5077 = vunpack.c.h.b16 %v903
        %v5078 = vunpack.c.l.b16 %v904
        %v5079 = vunpack.c.h.b16 %v904
        %v5080 = vunpack.c.l.b16 %v905
        %v5081 = vunpack.c.h.b16 %v905
        %v5082 = vunpack.c.l.b16 %v906
        %v5083 = vunpack.c.h.b16 %v906
        %v5084 = vunpack.c.l.b16 %v907
        %v5085 = vunpack.c.h.b16 %v907
        %v5086 = vunpack.c.l.b16 %v908
        %v5087 = vunpack.c.h.b16 %v908
        %v5088 = vunpack.c.l.b16 %v909
        %v5089 = vunpack.c.h.b16 %v909
        %v5090 = vunpack.c.l.b16 %v910
        %v5091 = vunpack.c.h.b16 %v910
        %v5092 = vunpack.c.l.b16 %v911
        %v5093 = vunpack.c.h.b16 %v911
        %v5094 = vunpack.c.l.b16 %v912
        %v5095 = vunpack.c.h.b16 %v912
        %v5096 = vunpack.c.l.b16 %v913
        %v5097 = vunpack.c.h.b16 %v913
        %v5098 = vunpack.c.l.b16 %v914
        %v5099 = vunpack.c.h.b16 %v914
        %v5100 = vunpack.c.l.b16 %v915
        %v5101 = vunpack.c.h.b16 %v915
        %v5102 = vunpack.c.l.b16 %v916
        %v5103 = vunpack.c.h.b16 %v916
        %v5104 = vunpack.c.l.b16 %v917
        %v5105 = vunpack.c.h.b16 %v917
        %v5106 = vunpack.c.l.b16 %v918
        %v5107 = vunpack.c.h.b16 %v918
        %v5108 = vunpack.c.l.b16 %v919
        %v5109 = vunpack.c.h.b16 %v919
        %v5110 = vunpack.c.l.b16 %v920
        %v5111 = vunpack.c.h.b16 %v920
        %v5112 = vunpack.c.l.b16 %v921
        %v5113 = vunpack.c.h.b16 %v921
        %v5114 = vunpack.c.l.b16 %v922
        %v5115 = vunpack.c.h.b16 %v922
        %v5116 = vunpack.c.l.b16 %v923
        %v5117 = vunpack.c.h.b16 %v923
        %v5118 = vunpack.c.l.b16 %v924
        %v5119 = vunpack.c.h.b16 %v924
        %v5120 = vunpack.c.l.b16 %v925
        %v5121 = vunpack.c.h.b16 %v925
        %v5122 = vunpack.c.l.b16 %v926
        %v5123 = vunpack.c.h.b16 %v926
        %v5124 = vunpack.c.l.b16 %v927
        %v5125 = vunpack.c.h.b16 %v927
        %v5126 = vunpack.c.l.b16 %v928
        %v5127 = vunpack.c.h.b16 %v928
        %v5128 = vunpack.c.l.b16 %v929
        %v5129 = vunpack.c.h.b16 %v929
        %v5130 = vunpack.c.l.b16 %v930
        %v5131 = vunpack.c.h.b16 %v930
        %v5132 = vunpack.c.l.b16 %v931
        %v5133 = vunpack.c.h.b16 %v931
        %v5134 = vunpack.c.l.b16 %v932
        %v5135 = vunpack.c.h.b16 %v932
        %v5136 = vunpack.c.l.b16 %v933
        %v5137 = vunpack.c.h.b16 %v933
        %v5138 = vunpack.c.l.b16 %v934
        %v5139 = vunpack.c.h.b16 %v934
        %v5140 = vunpack.c.l.b16 %v935
        %v5141 = vunpack.c.h.b16 %v935
        %v5142 = vunpack.c.l.b16 %v936
        %v5143 = vunpack.c.h.b16 %v936
        %v5144 = vunpack.c.l.b16 %v937
        %v5145 = vunpack.c.h.b16 %v937
        %v5146 = vunpack.c.l.b16 %v938
        %v5147 = vunpack.c.h.b16 %v938
        %v5148 = vunpack.c.l.b16 %v939
        %v5149 = vunpack.c.h.b16 %v939
        %v5150 = vunpack.c.l.b16 %v940
        %v5151 = vunpack.c.h.b16 %v940
        %v5152 = vunpack.c.l.b16 %v941
        %v5153 = vunpack.c.h.b16 %v941
        %v5154 = vunpack.c.l.b16 %v942
        %v5155 = vunpack.c.h.b16 %v942
        %v5156 = vunpack.c.l.b16 %v943
        %v5157 = vunpack.c.h.b16 %v943
        %v5158 = vunpack.c.l.b16 %v944
        %v5159 = vunpack.c.h.b16 %v944
        %v5160 = vunpack.c.l.b16 %v945
        %v5161 = vunpack.c.h.b16 %v945
        %v5162 = vunpack.c.l.b16 %v946
        %v5163 = vunpack.c.h.b16 %v946
        %v5164 = vunpack.c.l.b16 %v947
        %v5165 = vunpack.c.h.b16 %v947
        %v5166 = vunpack.c.l.b16 %v948
        %v5167 = vunpack.c.h.b16 %v948
        %v5168 = vunpack.c.l.b16 %v949
        %v5169 = vunpack.c.h.b16 %v949
        %v5170 = vunpack.c.l.b16 %v950
        %v5171 = vunpack.c.h.b16 %v950
        %v5172 = vunpack.c.l.b16 %v951
        %v5173 = vunpack.c.h.b16 %v951
        %v5174 = vunpack.c.l.b16 %v952
        %v5175 = vunpack.c.h.b16 %v952
        %v5176 = vunpack.c.l.b16 %v953
        %v5177 = vunpack.c.h.b16 %v953
        %v5178 = vunpack.c.l.b16 %v954
        %v5179 = vunpack.c.h.b16 %v954
        %v5180 = vunpack.c.l.b16 %v955
        %v5181 = vunpack.c.h.b16 %v955
        %v5182 = vunpack.c.l.b16 %v956
        %v5183 = vunpack.c.h.b16 %v956
        %v5184 = vunpack.c.l.b16 %v957
        %v5185 = vunpack.c.h.b16 %v957
        %v5186 = vunpack.c.l.b16 %v958
        %v5187 = vunpack.c.h.b16 %v958
        %v5188 = vunpack.c.l.b16 %v959
        %v5189 = vunpack.c.h.b16 %v959
        %v5190 = vunpack.c.l.b16 %v960
        %v5191 = vunpack.c.h.b16 %v960
        %v5192 = vunpack.c.l.b16 %v961
        %v5193 = vunpack.c.h.b16 %v961
        %v5194 = vunpack.c.l.b16 %v962
        %v5195 = vunpack.c.h.b16 %v962
        %v5196 = vunpack.c.l.b16 %v963
        %v5197 = vunpack.c.h.b16 %v963
        %v5198 = vunpack.c.l.b16 %v964
        %v5199 = vunpack.c.h.b16 %v964
        %v5200 = vunpack.c.l.b16 %v965
        %v5201 = vunpack.c.h.b16 %v965
        %v5202 = vunpack.c.l.b16 %v966
        %v5203 = vunpack.c.h.b16 %v966
        %v5204 = vunpack.c.l.b16 %v967
        %v5205 = vunpack.c.h.b16 %v967
        %v5206 = vunpack.c.l.b16 %v968
        %v5207 = vunpack.c.h.b16 %v968
        %v5208 = vunpack.c.l.b16 %v969
        %v5209 = vunpack.c.h.b16 %v969
        %v5210 = vunpack.c.l.b16 %v970
        %v5211 = vunpack.c.h.b16 %v970
        %v5212 = vunpack.c.l.b16 %v971
        %v5213 = vunpack.c.h.b16 %v971
        %v5214 = vunpack.c.l.b16 %v972
        %v5215 = vunpack.c.h.b16 %v972
        %v5216 = vunpack.c.l.b16 %v973
        %v5217 = vunpack.c.h.b16 %v973
        %v5218 = vunpack.c.l.b16 %v974
        %v5219 = vunpack.c.h.b16 %v974
        %v5220 = vunpack.c.l.b16 %v975
        %v5221 = vunpack.c.h.b16 %v975
        %v5222 = vunpack.c.l.b16 %v976
        %v5223 = vunpack.c.h.b16 %v976
        %v5224 = vunpack.c.l.b16 %v977
        %v5225 = vunpack.c.h.b16 %v977
        %v5226 = vunpack.c.l.b16 %v978
        %v5227 = vunpack.c.h.b16 %v978
        %v5228 = vunpack.c.l.b16 %v979
        %v5229 = vunpack.c.h.b16 %v979
        %v5230 = vunpack.c.l.b16 %v980
        %v5231 = vunpack.c.h.b16 %v980
        %v5232 = vunpack.c.l.b16 %v981
        %v5233 = vunpack.c.h.b16 %v981
        %v5234 = vunpack.c.l.b16 %v982
        %v5235 = vunpack.c.h.b16 %v982
        %v5236 = vunpack.c.l.b16 %v983
        %v5237 = vunpack.c.h.b16 %v983
        %v5238 = vunpack.c.l.b16 %v984
        %v5239 = vunpack.c.h.b16 %v984
        %v5240 = vunpack.c.l.b16 %v985
        %v5241 = vunpack.c.h.b16 %v985
        %v5242 = vunpack.c.l.b16 %v986
        %v5243 = vunpack.c.h.b16 %v986
        %v5244 = vunpack.c.l.b16 %v987
        %v5245 = vunpack.c.h.b16 %v987
        %v5246 = vunpack.c.l.b16 %v988
        %v5247 = vunpack.c.h.b16 %v988
        %v5248 = vunpack.c.l.b16 %v989
        %v5249 = vunpack.c.h.b16 %v989
        %v5250 = vunpack.c.l.b16 %v990
        %v5251 = vunpack.c.h.b16 %v990
        %v5252 = vunpack.c.l.b16 %v991
        %v5253 = vunpack.c.h.b16 %v991
        %v5254 = vunpack.c.l.b16 %v992
        %v5255 = vunpack.c.h.b16 %v992
        %v5256 = vunpack.c.l.b16 %v993
        %v5257 = vunpack.c.h.b16 %v993
        %v5258 = vunpack.c.l.b16 %v994
        %v5259 = vunpack.c.h.b16 %v994
        %v5260 = vunpack.c.l.b16 %v995
        %v5261 = vunpack.c.h.b16 %v995
        %v5262 = vunpack.c.l.b16 %v996
        %v5263 = vunpack.c.h.b16 %v996
        %v5264 = vunpack.c.l.b16 %v997
        %v5265 = vunpack.c.h.b16 %v997
        %v5266 = vunpack.c.l.b16 %v998
        %v5267 = vunpack.c.h.b16 %v998
        %v5268 = vunpack.c.l.b16 %v999
        %v5269 = vunpack.c.h.b16 %v999
        %v5270 = vunpack.c.l.b16 %v1000
        %v5271 = vunpack.c.h.b16 %v1000
        %v5272 = vunpack.c.l.b16 %v1001
        %v5273 = vunpack.c.h.b16 %v1001
        %v5274 = vunpack.c.l.b16 %v1002
        %v5275 = vunpack.c.h.b16 %v1002
        %v5276 = vunpack.c.l.b16 %v1003
        %v5277 = vunpack.c.h.b16 %v1003
        %v5278 = vunpack.c.l.b16 %v1004
        %v5279 = vunpack.c.h.b16 %v1004
        %v5280 = vunpack.c.l.b16 %v1005
        %v5281 = vunpack.c.h.b16 %v1005
        %v5282 = vunpack.c.l.b16 %v1006
        %v5283 = vunpack.c.h.b16 %v1006
        %v5284 = vunpack.c.l.b16 %v1007
        %v5285 = vunpack.c.h.b16 %v1007
        %v5286 = vunpack.c.l.b16 %v1008
        %v5287 = vunpack.c.h.b16 %v1008
        %v5288 = vunpack.c.l.b16 %v1009
        %v5289 = vunpack.c.h.b16 %v1009
        %v5290 = vunpack.c.l.b16 %v1010
        %v5291 = vunpack.c.h.b16 %v1010
        %v5292 = vunpack.c.l.b16 %v1011
        %v5293 = vunpack.c.h.b16 %v1011
        %v5294 = vunpack.c.l.b16 %v1012
        %v5295 = vunpack.c.h.b16 %v1012
        %v5296 = vunpack.c.l.b16 %v1013
        %v5297 = vunpack.c.h.b16 %v1013
        %v5298 = vunpack.c.l.b16 %v1014
        %v5299 = vunpack.c.h.b16 %v1014
        %v5300 = vunpack.c.l.b16 %v1015
        %v5301 = vunpack.c.h.b16 %v1015
        %v5302 = vunpack.c.l.b16 %v1016
        %v5303 = vunpack.c.h.b16 %v1016
        %v5304 = vunpack.c.l.b16 %v1017
        %v5305 = vunpack.c.h.b16 %v1017
        %v5306 = vunpack.c.l.b16 %v1018
        %v5307 = vunpack.c.h.b16 %v1018
        %v5308 = vunpack.c.l.b16 %v1019
        %v5309 = vunpack.c.h.b16 %v1019
        %v5310 = vunpack.c.l.b16 %v1020
        %v5311 = vunpack.c.h.b16 %v1020
        %v5312 = vunpack.c.l.b16 %v1021
        %v5313 = vunpack.c.h.b16 %v1021
        %v5314 = vunpack.c.l.b16 %v1022
        %v5315 = vunpack.c.h.b16 %v1022
        %v5316 = vunpack.c.l.b16 %v1023
        %v5317 = vunpack.c.h.b16 %v1023
        %v5318 = vunpack.c.l.b16 %v1024
        %v5319 = vunpack.c.h.b16 %v1024
        %v5320 = vunpack.c.l.b16 %v1025
        %v5321 = vunpack.c.h.b16 %v1025
        %v5322 = vunpack.c.l.b16 %v1026
        %v5323 = vunpack.c.h.b16 %v1026
        %v5324 = vunpack.c.l.b16 %v1027
        %v5325 = vunpack.c.h.b16 %v1027
        %v5326 = vunpack.c.l.b16 %v1028
        %v5327 = vunpack.c.h.b16 %v1028
        %v5328 = vunpack.c.l.b16 %v1029
        %v5329 = vunpack.c.h.b16 %v1029
        %v5330 = vunpack.c.l.b16 %v1030
        %v5331 = vunpack.c.h.b16 %v1030
        %v5332 = vunpack.c.l.b16 %v1031
        %v5333 = vunpack.c.h.b16 %v1031
        %v5334 = vunpack.c.l.b16 %v1032
        %v5335 = vunpack.c.h.b16 %v1032
        %v5336 = vunpack.c.l.b16 %v1033
        %v5337 = vunpack.c.h.b16 %v1033
        %v5338 = vunpack.c.l.b16 %v1034
        %v5339 = vunpack.c.h.b16 %v1034
        %v5340 = vunpack.c.l.b16 %v1035
        %v5341 = vunpack.c.h.b16 %v1035
        %v5342 = vunpack.c.l.b16 %v1036
        %v5343 = vunpack.c.h.b16 %v1036
        %v5344 = vunpack.c.l.b16 %v1037
        %v5345 = vunpack.c.h.b16 %v1037
        %v5346 = vunpack.c.l.b16 %v1038
        %v5347 = vunpack.c.h.b16 %v1038
        %v5348 = vunpack.c.l.b16 %v1039
        %v5349 = vunpack.c.h.b16 %v1039
        %v5350 = vunpack.c.l.b16 %v1040
        %v5351 = vunpack.c.h.b16 %v1040
        %v5352 = vunpack.c.l.b16 %v1041
        %v5353 = vunpack.c.h.b16 %v1041
        %v5354 = vunpack.c.l.b16 %v1042
        %v5355 = vunpack.c.h.b16 %v1042
        %v5356 = vunpack.c.l.b16 %v1043
        %v5357 = vunpack.c.h.b16 %v1043
        %v5358 = vunpack.c.l.b16 %v1044
        %v5359 = vunpack.c.h.b16 %v1044
        %v5360 = vunpack.c.l.b16 %v1045
        %v5361 = vunpack.c.h.b16 %v1045
        %v5362 = vunpack.c.l.b16 %v1046
        %v5363 = vunpack.c.h.b16 %v1046
        %v5364 = vunpack.c.l.b16 %v1047
        %v5365 = vunpack.c.h.b16 %v1047
        %v5366 = vunpack.c.l.b16 %v1048
        %v5367 = vunpack.c.h.b16 %v1048
        %v5368 = vunpack.c.l.b16 %v1049
        %v5369 = vunpack.c.h.b16 %v1049
        %v5370 = vunpack.c.l.b16 %v1050
        %v5371 = vunpack.c.h.b16 %v1050
        %v5372 = vunpack.c.l.b16 %v1051
        %v5373 = vunpack.c.h.b16 %v1051
        %v5374 = vunpack.c.l.b16 %v1052
        %v5375 = vunpack.c.h.b16 %v1052
        %v5376 = vunpack.c.l.b16 %v1053
        %v5377 = vunpack.c.h.b16 %v1053
        %v5378 = vunpack.c.l.b16 %v1054
        %v5379 = vunpack.c.h.b16 %v1054
        %v5380 = vunpack.c.l.b16 %v1055
        %v5381 = vunpack.c.h.b16 %v1055
        %v5382 = vunpack.c.l.b16 %v1056
        %v5383 = vunpack.c.h.b16 %v1056
        %v5384 = vunpack.c.l.b16 %v1057
        %v5385 = vunpack.c.h.b16 %v1057
        %v5386 = vunpack.c.l.b16 %v1058
        %v5387 = vunpack.c.h.b16 %v1058
        %v5388 = vunpack.c.l.b16 %v1059
        %v5389 = vunpack.c.h.b16 %v1059
        %v5390 = vunpack.c.l.b16 %v1060
        %v5391 = vunpack.c.h.b16 %v1060
        %v5392 = vunpack.c.l.b16 %v1061
        %v5393 = vunpack.c.h.b16 %v1061
        %v5394 = vunpack.c.l.b16 %v1062
        %v5395 = vunpack.c.h.b16 %v1062
        %v5396 = vunpack.c.l.b16 %v1063
        %v5397 = vunpack.c.h.b16 %v1063
        %v5398 = vunpack.c.l.b16 %v1064
        %v5399 = vunpack.c.h.b16 %v1064
        %v5400 = vunpack.c.l.b16 %v1065
        %v5401 = vunpack.c.h.b16 %v1065
        %v5402 = vunpack.c.l.b16 %v1066
        %v5403 = vunpack.c.h.b16 %v1066
        %v5404 = vunpack.c.l.b16 %v1067
        %v5405 = vunpack.c.h.b16 %v1067
        %v5406 = vunpack.c.l.b16 %v1068
        %v5407 = vunpack.c.h.b16 %v1068
        %v5408 = vunpack.c.l.b16 %v1069
        %v5409 = vunpack.c.h.b16 %v1069
        %v5410 = vunpack.c.l.b16 %v1070
        %v5411 = vunpack.c.h.b16 %v1070
        %v5412 = vunpack.c.l.b16 %v1071
        %v5413 = vunpack.c.h.b16 %v1071
        %v5414 = vunpack.c.l.b16 %v1072
        %v5415 = vunpack.c.h.b16 %v1072
        %v5416 = vunpack.c.l.b16 %v1073
        %v5417 = vunpack.c.h.b16 %v1073
        %v5418 = vunpack.c.l.b16 %v1074
        %v5419 = vunpack.c.h.b16 %v1074
        %v5420 = vunpack.c.l.b16 %v1075
        %v5421 = vunpack.c.h.b16 %v1075
        %v5422 = vunpack.c.l.b16 %v1076
        %v5423 = vunpack.c.h.b16 %v1076
        %v5424 = vunpack.c.l.b16 %v1077
        %v5425 = vunpack.c.h.b16 %v1077
        %v5426 = vunpack.c.l.b16 %v1078
        %v5427 = vunpack.c.h.b16 %v1078
        %v5428 = vunpack.c.l.b16 %v1079
        %v5429 = vunpack.c.h.b16 %v1079
        %v5430 = vunpack.c.l.b16 %v1080
        %v5431 = vunpack.c.h.b16 %v1080
        %v5432 = vunpack.c.l.b16 %v1081
        %v5433 = vunpack.c.h.b16 %v1081
        %v5434 = vunpack.c.l.b16 %v1082
        %v5435 = vunpack.c.h.b16 %v1082
        %v5436 = vunpack.c.l.b16 %v1083
        %v5437 = vunpack.c.h.b16 %v1083
        %v5438 = vunpack.c.l.b16 %v1084
        %v5439 = vunpack.c.h.b16 %v1084
        %v5440 = vunpack.c.l.b16 %v1085
        %v5441 = vunpack.c.h.b16 %v1085
        %v5442 = vunpack.c.l.b16 %v1086
        %v5443 = vunpack.c.h.b16 %v1086
        %v5444 = vunpack.c.l.b16 %v1087
        %v5445 = vunpack.c.h.b16 %v1087
        %v5446 = vunpack.c.l.b16 %v1088
        %v5447 = vunpack.c.h.b16 %v1088
        %v5448 = vunpack.c.l.b16 %v1089
        %v5449 = vunpack.c.h.b16 %v1089
        %v5450 = vunpack.c.l.b16 %v1090
        %v5451 = vunpack.c.h.b16 %v1090
        %v5452 = vunpack.c.l.b16 %v1091
        %v5453 = vunpack.c.h.b16 %v1091
        %v5454 = vunpack.c.l.b16 %v1092
        %v5455 = vunpack.c.h.b16 %v1092
        %v5456 = vunpack.c.l.b16 %v1093
        %v5457 = vunpack.c.h.b16 %v1093
        %v5458 = vunpack.c.l.b16 %v1094
        %v5459 = vunpack.c.h.b16 %v1094
        %v5460 = vunpack.c.l.b16 %v1095
        %v5461 = vunpack.c.h.b16 %v1095
        %v5462 = vunpack.c.l.b16 %v1096
        %v5463 = vunpack.c.h.b16 %v1096
        %v5464 = vunpack.c.l.b16 %v1097
        %v5465 = vunpack.c.h.b16 %v1097
        %v5466 = vunpack.c.l.b16 %v1098
        %v5467 = vunpack.c.h.b16 %v1098
        %v5468 = vunpack.c.l.b16 %v1099
        %v5469 = vunpack.c.h.b16 %v1099
        %v5470 = vunpack.c.l.b16 %v1100
        %v5471 = vunpack.c.h.b16 %v1100
        %v5472 = vunpack.c.l.b16 %v1101
        %v5473 = vunpack.c.h.b16 %v1101
        %v5474 = vunpack.c.l.b16 %v1102
        %v5475 = vunpack.c.h.b16 %v1102
        %v5476 = vunpack.c.l.b16 %v1103
        %v5477 = vunpack.c.h.b16 %v1103
        %v5478 = vunpack.c.l.b16 %v1104
        %v5479 = vunpack.c.h.b16 %v1104
        %v5480 = vunpack.c.l.b16 %v1105
        %v5481 = vunpack.c.h.b16 %v1105
        %v5482 = vunpack.c.l.b16 %v1106
        %v5483 = vunpack.c.h.b16 %v1106
        %v5484 = vunpack.c.l.b16 %v1107
        %v5485 = vunpack.c.h.b16 %v1107
        %v5486 = vunpack.c.l.b16 %v1108
        %v5487 = vunpack.c.h.b16 %v1108
        %v5488 = vunpack.c.l.b16 %v1109
        %v5489 = vunpack.c.h.b16 %v1109
        %v5490 = vunpack.c.l.b16 %v1110
        %v5491 = vunpack.c.h.b16 %v1110
        %v5492 = vunpack.c.l.b16 %v1111
        %v5493 = vunpack.c.h.b16 %v1111
        %v5494 = vunpack.c.l.b16 %v1112
        %v5495 = vunpack.c.h.b16 %v1112
        %v5496 = vunpack.c.l.b16 %v1113
        %v5497 = vunpack.c.h.b16 %v1113
        %v5498 = vunpack.c.l.b16 %v1114
        %v5499 = vunpack.c.h.b16 %v1114
        %v5500 = vunpack.c.l.b16 %v1115
        %v5501 = vunpack.c.h.b16 %v1115
        %v5502 = vunpack.c.l.b16 %v1116
        %v5503 = vunpack.c.h.b16 %v1116
        %v5504 = vunpack.c.l.b16 %v1117
        %v5505 = vunpack.c.h.b16 %v1117
        %v5506 = vunpack.c.l.b16 %v1118
        %v5507 = vunpack.c.h.b16 %v1118
        %v5508 = vunpack.c.l.b16 %v1119
        %v5509 = vunpack.c.h.b16 %v1119
        %v5510 = vunpack.c.l.b16 %v1120
        %v5511 = vunpack.c.h.b16 %v1120
        %v5512 = vunpack.c.l.b16 %v1121
        %v5513 = vunpack.c.h.b16 %v1121
        %v5514 = vunpack.c.l.b16 %v1122
        %v5515 = vunpack.c.h.b16 %v1122
        %v5516 = vunpack.c.l.b16 %v1123
        %v5517 = vunpack.c.h.b16 %v1123
        %v5518 = vunpack.c.l.b16 %v1124
        %v5519 = vunpack.c.h.b16 %v1124
        %v5520 = vunpack.c.l.b16 %v1125
        %v5521 = vunpack.c.h.b16 %v1125
        %v5522 = vunpack.c.l.b16 %v1126
        %v5523 = vunpack.c.h.b16 %v1126
        %v5524 = vunpack.c.l.b16 %v1127
        %v5525 = vunpack.c.h.b16 %v1127
        %v5526 = vunpack.c.l.b16 %v1128
        %v5527 = vunpack.c.h.b16 %v1128
        %v5528 = vunpack.c.l.b16 %v1129
        %v5529 = vunpack.c.h.b16 %v1129
        %v5530 = vunpack.c.l.b16 %v1130
        %v5531 = vunpack.c.h.b16 %v1130
        %v5532 = vunpack.c.l.b16 %v1131
        %v5533 = vunpack.c.h.b16 %v1131
        %v5534 = vunpack.c.l.b16 %v1132
        %v5535 = vunpack.c.h.b16 %v1132
        %v5536 = vunpack.c.l.b16 %v1133
        %v5537 = vunpack.c.h.b16 %v1133
        %v5538 = vunpack.c.l.b16 %v1134
        %v5539 = vunpack.c.h.b16 %v1134
        %v5540 = vunpack.c.l.b16 %v1135
        %v5541 = vunpack.c.h.b16 %v1135
        %v5542 = vunpack.c.l.b16 %v1136
        %v5543 = vunpack.c.h.b16 %v1136
        %v5544 = vunpack.c.l.b16 %v1137
        %v5545 = vunpack.c.h.b16 %v1137
        %v5546 = vunpack.c.l.b16 %v1138
        %v5547 = vunpack.c.h.b16 %v1138
        %v5548 = vunpack.c.l.b16 %v1139
        %v5549 = vunpack.c.h.b16 %v1139
        %v5550 = vunpack.c.l.b16 %v1140
        %v5551 = vunpack.c.h.b16 %v1140
        %v5552 = vunpack.c.l.b16 %v1141
        %v5553 = vunpack.c.h.b16 %v1141
        %v5554 = vunpack.c.l.b16 %v1142
        %v5555 = vunpack.c.h.b16 %v1142
        %v5556 = vunpack.c.l.b16 %v1143
        %v5557 = vunpack.c.h.b16 %v1143
        %v5558 = vunpack.c.l.b16 %v1144
        %v5559 = vunpack.c.h.b16 %v1144
        %v5560 = vunpack.c.l.b16 %v1145
        %v5561 = vunpack.c.h.b16 %v1145
        %v5562 = vunpack.c.l.b16 %v1146
        %v5563 = vunpack.c.h.b16 %v1146
        %v5564 = vunpack.c.l.b16 %v1147
        %v5565 = vunpack.c.h.b16 %v1147
        %v5566 = vunpack.c.l.b16 %v1148
        %v5567 = vunpack.c.h.b16 %v1148
        %v5568 = vunpack.c.l.b16 %v1149
        %v5569 = vunpack.c.h.b16 %v1149
        %v5570 = vunpack.c.l.b16 %v1150
        %v5571 = vunpack.c.h.b16 %v1150
        %v5572 = vunpack.c.l.b16 %v1151
        %v5573 = vunpack.c.h.b16 %v1151
        %v5574 = vunpack.c.l.b16 %v1152
        %v5575 = vunpack.c.h.b16 %v1152
        %v5576 = vunpack.c.l.b16 %v1153
        %v5577 = vunpack.c.h.b16 %v1153
        %v5578 = vunpack.c.l.b16 %v1154
        %v5579 = vunpack.c.h.b16 %v1154
        %v5580 = vunpack.c.l.b16 %v1155
        %v5581 = vunpack.c.h.b16 %v1155
        %v5582 = vunpack.c.l.b16 %v1156
        %v5583 = vunpack.c.h.b16 %v1156
        %v5584 = vunpack.c.l.b16 %v1157
        %v5585 = vunpack.c.h.b16 %v1157
        %v5586 = vunpack.c.l.b16 %v1158
        %v5587 = vunpack.c.h.b16 %v1158
        %v5588 = vunpack.c.l.b16 %v1159
        %v5589 = vunpack.c.h.b16 %v1159
        %v5590 = vunpack.c.l.b16 %v1160
        %v5591 = vunpack.c.h.b16 %v1160
        %v5592 = vunpack.c.l.b16 %v1161
        %v5593 = vunpack.c.h.b16 %v1161
        %v5594 = vunpack.c.l.b16 %v1162
        %v5595 = vunpack.c.h.b16 %v1162
        %v5596 = vunpack.c.l.b16 %v1163
        %v5597 = vunpack.c.h.b16 %v1163
        %v5598 = vunpack.c.l.b16 %v1164
        %v5599 = vunpack.c.h.b16 %v1164
        %v5600 = vunpack.c.l.b16 %v1165
        %v5601 = vunpack.c.h.b16 %v1165
        %v5602 = vunpack.c.l.b16 %v1166
        %v5603 = vunpack.c.h.b16 %v1166
        %v5604 = vunpack.c.l.b16 %v1167
        %v5605 = vunpack.c.h.b16 %v1167
        %v5606 = vunpack.c.l.b16 %v1168
        %v5607 = vunpack.c.h.b16 %v1168
        %v5608 = vunpack.c.l.b16 %v1169
        %v5609 = vunpack.c.h.b16 %v1169
        %v5610 = vunpack.c.l.b16 %v1170
        %v5611 = vunpack.c.h.b16 %v1170
        %v5612 = vunpack.c.l.b16 %v1171
        %v5613 = vunpack.c.h.b16 %v1171
        %v5614 = vunpack.c.l.b16 %v1172
        %v5615 = vunpack.c.h.b16 %v1172
        %v5616 = vunpack.c.l.b16 %v1173
        %v5617 = vunpack.c.h.b16 %v1173
        %v5618 = vunpack.c.l.b16 %v1174
        %v5619 = vunpack.c.h.b16 %v1174
        %v5620 = vunpack.c.l.b16 %v1175
        %v5621 = vunpack.c.h.b16 %v1175
        %v5622 = vunpack.c.l.b16 %v1176
        %v5623 = vunpack.c.h.b16 %v1176
        %v5624 = vunpack.c.l.b16 %v1177
        %v5625 = vunpack.c.h.b16 %v1177
        %v5626 = vunpack.c.l.b16 %v1178
        %v5627 = vunpack.c.h.b16 %v1178
        %v5628 = vunpack.c.l.b16 %v1179
        %v5629 = vunpack.c.h.b16 %v1179
        %v5630 = vunpack.c.l.b16 %v1180
        %v5631 = vunpack.c.h.b16 %v1180
        %v5632 = vunpack.c.l.b16 %v1181
        %v5633 = vunpack.c.h.b16 %v1181
        %v5634 = vunpack.c.l.b16 %v1182
        %v5635 = vunpack.c.h.b16 %v1182
        %v5636 = vunpack.c.l.b16 %v1183
        %v5637 = vunpack.c.h.b16 %v1183
        %v5638 = vunpack.c.l.b16 %v1184
        %v5639 = vunpack.c.h.b16 %v1184
        %v5640 = vunpack.c.l.b16 %v1185
        %v5641 = vunpack.c.h.b16 %v1185
        %v5642 = vunpack.c.l.b16 %v1186
        %v5643 = vunpack.c.h.b16 %v1186
        %v5644 = vunpack.c.l.b16 %v1187
        %v5645 = vunpack.c.h.b16 %v1187
        %v5646 = vunpack.c.l.b16 %v1188
        %v5647 = vunpack.c.h.b16 %v1188
        %v5648 = vunpack.c.l.b16 %v1189
        %v5649 = vunpack.c.h.b16 %v1189
        %v5650 = vunpack.c.l.b16 %v1190
        %v5651 = vunpack.c.h.b16 %v1190
        %v5652 = vunpack.c.l.b16 %v1191
        %v5653 = vunpack.c.h.b16 %v1191
        %v5654 = vunpack.c.l.b16 %v1192
        %v5655 = vunpack.c.h.b16 %v1192
        %v5656 = vunpack.c.l.b16 %v1193
        %v5657 = vunpack.c.h.b16 %v1193
        %v5658 = vunpack.c.l.b16 %v1194
        %v5659 = vunpack.c.h.b16 %v1194
        %v5660 = vunpack.c.l.b16 %v1195
        %v5661 = vunpack.c.h.b16 %v1195
        %v5662 = vunpack.c.l.b16 %v1196
        %v5663 = vunpack.c.h.b16 %v1196
        %v5664 = vunpack.c.l.b16 %v1197
        %v5665 = vunpack.c.h.b16 %v1197
        %v5666 = vunpack.c.l.b16 %v1198
        %v5667 = vunpack.c.h.b16 %v1198
        %v5668 = vunpack.c.l.b16 %v1199
        %v5669 = vunpack.c.h.b16 %v1199
        %v5670 = vunpack.c.l.b16 %v1200
        %v5671 = vunpack.c.h.b16 %v1200
        %v5672 = vunpack.c.l.b16 %v1201
        %v5673 = vunpack.c.h.b16 %v1201
        %v5674 = vunpack.c.l.b16 %v1202
        %v5675 = vunpack.c.h.b16 %v1202
        %v5676 = vunpack.c.l.b16 %v1203
        %v5677 = vunpack.c.h.b16 %v1203
        %v5678 = vunpack.c.l.b16 %v1204
        %v5679 = vunpack.c.h.b16 %v1204
        %v5680 = vunpack.c.l.b16 %v1205
        %v5681 = vunpack.c.h.b16 %v1205
        %v5682 = vunpack.c.l.b16 %v1206
        %v5683 = vunpack.c.h.b16 %v1206
        %v5684 = vunpack.c.l.b16 %v1207
        %v5685 = vunpack.c.h.b16 %v1207
        %v5686 = vunpack.c.l.b16 %v1208
        %v5687 = vunpack.c.h.b16 %v1208
        %v5688 = vunpack.c.l.b16 %v1209
        %v5689 = vunpack.c.h.b16 %v1209
        %v5690 = vunpack.c.l.b16 %v1210
        %v5691 = vunpack.c.h.b16 %v1210
        %v5692 = vunpack.c.l.b16 %v1211
        %v5693 = vunpack.c.h.b16 %v1211
        %v5694 = vunpack.c.l.b16 %v1212
        %v5695 = vunpack.c.h.b16 %v1212
        %v5696 = vunpack.c.l.b16 %v1213
        %v5697 = vunpack.c.h.b16 %v1213
        %v5698 = vunpack.c.l.b16 %v1214
        %v5699 = vunpack.c.h.b16 %v1214
        %v5700 = vunpack.c.l.b16 %v1215
        %v5701 = vunpack.c.h.b16 %v1215
        %v5702 = vunpack.c.l.b16 %v1216
        %v5703 = vunpack.c.h.b16 %v1216
        %v5704 = vunpack.c.l.b16 %v1217
        %v5705 = vunpack.c.h.b16 %v1217
        %v5706 = vunpack.c.l.b16 %v1218
        %v5707 = vunpack.c.h.b16 %v1218
        %v5708 = vunpack.c.l.b16 %v1219
        %v5709 = vunpack.c.h.b16 %v1219
        %v5710 = vunpack.c.l.b16 %v1220
        %v5711 = vunpack.c.h.b16 %v1220
        %v5712 = vunpack.c.l.b16 %v1221
        %v5713 = vunpack.c.h.b16 %v1221
        %v5714 = vunpack.c.l.b16 %v1222
        %v5715 = vunpack.c.h.b16 %v1222
        %v5716 = vunpack.c.l.b16 %v1223
        %v5717 = vunpack.c.h.b16 %v1223
        %v5718 = vunpack.c.l.b16 %v1224
        %v5719 = vunpack.c.h.b16 %v1224
        %v5720 = vunpack.c.l.b16 %v1225
        %v5721 = vunpack.c.h.b16 %v1225
        %v5722 = vunpack.c.l.b16 %v1226
        %v5723 = vunpack.c.h.b16 %v1226
        %v5724 = vunpack.c.l.b16 %v1227
        %v5725 = vunpack.c.h.b16 %v1227
        %v5726 = vunpack.c.l.b16 %v1228
        %v5727 = vunpack.c.h.b16 %v1228
        %v5728 = vunpack.c.l.b16 %v1229
        %v5729 = vunpack.c.h.b16 %v1229
        %v5730 = vunpack.c.l.b16 %v1230
        %v5731 = vunpack.c.h.b16 %v1230
        %v5732 = vunpack.c.l.b16 %v1231
        %v5733 = vunpack.c.h.b16 %v1231
        %v5734 = vunpack.c.l.b16 %v1232
        %v5735 = vunpack.c.h.b16 %v1232
        %v5736 = vunpack.c.l.b16 %v1233
        %v5737 = vunpack.c.h.b16 %v1233
        %v5738 = vunpack.c.l.b16 %v1234
        %v5739 = vunpack.c.h.b16 %v1234
        %v5740 = vunpack.c.l.b16 %v1235
        %v5741 = vunpack.c.h.b16 %v1235
        %v5742 = vunpack.c.l.b16 %v1236
        %v5743 = vunpack.c.h.b16 %v1236
        %v5744 = vunpack.c.l.b16 %v1237
        %v5745 = vunpack.c.h.b16 %v1237
        %v5746 = vunpack.c.l.b16 %v1238
        %v5747 = vunpack.c.h.b16 %v1238
        %v5748 = vunpack.c.l.b16 %v1239
        %v5749 = vunpack.c.h.b16 %v1239
        %v5750 = vunpack.c.l.b16 %v1240
        %v5751 = vunpack.c.h.b16 %v1240
        %v5752 = vunpack.c.l.b16 %v1241
        %v5753 = vunpack.c.h.b16 %v1241
        %v5754 = vunpack.c.l.b16 %v1242
        %v5755 = vunpack.c.h.b16 %v1242
        %v5756 = vunpack.c.l.b16 %v1243
        %v5757 = vunpack.c.h.b16 %v1243
        %v5758 = vunpack.c.l.b16 %v1244
        %v5759 = vunpack.c.h.b16 %v1244
        %v5760 = vunpack.c.l.b16 %v1245
        %v5761 = vunpack.c.h.b16 %v1245
        %v5762 = vunpack.c.l.b16 %v1246
        %v5763 = vunpack.c.h.b16 %v1246
        %v5764 = vunpack.c.l.b16 %v1247
        %v5765 = vunpack.c.h.b16 %v1247
        %v5766 = vunpack.c.l.b16 %v1248
        %v5767 = vunpack.c.h.b16 %v1248
        %v5768 = vunpack.c.l.b16 %v1249
        %v5769 = vunpack.c.h.b16 %v1249
        %v5770 = vunpack.c.l.b16 %v1250
        %v5771 = vunpack.c.h.b16 %v1250
        %v5772 = vunpack.c.l.b16 %v1251
        %v5773 = vunpack.c.h.b16 %v1251
        %v5774 = vunpack.c.l.b16 %v1252
        %v5775 = vunpack.c.h.b16 %v1252
        %v5776 = vunpack.c.l.b16 %v1253
        %v5777 = vunpack.c.h.b16 %v1253
        %v5778 = vunpack.c.l.b16 %v1254
        %v5779 = vunpack.c.h.b16 %v1254
        %v5780 = vunpack.c.l.b16 %v1255
        %v5781 = vunpack.c.h.b16 %v1255
        %v5782 = vunpack.c.l.b16 %v1256
        %v5783 = vunpack.c.h.b16 %v1256
        %v5784 = vunpack.c.l.b16 %v1257
        %v5785 = vunpack.c.h.b16 %v1257
        %v5786 = vunpack.c.l.b16 %v1258
        %v5787 = vunpack.c.h.b16 %v1258
        %v5788 = vunpack.c.l.b16 %v1259
        %v5789 = vunpack.c.h.b16 %v1259
        %v5790 = vunpack.c.l.b16 %v1260
        %v5791 = vunpack.c.h.b16 %v1260
        %v5792 = vunpack.c.l.b16 %v1261
        %v5793 = vunpack.c.h.b16 %v1261
        %v5794 = vunpack.c.l.b16 %v1262
        %v5795 = vunpack.c.h.b16 %v1262
        %v5796 = vunpack.c.l.b16 %v1263
        %v5797 = vunpack.c.h.b16 %v1263
        %v5798 = vunpack.c.l.b16 %v1264
        %v5799 = vunpack.c.h.b16 %v1264
        %v5800 = vunpack.c.l.b16 %v1265
        %v5801 = vunpack.c.h.b16 %v1265
        %v5802 = vunpack.c.l.b16 %v1266
        %v5803 = vunpack.c.h.b16 %v1266
        %v5804 = vunpack.c.l.b16 %v1267
        %v5805 = vunpack.c.h.b16 %v1267
        %v5806 = vunpack.c.l.b16 %v1268
        %v5807 = vunpack.c.h.b16 %v1268
        %v5808 = vunpack.c.l.b16 %v1269
        %v5809 = vunpack.c.h.b16 %v1269
        %v5810 = vunpack.c.l.b16 %v1270
        %v5811 = vunpack.c.h.b16 %v1270
        %v5812 = vunpack.c.l.b16 %v1271
        %v5813 = vunpack.c.h.b16 %v1271
        %v5814 = vunpack.c.l.b16 %v1272
        %v5815 = vunpack.c.h.b16 %v1272
        %v5816 = vunpack.c.l.b16 %v1273
        %v5817 = vunpack.c.h.b16 %v1273
        %v5818 = vunpack.c.l.b16 %v1274
        %v5819 = vunpack.c.h.b16 %v1274
        %v5820 = vunpack.c.l.b16 %v1275
        %v5821 = vunpack.c.h.b16 %v1275
        %v5822 = vunpack.c.l.b16 %v1276
        %v5823 = vunpack.c.h.b16 %v1276
        %v5824 = vunpack.c.l.b16 %v1277
        %v5825 = vunpack.c.h.b16 %v1277
        %v5826 = vunpack.c.l.b16 %v1278
        %v5827 = vunpack.c.h.b16 %v1278
        %v5828 = vunpack.c.l.b16 %v1279
        %v5829 = vunpack.c.h.b16 %v1279
        %v5830 = vunpack.c.l.b16 %v1280
        %v5831 = vunpack.c.h.b16 %v1280
        %v5832 = vunpack.c.l.b16 %v1281
        %v5833 = vunpack.c.h.b16 %v1281
        %v5834 = vunpack.c.l.b16 %v1282
        %v5835 = vunpack.c.h.b16 %v1282
        %v5836 = vunpack.c.l.b16 %v1283
        %v5837 = vunpack.c.h.b16 %v1283
        %v5838 = vunpack.c.l.b16 %v1284
        %v5839 = vunpack.c.h.b16 %v1284
        %v5840 = vunpack.c.l.b16 %v1285
        %v5841 = vunpack.c.h.b16 %v1285
        %v5842 = vunpack.c.l.b16 %v1286
        %v5843 = vunpack.c.h.b16 %v1286
        %v5844 = vunpack.c.l.b16 %v1287
        %v5845 = vunpack.c.h.b16 %v1287
        %v5846 = vunpack.c.l.b16 %v1288
        %v5847 = vunpack.c.h.b16 %v1288
        %v5848 = vunpack.c.l.b16 %v1289
        %v5849 = vunpack.c.h.b16 %v1289
        %v5850 = vunpack.c.l.b16 %v1290
        %v5851 = vunpack.c.h.b16 %v1290
        %v5852 = vunpack.c.l.b16 %v1291
        %v5853 = vunpack.c.h.b16 %v1291
        %v5854 = vunpack.c.l.b16 %v1292
        %v5855 = vunpack.c.h.b16 %v1292
        %v5856 = vunpack.c.l.b16 %v1293
        %v5857 = vunpack.c.h.b16 %v1293
        %v5858 = vunpack.c.l.b16 %v1294
        %v5859 = vunpack.c.h.b16 %v1294
        %v5860 = vunpack.c.l.b16 %v1295
        %v5861 = vunpack.c.h.b16 %v1295
        %v5862 = vunpack.c.l.b16 %v1296
        %v5863 = vunpack.c.h.b16 %v1296
        %v5864 = vunpack.c.l.b16 %v1297
        %v5865 = vunpack.c.h.b16 %v1297
        %v5866 = vunpack.c.l.b16 %v1298
        %v5867 = vunpack.c.h.b16 %v1298
        %v5868 = vunpack.c.l.b16 %v1299
        %v5869 = vunpack.c.h.b16 %v1299
        %v5870 = vunpack.c.l.b16 %v1300
        %v5871 = vunpack.c.h.b16 %v1300
        %v5872 = vunpack.c.l.b16 %v1301
        %v5873 = vunpack.c.h.b16 %v1301
        %v5874 = vunpack.c.l.b16 %v1302
        %v5875 = vunpack.c.h.b16 %v1302
        %v5876 = vunpack.c.l.b16 %v1303
        %v5877 = vunpack.c.h.b16 %v1303
        %v5878 = vunpack.c.l.b16 %v1304
        %v5879 = vunpack.c.h.b16 %v1304
        %v5880 = vunpack.c.l.b16 %v1305
        %v5881 = vunpack.c.h.b16 %v1305
        %v5882 = vunpack.c.l.b16 %v1306
        %v5883 = vunpack.c.h.b16 %v1306
        %v5884 = vunpack.c.l.b16 %v1307
        %v5885 = vunpack.c.h.b16 %v1307
        %v5886 = vunpack.c.l.b16 %v1308
        %v5887 = vunpack.c.h.b16 %v1308
        %v5888 = vunpack.c.l.b16 %v1309
        %v5889 = vunpack.c.h.b16 %v1309
        %v5890 = vunpack.c.l.b16 %v1310
        %v5891 = vunpack.c.h.b16 %v1310
        %v5892 = vunpack.c.l.b16 %v1311
        %v5893 = vunpack.c.h.b16 %v1311
        %v5894 = vunpack.c.l.b16 %v1312
        %v5895 = vunpack.c.h.b16 %v1312
        %v5896 = vunpack.c.l.b16 %v1313
        %v5897 = vunpack.c.h.b16 %v1313
        %v5898 = vunpack.c.l.b16 %v1314
        %v5899 = vunpack.c.h.b16 %v1314
        %v5900 = vunpack.c.l.b16 %v1315
        %v5901 = vunpack.c.h.b16 %v1315
        %v5902 = vunpack.c.l.b16 %v1316
        %v5903 = vunpack.c.h.b16 %v1316
        %v5904 = vunpack.c.l.b16 %v1317
        %v5905 = vunpack.c.h.b16 %v1317
        %v5906 = vunpack.c.l.b16 %v1318
        %v5907 = vunpack.c.h.b16 %v1318
        %v5908 = vunpack.c.l.b16 %v1319
        %v5909 = vunpack.c.h.b16 %v1319
        %v5910 = vunpack.c.l.b16 %v1320
        %v5911 = vunpack.c.h.b16 %v1320
        %v5912 = vunpack.c.l.b16 %v1321
        %v5913 = vunpack.c.h.b16 %v1321
        %v5914 = vunpack.c.l.b16 %v1322
        %v5915 = vunpack.c.h.b16 %v1322
        %v5916 = vunpack.c.l.b16 %v1323
        %v5917 = vunpack.c.h.b16 %v1323
        %v5918 = vunpack.c.l.b16 %v1324
        %v5919 = vunpack.c.h.b16 %v1324
        %v5920 = vunpack.c.l.b16 %v1325
        %v5921 = vunpack.c.h.b16 %v1325
        %v5922 = vunpack.c.l.b16 %v1326
        %v5923 = vunpack.c.h.b16 %v1326
        %v5924 = vunpack.c.l.b16 %v1327
        %v5925 = vunpack.c.h.b16 %v1327
        %v5926 = vunpack.c.l.b16 %v1328
        %v5927 = vunpack.c.h.b16 %v1328
        %v5928 = vunpack.c.l.b16 %v1329
        %v5929 = vunpack.c.h.b16 %v1329
        %v5930 = vunpack.c.l.b16 %v1330
        %v5931 = vunpack.c.h.b16 %v1330
        %v5932 = vunpack.c.l.b16 %v1331
        %v5933 = vunpack.c.h.b16 %v1331
        %v5934 = vunpack.c.l.b16 %v1332
        %v5935 = vunpack.c.h.b16 %v1332
        %v5936 = vunpack.c.l.b16 %v1333
        %v5937 = vunpack.c.h.b16 %v1333
        %v5938 = vunpack.c.l.b16 %v1334
        %v5939 = vunpack.c.h.b16 %v1334
        %v5940 = vunpack.c.l.b16 %v1335
        %v5941 = vunpack.c.h.b16 %v1335
        %v5942 = vunpack.c.l.b16 %v1336
        %v5943 = vunpack.c.h.b16 %v1336
        %v5944 = vunpack.c.l.b16 %v1337
        %v5945 = vunpack.c.h.b16 %v1337
        %v5946 = vunpack.c.l.b16 %v1338
        %v5947 = vunpack.c.h.b16 %v1338
        %v5948 = vunpack.c.l.b16 %v1339
        %v5949 = vunpack.c.h.b16 %v1339
        %v5950 = vunpack.c.l.b16 %v1340
        %v5951 = vunpack.c.h.b16 %v1340
        %v5952 = vunpack.c.l.b16 %v1341
        %v5953 = vunpack.c.h.b16 %v1341
        %v5954 = vunpack.c.l.b16 %v1342
        %v5955 = vunpack.c.h.b16 %v1342
        %v5956 = vunpack.c.l.b16 %v1343
        %v5957 = vunpack.c.h.b16 %v1343
        %v5958 = vunpack.c.l.b16 %v1344
        %v5959 = vunpack.c.h.b16 %v1344
        %v5960 = vunpack.c.l.b16 %v1345
        %v5961 = vunpack.c.h.b16 %v1345
        %v5962 = vunpack.c.l.b16 %v1346
        %v5963 = vunpack.c.h.b16 %v1346
        %v5964 = vunpack.c.l.b16 %v1347
        %v5965 = vunpack.c.h.b16 %v1347
        %v5966 = vunpack.c.l.b16 %v1348
        %v5967 = vunpack.c.h.b16 %v1348
        %v5968 = vunpack.c.l.b16 %v1349
        %v5969 = vunpack.c.h.b16 %v1349
        %v5970 = vunpack.c.l.b16 %v1350
        %v5971 = vunpack.c.h.b16 %v1350
        %v5972 = vunpack.c.l.b16 %v1351
        %v5973 = vunpack.c.h.b16 %v1351
        %v5974 = vunpack.c.l.b16 %v1352
        %v5975 = vunpack.c.h.b16 %v1352
        %v5976 = vunpack.c.l.b16 %v1353
        %v5977 = vunpack.c.h.b16 %v1353
        %v5978 = vunpack.c.l.b16 %v1354
        %v5979 = vunpack.c.h.b16 %v1354
        %v5980 = vunpack.c.l.b16 %v1355
        %v5981 = vunpack.c.h.b16 %v1355
        %v5982 = vunpack.c.l.b16 %v1356
        %v5983 = vunpack.c.h.b16 %v1356
        %v5984 = vunpack.c.l.b16 %v1357
        %v5985 = vunpack.c.h.b16 %v1357
        %v5986 = vunpack.c.l.b16 %v1358
        %v5987 = vunpack.c.h.b16 %v1358
        %v5988 = vunpack.c.l.b16 %v1359
        %v5989 = vunpack.c.h.b16 %v1359
        %v5990 = vunpack.c.l.b16 %v1360
        %v5991 = vunpack.c.h.b16 %v1360
        %v5992 = vunpack.c.l.b16 %v1361
        %v5993 = vunpack.c.h.b16 %v1361
        %v5994 = vunpack.c.l.b16 %v1362
        %v5995 = vunpack.c.h.b16 %v1362
        %v5996 = vunpack.c.l.b16 %v1363
        %v5997 = vunpack.c.h.b16 %v1363
        %v5998 = vunpack.c.l.b16 %v1364
        %v5999 = vunpack.c.h.b16 %v1364
        %v6000 = vunpack.c.l.b16 %v1365
        %v6001 = vunpack.c.h.b16 %v1365
        %v6002 = vunpack.c.l.b16 %v1366
        %v6003 = vunpack.c.h.b16 %v1366
        %v6004 = vunpack.c.l.b16 %v1367
        %v6005 = vunpack.c.h.b16 %v1367
        %v6006 = vunpack.c.l.b16 %v1368
        %v6007 = vunpack.c.h.b16 %v1368
        %v6008 = vunpack.c.l.b16 %v1369
        %v6009 = vunpack.c.h.b16 %v1369
        %v6010 = vunpack.c.l.b16 %v1370
        %v6011 = vunpack.c.h.b16 %v1370
        %v6012 = vunpack.c.l.b16 %v1371
        %v6013 = vunpack.c.h.b16 %v1371
        %v6014 = vunpack.c.l.b16 %v1372
        %v6015 = vunpack.c.h.b16 %v1372
        %v6016 = vunpack.c.l.b16 %v1373
        %v6017 = vunpack.c.h.b16 %v1373
        %v6018 = vunpack.c.l.b16 %v1374
        %v6019 = vunpack.c.h.b16 %v1374
        %v6020 = vunpack.c.l.b16 %v1375
        %v6021 = vunpack.c.h.b16 %v1375
        %v6022 = vunpack.c.l.b16 %v1376
        %v6023 = vunpack.c.h.b16 %v1376
        %v6024 = vunpack.c.l.b16 %v1377
        %v6025 = vunpack.c.h.b16 %v1377
        %v6026 = vunpack.c.l.b16 %v1378
        %v6027 = vunpack.c.h.b16 %v1378
        %v6028 = vunpack.c.l.b16 %v1379
        %v6029 = vunpack.c.h.b16 %v1379
        %v6030 = vunpack.c.l.b16 %v1380
        %v6031 = vunpack.c.h.b16 %v1380
        %v6032 = vunpack.c.l.b16 %v1381
        %v6033 = vunpack.c.h.b16 %v1381
        %v6034 = vunpack.c.l.b16 %v1382
        %v6035 = vunpack.c.h.b16 %v1382
        %v6036 = vunpack.c.l.b16 %v1383
        %v6037 = vunpack.c.h.b16 %v1383
        %v6038 = vunpack.c.l.b16 %v1384
        %v6039 = vunpack.c.h.b16 %v1384
        %v6040 = vunpack.c.l.b16 %v1385
        %v6041 = vunpack.c.h.b16 %v1385
        %v6042 = vunpack.c.l.b16 %v1386
        %v6043 = vunpack.c.h.b16 %v1386
        %v6044 = vunpack.c.l.b16 %v1387
        %v6045 = vunpack.c.h.b16 %v1387
        %v6046 = vunpack.c.l.b16 %v1388
        %v6047 = vunpack.c.h.b16 %v1388
        %v6048 = vunpack.c.l.b16 %v1389
        %v6049 = vunpack.c.h.b16 %v1389
        %v6050 = vunpack.c.l.b16 %v1390
        %v6051 = vunpack.c.h.b16 %v1390
        %v6052 = vunpack.c.l.b16 %v1391
        %v6053 = vunpack.c.h.b16 %v1391
        %v6054 = vunpack.c.l.b16 %v1392
        %v6055 = vunpack.c.h.b16 %v1392
        %v6056 = vunpack.c.l.b16 %v1393
        %v6057 = vunpack.c.h.b16 %v1393
        %v6058 = vunpack.c.l.b16 %v1394
        %v6059 = vunpack.c.h.b16 %v1394
        %v6060 = vunpack.c.l.b16 %v1395
        %v6061 = vunpack.c.h.b16 %v1395
        %v6062 = vunpack.c.l.b16 %v1396
        %v6063 = vunpack.c.h.b16 %v1396
        %v6064 = vunpack.c.l.b16 %v1397
        %v6065 = vunpack.c.h.b16 %v1397
        %v6066 = vunpack.c.l.b16 %v1398
        %v6067 = vunpack.c.h.b16 %v1398
        %v6068 = vunpack.c.l.b16 %v1399
        %v6069 = vunpack.c.h.b16 %v1399
        %v6070 = vunpack.c.l.b16 %v1400
        %v6071 = vunpack.c.h.b16 %v1400
        %v6072 = vunpack.c.l.b16 %v1401
        %v6073 = vunpack.c.h.b16 %v1401
        %v6074 = vunpack.c.l.b16 %v1402
        %v6075 = vunpack.c.h.b16 %v1402
        %v6076 = vunpack.c.l.b16 %v1403
        %v6077 = vunpack.c.h.b16 %v1403
        %v6078 = vunpack.c.l.b16 %v1404
        %v6079 = vunpack.c.h.b16 %v1404
        %v6080 = vunpack.c.l.b16 %v1405
        %v6081 = vunpack.c.h.b16 %v1405
        %v6082 = vunpack.c.l.b16 %v1406
        %v6083 = vunpack.c.h.b16 %v1406
        %v6084 = vunpack.c.l.b16 %v1407
        %v6085 = vunpack.c.h.b16 %v1407
        %v6086 = vunpack.c.l.b16 %v1408
        %v6087 = vunpack.c.h.b16 %v1408
        %v6088 = vunpack.c.l.b16 %v1409
        %v6089 = vunpack.c.h.b16 %v1409
        %v6090 = vunpack.c.l.b16 %v1410
        %v6091 = vunpack.c.h.b16 %v1410
        %v6092 = vunpack.c.l.b16 %v1411
        %v6093 = vunpack.c.h.b16 %v1411
        %v6094 = vunpack.c.l.b16 %v1412
        %v6095 = vunpack.c.h.b16 %v1412
        %v6096 = vunpack.c.l.b16 %v1413
        %v6097 = vunpack.c.h.b16 %v1413
        %v6098 = vunpack.c.l.b16 %v1414
        %v6099 = vunpack.c.h.b16 %v1414
        %v6100 = vunpack.c.l.b16 %v1415
        %v6101 = vunpack.c.h.b16 %v1415
        %v6102 = vunpack.c.l.b16 %v1416
        %v6103 = vunpack.c.h.b16 %v1416
        %v6104 = vunpack.c.l.b16 %v1417
        %v6105 = vunpack.c.h.b16 %v1417
        %v6106 = vunpack.c.l.b16 %v1418
        %v6107 = vunpack.c.h.b16 %v1418
        %v6108 = vunpack.c.l.b16 %v1419
        %v6109 = vunpack.c.h.b16 %v1419
        %v6110 = vunpack.c.l.b16 %v1420
        %v6111 = vunpack.c.h.b16 %v1420
        %v6112 = vunpack.c.l.b16 %v1421
        %v6113 = vunpack.c.h.b16 %v1421
        %v6114 = vunpack.c.l.b16 %v1422
        %v6115 = vunpack.c.h.b16 %v1422
        %v6116 = vunpack.c.l.b16 %v1423
        %v6117 = vunpack.c.h.b16 %v1423
        %v6118 = vunpack.c.l.b16 %v1424
        %v6119 = vunpack.c.h.b16 %v1424
        %v6120 = vunpack.c.l.b16 %v1425
        %v6121 = vunpack.c.h.b16 %v1425
        %v6122 = vunpack.c.l.b16 %v1426
        %v6123 = vunpack.c.h.b16 %v1426
        %v6124 = vunpack.c.l.b16 %v1427
        %v6125 = vunpack.c.h.b16 %v1427
        %v6126 = vunpack.c.l.b16 %v1428
        %v6127 = vunpack.c.h.b16 %v1428
        %v6128 = vunpack.c.l.b16 %v1429
        %v6129 = vunpack.c.h.b16 %v1429
        %v6130 = vunpack.c.l.b16 %v1430
        %v6131 = vunpack.c.h.b16 %v1430
        %v6132 = vunpack.c.l.b16 %v1431
        %v6133 = vunpack.c.h.b16 %v1431
        %v6134 = vunpack.c.l.b16 %v1432
        %v6135 = vunpack.c.h.b16 %v1432
        %v6136 = vunpack.c.l.b16 %v1433
        %v6137 = vunpack.c.h.b16 %v1433
        %v6138 = vunpack.c.l.b16 %v1434
        %v6139 = vunpack.c.h.b16 %v1434
        %v6140 = vunpack.c.l.b16 %v1435
        %v6141 = vunpack.c.h.b16 %v1435
        %v6142 = vunpack.c.l.b16 %v1436
        %v6143 = vunpack.c.h.b16 %v1436
        %v6144 = vunpack.c.l.b16 %v1437
        %v6145 = vunpack.c.h.b16 %v1437
        %v6146 = vunpack.c.l.b16 %v1438
        %v6147 = vunpack.c.h.b16 %v1438
        %v6148 = vunpack.c.l.b16 %v1439
        %v6149 = vunpack.c.h.b16 %v1439
        %v6150 = vunpack.c.l.b16 %v1440
        %v6151 = vunpack.c.h.b16 %v1440
        %v6152 = vunpack.c.l.b16 %v1441
        %v6153 = vunpack.c.h.b16 %v1441
        %v6154 = vunpack.c.l.b16 %v1442
        %v6155 = vunpack.c.h.b16 %v1442
        %v6156 = vunpack.c.l.b16 %v1443
        %v6157 = vunpack.c.h.b16 %v1443
        %v6158 = vunpack.c.l.b16 %v1444
        %v6159 = vunpack.c.h.b16 %v1444
        %v6160 = vunpack.c.l.b16 %v1445
        %v6161 = vunpack.c.h.b16 %v1445
        %v6162 = vunpack.c.l.b16 %v1446
        %v6163 = vunpack.c.h.b16 %v1446
        %v6164 = vunpack.c.l.b16 %v1447
        %v6165 = vunpack.c.h.b16 %v1447
        %v6166 = vunpack.c.l.b16 %v1448
        %v6167 = vunpack.c.h.b16 %v1448
        %v6168 = vunpack.c.l.b16 %v1449
        %v6169 = vunpack.c.h.b16 %v1449
        %v6170 = vunpack.c.l.b16 %v1450
        %v6171 = vunpack.c.h.b16 %v1450
        %v6172 = vunpack.c.l.b16 %v1451
        %v6173 = vunpack.c.h.b16 %v1451
        %v6174 = vunpack.c.l.b16 %v1452
        %v6175 = vunpack.c.h.b16 %v1452
        %v6176 = vunpack.c.l.b16 %v1453
        %v6177 = vunpack.c.h.b16 %v1453
        %v6178 = vunpack.c.l.b16 %v1454
        %v6179 = vunpack.c.h.b16 %v1454
        %v6180 = vunpack.c.l.b16 %v1455
        %v6181 = vunpack.c.h.b16 %v1455
        %v6182 = vunpack.c.l.b16 %v1456
        %v6183 = vunpack.c.h.b16 %v1456
        %v6184 = vunpack.c.l.b16 %v1457
        %v6185 = vunpack.c.h.b16 %v1457
        %v6186 = vunpack.c.l.b16 %v1458
        %v6187 = vunpack.c.h.b16 %v1458
        %v6188 = vunpack.c.l.b16 %v1459
        %v6189 = vunpack.c.h.b16 %v1459
        %v6190 = vunpack.c.l.b16 %v1460
        %v6191 = vunpack.c.h.b16 %v1460
        %v6192 = vunpack.c.l.b16 %v1461
        %v6193 = vunpack.c.h.b16 %v1461
        %v6194 = vunpack.c.l.b16 %v1462
        %v6195 = vunpack.c.h.b16 %v1462
        %v6196 = vunpack.c.l.b16 %v1463
        %v6197 = vunpack.c.h.b16 %v1463
        %v6198 = vunpack.c.l.b16 %v1464
        %v6199 = vunpack.c.h.b16 %v1464
        %v6200 = vunpack.c.l.b16 %v1465
        %v6201 = vunpack.c.h.b16 %v1465
        %v6202 = vunpack.c.l.b16 %v1466
        %v6203 = vunpack.c.h.b16 %v1466
        %v6204 = vunpack.c.l.b16 %v1467
        %v6205 = vunpack.c.h.b16 %v1467
        %v6206 = vunpack.c.l.b16 %v1468
        %v6207 = vunpack.c.h.b16 %v1468
        %v6208 = vunpack.c.l.b16 %v1469
        %v6209 = vunpack.c.h.b16 %v1469
        %v6210 = vunpack.c.l.b16 %v1470
        %v6211 = vunpack.c.h.b16 %v1470
        %v6212 = vunpack.c.l.b16 %v1471
        %v6213 = vunpack.c.h.b16 %v1471
        %v6214 = vunpack.c.l.b16 %v1472
        %v6215 = vunpack.c.h.b16 %v1472
        %v6216 = vunpack.c.l.b16 %v1473
        %v6217 = vunpack.c.h.b16 %v1473
        %v6218 = vunpack.c.l.b16 %v1474
        %v6219 = vunpack.c.h.b16 %v1474
        %v6220 = vunpack.c.l.b16 %v1475
        %v6221 = vunpack.c.h.b16 %v1475
        %v6222 = vunpack.c.l.b16 %v1476
        %v6223 = vunpack.c.h.b16 %v1476
        %v6224 = vunpack.c.l.b16 %v1477
        %v6225 = vunpack.c.h.b16 %v1477
        %v6226 = vunpack.c.l.b16 %v1478
        %v6227 = vunpack.c.h.b16 %v1478
        %v6228 = vunpack.c.l.b16 %v1479
        %v6229 = vunpack.c.h.b16 %v1479
        %v6230 = vunpack.c.l.b16 %v1480
        %v6231 = vunpack.c.h.b16 %v1480
        %v6232 = vunpack.c.l.b16 %v1481
        %v6233 = vunpack.c.h.b16 %v1481
        %v6234 = vunpack.c.l.b16 %v1482
        %v6235 = vunpack.c.h.b16 %v1482
        %v6236 = vunpack.c.l.b16 %v1483
        %v6237 = vunpack.c.h.b16 %v1483
        %v6238 = vunpack.c.l.b16 %v1484
        %v6239 = vunpack.c.h.b16 %v1484
        %v6240 = vunpack.c.l.b16 %v1485
        %v6241 = vunpack.c.h.b16 %v1485
        %v6242 = vunpack.c.l.b16 %v1486
        %v6243 = vunpack.c.h.b16 %v1486
        %v6244 = vunpack.c.l.b16 %v1487
        %v6245 = vunpack.c.h.b16 %v1487
        %v6246 = vunpack.c.l.b16 %v1488
        %v6247 = vunpack.c.h.b16 %v1488
        %v6248 = vunpack.c.l.b16 %v1489
        %v6249 = vunpack.c.h.b16 %v1489
        %v6250 = vunpack.c.l.b16 %v1490
        %v6251 = vunpack.c.h.b16 %v1490
        %v6252 = vunpack.c.l.b16 %v1491
        %v6253 = vunpack.c.h.b16 %v1491
        %v6254 = vunpack.c.l.b16 %v1492
        %v6255 = vunpack.c.h.b16 %v1492
        %v6256 = vunpack.c.l.b16 %v1493
        %v6257 = vunpack.c.h.b16 %v1493
        %v6258 = vunpack.c.l.b16 %v1494
        %v6259 = vunpack.c.h.b16 %v1494
        %v6260 = vunpack.c.l.b16 %v1495
        %v6261 = vunpack.c.h.b16 %v1495
        %v6262 = vunpack.c.l.b16 %v1496
        %v6263 = vunpack.c.h.b16 %v1496
        %v6264 = vunpack.c.l.b16 %v1497
        %v6265 = vunpack.c.h.b16 %v1497
        %v6266 = vunpack.c.l.b16 %v1498
        %v6267 = vunpack.c.h.b16 %v1498
        %v6268 = vunpack.c.l.b16 %v1499
        %v6269 = vunpack.c.h.b16 %v1499
        %v6270 = vunpack.c.l.b16 %v1500
        %v6271 = vunpack.c.h.b16 %v1500
        %v6272 = vunpack.c.l.b16 %v1501
        %v6273 = vunpack.c.h.b16 %v1501
        %v6274 = vunpack.c.l.b16 %v1502
        %v6275 = vunpack.c.h.b16 %v1502
        %v6276 = vunpack.c.l.b16 %v1503
        %v6277 = vunpack.c.h.b16 %v1503
        %v6278 = vunpack.c.l.b16 %v1504
        %v6279 = vunpack.c.h.b16 %v1504
        %v6280 = vunpack.c.l.b16 %v1505
        %v6281 = vunpack.c.h.b16 %v1505
        %v6282 = vunpack.c.l.b16 %v1506
        %v6283 = vunpack.c.h.b16 %v1506
        %v6284 = vunpack.c.l.b16 %v1507
        %v6285 = vunpack.c.h.b16 %v1507
        %v6286 = vunpack.c.l.b16 %v1508
        %v6287 = vunpack.c.h.b16 %v1508
        %v6288 = vunpack.c.l.b16 %v1509
        %v6289 = vunpack.c.h.b16 %v1509
        %v6290 = vunpack.c.l.b16 %v1510
        %v6291 = vunpack.c.h.b16 %v1510
        %v6292 = vunpack.c.l.b16 %v1511
        %v6293 = vunpack.c.h.b16 %v1511
        %v6294 = vunpack.c.l.b16 %v1512
        %v6295 = vunpack.c.h.b16 %v1512
        %v6296 = vunpack.c.l.b16 %v1513
        %v6297 = vunpack.c.h.b16 %v1513
        %v6298 = vunpack.c.l.b16 %v1514
        %v6299 = vunpack.c.h.b16 %v1514
        %v6300 = vunpack.c.l.b16 %v1515
        %v6301 = vunpack.c.h.b16 %v1515
        %v6302 = vunpack.c.l.b16 %v1516
        %v6303 = vunpack.c.h.b16 %v1516
        %v6304 = vunpack.c.l.b16 %v1517
        %v6305 = vunpack.c.h.b16 %v1517
        %v6306 = vunpack.c.l.b16 %v1518
        %v6307 = vunpack.c.h.b16 %v1518
        %v6308 = vunpack.c.l.b16 %v1519
        %v6309 = vunpack.c.h.b16 %v1519
        %v6310 = vunpack.c.l.b16 %v1520
        %v6311 = vunpack.c.h.b16 %v1520
        %v6312 = vunpack.c.l.b16 %v1521
        %v6313 = vunpack.c.h.b16 %v1521
        %v6314 = vunpack.c.l.b16 %v1522
        %v6315 = vunpack.c.h.b16 %v1522
        %v6316 = vunpack.c.l.b16 %v1523
        %v6317 = vunpack.c.h.b16 %v1523
        %v6318 = vunpack.c.l.b16 %v1524
        %v6319 = vunpack.c.h.b16 %v1524
        %v6320 = vunpack.c.l.b16 %v1525
        %v6321 = vunpack.c.h.b16 %v1525
        %v6322 = vunpack.c.l.b16 %v1526
        %v6323 = vunpack.c.h.b16 %v1526
        %v6324 = vunpack.c.l.b16 %v1527
        %v6325 = vunpack.c.h.b16 %v1527
        %v6326 = vunpack.c.l.b16 %v1528
        %v6327 = vunpack.c.h.b16 %v1528
        %v6328 = vunpack.c.l.b16 %v1529
        %v6329 = vunpack.c.h.b16 %v1529
        %v6330 = vunpack.c.l.b16 %v1530
        %v6331 = vunpack.c.h.b16 %v1530
        %v6332 = vunpack.c.l.b16 %v1531
        %v6333 = vunpack.c.h.b16 %v1531
        %v6334 = vunpack.c.l.b16 %v1532
        %v6335 = vunpack.c.h.b16 %v1532
        %v6336 = vunpack.c.l.b16 %v1533
        %v6337 = vunpack.c.h.b16 %v1533
        %v6338 = vunpack.c.l.b16 %v1534
        %v6339 = vunpack.c.h.b16 %v1534
        %v6340 = vunpack.c.l.b16 %v1535
        %v6341 = vunpack.c.h.b16 %v1535
        %v6342 = vunpack.c.l.b16 %v1536
        %v6343 = vunpack.c.h.b16 %v1536
        %v6344 = vunpack.c.l.b16 %v1537
        %v6345 = vunpack.c.h.b16 %v1537
        %v6346 = vunpack.c.l.b16 %v1538
        %v6347 = vunpack.c.h.b16 %v1538
        %v6348 = vunpack.c.l.b16 %v1539
        %v6349 = vunpack.c.h.b16 %v1539
        %v6350 = vunpack.c.l.b16 %v1540
        %v6351 = vunpack.c.h.b16 %v1540
        %v6352 = vunpack.c.l.b16 %v1541
        %v6353 = vunpack.c.h.b16 %v1541
        %v6354 = vunpack.c.l.b16 %v1542
        %v6355 = vunpack.c.h.b16 %v1542
        %v6356 = vunpack.c.l.b16 %v1543
        %v6357 = vunpack.c.h.b16 %v1543
        %v6358 = vunpack.c.l.b16 %v1544
        %v6359 = vunpack.c.h.b16 %v1544
        %v6360 = vunpack.c.l.b16 %v1545
        %v6361 = vunpack.c.h.b16 %v1545
        %v6362 = vunpack.c.l.b16 %v1546
        %v6363 = vunpack.c.h.b16 %v1546
        %v6364 = vunpack.c.l.b16 %v1547
        %v6365 = vunpack.c.h.b16 %v1547
        %v6366 = vunpack.c.l.b16 %v1548
        %v6367 = vunpack.c.h.b16 %v1548
        %v6368 = vunpack.c.l.b16 %v1549
        %v6369 = vunpack.c.h.b16 %v1549
        %v6370 = vunpack.c.l.b16 %v1550
        %v6371 = vunpack.c.h.b16 %v1550
        %v6372 = vunpack.c.l.b16 %v1551
        %v6373 = vunpack.c.h.b16 %v1551
        %v6374 = vunpack.c.l.b16 %v1552
        %v6375 = vunpack.c.h.b16 %v1552
        %v6376 = vunpack.c.l.b16 %v1553
        %v6377 = vunpack.c.h.b16 %v1553
        %v6378 = vunpack.c.l.b16 %v1554
        %v6379 = vunpack.c.h.b16 %v1554
        %v6380 = vunpack.c.l.b16 %v1555
        %v6381 = vunpack.c.h.b16 %v1555
        %v6382 = vunpack.c.l.b16 %v1556
        %v6383 = vunpack.c.h.b16 %v1556
        %v6384 = vunpack.c.l.b16 %v1557
        %v6385 = vunpack.c.h.b16 %v1557
        %v6386 = vunpack.c.l.b16 %v1558
        %v6387 = vunpack.c.h.b16 %v1558
        %v6388 = vunpack.c.l.b16 %v1559
        %v6389 = vunpack.c.h.b16 %v1559
        %v6390 = vunpack.c.l.b16 %v1560
        %v6391 = vunpack.c.h.b16 %v1560
        %v6392 = vunpack.c.l.b16 %v1561
        %v6393 = vunpack.c.h.b16 %v1561
        %v6394 = vunpack.c.l.b16 %v1562
        %v6395 = vunpack.c.h.b16 %v1562
        %v6396 = vunpack.c.l.b16 %v1563
        %v6397 = vunpack.c.h.b16 %v1563
        %v6398 = vunpack.c.l.b16 %v1564
        %v6399 = vunpack.c.h.b16 %v1564
        %v6400 = vunpack.c.l.b16 %v1565
        %v6401 = vunpack.c.h.b16 %v1565
        %v6402 = vunpack.c.l.b16 %v1566
        %v6403 = vunpack.c.h.b16 %v1566
        %v6404 = vunpack.c.l.b16 %v1567
        %v6405 = vunpack.c.h.b16 %v1567
        %v6406 = vunpack.c.l.b16 %v1568
        %v6407 = vunpack.c.h.b16 %v1568
        %v6408 = vunpack.c.l.b16 %v1569
        %v6409 = vunpack.c.h.b16 %v1569
        %v6410 = vunpack.c.l.b16 %v1570
        %v6411 = vunpack.c.h.b16 %v1570
        %v6412 = vunpack.c.l.b16 %v1571
        %v6413 = vunpack.c.h.b16 %v1571
        %v6414 = vunpack.c.l.b16 %v1572
        %v6415 = vunpack.c.h.b16 %v1572
        %v6416 = vunpack.c.l.b16 %v1573
        %v6417 = vunpack.c.h.b16 %v1573
        %v6418 = vunpack.c.l.b16 %v1574
        %v6419 = vunpack.c.h.b16 %v1574
        %v6420 = vunpack.c.l.b16 %v1575
        %v6421 = vunpack.c.h.b16 %v1575
        %v6422 = vunpack.c.l.b16 %v1576
        %v6423 = vunpack.c.h.b16 %v1576
        %v6424 = vunpack.c.l.b16 %v1577
        %v6425 = vunpack.c.h.b16 %v1577
        %v6426 = vunpack.c.l.b16 %v1578
        %v6427 = vunpack.c.h.b16 %v1578
        %v6428 = vunpack.c.l.b16 %v1579
        %v6429 = vunpack.c.h.b16 %v1579
        %v6430 = vunpack.c.l.b16 %v1580
        %v6431 = vunpack.c.h.b16 %v1580
        %v6432 = vunpack.c.l.b16 %v1581
        %v6433 = vunpack.c.h.b16 %v1581
        %v6434 = vunpack.c.l.b16 %v1582
        %v6435 = vunpack.c.h.b16 %v1582
        %v6436 = vunpack.c.l.b16 %v1583
        %v6437 = vunpack.c.h.b16 %v1583
        %v6438 = vunpack.c.l.b16 %v1584
        %v6439 = vunpack.c.h.b16 %v1584
        %v6440 = vunpack.c.l.b16 %v1585
        %v6441 = vunpack.c.h.b16 %v1585
        %v6442 = vunpack.c.l.b16 %v1586
        %v6443 = vunpack.c.h.b16 %v1586
        %v6444 = vunpack.c.l.b16 %v1587
        %v6445 = vunpack.c.h.b16 %v1587
        %v6446 = vunpack.c.l.b16 %v1588
        %v6447 = vunpack.c.h.b16 %v1588
        %v6448 = vunpack.c.l.b16 %v1589
        %v6449 = vunpack.c.h.b16 %v1589
        %v6450 = vunpack.c.l.b16 %v1590
        %v6451 = vunpack.c.h.b16 %v1590
        %v6452 = vunpack.c.l.b16 %v1591
        %v6453 = vunpack.c.h.b16 %v1591
        %v6454 = vunpack.c.l.b16 %v1592
        %v6455 = vunpack.c.h.b16 %v1592
        %v6456 = vunpack.c.l.b16 %v1593
        %v6457 = vunpack.c.h.b16 %v1593
        %v6458 = vunpack.c.l.b16 %v1594
        %v6459 = vunpack.c.h.b16 %v1594
        %v6460 = vunpack.c.l.b16 %v1595
        %v6461 = vunpack.c.h.b16 %v1595
        %v6462 = vunpack.c.l.b16 %v1596
        %v6463 = vunpack.c.h.b16 %v1596
        %v6464 = vunpack.c.l.b16 %v1597
        %v6465 = vunpack.c.h.b16 %v1597
        %v6466 = vunpack.c.l.b16 %v1598
        %v6467 = vunpack.c.h.b16 %v1598
        %v6468 = vunpack.c.l.b16 %v1599
        %v6469 = vunpack.c.h.b16 %v1599
        %v6470 = vunpack.c.l.b16 %v1600
        %v6471 = vunpack.c.h.b16 %v1600
        %v6472 = vunpack.c.l.b16 %v1601
        %v6473 = vunpack.c.h.b16 %v1601
        %v6474 = vunpack.c.l.b16 %v1602
        %v6475 = vunpack.c.h.b16 %v1602
        %v6476 = vunpack.c.l.b16 %v1603
        %v6477 = vunpack.c.h.b16 %v1603
        %v6478 = vunpack.c.l.b16 %v1604
        %v6479 = vunpack.c.h.b16 %v1604
        %v6480 = vunpack.c.l.b16 %v1605
        %v6481 = vunpack.c.h.b16 %v1605
        %v6482 = vunpack.c.l.b16 %v1606
        %v6483 = vunpack.c.h.b16 %v1606
        %v6484 = vunpack.c.l.b16 %v1607
        %v6485 = vunpack.c.h.b16 %v1607
        %v6486 = vunpack.c.l.b16 %v1608
        %v6487 = vunpack.c.h.b16 %v1608
        %v6488 = vunpack.c.l.b16 %v1609
        %v6489 = vunpack.c.h.b16 %v1609
        %v6490 = vunpack.c.l.b16 %v1610
        %v6491 = vunpack.c.h.b16 %v1610
        %v6492 = vunpack.c.l.b16 %v1611
        %v6493 = vunpack.c.h.b16 %v1611
        %v6494 = vunpack.c.l.b16 %v1612
        %v6495 = vunpack.c.h.b16 %v1612
        %v6496 = vunpack.c.l.b16 %v1613
        %v6497 = vunpack.c.h.b16 %v1613
        %v6498 = vunpack.c.l.b16 %v1614
        %v6499 = vunpack.c.h.b16 %v1614
        %v6500 = vunpack.c.l.b16 %v1615
        %v6501 = vunpack.c.h.b16 %v1615
        %v6502 = vunpack.c.l.b16 %v1616
        %v6503 = vunpack.c.h.b16 %v1616
        %v6504 = vunpack.c.l.b16 %v1617
        %v6505 = vunpack.c.h.b16 %v1617
        %v6506 = vunpack.c.l.b16 %v1618
        %v6507 = vunpack.c.h.b16 %v1618
        %v6508 = vunpack.c.l.b16 %v1619
        %v6509 = vunpack.c.h.b16 %v1619
        %v6510 = vunpack.c.l.b16 %v1620
        %v6511 = vunpack.c.h.b16 %v1620
        %v6512 = vunpack.c.l.b16 %v1621
        %v6513 = vunpack.c.h.b16 %v1621
        %v6514 = vunpack.c.l.b16 %v1622
        %v6515 = vunpack.c.h.b16 %v1622
        %v6516 = vunpack.c.l.b16 %v1623
        %v6517 = vunpack.c.h.b16 %v1623
        %v6518 = vunpack.c.l.b16 %v1624
        %v6519 = vunpack.c.h.b16 %v1624
        %v6520 = vunpack.c.l.b16 %v1625
        %v6521 = vunpack.c.h.b16 %v1625
        %v6522 = vunpack.c.l.b16 %v1626
        %v6523 = vunpack.c.h.b16 %v1626
        %v6524 = vunpack.c.l.b16 %v1627
        %v6525 = vunpack.c.h.b16 %v1627
        %v6526 = vunpack.c.l.b16 %v1628
        %v6527 = vunpack.c.h.b16 %v1628
        %v6528 = vunpack.c.l.b16 %v1629
        %v6529 = vunpack.c.h.b16 %v1629
        %v6530 = vunpack.c.l.b16 %v1630
        %v6531 = vunpack.c.h.b16 %v1630
        %v6532 = vunpack.c.l.b16 %v1631
        %v6533 = vunpack.c.h.b16 %v1631
        %v6534 = vunpack.c.l.b16 %v1632
        %v6535 = vunpack.c.h.b16 %v1632
        %v6536 = vunpack.c.l.b16 %v1633
        %v6537 = vunpack.c.h.b16 %v1633
        %v6538 = vunpack.c.l.b16 %v1634
        %v6539 = vunpack.c.h.b16 %v1634
        %v6540 = vunpack.c.l.b16 %v1635
        %v6541 = vunpack.c.h.b16 %v1635
        %v6542 = vunpack.c.l.b16 %v1636
        %v6543 = vunpack.c.h.b16 %v1636
        %v6544 = vunpack.c.l.b16 %v1637
        %v6545 = vunpack.c.h.b16 %v1637
        %v6546 = vunpack.c.l.b16 %v1638
        %v6547 = vunpack.c.h.b16 %v1638
        %v6548 = vunpack.c.l.b16 %v1639
        %v6549 = vunpack.c.h.b16 %v1639
        %v6550 = vunpack.c.l.b16 %v1640
        %v6551 = vunpack.c.h.b16 %v1640
        %v6552 = vunpack.c.l.b16 %v1641
        %v6553 = vunpack.c.h.b16 %v1641
        %v6554 = vunpack.c.l.b16 %v1642
        %v6555 = vunpack.c.h.b16 %v1642
        %v6556 = vunpack.c.l.b16 %v1643
        %v6557 = vunpack.c.h.b16 %v1643
        %v6558 = vunpack.c.l.b16 %v1644
        %v6559 = vunpack.c.h.b16 %v1644
        %v6560 = vunpack.c.l.b16 %v1645
        %v6561 = vunpack.c.h.b16 %v1645
        %v6562 = vunpack.c.l.b16 %v1646
        %v6563 = vunpack.c.h.b16 %v1646
        %v6564 = vunpack.c.l.b16 %v1647
        %v6565 = vunpack.c.h.b16 %v1647
        %v6566 = vunpack.c.l.b16 %v1648
        %v6567 = vunpack.c.h.b16 %v1648
        %v6568 = vunpack.c.l.b16 %v1649
        %v6569 = vunpack.c.h.b16 %v1649
        %v6570 = vunpack.c.l.b16 %v1650
        %v6571 = vunpack.c.h.b16 %v1650
        %v6572 = vunpack.c.l.b16 %v1651
        %v6573 = vunpack.c.h.b16 %v1651
        %v6574 = vunpack.c.l.b16 %v1652
        %v6575 = vunpack.c.h.b16 %v1652
        %v6576 = vunpack.c.l.b16 %v1653
        %v6577 = vunpack.c.h.b16 %v1653
        %v6578 = vunpack.c.l.b16 %v1654
        %v6579 = vunpack.c.h.b16 %v1654
        %v6580 = vunpack.c.l.b16 %v1655
        %v6581 = vunpack.c.h.b16 %v1655
        %v6582 = vunpack.c.l.b16 %v1656
        %v6583 = vunpack.c.h.b16 %v1656
        %v6584 = vunpack.c.l.b16 %v1657
        %v6585 = vunpack.c.h.b16 %v1657
        %v6586 = vunpack.c.l.b16 %v1658
        %v6587 = vunpack.c.h.b16 %v1658
        %v6588 = vunpack.c.l.b16 %v1659
        %v6589 = vunpack.c.h.b16 %v1659
        %v6590 = vunpack.c.l.b16 %v1660
        %v6591 = vunpack.c.h.b16 %v1660
        %v6592 = vunpack.c.l.b16 %v1661
        %v6593 = vunpack.c.h.b16 %v1661
        %v6594 = vunpack.c.l.b16 %v1662
        %v6595 = vunpack.c.h.b16 %v1662
        %v6596 = vunpack.c.l.b16 %v1663
        %v6597 = vunpack.c.h.b16 %v1663
        %v6598 = vunpack.c.l.b16 %v1664
        %v6599 = vunpack.c.h.b16 %v1664
        %v6600 = vunpack.c.l.b16 %v1665
        %v6601 = vunpack.c.h.b16 %v1665
        %v6602 = vunpack.c.l.b16 %v1666
        %v6603 = vunpack.c.h.b16 %v1666
        %v6604 = vunpack.c.l.b16 %v1667
        %v6605 = vunpack.c.h.b16 %v1667
        %v6606 = vunpack.c.l.b16 %v1668
        %v6607 = vunpack.c.h.b16 %v1668
        %v6608 = vunpack.c.l.b16 %v1669
        %v6609 = vunpack.c.h.b16 %v1669
        %v6610 = vunpack.c.l.b16 %v1670
        %v6611 = vunpack.c.h.b16 %v1670
        %v6612 = vunpack.c.l.b16 %v1671
        %v6613 = vunpack.c.h.b16 %v1671
        %v6614 = vunpack.c.l.b16 %v1672
        %v6615 = vunpack.c.h.b16 %v1672
        %v6616 = vunpack.c.l.b16 %v1673
        %v6617 = vunpack.c.h.b16 %v1673
        %v6618 = vunpack.c.l.b16 %v1674
        %v6619 = vunpack.c.h.b16 %v1674
        %v6620 = vunpack.c.l.b16 %v1675
        %v6621 = vunpack.c.h.b16 %v1675
        %v6622 = vunpack.c.l.b16 %v1676
        %v6623 = vunpack.c.h.b16 %v1676
        %v6624 = vunpack.c.l.b16 %v1677
        %v6625 = vunpack.c.h.b16 %v1677
        %v6626 = vunpack.c.l.b16 %v1678
        %v6627 = vunpack.c.h.b16 %v1678
        %v6628 = vunpack.c.l.b16 %v1679
        %v6629 = vunpack.c.h.b16 %v1679
        %v6630 = vunpack.c.l.b16 %v1680
        %v6631 = vunpack.c.h.b16 %v1680
        %v6632 = vunpack.c.l.b16 %v1681
        %v6633 = vunpack.c.h.b16 %v1681
        %v6634 = vunpack.c.l.b16 %v1682
        %v6635 = vunpack.c.h.b16 %v1682
        %v6636 = vunpack.c.l.b16 %v1683
        %v6637 = vunpack.c.h.b16 %v1683
        %v6638 = vunpack.c.l.b16 %v1684
        %v6639 = vunpack.c.h.b16 %v1684
        %v6640 = vunpack.c.l.b16 %v1685
        %v6641 = vunpack.c.h.b16 %v1685
        %v6642 = vunpack.c.l.b16 %v1686
        %v6643 = vunpack.c.h.b16 %v1686
        %v6644 = vunpack.c.l.b16 %v1687
        %v6645 = vunpack.c.h.b16 %v1687
        %v6646 = vunpack.c.l.b16 %v1688
        %v6647 = vunpack.c.h.b16 %v1688
        %v6648 = vunpack.c.l.b16 %v1689
        %v6649 = vunpack.c.h.b16 %v1689
        %v6650 = vunpack.c.l.b16 %v1690
        %v6651 = vunpack.c.h.b16 %v1690
        %v6652 = vunpack.c.l.b16 %v1691
        %v6653 = vunpack.c.h.b16 %v1691
        %v6654 = vunpack.c.l.b16 %v1692
        %v6655 = vunpack.c.h.b16 %v1692
        %v6656 = vunpack.c.l.b16 %v1693
        %v6657 = vunpack.c.h.b16 %v1693
        %v6658 = vunpack.c.l.b16 %v1694
        %v6659 = vunpack.c.h.b16 %v1694
        %v6660 = vunpack.c.l.b16 %v1695
        %v6661 = vunpack.c.h.b16 %v1695
        %v6662 = vunpack.c.l.b16 %v1696
        %v6663 = vunpack.c.h.b16 %v1696
        %v6664 = vunpack.c.l.b16 %v1697
        %v6665 = vunpack.c.h.b16 %v1697
        %v6666 = vunpack.c.l.b16 %v1698
        %v6667 = vunpack.c.h.b16 %v1698
        %v6668 = vunpack.c.l.b16 %v1699
        %v6669 = vunpack.c.h.b16 %v1699
        %v6670 = vunpack.c.l.b16 %v1700
        %v6671 = vunpack.c.h.b16 %v1700
        %v6672 = vunpack.c.l.b16 %v1701
        %v6673 = vunpack.c.h.b16 %v1701
        %v6674 = vunpack.c.l.b16 %v1702
        %v6675 = vunpack.c.h.b16 %v1702
        %v6676 = vunpack.c.l.b16 %v1703
        %v6677 = vunpack.c.h.b16 %v1703
        %v6678 = vunpack.c.l.b16 %v1704
        %v6679 = vunpack.c.h.b16 %v1704
        %v6680 = vunpack.c.l.b16 %v1705
        %v6681 = vunpack.c.h.b16 %v1705
        %v6682 = vunpack.c.l.b16 %v1706
        %v6683 = vunpack.c.h.b16 %v1706
        %v6684 = vunpack.c.l.b16 %v1707
        %v6685 = vunpack.c.h.b16 %v1707
        %v6686 = vunpack.c.l.b16 %v1708
        %v6687 = vunpack.c.h.b16 %v1708
        %v6688 = vunpack.c.l.b16 %v1709
        %v6689 = vunpack.c.h.b16 %v1709
        %v6690 = vunpack.c.l.b16 %v1710
        %v6691 = vunpack.c.h.b16 %v1710
        %v6692 = vunpack.c.l.b16 %v1711
        %v6693 = vunpack.c.h.b16 %v1711
        %v6694 = vunpack.c.l.b16 %v1712
        %v6695 = vunpack.c.h.b16 %v1712
        %v6696 = vunpack.c.l.b16 %v1713
        %v6697 = vunpack.c.h.b16 %v1713
        %v6698 = vunpack.c.l.b16 %v1714
        %v6699 = vunpack.c.h.b16 %v1714
        %v6700 = vunpack.c.l.b16 %v1715
        %v6701 = vunpack.c.h.b16 %v1715
        %v6702 = vunpack.c.l.b16 %v1716
        %v6703 = vunpack.c.h.b16 %v1716
        %v6704 = vunpack.c.l.b16 %v1717
        %v6705 = vunpack.c.h.b16 %v1717
        %v6706 = vunpack.c.l.b16 %v1718
        %v6707 = vunpack.c.h.b16 %v1718
        %v6708 = vunpack.c.l.b16 %v1719
        %v6709 = vunpack.c.h.b16 %v1719
        %v6710 = vunpack.c.l.b16 %v1720
        %v6711 = vunpack.c.h.b16 %v1720
        %v6712 = vunpack.c.l.b16 %v1721
        %v6713 = vunpack.c.h.b16 %v1721
        %v6714 = vunpack.c.l.b16 %v1722
        %v6715 = vunpack.c.h.b16 %v1722
        %v6716 = vunpack.c.l.b16 %v1723
        %v6717 = vunpack.c.h.b16 %v1723
        %v6718 = vunpack.c.l.b16 %v1724
        %v6719 = vunpack.c.h.b16 %v1724
        %v6720 = vunpack.c.l.b16 %v1725
        %v6721 = vunpack.c.h.b16 %v1725
        %v6722 = vunpack.c.l.b16 %v1726
        %v6723 = vunpack.c.h.b16 %v1726
        %v6724 = vunpack.c.l.b16 %v1727
        %v6725 = vunpack.c.h.b16 %v1727
        %v6726 = vunpack.c.l.b16 %v1728
        %v6727 = vunpack.c.h.b16 %v1728
        %v6728 = vunpack.c.l.b16 %v1729
        %v6729 = vunpack.c.h.b16 %v1729
        %v6730 = vunpack.c.l.b16 %v1730
        %v6731 = vunpack.c.h.b16 %v1730
        %v6732 = vunpack.c.l.b16 %v1731
        %v6733 = vunpack.c.h.b16 %v1731
        %v6734 = vunpack.c.l.b16 %v1732
        %v6735 = vunpack.c.h.b16 %v1732
        %v6736 = vunpack.c.l.b16 %v1733
        %v6737 = vunpack.c.h.b16 %v1733
        %v6738 = vunpack.c.l.b16 %v1734
        %v6739 = vunpack.c.h.b16 %v1734
        %v6740 = vunpack.c.l.b16 %v1735
        %v6741 = vunpack.c.h.b16 %v1735
        %v6742 = vunpack.c.l.b16 %v1736
        %v6743 = vunpack.c.h.b16 %v1736
        %v6744 = vunpack.c.l.b16 %v1737
        %v6745 = vunpack.c.h.b16 %v1737
        %v6746 = vunpack.c.l.b16 %v1738
        %v6747 = vunpack.c.h.b16 %v1738
        %v6748 = vunpack.c.l.b16 %v1739
        %v6749 = vunpack.c.h.b16 %v1739
        %v6750 = vunpack.c.l.b16 %v1740
        %v6751 = vunpack.c.h.b16 %v1740
        %v6752 = vunpack.c.l.b16 %v1741
        %v6753 = vunpack.c.h.b16 %v1741
        %v6754 = vunpack.c.l.b16 %v1742
        %v6755 = vunpack.c.h.b16 %v1742
        %v6756 = vunpack.c.l.b16 %v1743
        %v6757 = vunpack.c.h.b16 %v1743
        %v6758 = vunpack.c.l.b16 %v1744
        %v6759 = vunpack.c.h.b16 %v1744
        %v6760 = vunpack.c.l.b16 %v1745
        %v6761 = vunpack.c.h.b16 %v1745
        %v6762 = vunpack.c.l.b16 %v1746
        %v6763 = vunpack.c.h.b16 %v1746
        %v6764 = vunpack.c.l.b16 %v1747
        %v6765 = vunpack.c.h.b16 %v1747
        %v6766 = vunpack.c.l.b16 %v1748
        %v6767 = vunpack.c.h.b16 %v1748
        %v6768 = vunpack.c.l.b16 %v1749
        %v6769 = vunpack.c.h.b16 %v1749
        %v6770 = vunpack.c.l.b16 %v1750
        %v6771 = vunpack.c.h.b16 %v1750
        %v6772 = vunpack.c.l.b16 %v1751
        %v6773 = vunpack.c.h.b16 %v1751
        %v6774 = vunpack.c.l.b16 %v1752
        %v6775 = vunpack.c.h.b16 %v1752
        %v6776 = vunpack.c.l.b16 %v1753
        %v6777 = vunpack.c.h.b16 %v1753
        %v6778 = vunpack.c.l.b16 %v1754
        %v6779 = vunpack.c.h.b16 %v1754
        %v6780 = vunpack.c.l.b16 %v1755
        %v6781 = vunpack.c.h.b16 %v1755
        %v6782 = vunpack.c.l.b16 %v1756
        %v6783 = vunpack.c.h.b16 %v1756
        %v6784 = vunpack.c.l.b16 %v1757
        %v6785 = vunpack.c.h.b16 %v1757
        %v6786 = vunpack.c.l.b16 %v1758
        %v6787 = vunpack.c.h.b16 %v1758
        %v6788 = vunpack.c.l.b16 %v1759
        %v6789 = vunpack.c.h.b16 %v1759
        %v6790 = vunpack.c.l.b16 %v1760
        %v6791 = vunpack.c.h.b16 %v1760
        %v6792 = vunpack.c.l.b16 %v1761
        %v6793 = vunpack.c.h.b16 %v1761
        %v6794 = vunpack.c.l.b16 %v1762
        %v6795 = vunpack.c.h.b16 %v1762
        %v6796 = vunpack.c.l.b16 %v1763
        %v6797 = vunpack.c.h.b16 %v1763
        %v6798 = vunpack.c.l.b16 %v1764
        %v6799 = vunpack.c.h.b16 %v1764
        %v6800 = vunpack.c.l.b16 %v1765
        %v6801 = vunpack.c.h.b16 %v1765
        %v6802 = vunpack.c.l.b16 %v1766
        %v6803 = vunpack.c.h.b16 %v1766
        %v6804 = vunpack.c.l.b16 %v1767
        %v6805 = vunpack.c.h.b16 %v1767
        %v6806 = vunpack.c.l.b16 %v1768
        %v6807 = vunpack.c.h.b16 %v1768
        %v6808 = vunpack.c.l.b16 %v1769
        %v6809 = vunpack.c.h.b16 %v1769
        %v6810 = vunpack.c.l.b16 %v1770
        %v6811 = vunpack.c.h.b16 %v1770
        %v6812 = vunpack.c.l.b16 %v1771
        %v6813 = vunpack.c.h.b16 %v1771
        %v6814 = vunpack.c.l.b16 %v1772
        %v6815 = vunpack.c.h.b16 %v1772
        %v6816 = vunpack.c.l.b16 %v1773
        %v6817 = vunpack.c.h.b16 %v1773
        %v6818 = vunpack.c.l.b16 %v1774
        %v6819 = vunpack.c.h.b16 %v1774
        %v6820 = vunpack.c.l.b16 %v1775
        %v6821 = vunpack.c.h.b16 %v1775
        %v6822 = vunpack.c.l.b16 %v1776
        %v6823 = vunpack.c.h.b16 %v1776
        %v6824 = vunpack.c.l.b16 %v1777
        %v6825 = vunpack.c.h.b16 %v1777
        %v6826 = vunpack.c.l.b16 %v1778
        %v6827 = vunpack.c.h.b16 %v1778
        %v6828 = vunpack.c.l.b16 %v1779
        %v6829 = vunpack.c.h.b16 %v1779
        %v6830 = vunpack.c.l.b16 %v1780
        %v6831 = vunpack.c.h.b16 %v1780
        %v6832 = vunpack.c.l.b16 %v1781
        %v6833 = vunpack.c.h.b16 %v1781
        %v6834 = vunpack.c.l.b16 %v1782
        %v6835 = vunpack.c.h.b16 %v1782
        %v6836 = vunpack.c.l.b16 %v1783
        %v6837 = vunpack.c.h.b16 %v1783
        %v6838 = vunpack.c.l.b16 %v1784
        %v6839 = vunpack.c.h.b16 %v1784
        %v6840 = vunpack.c.l.b16 %v1785
        %v6841 = vunpack.c.h.b16 %v1785
        %v6842 = vunpack.c.l.b16 %v1786
        %v6843 = vunpack.c.h.b16 %v1786
        %v6844 = vunpack.c.l.b16 %v1787
        %v6845 = vunpack.c.h.b16 %v1787
        %v6846 = vunpack.c.l.b16 %v1788
        %v6847 = vunpack.c.h.b16 %v1788
        %v6848 = vunpack.c.l.b16 %v1789
        %v6849 = vunpack.c.h.b16 %v1789
        %v6850 = vunpack.c.l.b16 %v1790
        %v6851 = vunpack.c.h.b16 %v1790
        %v6852 = vunpack.c.l.b16 %v1791
        %v6853 = vunpack.c.h.b16 %v1791
        %v6854 = vunpack.c.l.b16 %v1792
        %v6855 = vunpack.c.h.b16 %v1792
        %v6856 = vunpack.c.l.b16 %v1793
        %v6857 = vunpack.c.h.b16 %v1793
        %v6858 = vunpack.c.l.b16 %v1794
        %v6859 = vunpack.c.h.b16 %v1794
        %v6860 = vunpack.c.l.b16 %v1795
        %v6861 = vunpack.c.h.b16 %v1795
        %v6862 = vunpack.c.l.b16 %v1796
        %v6863 = vunpack.c.h.b16 %v1796
        %v6864 = vunpack.c.l.b16 %v1797
        %v6865 = vunpack.c.h.b16 %v1797
        %v6866 = vunpack.c.l.b16 %v1798
        %v6867 = vunpack.c.h.b16 %v1798
        %v6868 = vunpack.c.l.b16 %v1799
        %v6869 = vunpack.c.h.b16 %v1799
        %v6870 = vunpack.c.l.b16 %v1800
        %v6871 = vunpack.c.h.b16 %v1800
        %v6872 = vunpack.c.l.b16 %v1801
        %v6873 = vunpack.c.h.b16 %v1801
        %v6874 = vunpack.c.l.b16 %v1802
        %v6875 = vunpack.c.h.b16 %v1802
        %v6876 = vunpack.c.l.b16 %v1803
        %v6877 = vunpack.c.h.b16 %v1803
        %v6878 = vunpack.c.l.b16 %v1804
        %v6879 = vunpack.c.h.b16 %v1804
        %v6880 = vunpack.c.l.b16 %v1805
        %v6881 = vunpack.c.h.b16 %v1805
        %v6882 = vunpack.c.l.b16 %v1806
        %v6883 = vunpack.c.h.b16 %v1806
        %v6884 = vunpack.c.l.b16 %v1807
        %v6885 = vunpack.c.h.b16 %v1807
        %v6886 = vunpack.c.l.b16 %v1808
        %v6887 = vunpack.c.h.b16 %v1808
        %v6888 = vunpack.c.l.b16 %v1809
        %v6889 = vunpack.c.h.b16 %v1809
        %v6890 = vunpack.c.l.b16 %v1810
        %v6891 = vunpack.c.h.b16 %v1810
        %v6892 = vunpack.c.l.b16 %v1811
        %v6893 = vunpack.c.h.b16 %v1811
        %v6894 = vunpack.c.l.b16 %v1812
        %v6895 = vunpack.c.h.b16 %v1812
        %v6896 = vunpack.c.l.b16 %v1813
        %v6897 = vunpack.c.h.b16 %v1813
        %v6898 = vunpack.c.l.b16 %v1814
        %v6899 = vunpack.c.h.b16 %v1814
        %v6900 = vunpack.c.l.b16 %v1815
        %v6901 = vunpack.c.h.b16 %v1815
        %v6902 = vunpack.c.l.b16 %v1816
        %v6903 = vunpack.c.h.b16 %v1816
        %v6904 = vunpack.c.l.b16 %v1817
        %v6905 = vunpack.c.h.b16 %v1817
        %v6906 = vunpack.c.l.b16 %v1818
        %v6907 = vunpack.c.h.b16 %v1818
        %v6908 = vunpack.c.l.b16 %v1819
        %v6909 = vunpack.c.h.b16 %v1819
        %v6910 = vunpack.c.l.b16 %v1820
        %v6911 = vunpack.c.h.b16 %v1820
        %v6912 = vunpack.c.l.b16 %v1821
        %v6913 = vunpack.c.h.b16 %v1821
        %v6914 = vunpack.c.l.b16 %v1822
        %v6915 = vunpack.c.h.b16 %v1822
        %v6916 = vunpack.c.l.b16 %v1823
        %v6917 = vunpack.c.h.b16 %v1823
        %v6918 = vunpack.c.l.b16 %v1824
        %v6919 = vunpack.c.h.b16 %v1824
        %v6920 = vunpack.c.l.b16 %v1825
        %v6921 = vunpack.c.h.b16 %v1825
        %v6922 = vunpack.c.l.b16 %v1826
        %v6923 = vunpack.c.h.b16 %v1826
        %v6924 = vunpack.c.l.b16 %v1827
        %v6925 = vunpack.c.h.b16 %v1827
        %v6926 = vunpack.c.l.b16 %v1828
        %v6927 = vunpack.c.h.b16 %v1828
        %v6928 = vunpack.c.l.b16 %v1829
        %v6929 = vunpack.c.h.b16 %v1829
        %v6930 = vunpack.c.l.b16 %v1830
        %v6931 = vunpack.c.h.b16 %v1830
        %v6932 = vunpack.c.l.b16 %v1831
        %v6933 = vunpack.c.h.b16 %v1831
        %v6934 = vunpack.c.l.b16 %v1832
        %v6935 = vunpack.c.h.b16 %v1832
        %v6936 = vunpack.c.l.b16 %v1833
        %v6937 = vunpack.c.h.b16 %v1833
        %v6938 = vunpack.c.l.b16 %v1834
        %v6939 = vunpack.c.h.b16 %v1834
        %v6940 = vunpack.c.l.b16 %v1835
        %v6941 = vunpack.c.h.b16 %v1835
        %v6942 = vunpack.c.l.b16 %v1836
        %v6943 = vunpack.c.h.b16 %v1836
        %v6944 = vunpack.c.l.b16 %v1837
        %v6945 = vunpack.c.h.b16 %v1837
        %v6946 = vunpack.c.l.b16 %v1838
        %v6947 = vunpack.c.h.b16 %v1838
        %v6948 = vunpack.c.l.b16 %v1839
        %v6949 = vunpack.c.h.b16 %v1839
        %v6950 = vunpack.c.l.b16 %v1840
        %v6951 = vunpack.c.h.b16 %v1840
        %v6952 = vunpack.c.l.b16 %v1841
        %v6953 = vunpack.c.h.b16 %v1841
        %v6954 = vunpack.c.l.b16 %v1842
        %v6955 = vunpack.c.h.b16 %v1842
        %v6956 = vunpack.c.l.b16 %v1843
        %v6957 = vunpack.c.h.b16 %v1843
        %v6958 = vunpack.c.l.b16 %v1844
        %v6959 = vunpack.c.h.b16 %v1844
        %v6960 = vunpack.c.l.b16 %v1845
        %v6961 = vunpack.c.h.b16 %v1845
        %v6962 = vunpack.c.l.b16 %v1846
        %v6963 = vunpack.c.h.b16 %v1846
        %v6964 = vunpack.c.l.b16 %v1847
        %v6965 = vunpack.c.h.b16 %v1847
        %v6966 = vunpack.c.l.b16 %v1848
        %v6967 = vunpack.c.h.b16 %v1848
        %v6968 = vunpack.c.l.b16 %v1849
        %v6969 = vunpack.c.h.b16 %v1849
        %v6970 = vunpack.c.l.b16 %v1850
        %v6971 = vunpack.c.h.b16 %v1850
        %v6972 = vunpack.c.l.b16 %v1851
        %v6973 = vunpack.c.h.b16 %v1851
        %v6974 = vunpack.c.l.b16 %v1852
        %v6975 = vunpack.c.h.b16 %v1852
        %v6976 = vunpack.c.l.b16 %v1853
        %v6977 = vunpack.c.h.b16 %v1853
        %v6978 = vunpack.c.l.b16 %v1854
        %v6979 = vunpack.c.h.b16 %v1854
        %v6980 = vunpack.c.l.b16 %v1855
        %v6981 = vunpack.c.h.b16 %v1855
        %v6982 = vunpack.c.l.b16 %v1856
        %v6983 = vunpack.c.h.b16 %v1856
        %v6984 = vunpack.c.l.b16 %v1857
        %v6985 = vunpack.c.h.b16 %v1857
        %v6986 = vunpack.c.l.b16 %v1858
        %v6987 = vunpack.c.h.b16 %v1858
        %v6988 = vunpack.c.l.b16 %v1859
        %v6989 = vunpack.c.h.b16 %v1859
        %v6990 = vunpack.c.l.b16 %v1860
        %v6991 = vunpack.c.h.b16 %v1860
        %v6992 = vunpack.c.l.b16 %v1861
        %v6993 = vunpack.c.h.b16 %v1861
        %v6994 = vunpack.c.l.b16 %v1862
        %v6995 = vunpack.c.h.b16 %v1862
        %v6996 = vunpack.c.l.b16 %v1863
        %v6997 = vunpack.c.h.b16 %v1863
        %v6998 = vunpack.c.l.b16 %v1864
        %v6999 = vunpack.c.h.b16 %v1864
        %v7000 = vunpack.c.l.b16 %v1865
        %v7001 = vunpack.c.h.b16 %v1865
        %v7002 = vunpack.c.l.b16 %v1866
        %v7003 = vunpack.c.h.b16 %v1866
        %v7004 = vunpack.c.l.b16 %v1867
        %v7005 = vunpack.c.h.b16 %v1867
        %v7006 = vunpack.c.l.b16 %v1868
        %v7007 = vunpack.c.h.b16 %v1868
        %v7008 = vunpack.c.l.b16 %v1869
        %v7009 = vunpack.c.h.b16 %v1869
        %v7010 = vunpack.c.l.b16 %v1870
        %v7011 = vunpack.c.h.b16 %v1870
        %v7012 = vunpack.c.l.b16 %v1871
        %v7013 = vunpack.c.h.b16 %v1871
        %v7014 = vunpack.c.l.b16 %v1872
        %v7015 = vunpack.c.h.b16 %v1872
        %v7016 = vunpack.c.l.b16 %v1873
        %v7017 = vunpack.c.h.b16 %v1873
        %v7018 = vunpack.c.l.b16 %v1874
        %v7019 = vunpack.c.h.b16 %v1874
        %v7020 = vunpack.c.l.b16 %v1875
        %v7021 = vunpack.c.h.b16 %v1875
        %v7022 = vunpack.c.l.b16 %v1876
        %v7023 = vunpack.c.h.b16 %v1876
        %v7024 = vunpack.c.l.b16 %v1877
        %v7025 = vunpack.c.h.b16 %v1877
        %v7026 = vunpack.c.l.b16 %v1878
        %v7027 = vunpack.c.h.b16 %v1878
        %v7028 = vunpack.c.l.b16 %v1879
        %v7029 = vunpack.c.h.b16 %v1879
        %v7030 = vunpack.c.l.b16 %v1880
        %v7031 = vunpack.c.h.b16 %v1880
        %v7032 = vunpack.c.l.b16 %v1881
        %v7033 = vunpack.c.h.b16 %v1881
        %v7034 = vunpack.c.l.b16 %v1882
        %v7035 = vunpack.c.h.b16 %v1882
        %v7036 = vunpack.c.l.b16 %v1883
        %v7037 = vunpack.c.h.b16 %v1883
        %v7038 = vunpack.c.l.b16 %v1884
        %v7039 = vunpack.c.h.b16 %v1884
        %v7040 = vunpack.c.l.b16 %v1885
        %v7041 = vunpack.c.h.b16 %v1885
        %v7042 = vunpack.c.l.b16 %v1886
        %v7043 = vunpack.c.h.b16 %v1886
        %v7044 = vunpack.c.l.b16 %v1887
        %v7045 = vunpack.c.h.b16 %v1887
        %v7046 = vunpack.c.l.b16 %v1888
        %v7047 = vunpack.c.h.b16 %v1888
        %v7048 = vunpack.c.l.b16 %v1889
        %v7049 = vunpack.c.h.b16 %v1889
        %v7050 = vunpack.c.l.b16 %v1890
        %v7051 = vunpack.c.h.b16 %v1890
        %v7052 = vunpack.c.l.b16 %v1891
        %v7053 = vunpack.c.h.b16 %v1891
        %v7054 = vunpack.c.l.b16 %v1892
        %v7055 = vunpack.c.h.b16 %v1892
        %v7056 = vunpack.c.l.b16 %v1893
        %v7057 = vunpack.c.h.b16 %v1893
        %v7058 = vunpack.c.l.b16 %v1894
        %v7059 = vunpack.c.h.b16 %v1894
        %v7060 = vunpack.c.l.b16 %v1895
        %v7061 = vunpack.c.h.b16 %v1895
        %v7062 = vunpack.c.l.b16 %v1896
        %v7063 = vunpack.c.h.b16 %v1896
        %v7064 = vunpack.c.l.b16 %v1897
        %v7065 = vunpack.c.h.b16 %v1897
        %v7066 = vunpack.c.l.b16 %v1898
        %v7067 = vunpack.c.h.b16 %v1898
        %v7068 = vunpack.c.l.b16 %v1899
        %v7069 = vunpack.c.h.b16 %v1899
        %v7070 = vunpack.c.l.b16 %v1900
        %v7071 = vunpack.c.h.b16 %v1900
        %v7072 = vunpack.c.l.b16 %v1901
        %v7073 = vunpack.c.h.b16 %v1901
        %v7074 = vunpack.c.l.b16 %v1902
        %v7075 = vunpack.c.h.b16 %v1902
        %v7076 = vunpack.c.l.b16 %v1903
        %v7077 = vunpack.c.h.b16 %v1903
        %v7078 = vunpack.c.l.b16 %v1904
        %v7079 = vunpack.c.h.b16 %v1904
        %v7080 = vunpack.c.l.b16 %v1905
        %v7081 = vunpack.c.h.b16 %v1905
        %v7082 = vunpack.c.l.b16 %v1906
        %v7083 = vunpack.c.h.b16 %v1906
        %v7084 = vunpack.c.l.b16 %v1907
        %v7085 = vunpack.c.h.b16 %v1907
        %v7086 = vunpack.c.l.b16 %v1908
        %v7087 = vunpack.c.h.b16 %v1908
        %v7088 = vunpack.c.l.b16 %v1909
        %v7089 = vunpack.c.h.b16 %v1909
        %v7090 = vunpack.c.l.b16 %v1910
        %v7091 = vunpack.c.h.b16 %v1910
        %v7092 = vunpack.c.l.b16 %v1911
        %v7093 = vunpack.c.h.b16 %v1911
        %v7094 = vunpack.c.l.b16 %v1912
        %v7095 = vunpack.c.h.b16 %v1912
        %v7096 = vunpack.c.l.b16 %v1913
        %v7097 = vunpack.c.h.b16 %v1913
        %v7098 = vunpack.c.l.b16 %v1914
        %v7099 = vunpack.c.h.b16 %v1914
        %v7100 = vunpack.c.l.b16 %v1915
        %v7101 = vunpack.c.h.b16 %v1915
        %v7102 = vunpack.c.l.b16 %v1916
        %v7103 = vunpack.c.h.b16 %v1916
        %v7104 = vunpack.c.l.b16 %v1917
        %v7105 = vunpack.c.h.b16 %v1917
        %v7106 = vunpack.c.l.b16 %v1918
        %v7107 = vunpack.c.h.b16 %v1918
        %v7108 = vunpack.c.l.b16 %v1919
        %v7109 = vunpack.c.h.b16 %v1919
        %v7110 = vunpack.c.l.b16 %v1920
        %v7111 = vunpack.c.h.b16 %v1920
        %v7112 = vunpack.c.l.b16 %v1921
        %v7113 = vunpack.c.h.b16 %v1921
        %v7114 = vunpack.c.l.b16 %v1922
        %v7115 = vunpack.c.h.b16 %v1922
        %v7116 = vunpack.c.l.b16 %v1923
        %v7117 = vunpack.c.h.b16 %v1923
        %v7118 = vunpack.c.l.b16 %v1924
        %v7119 = vunpack.c.h.b16 %v1924
        %v7120 = vunpack.c.l.b16 %v1925
        %v7121 = vunpack.c.h.b16 %v1925
        %v7122 = vunpack.c.l.b16 %v1926
        %v7123 = vunpack.c.h.b16 %v1926
        %v7124 = vunpack.c.l.b16 %v1927
        %v7125 = vunpack.c.h.b16 %v1927
        %v7126 = vunpack.c.l.b16 %v1928
        %v7127 = vunpack.c.h.b16 %v1928
        %v7128 = vunpack.c.l.b16 %v1929
        %v7129 = vunpack.c.h.b16 %v1929
        %v7130 = vunpack.c.l.b16 %v1930
        %v7131 = vunpack.c.h.b16 %v1930
        %v7132 = vunpack.c.l.b16 %v1931
        %v7133 = vunpack.c.h.b16 %v1931
        %v7134 = vunpack.c.l.b16 %v1932
        %v7135 = vunpack.c.h.b16 %v1932
        %v7136 = vunpack.c.l.b16 %v1933
        %v7137 = vunpack.c.h.b16 %v1933
        %v7138 = vunpack.c.l.b16 %v1934
        %v7139 = vunpack.c.h.b16 %v1934
        %v7140 = vunpack.c.l.b16 %v1935
        %v7141 = vunpack.c.h.b16 %v1935
        %v7142 = vunpack.c.l.b16 %v1936
        %v7143 = vunpack.c.h.b16 %v1936
        %v7144 = vunpack.c.l.b16 %v1937
        %v7145 = vunpack.c.h.b16 %v1937
        %v7146 = vunpack.c.l.b16 %v1938
        %v7147 = vunpack.c.h.b16 %v1938
        %v7148 = vunpack.c.l.b16 %v1939
        %v7149 = vunpack.c.h.b16 %v1939
        %v7150 = vunpack.c.l.b16 %v1940
        %v7151 = vunpack.c.h.b16 %v1940
        %v7152 = vunpack.c.l.b16 %v1941
        %v7153 = vunpack.c.h.b16 %v1941
        %v7154 = vunpack.c.l.b16 %v1942
        %v7155 = vunpack.c.h.b16 %v1942
        %v7156 = vunpack.c.l.b16 %v1943
        %v7157 = vunpack.c.h.b16 %v1943
        %v7158 = vunpack.c.l.b16 %v1944
        %v7159 = vunpack.c.h.b16 %v1944
        %v7160 = vunpack.c.l.b16 %v1945
        %v7161 = vunpack.c.h.b16 %v1945
        %v7162 = vunpack.c.l.b16 %v1946
        %v7163 = vunpack.c.h.b16 %v1946
        %v7164 = vunpack.c.l.b16 %v1947
        %v7165 = vunpack.c.h.b16 %v1947
        %v7166 = vunpack.c.l.b16 %v1948
        %v7167 = vunpack.c.h.b16 %v1948
        %v7168 = vunpack.c.l.b16 %v1949
        %v7169 = vunpack.c.h.b16 %v1949
        %v7170 = vunpack.c.l.b16 %v1950
        %v7171 = vunpack.c.h.b16 %v1950
        %v7172 = vunpack.c.l.b16 %v1951
        %v7173 = vunpack.c.h.b16 %v1951
        %v7174 = vunpack.c.l.b16 %v1952
        %v7175 = vunpack.c.h.b16 %v1952
        %v7176 = vunpack.c.l.b16 %v1953
        %v7177 = vunpack.c.h.b16 %v1953
        %v7178 = vunpack.c.l.b16 %v1954
        %v7179 = vunpack.c.h.b16 %v1954
        %v7180 = vunpack.c.l.b16 %v1955
        %v7181 = vunpack.c.h.b16 %v1955
        %v7182 = vunpack.c.l.b16 %v1956
        %v7183 = vunpack.c.h.b16 %v1956
        %v7184 = vunpack.c.l.b16 %v1957
        %v7185 = vunpack.c.h.b16 %v1957
        %v7186 = vunpack.c.l.b16 %v1958
        %v7187 = vunpack.c.h.b16 %v1958
        %v7188 = vunpack.c.l.b16 %v1959
        %v7189 = vunpack.c.h.b16 %v1959
        %v7190 = vunpack.c.l.b16 %v1960
        %v7191 = vunpack.c.h.b16 %v1960
        %v7192 = vunpack.c.l.b16 %v1961
        %v7193 = vunpack.c.h.b16 %v1961
        %v7194 = vunpack.c.l.b16 %v1962
        %v7195 = vunpack.c.h.b16 %v1962
        %v7196 = vunpack.c.l.b16 %v1963
        %v7197 = vunpack.c.h.b16 %v1963
        %v7198 = vunpack.c.l.b16 %v1964
        %v7199 = vunpack.c.h.b16 %v1964
        %v7200 = vunpack.c.l.b16 %v1965
        %v7201 = vunpack.c.h.b16 %v1965
        %v7202 = vunpack.c.l.b16 %v1966
        %v7203 = vunpack.c.h.b16 %v1966
        %v7204 = vunpack.c.l.b16 %v1967
        %v7205 = vunpack.c.h.b16 %v1967
        %v7206 = vunpack.c.l.b16 %v1968
        %v7207 = vunpack.c.h.b16 %v1968
        %v7208 = vunpack.c.l.b16 %v1969
        %v7209 = vunpack.c.h.b16 %v1969
        %v7210 = vunpack.c.l.b16 %v1970
        %v7211 = vunpack.c.h.b16 %v1970
        %v7212 = vunpack.c.l.b16 %v1971
        %v7213 = vunpack.c.h.b16 %v1971
        %v7214 = vunpack.c.l.b16 %v1972
        %v7215 = vunpack.c.h.b16 %v1972
        %v7216 = vunpack.c.l.b16 %v1973
        %v7217 = vunpack.c.h.b16 %v1973
        %v7218 = vunpack.c.l.b16 %v1974
        %v7219 = vunpack.c.h.b16 %v1974
        %v7220 = vunpack.c.l.b16 %v1975
        %v7221 = vunpack.c.h.b16 %v1975
        %v7222 = vunpack.c.l.b16 %v1976
        %v7223 = vunpack.c.h.b16 %v1976
        %v7224 = vunpack.c.l.b16 %v1977
        %v7225 = vunpack.c.h.b16 %v1977
        %v7226 = vunpack.c.l.b16 %v1978
        %v7227 = vunpack.c.h.b16 %v1978
        %v7228 = vunpack.c.l.b16 %v1979
        %v7229 = vunpack.c.h.b16 %v1979
        %v7230 = vunpack.c.l.b16 %v1980
        %v7231 = vunpack.c.h.b16 %v1980
        %v7232 = vunpack.c.l.b16 %v1981
        %v7233 = vunpack.c.h.b16 %v1981
        %v7234 = vunpack.c.l.b16 %v1982
        %v7235 = vunpack.c.h.b16 %v1982
        %v7236 = vunpack.c.l.b16 %v1983
        %v7237 = vunpack.c.h.b16 %v1983
        %v7238 = vunpack.c.l.b16 %v1984
        %v7239 = vunpack.c.h.b16 %v1984
        %v7240 = vunpack.c.l.b16 %v1985
        %v7241 = vunpack.c.h.b16 %v1985
        %v7242 = vunpack.c.l.b16 %v1986
        %v7243 = vunpack.c.h.b16 %v1986
        %v7244 = vunpack.c.l.b16 %v1987
        %v7245 = vunpack.c.h.b16 %v1987
        %v7246 = vunpack.c.l.b16 %v1988
        %v7247 = vunpack.c.h.b16 %v1988
        %v7248 = vunpack.c.l.b16 %v1989
        %v7249 = vunpack.c.h.b16 %v1989
        %v7250 = vunpack.c.l.b16 %v1990
        %v7251 = vunpack.c.h.b16 %v1990
        %v7252 = vunpack.c.l.b16 %v1991
        %v7253 = vunpack.c.h.b16 %v1991
        %v7254 = vunpack.c.l.b16 %v1992
        %v7255 = vunpack.c.h.b16 %v1992
        %v7256 = vunpack.c.l.b16 %v1993
        %v7257 = vunpack.c.h.b16 %v1993
        %v7258 = vunpack.c.l.b16 %v1994
        %v7259 = vunpack.c.h.b16 %v1994
        %v7260 = vunpack.c.l.b16 %v1995
        %v7261 = vunpack.c.h.b16 %v1995
        %v7262 = vunpack.c.l.b16 %v1996
        %v7263 = vunpack.c.h.b16 %v1996
        %v7264 = vunpack.c.l.b16 %v1997
        %v7265 = vunpack.c.h.b16 %v1997
        %v7266 = vunpack.c.l.b16 %v1998
        %v7267 = vunpack.c.h.b16 %v1998
        %v7268 = vunpack.c.l.b16 %v1999
        %v7269 = vunpack.c.h.b16 %v1999
        %v7270 = vunpack.c.l.b16 %v2000
        %v7271 = vunpack.c.h.b16 %v2000
        %v7272 = vunpack.c.l.b16 %v2001
        %v7273 = vunpack.c.h.b16 %v2001
        %v7274 = vunpack.c.l.b16 %v2002
        %v7275 = vunpack.c.h.b16 %v2002
        %v7276 = vunpack.c.l.b16 %v2003
        %v7277 = vunpack.c.h.b16 %v2003
        %v7278 = vunpack.c.l.b16 %v2004
        %v7279 = vunpack.c.h.b16 %v2004
        %v7280 = vunpack.c.l.b16 %v2005
        %v7281 = vunpack.c.h.b16 %v2005
        %v7282 = vunpack.c.l.b16 %v2006
        %v7283 = vunpack.c.h.b16 %v2006
        %v7284 = vunpack.c.l.b16 %v2007
        %v7285 = vunpack.c.h.b16 %v2007
        %v7286 = vunpack.c.l.b16 %v2008
        %v7287 = vunpack.c.h.b16 %v2008
        %v7288 = vunpack.c.l.b16 %v2009
        %v7289 = vunpack.c.h.b16 %v2009
        %v7290 = vunpack.c.l.b16 %v2010
        %v7291 = vunpack.c.h.b16 %v2010
        %v7292 = vunpack.c.l.b16 %v2011
        %v7293 = vunpack.c.h.b16 %v2011
        %v7294 = vunpack.c.l.b16 %v2012
        %v7295 = vunpack.c.h.b16 %v2012
        %v7296 = vunpack.c.l.b16 %v2013
        %v7297 = vunpack.c.h.b16 %v2013
        %v7298 = vunpack.c.l.b16 %v2014
        %v7299 = vunpack.c.h.b16 %v2014
        %v7300 = vunpack.c.l.b16 %v2015
        %v7301 = vunpack.c.h.b16 %v2015
        %v7302 = vunpack.c.l.b16 %v2016
        %v7303 = vunpack.c.h.b16 %v2016
        %v7304 = vunpack.c.l.b16 %v2017
        %v7305 = vunpack.c.h.b16 %v2017
        %v7306 = vunpack.c.l.b16 %v2018
        %v7307 = vunpack.c.h.b16 %v2018
        %v7308 = vunpack.c.l.b16 %v2019
        %v7309 = vunpack.c.h.b16 %v2019
        %v7310 = vunpack.c.l.b16 %v2020
        %v7311 = vunpack.c.h.b16 %v2020
        %v7312 = vunpack.c.l.b16 %v2021
        %v7313 = vunpack.c.h.b16 %v2021
        %v7314 = vunpack.c.l.b16 %v2022
        %v7315 = vunpack.c.h.b16 %v2022
        %v7316 = vunpack.c.l.b16 %v2023
        %v7317 = vunpack.c.h.b16 %v2023
        %v7318 = vunpack.c.l.b16 %v2024
        %v7319 = vunpack.c.h.b16 %v2024
        %v7320 = vunpack.c.l.b16 %v2025
        %v7321 = vunpack.c.h.b16 %v2025
        %v7322 = vunpack.c.l.b16 %v2026
        %v7323 = vunpack.c.h.b16 %v2026
        %v7324 = vunpack.c.l.b16 %v2027
        %v7325 = vunpack.c.h.b16 %v2027
        %v7326 = vunpack.c.l.b16 %v2028
        %v7327 = vunpack.c.h.b16 %v2028
        %v7328 = vunpack.c.l.b16 %v2029
        %v7329 = vunpack.c.h.b16 %v2029
        %v7330 = vunpack.c.l.b16 %v2030
        %v7331 = vunpack.c.h.b16 %v2030
        %v7332 = vunpack.c.l.b16 %v2031
        %v7333 = vunpack.c.h.b16 %v2031
        %v7334 = vunpack.c.l.b16 %v2032
        %v7335 = vunpack.c.h.b16 %v2032
        %v7336 = vunpack.c.l.b16 %v2033
        %v7337 = vunpack.c.h.b16 %v2033
        %v7338 = vunpack.c.l.b16 %v2034
        %v7339 = vunpack.c.h.b16 %v2034
        %v7340 = vunpack.c.l.b16 %v2035
        %v7341 = vunpack.c.h.b16 %v2035
        %v7342 = vunpack.c.l.b16 %v2036
        %v7343 = vunpack.c.h.b16 %v2036
        %v7344 = vunpack.c.l.b16 %v2037
        %v7345 = vunpack.c.h.b16 %v2037
        %v7346 = vunpack.c.l.b16 %v2038
        %v7347 = vunpack.c.h.b16 %v2038
        %v7348 = vunpack.c.l.b16 %v2039
        %v7349 = vunpack.c.h.b16 %v2039
        %v7350 = vunpack.c.l.b16 %v2040
        %v7351 = vunpack.c.h.b16 %v2040
        %v7352 = vunpack.c.l.b16 %v2041
        %v7353 = vunpack.c.h.b16 %v2041
        %v7354 = vunpack.c.l.b16 %v2042
        %v7355 = vunpack.c.h.b16 %v2042
        %v7356 = vunpack.c.l.b16 %v2043
        %v7357 = vunpack.c.h.b16 %v2043
        %v7358 = vunpack.c.l.b16 %v2044
        %v7359 = vunpack.c.h.b16 %v2044
        %v7360 = vunpack.c.l.b16 %v2045
        %v7361 = vunpack.c.h.b16 %v2045
        %v7362 = vunpack.c.l.b16 %v2046
        %v7363 = vunpack.c.h.b16 %v2046
        %v7364 = vunpack.c.l.b16 %v2047
        %v7365 = vunpack.c.h.b16 %v2047
        %v7366 = vunpack.c.l.b16 %v2048
        %v7367 = vunpack.c.h.b16 %v2048
        %v7368 = vunpack.c.l.b16 %v2049
        %v7369 = vunpack.c.h.b16 %v2049
        %v7370 = vunpack.c.l.b16 %v2050
        %v7371 = vunpack.c.h.b16 %v2050
        %v7372 = vunpack.c.l.b16 %v2051
        %v7373 = vunpack.c.h.b16 %v2051
        %v7374 = vunpack.c.l.b16 %v2052
        %v7375 = vunpack.c.h.b16 %v2052
        %v7376 = vunpack.c.l.b16 %v2053
        %v7377 = vunpack.c.h.b16 %v2053
        %v7378 = vunpack.c.l.b16 %v2054
        %v7379 = vunpack.c.h.b16 %v2054
        %v7380 = vunpack.c.l.b16 %v2055
        %v7381 = vunpack.c.h.b16 %v2055
        %v7382 = vunpack.c.l.b16 %v2056
        %v7383 = vunpack.c.h.b16 %v2056
        %v7384 = vunpack.c.l.b16 %v2057
        %v7385 = vunpack.c.h.b16 %v2057
        %v7386 = vunpack.c.l.b16 %v2058
        %v7387 = vunpack.c.h.b16 %v2058
        %v7388 = vunpack.c.l.b16 %v2059
        %v7389 = vunpack.c.h.b16 %v2059
        %v7390 = vunpack.c.l.b16 %v2060
        %v7391 = vunpack.c.h.b16 %v2060
        %v7392 = vunpack.c.l.b16 %v2061
        %v7393 = vunpack.c.h.b16 %v2061
        %v7394 = vunpack.c.l.b16 %v2062
        %v7395 = vunpack.c.h.b16 %v2062
        %v7396 = vunpack.c.l.b16 %v2063
        %v7397 = vunpack.c.h.b16 %v2063
        %v7398 = vunpack.c.l.b16 %v2064
        %v7399 = vunpack.c.h.b16 %v2064
        %v7400 = vunpack.c.l.b16 %v2065
        %v7401 = vunpack.c.h.b16 %v2065
        %v7402 = vunpack.c.l.b16 %v2066
        %v7403 = vunpack.c.h.b16 %v2066
        %v7404 = vunpack.c.l.b16 %v2067
        %v7405 = vunpack.c.h.b16 %v2067
        %v7406 = vunpack.c.l.b16 %v2068
        %v7407 = vunpack.c.h.b16 %v2068
        %v7408 = vunpack.c.l.b16 %v2069
        %v7409 = vunpack.c.h.b16 %v2069
        %v7410 = vunpack.c.l.b16 %v2070
        %v7411 = vunpack.c.h.b16 %v2070
        %v7412 = vunpack.c.l.b16 %v2071
        %v7413 = vunpack.c.h.b16 %v2071
        %v7414 = vunpack.c.l.b16 %v2072
        %v7415 = vunpack.c.h.b16 %v2072
        %v7416 = vunpack.c.l.b16 %v2073
        %v7417 = vunpack.c.h.b16 %v2073
        %v7418 = vunpack.c.l.b16 %v2074
        %v7419 = vunpack.c.h.b16 %v2074
        %v7420 = vunpack.c.l.b16 %v2075
        %v7421 = vunpack.c.h.b16 %v2075
        %v7422 = vunpack.c.l.b16 %v2076
        %v7423 = vunpack.c.h.b16 %v2076
        %v7424 = vunpack.c.l.b16 %v2077
        %v7425 = vunpack.c.h.b16 %v2077
        %v7426 = vunpack.c.l.b16 %v2078
        %v7427 = vunpack.c.h.b16 %v2078
        %v7428 = vunpack.c.l.b16 %v2079
        %v7429 = vunpack.c.h.b16 %v2079
        %v7430 = vunpack.c.l.b16 %v2080
        %v7431 = vunpack.c.h.b16 %v2080
        %v7432 = vunpack.c.l.b16 %v2081
        %v7433 = vunpack.c.h.b16 %v2081
        %v7434 = vunpack.c.l.b16 %v2082
        %v7435 = vunpack.c.h.b16 %v2082
        %v7436 = vunpack.c.l.b16 %v2083
        %v7437 = vunpack.c.h.b16 %v2083
        %v7438 = vunpack.c.l.b16 %v2084
        %v7439 = vunpack.c.h.b16 %v2084
        %v7440 = vunpack.c.l.b16 %v2085
        %v7441 = vunpack.c.h.b16 %v2085
        %v7442 = vunpack.c.l.b16 %v2086
        %v7443 = vunpack.c.h.b16 %v2086
        %v7444 = vunpack.c.l.b16 %v2087
        %v7445 = vunpack.c.h.b16 %v2087
        %v7446 = vunpack.c.l.b16 %v2088
        %v7447 = vunpack.c.h.b16 %v2088
        %v7448 = vunpack.c.l.b16 %v2089
        %v7449 = vunpack.c.h.b16 %v2089
        %v7450 = vunpack.c.l.b16 %v2090
        %v7451 = vunpack.c.h.b16 %v2090
        %v7452 = vunpack.c.l.b16 %v2091
        %v7453 = vunpack.c.h.b16 %v2091
        %v7454 = vunpack.c.l.b16 %v2092
        %v7455 = vunpack.c.h.b16 %v2092
        %v7456 = vunpack.c.l.b16 %v2093
        %v7457 = vunpack.c.h.b16 %v2093
        %v7458 = vunpack.c.l.b16 %v2094
        %v7459 = vunpack.c.h.b16 %v2094
        %v7460 = vunpack.c.l.b16 %v2095
        %v7461 = vunpack.c.h.b16 %v2095
        %v7462 = vunpack.c.l.b16 %v2096
        %v7463 = vunpack.c.h.b16 %v2096
        %v7464 = vunpack.c.l.b16 %v2097
        %v7465 = vunpack.c.h.b16 %v2097
        %v7466 = vunpack.c.l.b16 %v2098
        %v7467 = vunpack.c.h.b16 %v2098
        %v7468 = vunpack.c.l.b16 %v2099
        %v7469 = vunpack.c.h.b16 %v2099
        %v7470 = vunpack.c.l.b16 %v2100
        %v7471 = vunpack.c.h.b16 %v2100
        %v7472 = vunpack.c.l.b16 %v2101
        %v7473 = vunpack.c.h.b16 %v2101
        %v7474 = vunpack.c.l.b16 %v2102
        %v7475 = vunpack.c.h.b16 %v2102
        %v7476 = vunpack.c.l.b16 %v2103
        %v7477 = vunpack.c.h.b16 %v2103
        %v7478 = vunpack.c.l.b16 %v2104
        %v7479 = vunpack.c.h.b16 %v2104
        %v7480 = vunpack.c.l.b16 %v2105
        %v7481 = vunpack.c.h.b16 %v2105
        %v7482 = vunpack.c.l.b16 %v2106
        %v7483 = vunpack.c.h.b16 %v2106
        %v7484 = vunpack.c.l.b16 %v2107
        %v7485 = vunpack.c.h.b16 %v2107
        %v7486 = vunpack.c.l.b16 %v2108
        %v7487 = vunpack.c.h.b16 %v2108
        %v7488 = vunpack.c.l.b16 %v2109
        %v7489 = vunpack.c.h.b16 %v2109
        %v7490 = vunpack.c.l.b16 %v2110
        %v7491 = vunpack.c.h.b16 %v2110
        %v7492 = vunpack.c.l.b16 %v2111
        %v7493 = vunpack.c.h.b16 %v2111
        %v7494 = vunpack.c.l.b16 %v2112
        %v7495 = vunpack.c.h.b16 %v2112
        %v7496 = vunpack.c.l.b16 %v2113
        %v7497 = vunpack.c.h.b16 %v2113
        %v7498 = vunpack.c.l.b16 %v2114
        %v7499 = vunpack.c.h.b16 %v2114
        %v7500 = vunpack.c.l.b16 %v2115
        %v7501 = vunpack.c.h.b16 %v2115
        %v7502 = vunpack.c.l.b16 %v2116
        %v7503 = vunpack.c.h.b16 %v2116
        %v7504 = vunpack.c.l.b16 %v2117
        %v7505 = vunpack.c.h.b16 %v2117
        %v7506 = vunpack.c.l.b16 %v2118
        %v7507 = vunpack.c.h.b16 %v2118
        %v7508 = vunpack.c.l.b16 %v2119
        %v7509 = vunpack.c.h.b16 %v2119
        %v7510 = vunpack.c.l.b16 %v2120
        %v7511 = vunpack.c.h.b16 %v2120
        %v7512 = vunpack.c.l.b16 %v2121
        %v7513 = vunpack.c.h.b16 %v2121
        %v7514 = vunpack.c.l.b16 %v2122
        %v7515 = vunpack.c.h.b16 %v2122
        %v7516 = vunpack.c.l.b16 %v2123
        %v7517 = vunpack.c.h.b16 %v2123
        %v7518 = vunpack.c.l.b16 %v2124
        %v7519 = vunpack.c.h.b16 %v2124
        %v7520 = vunpack.c.l.b16 %v2125
        %v7521 = vunpack.c.h.b16 %v2125
        %v7522 = vunpack.c.l.b16 %v2126
        %v7523 = vunpack.c.h.b16 %v2126
        %v7524 = vunpack.c.l.b16 %v2127
        %v7525 = vunpack.c.h.b16 %v2127
        %v7526 = vunpack.c.l.b16 %v2128
        %v7527 = vunpack.c.h.b16 %v2128
        %v7528 = vunpack.c.l.b16 %v2129
        %v7529 = vunpack.c.h.b16 %v2129
        %v7530 = vunpack.c.l.b16 %v2130
        %v7531 = vunpack.c.h.b16 %v2130
        %v7532 = vunpack.c.l.b16 %v2131
        %v7533 = vunpack.c.h.b16 %v2131
        %v7534 = vunpack.c.l.b16 %v2132
        %v7535 = vunpack.c.h.b16 %v2132
        %v7536 = vunpack.c.l.b16 %v2133
        %v7537 = vunpack.c.h.b16 %v2133
        %v7538 = vunpack.c.l.b16 %v2134
        %v7539 = vunpack.c.h.b16 %v2134
        %v7540 = vunpack.c.l.b16 %v2135
        %v7541 = vunpack.c.h.b16 %v2135
        %v7542 = vunpack.c.l.b16 %v2136
        %v7543 = vunpack.c.h.b16 %v2136
        %v7544 = vunpack.c.l.b16 %v2137
        %v7545 = vunpack.c.h.b16 %v2137
        %v7546 = vunpack.c.l.b16 %v2138
        %v7547 = vunpack.c.h.b16 %v2138
        %v7548 = vunpack.c.l.b16 %v2139
        %v7549 = vunpack.c.h.b16 %v2139
        %v7550 = vunpack.c.l.b16 %v2140
        %v7551 = vunpack.c.h.b16 %v2140
        %v7552 = vunpack.c.l.b16 %v2141
        %v7553 = vunpack.c.h.b16 %v2141
        %v7554 = vunpack.c.l.b16 %v2142
        %v7555 = vunpack.c.h.b16 %v2142
        %v7556 = vunpack.c.l.b16 %v2143
        %v7557 = vunpack.c.h.b16 %v2143
        %v7558 = vunpack.c.l.b16 %v2144
        %v7559 = vunpack.c.h.b16 %v2144
        %v7560 = vunpack.c.l.b16 %v2145
        %v7561 = vunpack.c.h.b16 %v2145
        %v7562 = vunpack.c.l.b16 %v2146
        %v7563 = vunpack.c.h.b16 %v2146
        %v7564 = vunpack.c.l.b16 %v2147
        %v7565 = vunpack.c.h.b16 %v2147
        %v7566 = vunpack.c.l.b16 %v2148
        %v7567 = vunpack.c.h.b16 %v2148
        %v7568 = vunpack.c.l.b16 %v2149
        %v7569 = vunpack.c.h.b16 %v2149
        %v7570 = vunpack.c.l.b16 %v2150
        %v7571 = vunpack.c.h.b16 %v2150
        %v7572 = vunpack.c.l.b16 %v2151
        %v7573 = vunpack.c.h.b16 %v2151
        %v7574 = vunpack.c.l.b16 %v2152
        %v7575 = vunpack.c.h.b16 %v2152
        %v7576 = vunpack.c.l.b16 %v2153
        %v7577 = vunpack.c.h.b16 %v2153
        %v7578 = vunpack.c.l.b16 %v2154
        %v7579 = vunpack.c.h.b16 %v2154
        %v7580 = vunpack.c.l.b16 %v2155
        %v7581 = vunpack.c.h.b16 %v2155
        %v7582 = vunpack.c.l.b16 %v2156
        %v7583 = vunpack.c.h.b16 %v2156
        %v7584 = vunpack.c.l.b16 %v2157
        %v7585 = vunpack.c.h.b16 %v2157
        %v7586 = vunpack.c.l.b16 %v2158
        %v7587 = vunpack.c.h.b16 %v2158
        %v7588 = vunpack.c.l.b16 %v2159
        %v7589 = vunpack.c.h.b16 %v2159
        %v7590 = vunpack.c.l.b16 %v2160
        %v7591 = vunpack.c.h.b16 %v2160
        %v7592 = vunpack.c.l.b16 %v2161
        %v7593 = vunpack.c.h.b16 %v2161
        %v7594 = vunpack.c.l.b16 %v2162
        %v7595 = vunpack.c.h.b16 %v2162
        %v7596 = vunpack.c.l.b16 %v2163
        %v7597 = vunpack.c.h.b16 %v2163
        %v7598 = vunpack.c.l.b16 %v2164
        %v7599 = vunpack.c.h.b16 %v2164
        %v7600 = vunpack.c.l.b16 %v2165
        %v7601 = vunpack.c.h.b16 %v2165
        %v7602 = vunpack.c.l.b16 %v2166
        %v7603 = vunpack.c.h.b16 %v2166
        %v7604 = vunpack.c.l.b16 %v2167
        %v7605 = vunpack.c.h.b16 %v2167
        %v7606 = vunpack.c.l.b16 %v2168
        %v7607 = vunpack.c.h.b16 %v2168
        %v7608 = vunpack.c.l.b16 %v2169
        %v7609 = vunpack.c.h.b16 %v2169
        %v7610 = vunpack.c.l.b16 %v2170
        %v7611 = vunpack.c.h.b16 %v2170
        %v7612 = vunpack.c.l.b16 %v2171
        %v7613 = vunpack.c.h.b16 %v2171
        %v7614 = vunpack.c.l.b16 %v2172
        %v7615 = vunpack.c.h.b16 %v2172
        %v7616 = vunpack.c.l.b16 %v2173
        %v7617 = vunpack.c.h.b16 %v2173
        %v7618 = vunpack.c.l.b16 %v2174
        %v7619 = vunpack.c.h.b16 %v2174
        %v7620 = vunpack.c.l.b16 %v2175
        %v7621 = vunpack.c.h.b16 %v2175
        %v7622 = vpack.c.b16 %v4054, %v4038
        %v7623 = vpack.c.b16 %v4055, %v4039
        %v7624 = vpack.c.b16 %v4056, %v4040
        %v7625 = vpack.c.b16 %v4057, %v4041
        %v7626 = vpack.c.b16 %v4058, %v4042
        %v7627 = vpack.c.b16 %v4059, %v4043
        %v7628 = vpack.c.b16 %v4060, %v4044
        %v7629 = vpack.c.b16 %v4061, %v4045
        %v7630 = vpack.c.b16 %v4062, %v4046
        %v7631 = vpack.c.b16 %v4063, %v4047
        %v7632 = vpack.c.b16 %v4064, %v4048
        %v7633 = vpack.c.b16 %v4065, %v4049
        %v7634 = vpack.c.b16 %v4066, %v4050
        %v7635 = vpack.c.b16 %v4067, %v4051
        %v7636 = vpack.c.b16 %v4068, %v4052
        %v7637 = vpack.c.b16 %v4069, %v4053
        %v7638 = vpack.c.b16 %v4086, %v4070
        %v7639 = vpack.c.b16 %v4087, %v4071
        %v7640 = vpack.c.b16 %v4088, %v4072
        %v7641 = vpack.c.b16 %v4089, %v4073
        %v7642 = vpack.c.b16 %v4090, %v4074
        %v7643 = vpack.c.b16 %v4091, %v4075
        %v7644 = vpack.c.b16 %v4092, %v4076
        %v7645 = vpack.c.b16 %v4093, %v4077
        %v7646 = vpack.c.b16 %v4094, %v4078
        %v7647 = vpack.c.b16 %v4095, %v4079
        %v7648 = vpack.c.b16 %v4096, %v4080
        %v7649 = vpack.c.b16 %v4097, %v4081
        %v7650 = vpack.c.b16 %v4098, %v4082
        %v7651 = vpack.c.b16 %v4099, %v4083
        %v7652 = vpack.c.b16 %v4100, %v4084
        %v7653 = vpack.c.b16 %v4101, %v4085
        %v7654 = vpack.c.b16 %v4118, %v4102
        %v7655 = vpack.c.b16 %v4119, %v4103
        %v7656 = vpack.c.b16 %v4120, %v4104
        %v7657 = vpack.c.b16 %v4121, %v4105
        %v7658 = vpack.c.b16 %v4122, %v4106
        %v7659 = vpack.c.b16 %v4123, %v4107
        %v7660 = vpack.c.b16 %v4124, %v4108
        %v7661 = vpack.c.b16 %v4125, %v4109
        %v7662 = vpack.c.b16 %v4126, %v4110
        %v7663 = vpack.c.b16 %v4127, %v4111
        %v7664 = vpack.c.b16 %v4128, %v4112
        %v7665 = vpack.c.b16 %v4129, %v4113
        %v7666 = vpack.c.b16 %v4130, %v4114
        %v7667 = vpack.c.b16 %v4131, %v4115
        %v7668 = vpack.c.b16 %v4132, %v4116
        %v7669 = vpack.c.b16 %v4133, %v4117
        %v7670 = vpack.c.b16 %v4150, %v4134
        %v7671 = vpack.c.b16 %v4151, %v4135
        %v7672 = vpack.c.b16 %v4152, %v4136
        %v7673 = vpack.c.b16 %v4153, %v4137
        %v7674 = vpack.c.b16 %v4154, %v4138
        %v7675 = vpack.c.b16 %v4155, %v4139
        %v7676 = vpack.c.b16 %v4156, %v4140
        %v7677 = vpack.c.b16 %v4157, %v4141
        %v7678 = vpack.c.b16 %v4158, %v4142
        %v7679 = vpack.c.b16 %v4159, %v4143
        %v7680 = vpack.c.b16 %v4160, %v4144
        %v7681 = vpack.c.b16 %v4161, %v4145
        %v7682 = vpack.c.b16 %v4162, %v4146
        %v7683 = vpack.c.b16 %v4163, %v4147
        %v7684 = vpack.c.b16 %v4164, %v4148
        %v7685 = vpack.c.b16 %v4165, %v4149
        %v7686 = vpack.c.b16 %v4182, %v4166
        %v7687 = vpack.c.b16 %v4183, %v4167
        %v7688 = vpack.c.b16 %v4184, %v4168
        %v7689 = vpack.c.b16 %v4185, %v4169
        %v7690 = vpack.c.b16 %v4186, %v4170
        %v7691 = vpack.c.b16 %v4187, %v4171
        %v7692 = vpack.c.b16 %v4188, %v4172
        %v7693 = vpack.c.b16 %v4189, %v4173
        %v7694 = vpack.c.b16 %v4190, %v4174
        %v7695 = vpack.c.b16 %v4191, %v4175
        %v7696 = vpack.c.b16 %v4192, %v4176
        %v7697 = vpack.c.b16 %v4193, %v4177
        %v7698 = vpack.c.b16 %v4194, %v4178
        %v7699 = vpack.c.b16 %v4195, %v4179
        %v7700 = vpack.c.b16 %v4196, %v4180
        %v7701 = vpack.c.b16 %v4197, %v4181
        %v7702 = vpack.c.b16 %v4214, %v4198
        %v7703 = vpack.c.b16 %v4215, %v4199
        %v7704 = vpack.c.b16 %v4216, %v4200
        %v7705 = vpack.c.b16 %v4217, %v4201
        %v7706 = vpack.c.b16 %v4218, %v4202
        %v7707 = vpack.c.b16 %v4219, %v4203
        %v7708 = vpack.c.b16 %v4220, %v4204
        %v7709 = vpack.c.b16 %v4221, %v4205
        %v7710 = vpack.c.b16 %v4222, %v4206
        %v7711 = vpack.c.b16 %v4223, %v4207
        %v7712 = vpack.c.b16 %v4224, %v4208
        %v7713 = vpack.c.b16 %v4225, %v4209
        %v7714 = vpack.c.b16 %v4226, %v4210
        %v7715 = vpack.c.b16 %v4227, %v4211
        %v7716 = vpack.c.b16 %v4228, %v4212
        %v7717 = vpack.c.b16 %v4229, %v4213
        %v7718 = vpack.c.b16 %v4246, %v4230
        %v7719 = vpack.c.b16 %v4247, %v4231
        %v7720 = vpack.c.b16 %v4248, %v4232
        %v7721 = vpack.c.b16 %v4249, %v4233
        %v7722 = vpack.c.b16 %v4250, %v4234
        %v7723 = vpack.c.b16 %v4251, %v4235
        %v7724 = vpack.c.b16 %v4252, %v4236
        %v7725 = vpack.c.b16 %v4253, %v4237
        %v7726 = vpack.c.b16 %v4254, %v4238
        %v7727 = vpack.c.b16 %v4255, %v4239
        %v7728 = vpack.c.b16 %v4256, %v4240
        %v7729 = vpack.c.b16 %v4257, %v4241
        %v7730 = vpack.c.b16 %v4258, %v4242
        %v7731 = vpack.c.b16 %v4259, %v4243
        %v7732 = vpack.c.b16 %v4260, %v4244
        %v7733 = vpack.c.b16 %v4261, %v4245
        %v7734 = vpack.c.b16 %v4278, %v4262
        %v7735 = vpack.c.b16 %v4279, %v4263
        %v7736 = vpack.c.b16 %v4280, %v4264
        %v7737 = vpack.c.b16 %v4281, %v4265
        %v7738 = vpack.c.b16 %v4282, %v4266
        %v7739 = vpack.c.b16 %v4283, %v4267
        %v7740 = vpack.c.b16 %v4284, %v4268
        %v7741 = vpack.c.b16 %v4285, %v4269
        %v7742 = vpack.c.b16 %v4286, %v4270
        %v7743 = vpack.c.b16 %v4287, %v4271
        %v7744 = vpack.c.b16 %v4288, %v4272
        %v7745 = vpack.c.b16 %v4289, %v4273
        %v7746 = vpack.c.b16 %v4290, %v4274
        %v7747 = vpack.c.b16 %v4291, %v4275
        %v7748 = vpack.c.b16 %v4292, %v4276
        %v7749 = vpack.c.b16 %v4293, %v4277
        %v7750 = vpack.c.b16 %v4310, %v4294
        %v7751 = vpack.c.b16 %v4311, %v4295
        %v7752 = vpack.c.b16 %v4312, %v4296
        %v7753 = vpack.c.b16 %v4313, %v4297
        %v7754 = vpack.c.b16 %v4314, %v4298
        %v7755 = vpack.c.b16 %v4315, %v4299
        %v7756 = vpack.c.b16 %v4316, %v4300
        %v7757 = vpack.c.b16 %v4317, %v4301
        %v7758 = vpack.c.b16 %v4318, %v4302
        %v7759 = vpack.c.b16 %v4319, %v4303
        %v7760 = vpack.c.b16 %v4320, %v4304
        %v7761 = vpack.c.b16 %v4321, %v4305
        %v7762 = vpack.c.b16 %v4322, %v4306
        %v7763 = vpack.c.b16 %v4323, %v4307
        %v7764 = vpack.c.b16 %v4324, %v4308
        %v7765 = vpack.c.b16 %v4325, %v4309
        %v7766 = vpack.c.b16 %v4342, %v4326
        %v7767 = vpack.c.b16 %v4343, %v4327
        %v7768 = vpack.c.b16 %v4344, %v4328
        %v7769 = vpack.c.b16 %v4345, %v4329
        %v7770 = vpack.c.b16 %v4346, %v4330
        %v7771 = vpack.c.b16 %v4347, %v4331
        %v7772 = vpack.c.b16 %v4348, %v4332
        %v7773 = vpack.c.b16 %v4349, %v4333
        %v7774 = vpack.c.b16 %v4350, %v4334
        %v7775 = vpack.c.b16 %v4351, %v4335
        %v7776 = vpack.c.b16 %v4352, %v4336
        %v7777 = vpack.c.b16 %v4353, %v4337
        %v7778 = vpack.c.b16 %v4354, %v4338
        %v7779 = vpack.c.b16 %v4355, %v4339
        %v7780 = vpack.c.b16 %v4356, %v4340
        %v7781 = vpack.c.b16 %v4357, %v4341
        %v7782 = vpack.c.b16 %v4374, %v4358
        %v7783 = vpack.c.b16 %v4375, %v4359
        %v7784 = vpack.c.b16 %v4376, %v4360
        %v7785 = vpack.c.b16 %v4377, %v4361
        %v7786 = vpack.c.b16 %v4378, %v4362
        %v7787 = vpack.c.b16 %v4379, %v4363
        %v7788 = vpack.c.b16 %v4380, %v4364
        %v7789 = vpack.c.b16 %v4381, %v4365
        %v7790 = vpack.c.b16 %v4382, %v4366
        %v7791 = vpack.c.b16 %v4383, %v4367
        %v7792 = vpack.c.b16 %v4384, %v4368
        %v7793 = vpack.c.b16 %v4385, %v4369
        %v7794 = vpack.c.b16 %v4386, %v4370
        %v7795 = vpack.c.b16 %v4387, %v4371
        %v7796 = vpack.c.b16 %v4388, %v4372
        %v7797 = vpack.c.b16 %v4389, %v4373
        %v7798 = vpack.c.b16 %v4406, %v4390
        %v7799 = vpack.c.b16 %v4407, %v4391
        %v7800 = vpack.c.b16 %v4408, %v4392
        %v7801 = vpack.c.b16 %v4409, %v4393
        %v7802 = vpack.c.b16 %v4410, %v4394
        %v7803 = vpack.c.b16 %v4411, %v4395
        %v7804 = vpack.c.b16 %v4412, %v4396
        %v7805 = vpack.c.b16 %v4413, %v4397
        %v7806 = vpack.c.b16 %v4414, %v4398
        %v7807 = vpack.c.b16 %v4415, %v4399
        %v7808 = vpack.c.b16 %v4416, %v4400
        %v7809 = vpack.c.b16 %v4417, %v4401
        %v7810 = vpack.c.b16 %v4418, %v4402
        %v7811 = vpack.c.b16 %v4419, %v4403
        %v7812 = vpack.c.b16 %v4420, %v4404
        %v7813 = vpack.c.b16 %v4421, %v4405
        %v7814 = vpack.c.b16 %v4438, %v4422
        %v7815 = vpack.c.b16 %v4439, %v4423
        %v7816 = vpack.c.b16 %v4440, %v4424
        %v7817 = vpack.c.b16 %v4441, %v4425
        %v7818 = vpack.c.b16 %v4442, %v4426
        %v7819 = vpack.c.b16 %v4443, %v4427
        %v7820 = vpack.c.b16 %v4444, %v4428
        %v7821 = vpack.c.b16 %v4445, %v4429
        %v7822 = vpack.c.b16 %v4446, %v4430
        %v7823 = vpack.c.b16 %v4447, %v4431
        %v7824 = vpack.c.b16 %v4448, %v4432
        %v7825 = vpack.c.b16 %v4449, %v4433
        %v7826 = vpack.c.b16 %v4450, %v4434
        %v7827 = vpack.c.b16 %v4451, %v4435
        %v7828 = vpack.c.b16 %v4452, %v4436
        %v7829 = vpack.c.b16 %v4453, %v4437
        %v7830 = vpack.c.b16 %v4470, %v4454
        %v7831 = vpack.c.b16 %v4471, %v4455
        %v7832 = vpack.c.b16 %v4472, %v4456
        %v7833 = vpack.c.b16 %v4473, %v4457
        %v7834 = vpack.c.b16 %v4474, %v4458
        %v7835 = vpack.c.b16 %v4475, %v4459
        %v7836 = vpack.c.b16 %v4476, %v4460
        %v7837 = vpack.c.b16 %v4477, %v4461
        %v7838 = vpack.c.b16 %v4478, %v4462
        %v7839 = vpack.c.b16 %v4479, %v4463
        %v7840 = vpack.c.b16 %v4480, %v4464
        %v7841 = vpack.c.b16 %v4481, %v4465
        %v7842 = vpack.c.b16 %v4482, %v4466
        %v7843 = vpack.c.b16 %v4483, %v4467
        %v7844 = vpack.c.b16 %v4484, %v4468
        %v7845 = vpack.c.b16 %v4485, %v4469
        %v7846 = vpack.c.b16 %v4502, %v4486
        %v7847 = vpack.c.b16 %v4503, %v4487
        %v7848 = vpack.c.b16 %v4504, %v4488
        %v7849 = vpack.c.b16 %v4505, %v4489
        %v7850 = vpack.c.b16 %v4506, %v4490
        %v7851 = vpack.c.b16 %v4507, %v4491
        %v7852 = vpack.c.b16 %v4508, %v4492
        %v7853 = vpack.c.b16 %v4509, %v4493
        %v7854 = vpack.c.b16 %v4510, %v4494
        %v7855 = vpack.c.b16 %v4511, %v4495
        %v7856 = vpack.c.b16 %v4512, %v4496
        %v7857 = vpack.c.b16 %v4513, %v4497
        %v7858 = vpack.c.b16 %v4514, %v4498
        %v7859 = vpack.c.b16 %v4515, %v4499
        %v7860 = vpack.c.b16 %v4516, %v4500
        %v7861 = vpack.c.b16 %v4517, %v4501
        %v7862 = vpack.c.b16 %v4534, %v4518
        %v7863 = vpack.c.b16 %v4535, %v4519
        %v7864 = vpack.c.b16 %v4536, %v4520
        %v7865 = vpack.c.b16 %v4537, %v4521
        %v7866 = vpack.c.b16 %v4538, %v4522
        %v7867 = vpack.c.b16 %v4539, %v4523
        %v7868 = vpack.c.b16 %v4540, %v4524
        %v7869 = vpack.c.b16 %v4541, %v4525
        %v7870 = vpack.c.b16 %v4542, %v4526
        %v7871 = vpack.c.b16 %v4543, %v4527
        %v7872 = vpack.c.b16 %v4544, %v4528
        %v7873 = vpack.c.b16 %v4545, %v4529
        %v7874 = vpack.c.b16 %v4546, %v4530
        %v7875 = vpack.c.b16 %v4547, %v4531
        %v7876 = vpack.c.b16 %v4548, %v4532
        %v7877 = vpack.c.b16 %v4549, %v4533
        %v7878 = vpack.c.b16 %v4566, %v4550
        %v7879 = vpack.c.b16 %v4567, %v4551
        %v7880 = vpack.c.b16 %v4568, %v4552
        %v7881 = vpack.c.b16 %v4569, %v4553
        %v7882 = vpack.c.b16 %v4570, %v4554
        %v7883 = vpack.c.b16 %v4571, %v4555
        %v7884 = vpack.c.b16 %v4572, %v4556
        %v7885 = vpack.c.b16 %v4573, %v4557
        %v7886 = vpack.c.b16 %v4574, %v4558
        %v7887 = vpack.c.b16 %v4575, %v4559
        %v7888 = vpack.c.b16 %v4576, %v4560
        %v7889 = vpack.c.b16 %v4577, %v4561
        %v7890 = vpack.c.b16 %v4578, %v4562
        %v7891 = vpack.c.b16 %v4579, %v4563
        %v7892 = vpack.c.b16 %v4580, %v4564
        %v7893 = vpack.c.b16 %v4581, %v4565
        %v7894 = vpack.c.b16 %v4598, %v4582
        %v7895 = vpack.c.b16 %v4599, %v4583
        %v7896 = vpack.c.b16 %v4600, %v4584
        %v7897 = vpack.c.b16 %v4601, %v4585
        %v7898 = vpack.c.b16 %v4602, %v4586
        %v7899 = vpack.c.b16 %v4603, %v4587
        %v7900 = vpack.c.b16 %v4604, %v4588
        %v7901 = vpack.c.b16 %v4605, %v4589
        %v7902 = vpack.c.b16 %v4606, %v4590
        %v7903 = vpack.c.b16 %v4607, %v4591
        %v7904 = vpack.c.b16 %v4608, %v4592
        %v7905 = vpack.c.b16 %v4609, %v4593
        %v7906 = vpack.c.b16 %v4610, %v4594
        %v7907 = vpack.c.b16 %v4611, %v4595
        %v7908 = vpack.c.b16 %v4612, %v4596
        %v7909 = vpack.c.b16 %v4613, %v4597
        %v7910 = vpack.c.b16 %v4630, %v4614
        %v7911 = vpack.c.b16 %v4631, %v4615
        %v7912 = vpack.c.b16 %v4632, %v4616
        %v7913 = vpack.c.b16 %v4633, %v4617
        %v7914 = vpack.c.b16 %v4634, %v4618
        %v7915 = vpack.c.b16 %v4635, %v4619
        %v7916 = vpack.c.b16 %v4636, %v4620
        %v7917 = vpack.c.b16 %v4637, %v4621
        %v7918 = vpack.c.b16 %v4638, %v4622
        %v7919 = vpack.c.b16 %v4639, %v4623
        %v7920 = vpack.c.b16 %v4640, %v4624
        %v7921 = vpack.c.b16 %v4641, %v4625
        %v7922 = vpack.c.b16 %v4642, %v4626
        %v7923 = vpack.c.b16 %v4643, %v4627
        %v7924 = vpack.c.b16 %v4644, %v4628
        %v7925 = vpack.c.b16 %v4645, %v4629
        %v7926 = vpack.c.b16 %v4662, %v4646
        %v7927 = vpack.c.b16 %v4663, %v4647
        %v7928 = vpack.c.b16 %v4664, %v4648
        %v7929 = vpack.c.b16 %v4665, %v4649
        %v7930 = vpack.c.b16 %v4666, %v4650
        %v7931 = vpack.c.b16 %v4667, %v4651
        %v7932 = vpack.c.b16 %v4668, %v4652
        %v7933 = vpack.c.b16 %v4669, %v4653
        %v7934 = vpack.c.b16 %v4670, %v4654
        %v7935 = vpack.c.b16 %v4671, %v4655
        %v7936 = vpack.c.b16 %v4672, %v4656
        %v7937 = vpack.c.b16 %v4673, %v4657
        %v7938 = vpack.c.b16 %v4674, %v4658
        %v7939 = vpack.c.b16 %v4675, %v4659
        %v7940 = vpack.c.b16 %v4676, %v4660
        %v7941 = vpack.c.b16 %v4677, %v4661
        %v7942 = vpack.c.b16 %v4694, %v4678
        %v7943 = vpack.c.b16 %v4695, %v4679
        %v7944 = vpack.c.b16 %v4696, %v4680
        %v7945 = vpack.c.b16 %v4697, %v4681
        %v7946 = vpack.c.b16 %v4698, %v4682
        %v7947 = vpack.c.b16 %v4699, %v4683
        %v7948 = vpack.c.b16 %v4700, %v4684
        %v7949 = vpack.c.b16 %v4701, %v4685
        %v7950 = vpack.c.b16 %v4702, %v4686
        %v7951 = vpack.c.b16 %v4703, %v4687
        %v7952 = vpack.c.b16 %v4704, %v4688
        %v7953 = vpack.c.b16 %v4705, %v4689
        %v7954 = vpack.c.b16 %v4706, %v4690
        %v7955 = vpack.c.b16 %v4707, %v4691
        %v7956 = vpack.c.b16 %v4708, %v4692
        %v7957 = vpack.c.b16 %v4709, %v4693
        %v7958 = vpack.c.b16 %v4726, %v4710
        %v7959 = vpack.c.b16 %v4727, %v4711
        %v7960 = vpack.c.b16 %v4728, %v4712
        %v7961 = vpack.c.b16 %v4729, %v4713
        %v7962 = vpack.c.b16 %v4730, %v4714
        %v7963 = vpack.c.b16 %v4731, %v4715
        %v7964 = vpack.c.b16 %v4732, %v4716
        %v7965 = vpack.c.b16 %v4733, %v4717
        %v7966 = vpack.c.b16 %v4734, %v4718
        %v7967 = vpack.c.b16 %v4735, %v4719
        %v7968 = vpack.c.b16 %v4736, %v4720
        %v7969 = vpack.c.b16 %v4737, %v4721
        %v7970 = vpack.c.b16 %v4738, %v4722
        %v7971 = vpack.c.b16 %v4739, %v4723
        %v7972 = vpack.c.b16 %v4740, %v4724
        %v7973 = vpack.c.b16 %v4741, %v4725
        %v7974 = vpack.c.b16 %v4758, %v4742
        %v7975 = vpack.c.b16 %v4759, %v4743
        %v7976 = vpack.c.b16 %v4760, %v4744
        %v7977 = vpack.c.b16 %v4761, %v4745
        %v7978 = vpack.c.b16 %v4762, %v4746
        %v7979 = vpack.c.b16 %v4763, %v4747
        %v7980 = vpack.c.b16 %v4764, %v4748
        %v7981 = vpack.c.b16 %v4765, %v4749
        %v7982 = vpack.c.b16 %v4766, %v4750
        %v7983 = vpack.c.b16 %v4767, %v4751
        %v7984 = vpack.c.b16 %v4768, %v4752
        %v7985 = vpack.c.b16 %v4769, %v4753
        %v7986 = vpack.c.b16 %v4770, %v4754
        %v7987 = vpack.c.b16 %v4771, %v4755
        %v7988 = vpack.c.b16 %v4772, %v4756
        %v7989 = vpack.c.b16 %v4773, %v4757
        %v7990 = vpack.c.b16 %v4790, %v4774
        %v7991 = vpack.c.b16 %v4791, %v4775
        %v7992 = vpack.c.b16 %v4792, %v4776
        %v7993 = vpack.c.b16 %v4793, %v4777
        %v7994 = vpack.c.b16 %v4794, %v4778
        %v7995 = vpack.c.b16 %v4795, %v4779
        %v7996 = vpack.c.b16 %v4796, %v4780
        %v7997 = vpack.c.b16 %v4797, %v4781
        %v7998 = vpack.c.b16 %v4798, %v4782
        %v7999 = vpack.c.b16 %v4799, %v4783
        %v8000 = vpack.c.b16 %v4800, %v4784
        %v8001 = vpack.c.b16 %v4801, %v4785
        %v8002 = vpack.c.b16 %v4802, %v4786
        %v8003 = vpack.c.b16 %v4803, %v4787
        %v8004 = vpack.c.b16 %v4804, %v4788
        %v8005 = vpack.c.b16 %v4805, %v4789
        %v8006 = vpack.c.b16 %v4822, %v4806
        %v8007 = vpack.c.b16 %v4823, %v4807
        %v8008 = vpack.c.b16 %v4824, %v4808
        %v8009 = vpack.c.b16 %v4825, %v4809
        %v8010 = vpack.c.b16 %v4826, %v4810
        %v8011 = vpack.c.b16 %v4827, %v4811
        %v8012 = vpack.c.b16 %v4828, %v4812
        %v8013 = vpack.c.b16 %v4829, %v4813
        %v8014 = vpack.c.b16 %v4830, %v4814
        %v8015 = vpack.c.b16 %v4831, %v4815
        %v8016 = vpack.c.b16 %v4832, %v4816
        %v8017 = vpack.c.b16 %v4833, %v4817
        %v8018 = vpack.c.b16 %v4834, %v4818
        %v8019 = vpack.c.b16 %v4835, %v4819
        %v8020 = vpack.c.b16 %v4836, %v4820
        %v8021 = vpack.c.b16 %v4837, %v4821
        %v8022 = vpack.c.b16 %v4854, %v4838
        %v8023 = vpack.c.b16 %v4855, %v4839
        %v8024 = vpack.c.b16 %v4856, %v4840
        %v8025 = vpack.c.b16 %v4857, %v4841
        %v8026 = vpack.c.b16 %v4858, %v4842
        %v8027 = vpack.c.b16 %v4859, %v4843
        %v8028 = vpack.c.b16 %v4860, %v4844
        %v8029 = vpack.c.b16 %v4861, %v4845
        %v8030 = vpack.c.b16 %v4862, %v4846
        %v8031 = vpack.c.b16 %v4863, %v4847
        %v8032 = vpack.c.b16 %v4864, %v4848
        %v8033 = vpack.c.b16 %v4865, %v4849
        %v8034 = vpack.c.b16 %v4866, %v4850
        %v8035 = vpack.c.b16 %v4867, %v4851
        %v8036 = vpack.c.b16 %v4868, %v4852
        %v8037 = vpack.c.b16 %v4869, %v4853
        %v8038 = vpack.c.b16 %v4886, %v4870
        %v8039 = vpack.c.b16 %v4887, %v4871
        %v8040 = vpack.c.b16 %v4888, %v4872
        %v8041 = vpack.c.b16 %v4889, %v4873
        %v8042 = vpack.c.b16 %v4890, %v4874
        %v8043 = vpack.c.b16 %v4891, %v4875
        %v8044 = vpack.c.b16 %v4892, %v4876
        %v8045 = vpack.c.b16 %v4893, %v4877
        %v8046 = vpack.c.b16 %v4894, %v4878
        %v8047 = vpack.c.b16 %v4895, %v4879
        %v8048 = vpack.c.b16 %v4896, %v4880
        %v8049 = vpack.c.b16 %v4897, %v4881
        %v8050 = vpack.c.b16 %v4898, %v4882
        %v8051 = vpack.c.b16 %v4899, %v4883
        %v8052 = vpack.c.b16 %v4900, %v4884
        %v8053 = vpack.c.b16 %v4901, %v4885
        %v8054 = vpack.c.b16 %v4918, %v4902
        %v8055 = vpack.c.b16 %v4919, %v4903
        %v8056 = vpack.c.b16 %v4920, %v4904
        %v8057 = vpack.c.b16 %v4921, %v4905
        %v8058 = vpack.c.b16 %v4922, %v4906
        %v8059 = vpack.c.b16 %v4923, %v4907
        %v8060 = vpack.c.b16 %v4924, %v4908
        %v8061 = vpack.c.b16 %v4925, %v4909
        %v8062 = vpack.c.b16 %v4926, %v4910
        %v8063 = vpack.c.b16 %v4927, %v4911
        %v8064 = vpack.c.b16 %v4928, %v4912
        %v8065 = vpack.c.b16 %v4929, %v4913
        %v8066 = vpack.c.b16 %v4930, %v4914
        %v8067 = vpack.c.b16 %v4931, %v4915
        %v8068 = vpack.c.b16 %v4932, %v4916
        %v8069 = vpack.c.b16 %v4933, %v4917
        %v8070 = vpack.c.b16 %v4950, %v4934
        %v8071 = vpack.c.b16 %v4951, %v4935
        %v8072 = vpack.c.b16 %v4952, %v4936
        %v8073 = vpack.c.b16 %v4953, %v4937
        %v8074 = vpack.c.b16 %v4954, %v4938
        %v8075 = vpack.c.b16 %v4955, %v4939
        %v8076 = vpack.c.b16 %v4956, %v4940
        %v8077 = vpack.c.b16 %v4957, %v4941
        %v8078 = vpack.c.b16 %v4958, %v4942
        %v8079 = vpack.c.b16 %v4959, %v4943
        %v8080 = vpack.c.b16 %v4960, %v4944
        %v8081 = vpack.c.b16 %v4961, %v4945
        %v8082 = vpack.c.b16 %v4962, %v4946
        %v8083 = vpack.c.b16 %v4963, %v4947
        %v8084 = vpack.c.b16 %v4964, %v4948
        %v8085 = vpack.c.b16 %v4965, %v4949
        %v8086 = vpack.c.b16 %v4982, %v4966
        %v8087 = vpack.c.b16 %v4983, %v4967
        %v8088 = vpack.c.b16 %v4984, %v4968
        %v8089 = vpack.c.b16 %v4985, %v4969
        %v8090 = vpack.c.b16 %v4986, %v4970
        %v8091 = vpack.c.b16 %v4987, %v4971
        %v8092 = vpack.c.b16 %v4988, %v4972
        %v8093 = vpack.c.b16 %v4989, %v4973
        %v8094 = vpack.c.b16 %v4990, %v4974
        %v8095 = vpack.c.b16 %v4991, %v4975
        %v8096 = vpack.c.b16 %v4992, %v4976
        %v8097 = vpack.c.b16 %v4993, %v4977
        %v8098 = vpack.c.b16 %v4994, %v4978
        %v8099 = vpack.c.b16 %v4995, %v4979
        %v8100 = vpack.c.b16 %v4996, %v4980
        %v8101 = vpack.c.b16 %v4997, %v4981
        %v8102 = vpack.c.b16 %v5014, %v4998
        %v8103 = vpack.c.b16 %v5015, %v4999
        %v8104 = vpack.c.b16 %v5016, %v5000
        %v8105 = vpack.c.b16 %v5017, %v5001
        %v8106 = vpack.c.b16 %v5018, %v5002
        %v8107 = vpack.c.b16 %v5019, %v5003
        %v8108 = vpack.c.b16 %v5020, %v5004
        %v8109 = vpack.c.b16 %v5021, %v5005
        %v8110 = vpack.c.b16 %v5022, %v5006
        %v8111 = vpack.c.b16 %v5023, %v5007
        %v8112 = vpack.c.b16 %v5024, %v5008
        %v8113 = vpack.c.b16 %v5025, %v5009
        %v8114 = vpack.c.b16 %v5026, %v5010
        %v8115 = vpack.c.b16 %v5027, %v5011
        %v8116 = vpack.c.b16 %v5028, %v5012
        %v8117 = vpack.c.b16 %v5029, %v5013
        %v8118 = vpack.c.b16 %v5046, %v5030
        %v8119 = vpack.c.b16 %v5047, %v5031
        %v8120 = vpack.c.b16 %v5048, %v5032
        %v8121 = vpack.c.b16 %v5049, %v5033
        %v8122 = vpack.c.b16 %v5050, %v5034
        %v8123 = vpack.c.b16 %v5051, %v5035
        %v8124 = vpack.c.b16 %v5052, %v5036
        %v8125 = vpack.c.b16 %v5053, %v5037
        %v8126 = vpack.c.b16 %v5054, %v5038
        %v8127 = vpack.c.b16 %v5055, %v5039
        %v8128 = vpack.c.b16 %v5056, %v5040
        %v8129 = vpack.c.b16 %v5057, %v5041
        %v8130 = vpack.c.b16 %v5058, %v5042
        %v8131 = vpack.c.b16 %v5059, %v5043
        %v8132 = vpack.c.b16 %v5060, %v5044
        %v8133 = vpack.c.b16 %v5061, %v5045
        %v8134 = vpack.c.b16 %v5078, %v5062
        %v8135 = vpack.c.b16 %v5079, %v5063
        %v8136 = vpack.c.b16 %v5080, %v5064
        %v8137 = vpack.c.b16 %v5081, %v5065
        %v8138 = vpack.c.b16 %v5082, %v5066
        %v8139 = vpack.c.b16 %v5083, %v5067
        %v8140 = vpack.c.b16 %v5084, %v5068
        %v8141 = vpack.c.b16 %v5085, %v5069
        %v8142 = vpack.c.b16 %v5086, %v5070
        %v8143 = vpack.c.b16 %v5087, %v5071
        %v8144 = vpack.c.b16 %v5088, %v5072
        %v8145 = vpack.c.b16 %v5089, %v5073
        %v8146 = vpack.c.b16 %v5090, %v5074
        %v8147 = vpack.c.b16 %v5091, %v5075
        %v8148 = vpack.c.b16 %v5092, %v5076
        %v8149 = vpack.c.b16 %v5093, %v5077
        %v8150 = vpack.c.b16 %v5110, %v5094
        %v8151 = vpack.c.b16 %v5111, %v5095
        %v8152 = vpack.c.b16 %v5112, %v5096
        %v8153 = vpack.c.b16 %v5113, %v5097
        %v8154 = vpack.c.b16 %v5114, %v5098
        %v8155 = vpack.c.b16 %v5115, %v5099
        %v8156 = vpack.c.b16 %v5116, %v5100
        %v8157 = vpack.c.b16 %v5117, %v5101
        %v8158 = vpack.c.b16 %v5118, %v5102
        %v8159 = vpack.c.b16 %v5119, %v5103
        %v8160 = vpack.c.b16 %v5120, %v5104
        %v8161 = vpack.c.b16 %v5121, %v5105
        %v8162 = vpack.c.b16 %v5122, %v5106
        %v8163 = vpack.c.b16 %v5123, %v5107
        %v8164 = vpack.c.b16 %v5124, %v5108
        %v8165 = vpack.c.b16 %v5125, %v5109
        %v8166 = vpack.c.b16 %v5142, %v5126
        %v8167 = vpack.c.b16 %v5143, %v5127
        %v8168 = vpack.c.b16 %v5144, %v5128
        %v8169 = vpack.c.b16 %v5145, %v5129
        %v8170 = vpack.c.b16 %v5146, %v5130
        %v8171 = vpack.c.b16 %v5147, %v5131
        %v8172 = vpack.c.b16 %v5148, %v5132
        %v8173 = vpack.c.b16 %v5149, %v5133
        %v8174 = vpack.c.b16 %v5150, %v5134
        %v8175 = vpack.c.b16 %v5151, %v5135
        %v8176 = vpack.c.b16 %v5152, %v5136
        %v8177 = vpack.c.b16 %v5153, %v5137
        %v8178 = vpack.c.b16 %v5154, %v5138
        %v8179 = vpack.c.b16 %v5155, %v5139
        %v8180 = vpack.c.b16 %v5156, %v5140
        %v8181 = vpack.c.b16 %v5157, %v5141
        %v8182 = vpack.c.b16 %v5174, %v5158
        %v8183 = vpack.c.b16 %v5175, %v5159
        %v8184 = vpack.c.b16 %v5176, %v5160
        %v8185 = vpack.c.b16 %v5177, %v5161
        %v8186 = vpack.c.b16 %v5178, %v5162
        %v8187 = vpack.c.b16 %v5179, %v5163
        %v8188 = vpack.c.b16 %v5180, %v5164
        %v8189 = vpack.c.b16 %v5181, %v5165
        %v8190 = vpack.c.b16 %v5182, %v5166
        %v8191 = vpack.c.b16 %v5183, %v5167
        %v8192 = vpack.c.b16 %v5184, %v5168
        %v8193 = vpack.c.b16 %v5185, %v5169
        %v8194 = vpack.c.b16 %v5186, %v5170
        %v8195 = vpack.c.b16 %v5187, %v5171
        %v8196 = vpack.c.b16 %v5188, %v5172
        %v8197 = vpack.c.b16 %v5189, %v5173
        %v8198 = vpack.c.b16 %v5206, %v5190
        %v8199 = vpack.c.b16 %v5207, %v5191
        %v8200 = vpack.c.b16 %v5208, %v5192
        %v8201 = vpack.c.b16 %v5209, %v5193
        %v8202 = vpack.c.b16 %v5210, %v5194
        %v8203 = vpack.c.b16 %v5211, %v5195
        %v8204 = vpack.c.b16 %v5212, %v5196
        %v8205 = vpack.c.b16 %v5213, %v5197
        %v8206 = vpack.c.b16 %v5214, %v5198
        %v8207 = vpack.c.b16 %v5215, %v5199
        %v8208 = vpack.c.b16 %v5216, %v5200
        %v8209 = vpack.c.b16 %v5217, %v5201
        %v8210 = vpack.c.b16 %v5218, %v5202
        %v8211 = vpack.c.b16 %v5219, %v5203
        %v8212 = vpack.c.b16 %v5220, %v5204
        %v8213 = vpack.c.b16 %v5221, %v5205
        %v8214 = vpack.c.b16 %v5238, %v5222
        %v8215 = vpack.c.b16 %v5239, %v5223
        %v8216 = vpack.c.b16 %v5240, %v5224
        %v8217 = vpack.c.b16 %v5241, %v5225
        %v8218 = vpack.c.b16 %v5242, %v5226
        %v8219 = vpack.c.b16 %v5243, %v5227
        %v8220 = vpack.c.b16 %v5244, %v5228
        %v8221 = vpack.c.b16 %v5245, %v5229
        %v8222 = vpack.c.b16 %v5246, %v5230
        %v8223 = vpack.c.b16 %v5247, %v5231
        %v8224 = vpack.c.b16 %v5248, %v5232
        %v8225 = vpack.c.b16 %v5249, %v5233
        %v8226 = vpack.c.b16 %v5250, %v5234
        %v8227 = vpack.c.b16 %v5251, %v5235
        %v8228 = vpack.c.b16 %v5252, %v5236
        %v8229 = vpack.c.b16 %v5253, %v5237
        %v8230 = vpack.c.b16 %v5270, %v5254
        %v8231 = vpack.c.b16 %v5271, %v5255
        %v8232 = vpack.c.b16 %v5272, %v5256
        %v8233 = vpack.c.b16 %v5273, %v5257
        %v8234 = vpack.c.b16 %v5274, %v5258
        %v8235 = vpack.c.b16 %v5275, %v5259
        %v8236 = vpack.c.b16 %v5276, %v5260
        %v8237 = vpack.c.b16 %v5277, %v5261
        %v8238 = vpack.c.b16 %v5278, %v5262
        %v8239 = vpack.c.b16 %v5279, %v5263
        %v8240 = vpack.c.b16 %v5280, %v5264
        %v8241 = vpack.c.b16 %v5281, %v5265
        %v8242 = vpack.c.b16 %v5282, %v5266
        %v8243 = vpack.c.b16 %v5283, %v5267
        %v8244 = vpack.c.b16 %v5284, %v5268
        %v8245 = vpack.c.b16 %v5285, %v5269
        %v8246 = vpack.c.b16 %v5302, %v5286
        %v8247 = vpack.c.b16 %v5303, %v5287
        %v8248 = vpack.c.b16 %v5304, %v5288
        %v8249 = vpack.c.b16 %v5305, %v5289
        %v8250 = vpack.c.b16 %v5306, %v5290
        %v8251 = vpack.c.b16 %v5307, %v5291
        %v8252 = vpack.c.b16 %v5308, %v5292
        %v8253 = vpack.c.b16 %v5309, %v5293
        %v8254 = vpack.c.b16 %v5310, %v5294
        %v8255 = vpack.c.b16 %v5311, %v5295
        %v8256 = vpack.c.b16 %v5312, %v5296
        %v8257 = vpack.c.b16 %v5313, %v5297
        %v8258 = vpack.c.b16 %v5314, %v5298
        %v8259 = vpack.c.b16 %v5315, %v5299
        %v8260 = vpack.c.b16 %v5316, %v5300
        %v8261 = vpack.c.b16 %v5317, %v5301
        %v8262 = vpack.c.b16 %v5334, %v5318
        %v8263 = vpack.c.b16 %v5335, %v5319
        %v8264 = vpack.c.b16 %v5336, %v5320
        %v8265 = vpack.c.b16 %v5337, %v5321
        %v8266 = vpack.c.b16 %v5338, %v5322
        %v8267 = vpack.c.b16 %v5339, %v5323
        %v8268 = vpack.c.b16 %v5340, %v5324
        %v8269 = vpack.c.b16 %v5341, %v5325
        %v8270 = vpack.c.b16 %v5342, %v5326
        %v8271 = vpack.c.b16 %v5343, %v5327
        %v8272 = vpack.c.b16 %v5344, %v5328
        %v8273 = vpack.c.b16 %v5345, %v5329
        %v8274 = vpack.c.b16 %v5346, %v5330
        %v8275 = vpack.c.b16 %v5347, %v5331
        %v8276 = vpack.c.b16 %v5348, %v5332
        %v8277 = vpack.c.b16 %v5349, %v5333
        %v8278 = vpack.c.b16 %v5366, %v5350
        %v8279 = vpack.c.b16 %v5367, %v5351
        %v8280 = vpack.c.b16 %v5368, %v5352
        %v8281 = vpack.c.b16 %v5369, %v5353
        %v8282 = vpack.c.b16 %v5370, %v5354
        %v8283 = vpack.c.b16 %v5371, %v5355
        %v8284 = vpack.c.b16 %v5372, %v5356
        %v8285 = vpack.c.b16 %v5373, %v5357
        %v8286 = vpack.c.b16 %v5374, %v5358
        %v8287 = vpack.c.b16 %v5375, %v5359
        %v8288 = vpack.c.b16 %v5376, %v5360
        %v8289 = vpack.c.b16 %v5377, %v5361
        %v8290 = vpack.c.b16 %v5378, %v5362
        %v8291 = vpack.c.b16 %v5379, %v5363
        %v8292 = vpack.c.b16 %v5380, %v5364
        %v8293 = vpack.c.b16 %v5381, %v5365
        %v8294 = vpack.c.b16 %v5398, %v5382
        %v8295 = vpack.c.b16 %v5399, %v5383
        %v8296 = vpack.c.b16 %v5400, %v5384
        %v8297 = vpack.c.b16 %v5401, %v5385
        %v8298 = vpack.c.b16 %v5402, %v5386
        %v8299 = vpack.c.b16 %v5403, %v5387
        %v8300 = vpack.c.b16 %v5404, %v5388
        %v8301 = vpack.c.b16 %v5405, %v5389
        %v8302 = vpack.c.b16 %v5406, %v5390
        %v8303 = vpack.c.b16 %v5407, %v5391
        %v8304 = vpack.c.b16 %v5408, %v5392
        %v8305 = vpack.c.b16 %v5409, %v5393
        %v8306 = vpack.c.b16 %v5410, %v5394
        %v8307 = vpack.c.b16 %v5411, %v5395
        %v8308 = vpack.c.b16 %v5412, %v5396
        %v8309 = vpack.c.b16 %v5413, %v5397
        %v8310 = vpack.c.b16 %v5430, %v5414
        %v8311 = vpack.c.b16 %v5431, %v5415
        %v8312 = vpack.c.b16 %v5432, %v5416
        %v8313 = vpack.c.b16 %v5433, %v5417
        %v8314 = vpack.c.b16 %v5434, %v5418
        %v8315 = vpack.c.b16 %v5435, %v5419
        %v8316 = vpack.c.b16 %v5436, %v5420
        %v8317 = vpack.c.b16 %v5437, %v5421
        %v8318 = vpack.c.b16 %v5438, %v5422
        %v8319 = vpack.c.b16 %v5439, %v5423
        %v8320 = vpack.c.b16 %v5440, %v5424
        %v8321 = vpack.c.b16 %v5441, %v5425
        %v8322 = vpack.c.b16 %v5442, %v5426
        %v8323 = vpack.c.b16 %v5443, %v5427
        %v8324 = vpack.c.b16 %v5444, %v5428
        %v8325 = vpack.c.b16 %v5445, %v5429
        %v8326 = vpack.c.b16 %v5462, %v5446
        %v8327 = vpack.c.b16 %v5463, %v5447
        %v8328 = vpack.c.b16 %v5464, %v5448
        %v8329 = vpack.c.b16 %v5465, %v5449
        %v8330 = vpack.c.b16 %v5466, %v5450
        %v8331 = vpack.c.b16 %v5467, %v5451
        %v8332 = vpack.c.b16 %v5468, %v5452
        %v8333 = vpack.c.b16 %v5469, %v5453
        %v8334 = vpack.c.b16 %v5470, %v5454
        %v8335 = vpack.c.b16 %v5471, %v5455
        %v8336 = vpack.c.b16 %v5472, %v5456
        %v8337 = vpack.c.b16 %v5473, %v5457
        %v8338 = vpack.c.b16 %v5474, %v5458
        %v8339 = vpack.c.b16 %v5475, %v5459
        %v8340 = vpack.c.b16 %v5476, %v5460
        %v8341 = vpack.c.b16 %v5477, %v5461
        %v8342 = vpack.c.b16 %v5494, %v5478
        %v8343 = vpack.c.b16 %v5495, %v5479
        %v8344 = vpack.c.b16 %v5496, %v5480
        %v8345 = vpack.c.b16 %v5497, %v5481
        %v8346 = vpack.c.b16 %v5498, %v5482
        %v8347 = vpack.c.b16 %v5499, %v5483
        %v8348 = vpack.c.b16 %v5500, %v5484
        %v8349 = vpack.c.b16 %v5501, %v5485
        %v8350 = vpack.c.b16 %v5502, %v5486
        %v8351 = vpack.c.b16 %v5503, %v5487
        %v8352 = vpack.c.b16 %v5504, %v5488
        %v8353 = vpack.c.b16 %v5505, %v5489
        %v8354 = vpack.c.b16 %v5506, %v5490
        %v8355 = vpack.c.b16 %v5507, %v5491
        %v8356 = vpack.c.b16 %v5508, %v5492
        %v8357 = vpack.c.b16 %v5509, %v5493
        %v8358 = vpack.c.b16 %v5526, %v5510
        %v8359 = vpack.c.b16 %v5527, %v5511
        %v8360 = vpack.c.b16 %v5528, %v5512
        %v8361 = vpack.c.b16 %v5529, %v5513
        %v8362 = vpack.c.b16 %v5530, %v5514
        %v8363 = vpack.c.b16 %v5531, %v5515
        %v8364 = vpack.c.b16 %v5532, %v5516
        %v8365 = vpack.c.b16 %v5533, %v5517
        %v8366 = vpack.c.b16 %v5534, %v5518
        %v8367 = vpack.c.b16 %v5535, %v5519
        %v8368 = vpack.c.b16 %v5536, %v5520
        %v8369 = vpack.c.b16 %v5537, %v5521
        %v8370 = vpack.c.b16 %v5538, %v5522
        %v8371 = vpack.c.b16 %v5539, %v5523
        %v8372 = vpack.c.b16 %v5540, %v5524
        %v8373 = vpack.c.b16 %v5541, %v5525
        %v8374 = vpack.c.b16 %v5558, %v5542
        %v8375 = vpack.c.b16 %v5559, %v5543
        %v8376 = vpack.c.b16 %v5560, %v5544
        %v8377 = vpack.c.b16 %v5561, %v5545
        %v8378 = vpack.c.b16 %v5562, %v5546
        %v8379 = vpack.c.b16 %v5563, %v5547
        %v8380 = vpack.c.b16 %v5564, %v5548
        %v8381 = vpack.c.b16 %v5565, %v5549
        %v8382 = vpack.c.b16 %v5566, %v5550
        %v8383 = vpack.c.b16 %v5567, %v5551
        %v8384 = vpack.c.b16 %v5568, %v5552
        %v8385 = vpack.c.b16 %v5569, %v5553
        %v8386 = vpack.c.b16 %v5570, %v5554
        %v8387 = vpack.c.b16 %v5571, %v5555
        %v8388 = vpack.c.b16 %v5572, %v5556
        %v8389 = vpack.c.b16 %v5573, %v5557
        %v8390 = vpack.c.b16 %v5590, %v5574
        %v8391 = vpack.c.b16 %v5591, %v5575
        %v8392 = vpack.c.b16 %v5592, %v5576
        %v8393 = vpack.c.b16 %v5593, %v5577
        %v8394 = vpack.c.b16 %v5594, %v5578
        %v8395 = vpack.c.b16 %v5595, %v5579
        %v8396 = vpack.c.b16 %v5596, %v5580
        %v8397 = vpack.c.b16 %v5597, %v5581
        %v8398 = vpack.c.b16 %v5598, %v5582
        %v8399 = vpack.c.b16 %v5599, %v5583
        %v8400 = vpack.c.b16 %v5600, %v5584
        %v8401 = vpack.c.b16 %v5601, %v5585
        %v8402 = vpack.c.b16 %v5602, %v5586
        %v8403 = vpack.c.b16 %v5603, %v5587
        %v8404 = vpack.c.b16 %v5604, %v5588
        %v8405 = vpack.c.b16 %v5605, %v5589
        %v8406 = vpack.c.b16 %v5622, %v5606
        %v8407 = vpack.c.b16 %v5623, %v5607
        %v8408 = vpack.c.b16 %v5624, %v5608
        %v8409 = vpack.c.b16 %v5625, %v5609
        %v8410 = vpack.c.b16 %v5626, %v5610
        %v8411 = vpack.c.b16 %v5627, %v5611
        %v8412 = vpack.c.b16 %v5628, %v5612
        %v8413 = vpack.c.b16 %v5629, %v5613
        %v8414 = vpack.c.b16 %v5630, %v5614
        %v8415 = vpack.c.b16 %v5631, %v5615
        %v8416 = vpack.c.b16 %v5632, %v5616
        %v8417 = vpack.c.b16 %v5633, %v5617
        %v8418 = vpack.c.b16 %v5634, %v5618
        %v8419 = vpack.c.b16 %v5635, %v5619
        %v8420 = vpack.c.b16 %v5636, %v5620
        %v8421 = vpack.c.b16 %v5637, %v5621
        %v8422 = vpack.c.b16 %v5654, %v5638
        %v8423 = vpack.c.b16 %v5655, %v5639
        %v8424 = vpack.c.b16 %v5656, %v5640
        %v8425 = vpack.c.b16 %v5657, %v5641
        %v8426 = vpack.c.b16 %v5658, %v5642
        %v8427 = vpack.c.b16 %v5659, %v5643
        %v8428 = vpack.c.b16 %v5660, %v5644
        %v8429 = vpack.c.b16 %v5661, %v5645
        %v8430 = vpack.c.b16 %v5662, %v5646
        %v8431 = vpack.c.b16 %v5663, %v5647
        %v8432 = vpack.c.b16 %v5664, %v5648
        %v8433 = vpack.c.b16 %v5665, %v5649
        %v8434 = vpack.c.b16 %v5666, %v5650
        %v8435 = vpack.c.b16 %v5667, %v5651
        %v8436 = vpack.c.b16 %v5668, %v5652
        %v8437 = vpack.c.b16 %v5669, %v5653
        %v8438 = vpack.c.b16 %v5686, %v5670
        %v8439 = vpack.c.b16 %v5687, %v5671
        %v8440 = vpack.c.b16 %v5688, %v5672
        %v8441 = vpack.c.b16 %v5689, %v5673
        %v8442 = vpack.c.b16 %v5690, %v5674
        %v8443 = vpack.c.b16 %v5691, %v5675
        %v8444 = vpack.c.b16 %v5692, %v5676
        %v8445 = vpack.c.b16 %v5693, %v5677
        %v8446 = vpack.c.b16 %v5694, %v5678
        %v8447 = vpack.c.b16 %v5695, %v5679
        %v8448 = vpack.c.b16 %v5696, %v5680
        %v8449 = vpack.c.b16 %v5697, %v5681
        %v8450 = vpack.c.b16 %v5698, %v5682
        %v8451 = vpack.c.b16 %v5699, %v5683
        %v8452 = vpack.c.b16 %v5700, %v5684
        %v8453 = vpack.c.b16 %v5701, %v5685
        %v8454 = vpack.c.b16 %v5718, %v5702
        %v8455 = vpack.c.b16 %v5719, %v5703
        %v8456 = vpack.c.b16 %v5720, %v5704
        %v8457 = vpack.c.b16 %v5721, %v5705
        %v8458 = vpack.c.b16 %v5722, %v5706
        %v8459 = vpack.c.b16 %v5723, %v5707
        %v8460 = vpack.c.b16 %v5724, %v5708
        %v8461 = vpack.c.b16 %v5725, %v5709
        %v8462 = vpack.c.b16 %v5726, %v5710
        %v8463 = vpack.c.b16 %v5727, %v5711
        %v8464 = vpack.c.b16 %v5728, %v5712
        %v8465 = vpack.c.b16 %v5729, %v5713
        %v8466 = vpack.c.b16 %v5730, %v5714
        %v8467 = vpack.c.b16 %v5731, %v5715
        %v8468 = vpack.c.b16 %v5732, %v5716
        %v8469 = vpack.c.b16 %v5733, %v5717
        %v8470 = vpack.c.b16 %v5750, %v5734
        %v8471 = vpack.c.b16 %v5751, %v5735
        %v8472 = vpack.c.b16 %v5752, %v5736
        %v8473 = vpack.c.b16 %v5753, %v5737
        %v8474 = vpack.c.b16 %v5754, %v5738
        %v8475 = vpack.c.b16 %v5755, %v5739
        %v8476 = vpack.c.b16 %v5756, %v5740
        %v8477 = vpack.c.b16 %v5757, %v5741
        %v8478 = vpack.c.b16 %v5758, %v5742
        %v8479 = vpack.c.b16 %v5759, %v5743
        %v8480 = vpack.c.b16 %v5760, %v5744
        %v8481 = vpack.c.b16 %v5761, %v5745
        %v8482 = vpack.c.b16 %v5762, %v5746
        %v8483 = vpack.c.b16 %v5763, %v5747
        %v8484 = vpack.c.b16 %v5764, %v5748
        %v8485 = vpack.c.b16 %v5765, %v5749
        %v8486 = vpack.c.b16 %v5782, %v5766
        %v8487 = vpack.c.b16 %v5783, %v5767
        %v8488 = vpack.c.b16 %v5784, %v5768
        %v8489 = vpack.c.b16 %v5785, %v5769
        %v8490 = vpack.c.b16 %v5786, %v5770
        %v8491 = vpack.c.b16 %v5787, %v5771
        %v8492 = vpack.c.b16 %v5788, %v5772
        %v8493 = vpack.c.b16 %v5789, %v5773
        %v8494 = vpack.c.b16 %v5790, %v5774
        %v8495 = vpack.c.b16 %v5791, %v5775
        %v8496 = vpack.c.b16 %v5792, %v5776
        %v8497 = vpack.c.b16 %v5793, %v5777
        %v8498 = vpack.c.b16 %v5794, %v5778
        %v8499 = vpack.c.b16 %v5795, %v5779
        %v8500 = vpack.c.b16 %v5796, %v5780
        %v8501 = vpack.c.b16 %v5797, %v5781
        %v8502 = vpack.c.b16 %v5814, %v5798
        %v8503 = vpack.c.b16 %v5815, %v5799
        %v8504 = vpack.c.b16 %v5816, %v5800
        %v8505 = vpack.c.b16 %v5817, %v5801
        %v8506 = vpack.c.b16 %v5818, %v5802
        %v8507 = vpack.c.b16 %v5819, %v5803
        %v8508 = vpack.c.b16 %v5820, %v5804
        %v8509 = vpack.c.b16 %v5821, %v5805
        %v8510 = vpack.c.b16 %v5822, %v5806
        %v8511 = vpack.c.b16 %v5823, %v5807
        %v8512 = vpack.c.b16 %v5824, %v5808
        %v8513 = vpack.c.b16 %v5825, %v5809
        %v8514 = vpack.c.b16 %v5826, %v5810
        %v8515 = vpack.c.b16 %v5827, %v5811
        %v8516 = vpack.c.b16 %v5828, %v5812
        %v8517 = vpack.c.b16 %v5829, %v5813
        %v8518 = vpack.c.b16 %v5846, %v5830
        %v8519 = vpack.c.b16 %v5847, %v5831
        %v8520 = vpack.c.b16 %v5848, %v5832
        %v8521 = vpack.c.b16 %v5849, %v5833
        %v8522 = vpack.c.b16 %v5850, %v5834
        %v8523 = vpack.c.b16 %v5851, %v5835
        %v8524 = vpack.c.b16 %v5852, %v5836
        %v8525 = vpack.c.b16 %v5853, %v5837
        %v8526 = vpack.c.b16 %v5854, %v5838
        %v8527 = vpack.c.b16 %v5855, %v5839
        %v8528 = vpack.c.b16 %v5856, %v5840
        %v8529 = vpack.c.b16 %v5857, %v5841
        %v8530 = vpack.c.b16 %v5858, %v5842
        %v8531 = vpack.c.b16 %v5859, %v5843
        %v8532 = vpack.c.b16 %v5860, %v5844
        %v8533 = vpack.c.b16 %v5861, %v5845
        %v8534 = vpack.c.b16 %v5878, %v5862
        %v8535 = vpack.c.b16 %v5879, %v5863
        %v8536 = vpack.c.b16 %v5880, %v5864
        %v8537 = vpack.c.b16 %v5881, %v5865
        %v8538 = vpack.c.b16 %v5882, %v5866
        %v8539 = vpack.c.b16 %v5883, %v5867
        %v8540 = vpack.c.b16 %v5884, %v5868
        %v8541 = vpack.c.b16 %v5885, %v5869
        %v8542 = vpack.c.b16 %v5886, %v5870
        %v8543 = vpack.c.b16 %v5887, %v5871
        %v8544 = vpack.c.b16 %v5888, %v5872
        %v8545 = vpack.c.b16 %v5889, %v5873
        %v8546 = vpack.c.b16 %v5890, %v5874
        %v8547 = vpack.c.b16 %v5891, %v5875
        %v8548 = vpack.c.b16 %v5892, %v5876
        %v8549 = vpack.c.b16 %v5893, %v5877
        %v8550 = vpack.c.b16 %v5910, %v5894
        %v8551 = vpack.c.b16 %v5911, %v5895
        %v8552 = vpack.c.b16 %v5912, %v5896
        %v8553 = vpack.c.b16 %v5913, %v5897
        %v8554 = vpack.c.b16 %v5914, %v5898
        %v8555 = vpack.c.b16 %v5915, %v5899
        %v8556 = vpack.c.b16 %v5916, %v5900
        %v8557 = vpack.c.b16 %v5917, %v5901
        %v8558 = vpack.c.b16 %v5918, %v5902
        %v8559 = vpack.c.b16 %v5919, %v5903
        %v8560 = vpack.c.b16 %v5920, %v5904
        %v8561 = vpack.c.b16 %v5921, %v5905
        %v8562 = vpack.c.b16 %v5922, %v5906
        %v8563 = vpack.c.b16 %v5923, %v5907
        %v8564 = vpack.c.b16 %v5924, %v5908
        %v8565 = vpack.c.b16 %v5925, %v5909
        %v8566 = vpack.c.b16 %v5942, %v5926
        %v8567 = vpack.c.b16 %v5943, %v5927
        %v8568 = vpack.c.b16 %v5944, %v5928
        %v8569 = vpack.c.b16 %v5945, %v5929
        %v8570 = vpack.c.b16 %v5946, %v5930
        %v8571 = vpack.c.b16 %v5947, %v5931
        %v8572 = vpack.c.b16 %v5948, %v5932
        %v8573 = vpack.c.b16 %v5949, %v5933
        %v8574 = vpack.c.b16 %v5950, %v5934
        %v8575 = vpack.c.b16 %v5951, %v5935
        %v8576 = vpack.c.b16 %v5952, %v5936
        %v8577 = vpack.c.b16 %v5953, %v5937
        %v8578 = vpack.c.b16 %v5954, %v5938
        %v8579 = vpack.c.b16 %v5955, %v5939
        %v8580 = vpack.c.b16 %v5956, %v5940
        %v8581 = vpack.c.b16 %v5957, %v5941
        %v8582 = vpack.c.b16 %v5974, %v5958
        %v8583 = vpack.c.b16 %v5975, %v5959
        %v8584 = vpack.c.b16 %v5976, %v5960
        %v8585 = vpack.c.b16 %v5977, %v5961
        %v8586 = vpack.c.b16 %v5978, %v5962
        %v8587 = vpack.c.b16 %v5979, %v5963
        %v8588 = vpack.c.b16 %v5980, %v5964
        %v8589 = vpack.c.b16 %v5981, %v5965
        %v8590 = vpack.c.b16 %v5982, %v5966
        %v8591 = vpack.c.b16 %v5983, %v5967
        %v8592 = vpack.c.b16 %v5984, %v5968
        %v8593 = vpack.c.b16 %v5985, %v5969
        %v8594 = vpack.c.b16 %v5986, %v5970
        %v8595 = vpack.c.b16 %v5987, %v5971
        %v8596 = vpack.c.b16 %v5988, %v5972
        %v8597 = vpack.c.b16 %v5989, %v5973
        %v8598 = vpack.c.b16 %v6006, %v5990
        %v8599 = vpack.c.b16 %v6007, %v5991
        %v8600 = vpack.c.b16 %v6008, %v5992
        %v8601 = vpack.c.b16 %v6009, %v5993
        %v8602 = vpack.c.b16 %v6010, %v5994
        %v8603 = vpack.c.b16 %v6011, %v5995
        %v8604 = vpack.c.b16 %v6012, %v5996
        %v8605 = vpack.c.b16 %v6013, %v5997
        %v8606 = vpack.c.b16 %v6014, %v5998
        %v8607 = vpack.c.b16 %v6015, %v5999
        %v8608 = vpack.c.b16 %v6016, %v6000
        %v8609 = vpack.c.b16 %v6017, %v6001
        %v8610 = vpack.c.b16 %v6018, %v6002
        %v8611 = vpack.c.b16 %v6019, %v6003
        %v8612 = vpack.c.b16 %v6020, %v6004
        %v8613 = vpack.c.b16 %v6021, %v6005
        %v8614 = vpack.c.b16 %v6038, %v6022
        %v8615 = vpack.c.b16 %v6039, %v6023
        %v8616 = vpack.c.b16 %v6040, %v6024
        %v8617 = vpack.c.b16 %v6041, %v6025
        %v8618 = vpack.c.b16 %v6042, %v6026
        %v8619 = vpack.c.b16 %v6043, %v6027
        %v8620 = vpack.c.b16 %v6044, %v6028
        %v8621 = vpack.c.b16 %v6045, %v6029
        %v8622 = vpack.c.b16 %v6046, %v6030
        %v8623 = vpack.c.b16 %v6047, %v6031
        %v8624 = vpack.c.b16 %v6048, %v6032
        %v8625 = vpack.c.b16 %v6049, %v6033
        %v8626 = vpack.c.b16 %v6050, %v6034
        %v8627 = vpack.c.b16 %v6051, %v6035
        %v8628 = vpack.c.b16 %v6052, %v6036
        %v8629 = vpack.c.b16 %v6053, %v6037
        %v8630 = vpack.c.b16 %v6070, %v6054
        %v8631 = vpack.c.b16 %v6071, %v6055
        %v8632 = vpack.c.b16 %v6072, %v6056
        %v8633 = vpack.c.b16 %v6073, %v6057
        %v8634 = vpack.c.b16 %v6074, %v6058
        %v8635 = vpack.c.b16 %v6075, %v6059
        %v8636 = vpack.c.b16 %v6076, %v6060
        %v8637 = vpack.c.b16 %v6077, %v6061
        %v8638 = vpack.c.b16 %v6078, %v6062
        %v8639 = vpack.c.b16 %v6079, %v6063
        %v8640 = vpack.c.b16 %v6080, %v6064
        %v8641 = vpack.c.b16 %v6081, %v6065
        %v8642 = vpack.c.b16 %v6082, %v6066
        %v8643 = vpack.c.b16 %v6083, %v6067
        %v8644 = vpack.c.b16 %v6084, %v6068
        %v8645 = vpack.c.b16 %v6085, %v6069
        %v8646 = vpack.c.b16 %v6102, %v6086
        %v8647 = vpack.c.b16 %v6103, %v6087
        %v8648 = vpack.c.b16 %v6104, %v6088
        %v8649 = vpack.c.b16 %v6105, %v6089
        %v8650 = vpack.c.b16 %v6106, %v6090
        %v8651 = vpack.c.b16 %v6107, %v6091
        %v8652 = vpack.c.b16 %v6108, %v6092
        %v8653 = vpack.c.b16 %v6109, %v6093
        %v8654 = vpack.c.b16 %v6110, %v6094
        %v8655 = vpack.c.b16 %v6111, %v6095
        %v8656 = vpack.c.b16 %v6112, %v6096
        %v8657 = vpack.c.b16 %v6113, %v6097
        %v8658 = vpack.c.b16 %v6114, %v6098
        %v8659 = vpack.c.b16 %v6115, %v6099
        %v8660 = vpack.c.b16 %v6116, %v6100
        %v8661 = vpack.c.b16 %v6117, %v6101
        %v8662 = vpack.c.b16 %v6134, %v6118
        %v8663 = vpack.c.b16 %v6135, %v6119
        %v8664 = vpack.c.b16 %v6136, %v6120
        %v8665 = vpack.c.b16 %v6137, %v6121
        %v8666 = vpack.c.b16 %v6138, %v6122
        %v8667 = vpack.c.b16 %v6139, %v6123
        %v8668 = vpack.c.b16 %v6140, %v6124
        %v8669 = vpack.c.b16 %v6141, %v6125
        %v8670 = vpack.c.b16 %v6142, %v6126
        %v8671 = vpack.c.b16 %v6143, %v6127
        %v8672 = vpack.c.b16 %v6144, %v6128
        %v8673 = vpack.c.b16 %v6145, %v6129
        %v8674 = vpack.c.b16 %v6146, %v6130
        %v8675 = vpack.c.b16 %v6147, %v6131
        %v8676 = vpack.c.b16 %v6148, %v6132
        %v8677 = vpack.c.b16 %v6149, %v6133
        %v8678 = vpack.c.b16 %v6166, %v6150
        %v8679 = vpack.c.b16 %v6167, %v6151
        %v8680 = vpack.c.b16 %v6168, %v6152
        %v8681 = vpack.c.b16 %v6169, %v6153
        %v8682 = vpack.c.b16 %v6170, %v6154
        %v8683 = vpack.c.b16 %v6171, %v6155
        %v8684 = vpack.c.b16 %v6172, %v6156
        %v8685 = vpack.c.b16 %v6173, %v6157
        %v8686 = vpack.c.b16 %v6174, %v6158
        %v8687 = vpack.c.b16 %v6175, %v6159
        %v8688 = vpack.c.b16 %v6176, %v6160
        %v8689 = vpack.c.b16 %v6177, %v6161
        %v8690 = vpack.c.b16 %v6178, %v6162
        %v8691 = vpack.c.b16 %v6179, %v6163
        %v8692 = vpack.c.b16 %v6180, %v6164
        %v8693 = vpack.c.b16 %v6181, %v6165
        %v8694 = vpack.c.b16 %v6198, %v6182
        %v8695 = vpack.c.b16 %v6199, %v6183
        %v8696 = vpack.c.b16 %v6200, %v6184
        %v8697 = vpack.c.b16 %v6201, %v6185
        %v8698 = vpack.c.b16 %v6202, %v6186
        %v8699 = vpack.c.b16 %v6203, %v6187
        %v8700 = vpack.c.b16 %v6204, %v6188
        %v8701 = vpack.c.b16 %v6205, %v6189
        %v8702 = vpack.c.b16 %v6206, %v6190
        %v8703 = vpack.c.b16 %v6207, %v6191
        %v8704 = vpack.c.b16 %v6208, %v6192
        %v8705 = vpack.c.b16 %v6209, %v6193
        %v8706 = vpack.c.b16 %v6210, %v6194
        %v8707 = vpack.c.b16 %v6211, %v6195
        %v8708 = vpack.c.b16 %v6212, %v6196
        %v8709 = vpack.c.b16 %v6213, %v6197
        %v8710 = vpack.c.b16 %v6230, %v6214
        %v8711 = vpack.c.b16 %v6231, %v6215
        %v8712 = vpack.c.b16 %v6232, %v6216
        %v8713 = vpack.c.b16 %v6233, %v6217
        %v8714 = vpack.c.b16 %v6234, %v6218
        %v8715 = vpack.c.b16 %v6235, %v6219
        %v8716 = vpack.c.b16 %v6236, %v6220
        %v8717 = vpack.c.b16 %v6237, %v6221
        %v8718 = vpack.c.b16 %v6238, %v6222
        %v8719 = vpack.c.b16 %v6239, %v6223
        %v8720 = vpack.c.b16 %v6240, %v6224
        %v8721 = vpack.c.b16 %v6241, %v6225
        %v8722 = vpack.c.b16 %v6242, %v6226
        %v8723 = vpack.c.b16 %v6243, %v6227
        %v8724 = vpack.c.b16 %v6244, %v6228
        %v8725 = vpack.c.b16 %v6245, %v6229
        %v8726 = vpack.c.b16 %v6262, %v6246
        %v8727 = vpack.c.b16 %v6263, %v6247
        %v8728 = vpack.c.b16 %v6264, %v6248
        %v8729 = vpack.c.b16 %v6265, %v6249
        %v8730 = vpack.c.b16 %v6266, %v6250
        %v8731 = vpack.c.b16 %v6267, %v6251
        %v8732 = vpack.c.b16 %v6268, %v6252
        %v8733 = vpack.c.b16 %v6269, %v6253
        %v8734 = vpack.c.b16 %v6270, %v6254
        %v8735 = vpack.c.b16 %v6271, %v6255
        %v8736 = vpack.c.b16 %v6272, %v6256
        %v8737 = vpack.c.b16 %v6273, %v6257
        %v8738 = vpack.c.b16 %v6274, %v6258
        %v8739 = vpack.c.b16 %v6275, %v6259
        %v8740 = vpack.c.b16 %v6276, %v6260
        %v8741 = vpack.c.b16 %v6277, %v6261
        %v8742 = vpack.c.b16 %v6294, %v6278
        %v8743 = vpack.c.b16 %v6295, %v6279
        %v8744 = vpack.c.b16 %v6296, %v6280
        %v8745 = vpack.c.b16 %v6297, %v6281
        %v8746 = vpack.c.b16 %v6298, %v6282
        %v8747 = vpack.c.b16 %v6299, %v6283
        %v8748 = vpack.c.b16 %v6300, %v6284
        %v8749 = vpack.c.b16 %v6301, %v6285
        %v8750 = vpack.c.b16 %v6302, %v6286
        %v8751 = vpack.c.b16 %v6303, %v6287
        %v8752 = vpack.c.b16 %v6304, %v6288
        %v8753 = vpack.c.b16 %v6305, %v6289
        %v8754 = vpack.c.b16 %v6306, %v6290
        %v8755 = vpack.c.b16 %v6307, %v6291
        %v8756 = vpack.c.b16 %v6308, %v6292
        %v8757 = vpack.c.b16 %v6309, %v6293
        %v8758 = vpack.c.b16 %v6326, %v6310
        %v8759 = vpack.c.b16 %v6327, %v6311
        %v8760 = vpack.c.b16 %v6328, %v6312
        %v8761 = vpack.c.b16 %v6329, %v6313
        %v8762 = vpack.c.b16 %v6330, %v6314
        %v8763 = vpack.c.b16 %v6331, %v6315
        %v8764 = vpack.c.b16 %v6332, %v6316
        %v8765 = vpack.c.b16 %v6333, %v6317
        %v8766 = vpack.c.b16 %v6334, %v6318
        %v8767 = vpack.c.b16 %v6335, %v6319
        %v8768 = vpack.c.b16 %v6336, %v6320
        %v8769 = vpack.c.b16 %v6337, %v6321
        %v8770 = vpack.c.b16 %v6338, %v6322
        %v8771 = vpack.c.b16 %v6339, %v6323
        %v8772 = vpack.c.b16 %v6340, %v6324
        %v8773 = vpack.c.b16 %v6341, %v6325
        %v8774 = vpack.c.b16 %v6358, %v6342
        %v8775 = vpack.c.b16 %v6359, %v6343
        %v8776 = vpack.c.b16 %v6360, %v6344
        %v8777 = vpack.c.b16 %v6361, %v6345
        %v8778 = vpack.c.b16 %v6362, %v6346
        %v8779 = vpack.c.b16 %v6363, %v6347
        %v8780 = vpack.c.b16 %v6364, %v6348
        %v8781 = vpack.c.b16 %v6365, %v6349
        %v8782 = vpack.c.b16 %v6366, %v6350
        %v8783 = vpack.c.b16 %v6367, %v6351
        %v8784 = vpack.c.b16 %v6368, %v6352
        %v8785 = vpack.c.b16 %v6369, %v6353
        %v8786 = vpack.c.b16 %v6370, %v6354
        %v8787 = vpack.c.b16 %v6371, %v6355
        %v8788 = vpack.c.b16 %v6372, %v6356
        %v8789 = vpack.c.b16 %v6373, %v6357
        %v8790 = vpack.c.b16 %v6390, %v6374
        %v8791 = vpack.c.b16 %v6391, %v6375
        %v8792 = vpack.c.b16 %v6392, %v6376
        %v8793 = vpack.c.b16 %v6393, %v6377
        %v8794 = vpack.c.b16 %v6394, %v6378
        %v8795 = vpack.c.b16 %v6395, %v6379
        %v8796 = vpack.c.b16 %v6396, %v6380
        %v8797 = vpack.c.b16 %v6397, %v6381
        %v8798 = vpack.c.b16 %v6398, %v6382
        %v8799 = vpack.c.b16 %v6399, %v6383
        %v8800 = vpack.c.b16 %v6400, %v6384
        %v8801 = vpack.c.b16 %v6401, %v6385
        %v8802 = vpack.c.b16 %v6402, %v6386
        %v8803 = vpack.c.b16 %v6403, %v6387
        %v8804 = vpack.c.b16 %v6404, %v6388
        %v8805 = vpack.c.b16 %v6405, %v6389
        %v8806 = vpack.c.b16 %v6422, %v6406
        %v8807 = vpack.c.b16 %v6423, %v6407
        %v8808 = vpack.c.b16 %v6424, %v6408
        %v8809 = vpack.c.b16 %v6425, %v6409
        %v8810 = vpack.c.b16 %v6426, %v6410
        %v8811 = vpack.c.b16 %v6427, %v6411
        %v8812 = vpack.c.b16 %v6428, %v6412
        %v8813 = vpack.c.b16 %v6429, %v6413
        %v8814 = vpack.c.b16 %v6430, %v6414
        %v8815 = vpack.c.b16 %v6431, %v6415
        %v8816 = vpack.c.b16 %v6432, %v6416
        %v8817 = vpack.c.b16 %v6433, %v6417
        %v8818 = vpack.c.b16 %v6434, %v6418
        %v8819 = vpack.c.b16 %v6435, %v6419
        %v8820 = vpack.c.b16 %v6436, %v6420
        %v8821 = vpack.c.b16 %v6437, %v6421
        %v8822 = vpack.c.b16 %v6454, %v6438
        %v8823 = vpack.c.b16 %v6455, %v6439
        %v8824 = vpack.c.b16 %v6456, %v6440
        %v8825 = vpack.c.b16 %v6457, %v6441
        %v8826 = vpack.c.b16 %v6458, %v6442
        %v8827 = vpack.c.b16 %v6459, %v6443
        %v8828 = vpack.c.b16 %v6460, %v6444
        %v8829 = vpack.c.b16 %v6461, %v6445
        %v8830 = vpack.c.b16 %v6462, %v6446
        %v8831 = vpack.c.b16 %v6463, %v6447
        %v8832 = vpack.c.b16 %v6464, %v6448
        %v8833 = vpack.c.b16 %v6465, %v6449
        %v8834 = vpack.c.b16 %v6466, %v6450
        %v8835 = vpack.c.b16 %v6467, %v6451
        %v8836 = vpack.c.b16 %v6468, %v6452
        %v8837 = vpack.c.b16 %v6469, %v6453
        %v8838 = vpack.c.b16 %v6486, %v6470
        %v8839 = vpack.c.b16 %v6487, %v6471
        %v8840 = vpack.c.b16 %v6488, %v6472
        %v8841 = vpack.c.b16 %v6489, %v6473
        %v8842 = vpack.c.b16 %v6490, %v6474
        %v8843 = vpack.c.b16 %v6491, %v6475
        %v8844 = vpack.c.b16 %v6492, %v6476
        %v8845 = vpack.c.b16 %v6493, %v6477
        %v8846 = vpack.c.b16 %v6494, %v6478
        %v8847 = vpack.c.b16 %v6495, %v6479
        %v8848 = vpack.c.b16 %v6496, %v6480
        %v8849 = vpack.c.b16 %v6497, %v6481
        %v8850 = vpack.c.b16 %v6498, %v6482
        %v8851 = vpack.c.b16 %v6499, %v6483
        %v8852 = vpack.c.b16 %v6500, %v6484
        %v8853 = vpack.c.b16 %v6501, %v6485
        %v8854 = vpack.c.b16 %v6518, %v6502
        %v8855 = vpack.c.b16 %v6519, %v6503
        %v8856 = vpack.c.b16 %v6520, %v6504
        %v8857 = vpack.c.b16 %v6521, %v6505
        %v8858 = vpack.c.b16 %v6522, %v6506
        %v8859 = vpack.c.b16 %v6523, %v6507
        %v8860 = vpack.c.b16 %v6524, %v6508
        %v8861 = vpack.c.b16 %v6525, %v6509
        %v8862 = vpack.c.b16 %v6526, %v6510
        %v8863 = vpack.c.b16 %v6527, %v6511
        %v8864 = vpack.c.b16 %v6528, %v6512
        %v8865 = vpack.c.b16 %v6529, %v6513
        %v8866 = vpack.c.b16 %v6530, %v6514
        %v8867 = vpack.c.b16 %v6531, %v6515
        %v8868 = vpack.c.b16 %v6532, %v6516
        %v8869 = vpack.c.b16 %v6533, %v6517
        %v8870 = vpack.c.b16 %v6550, %v6534
        %v8871 = vpack.c.b16 %v6551, %v6535
        %v8872 = vpack.c.b16 %v6552, %v6536
        %v8873 = vpack.c.b16 %v6553, %v6537
        %v8874 = vpack.c.b16 %v6554, %v6538
        %v8875 = vpack.c.b16 %v6555, %v6539
        %v8876 = vpack.c.b16 %v6556, %v6540
        %v8877 = vpack.c.b16 %v6557, %v6541
        %v8878 = vpack.c.b16 %v6558, %v6542
        %v8879 = vpack.c.b16 %v6559, %v6543
        %v8880 = vpack.c.b16 %v6560, %v6544
        %v8881 = vpack.c.b16 %v6561, %v6545
        %v8882 = vpack.c.b16 %v6562, %v6546
        %v8883 = vpack.c.b16 %v6563, %v6547
        %v8884 = vpack.c.b16 %v6564, %v6548
        %v8885 = vpack.c.b16 %v6565, %v6549
        %v8886 = vpack.c.b16 %v6582, %v6566
        %v8887 = vpack.c.b16 %v6583, %v6567
        %v8888 = vpack.c.b16 %v6584, %v6568
        %v8889 = vpack.c.b16 %v6585, %v6569
        %v8890 = vpack.c.b16 %v6586, %v6570
        %v8891 = vpack.c.b16 %v6587, %v6571
        %v8892 = vpack.c.b16 %v6588, %v6572
        %v8893 = vpack.c.b16 %v6589, %v6573
        %v8894 = vpack.c.b16 %v6590, %v6574
        %v8895 = vpack.c.b16 %v6591, %v6575
        %v8896 = vpack.c.b16 %v6592, %v6576
        %v8897 = vpack.c.b16 %v6593, %v6577
        %v8898 = vpack.c.b16 %v6594, %v6578
        %v8899 = vpack.c.b16 %v6595, %v6579
        %v8900 = vpack.c.b16 %v6596, %v6580
        %v8901 = vpack.c.b16 %v6597, %v6581
        %v8902 = vpack.c.b16 %v6614, %v6598
        %v8903 = vpack.c.b16 %v6615, %v6599
        %v8904 = vpack.c.b16 %v6616, %v6600
        %v8905 = vpack.c.b16 %v6617, %v6601
        %v8906 = vpack.c.b16 %v6618, %v6602
        %v8907 = vpack.c.b16 %v6619, %v6603
        %v8908 = vpack.c.b16 %v6620, %v6604
        %v8909 = vpack.c.b16 %v6621, %v6605
        %v8910 = vpack.c.b16 %v6622, %v6606
        %v8911 = vpack.c.b16 %v6623, %v6607
        %v8912 = vpack.c.b16 %v6624, %v6608
        %v8913 = vpack.c.b16 %v6625, %v6609
        %v8914 = vpack.c.b16 %v6626, %v6610
        %v8915 = vpack.c.b16 %v6627, %v6611
        %v8916 = vpack.c.b16 %v6628, %v6612
        %v8917 = vpack.c.b16 %v6629, %v6613
        %v8918 = vpack.c.b16 %v6646, %v6630
        %v8919 = vpack.c.b16 %v6647, %v6631
        %v8920 = vpack.c.b16 %v6648, %v6632
        %v8921 = vpack.c.b16 %v6649, %v6633
        %v8922 = vpack.c.b16 %v6650, %v6634
        %v8923 = vpack.c.b16 %v6651, %v6635
        %v8924 = vpack.c.b16 %v6652, %v6636
        %v8925 = vpack.c.b16 %v6653, %v6637
        %v8926 = vpack.c.b16 %v6654, %v6638
        %v8927 = vpack.c.b16 %v6655, %v6639
        %v8928 = vpack.c.b16 %v6656, %v6640
        %v8929 = vpack.c.b16 %v6657, %v6641
        %v8930 = vpack.c.b16 %v6658, %v6642
        %v8931 = vpack.c.b16 %v6659, %v6643
        %v8932 = vpack.c.b16 %v6660, %v6644
        %v8933 = vpack.c.b16 %v6661, %v6645
        %v8934 = vpack.c.b16 %v6678, %v6662
        %v8935 = vpack.c.b16 %v6679, %v6663
        %v8936 = vpack.c.b16 %v6680, %v6664
        %v8937 = vpack.c.b16 %v6681, %v6665
        %v8938 = vpack.c.b16 %v6682, %v6666
        %v8939 = vpack.c.b16 %v6683, %v6667
        %v8940 = vpack.c.b16 %v6684, %v6668
        %v8941 = vpack.c.b16 %v6685, %v6669
        %v8942 = vpack.c.b16 %v6686, %v6670
        %v8943 = vpack.c.b16 %v6687, %v6671
        %v8944 = vpack.c.b16 %v6688, %v6672
        %v8945 = vpack.c.b16 %v6689, %v6673
        %v8946 = vpack.c.b16 %v6690, %v6674
        %v8947 = vpack.c.b16 %v6691, %v6675
        %v8948 = vpack.c.b16 %v6692, %v6676
        %v8949 = vpack.c.b16 %v6693, %v6677
        %v8950 = vpack.c.b16 %v6710, %v6694
        %v8951 = vpack.c.b16 %v6711, %v6695
        %v8952 = vpack.c.b16 %v6712, %v6696
        %v8953 = vpack.c.b16 %v6713, %v6697
        %v8954 = vpack.c.b16 %v6714, %v6698
        %v8955 = vpack.c.b16 %v6715, %v6699
        %v8956 = vpack.c.b16 %v6716, %v6700
        %v8957 = vpack.c.b16 %v6717, %v6701
        %v8958 = vpack.c.b16 %v6718, %v6702
        %v8959 = vpack.c.b16 %v6719, %v6703
        %v8960 = vpack.c.b16 %v6720, %v6704
        %v8961 = vpack.c.b16 %v6721, %v6705
        %v8962 = vpack.c.b16 %v6722, %v6706
        %v8963 = vpack.c.b16 %v6723, %v6707
        %v8964 = vpack.c.b16 %v6724, %v6708
        %v8965 = vpack.c.b16 %v6725, %v6709
        %v8966 = vpack.c.b16 %v6742, %v6726
        %v8967 = vpack.c.b16 %v6743, %v6727
        %v8968 = vpack.c.b16 %v6744, %v6728
        %v8969 = vpack.c.b16 %v6745, %v6729
        %v8970 = vpack.c.b16 %v6746, %v6730
        %v8971 = vpack.c.b16 %v6747, %v6731
        %v8972 = vpack.c.b16 %v6748, %v6732
        %v8973 = vpack.c.b16 %v6749, %v6733
        %v8974 = vpack.c.b16 %v6750, %v6734
        %v8975 = vpack.c.b16 %v6751, %v6735
        %v8976 = vpack.c.b16 %v6752, %v6736
        %v8977 = vpack.c.b16 %v6753, %v6737
        %v8978 = vpack.c.b16 %v6754, %v6738
        %v8979 = vpack.c.b16 %v6755, %v6739
        %v8980 = vpack.c.b16 %v6756, %v6740
        %v8981 = vpack.c.b16 %v6757, %v6741
        %v8982 = vpack.c.b16 %v6774, %v6758
        %v8983 = vpack.c.b16 %v6775, %v6759
        %v8984 = vpack.c.b16 %v6776, %v6760
        %v8985 = vpack.c.b16 %v6777, %v6761
        %v8986 = vpack.c.b16 %v6778, %v6762
        %v8987 = vpack.c.b16 %v6779, %v6763
        %v8988 = vpack.c.b16 %v6780, %v6764
        %v8989 = vpack.c.b16 %v6781, %v6765
        %v8990 = vpack.c.b16 %v6782, %v6766
        %v8991 = vpack.c.b16 %v6783, %v6767
        %v8992 = vpack.c.b16 %v6784, %v6768
        %v8993 = vpack.c.b16 %v6785, %v6769
        %v8994 = vpack.c.b16 %v6786, %v6770
        %v8995 = vpack.c.b16 %v6787, %v6771
        %v8996 = vpack.c.b16 %v6788, %v6772
        %v8997 = vpack.c.b16 %v6789, %v6773
        %v8998 = vpack.c.b16 %v6806, %v6790
        %v8999 = vpack.c.b16 %v6807, %v6791
        %v9000 = vpack.c.b16 %v6808, %v6792
        %v9001 = vpack.c.b16 %v6809, %v6793
        %v9002 = vpack.c.b16 %v6810, %v6794
        %v9003 = vpack.c.b16 %v6811, %v6795
        %v9004 = vpack.c.b16 %v6812, %v6796
        %v9005 = vpack.c.b16 %v6813, %v6797
        %v9006 = vpack.c.b16 %v6814, %v6798
        %v9007 = vpack.c.b16 %v6815, %v6799
        %v9008 = vpack.c.b16 %v6816, %v6800
        %v9009 = vpack.c.b16 %v6817, %v6801
        %v9010 = vpack.c.b16 %v6818, %v6802
        %v9011 = vpack.c.b16 %v6819, %v6803
        %v9012 = vpack.c.b16 %v6820, %v6804
        %v9013 = vpack.c.b16 %v6821, %v6805
        %v9014 = vpack.c.b16 %v6838, %v6822
        %v9015 = vpack.c.b16 %v6839, %v6823
        %v9016 = vpack.c.b16 %v6840, %v6824
        %v9017 = vpack.c.b16 %v6841, %v6825
        %v9018 = vpack.c.b16 %v6842, %v6826
        %v9019 = vpack.c.b16 %v6843, %v6827
        %v9020 = vpack.c.b16 %v6844, %v6828
        %v9021 = vpack.c.b16 %v6845, %v6829
        %v9022 = vpack.c.b16 %v6846, %v6830
        %v9023 = vpack.c.b16 %v6847, %v6831
        %v9024 = vpack.c.b16 %v6848, %v6832
        %v9025 = vpack.c.b16 %v6849, %v6833
        %v9026 = vpack.c.b16 %v6850, %v6834
        %v9027 = vpack.c.b16 %v6851, %v6835
        %v9028 = vpack.c.b16 %v6852, %v6836
        %v9029 = vpack.c.b16 %v6853, %v6837
        %v9030 = vpack.c.b16 %v6870, %v6854
        %v9031 = vpack.c.b16 %v6871, %v6855
        %v9032 = vpack.c.b16 %v6872, %v6856
        %v9033 = vpack.c.b16 %v6873, %v6857
        %v9034 = vpack.c.b16 %v6874, %v6858
        %v9035 = vpack.c.b16 %v6875, %v6859
        %v9036 = vpack.c.b16 %v6876, %v6860
        %v9037 = vpack.c.b16 %v6877, %v6861
        %v9038 = vpack.c.b16 %v6878, %v6862
        %v9039 = vpack.c.b16 %v6879, %v6863
        %v9040 = vpack.c.b16 %v6880, %v6864
        %v9041 = vpack.c.b16 %v6881, %v6865
        %v9042 = vpack.c.b16 %v6882, %v6866
        %v9043 = vpack.c.b16 %v6883, %v6867
        %v9044 = vpack.c.b16 %v6884, %v6868
        %v9045 = vpack.c.b16 %v6885, %v6869
        %v9046 = vpack.c.b16 %v6902, %v6886
        %v9047 = vpack.c.b16 %v6903, %v6887
        %v9048 = vpack.c.b16 %v6904, %v6888
        %v9049 = vpack.c.b16 %v6905, %v6889
        %v9050 = vpack.c.b16 %v6906, %v6890
        %v9051 = vpack.c.b16 %v6907, %v6891
        %v9052 = vpack.c.b16 %v6908, %v6892
        %v9053 = vpack.c.b16 %v6909, %v6893
        %v9054 = vpack.c.b16 %v6910, %v6894
        %v9055 = vpack.c.b16 %v6911, %v6895
        %v9056 = vpack.c.b16 %v6912, %v6896
        %v9057 = vpack.c.b16 %v6913, %v6897
        %v9058 = vpack.c.b16 %v6914, %v6898
        %v9059 = vpack.c.b16 %v6915, %v6899
        %v9060 = vpack.c.b16 %v6916, %v6900
        %v9061 = vpack.c.b16 %v6917, %v6901
        %v9062 = vpack.c.b16 %v6934, %v6918
        %v9063 = vpack.c.b16 %v6935, %v6919
        %v9064 = vpack.c.b16 %v6936, %v6920
        %v9065 = vpack.c.b16 %v6937, %v6921
        %v9066 = vpack.c.b16 %v6938, %v6922
        %v9067 = vpack.c.b16 %v6939, %v6923
        %v9068 = vpack.c.b16 %v6940, %v6924
        %v9069 = vpack.c.b16 %v6941, %v6925
        %v9070 = vpack.c.b16 %v6942, %v6926
        %v9071 = vpack.c.b16 %v6943, %v6927
        %v9072 = vpack.c.b16 %v6944, %v6928
        %v9073 = vpack.c.b16 %v6945, %v6929
        %v9074 = vpack.c.b16 %v6946, %v6930
        %v9075 = vpack.c.b16 %v6947, %v6931
        %v9076 = vpack.c.b16 %v6948, %v6932
        %v9077 = vpack.c.b16 %v6949, %v6933
        %v9078 = vpack.c.b16 %v6966, %v6950
        %v9079 = vpack.c.b16 %v6967, %v6951
        %v9080 = vpack.c.b16 %v6968, %v6952
        %v9081 = vpack.c.b16 %v6969, %v6953
        %v9082 = vpack.c.b16 %v6970, %v6954
        %v9083 = vpack.c.b16 %v6971, %v6955
        %v9084 = vpack.c.b16 %v6972, %v6956
        %v9085 = vpack.c.b16 %v6973, %v6957
        %v9086 = vpack.c.b16 %v6974, %v6958
        %v9087 = vpack.c.b16 %v6975, %v6959
        %v9088 = vpack.c.b16 %v6976, %v6960
        %v9089 = vpack.c.b16 %v6977, %v6961
        %v9090 = vpack.c.b16 %v6978, %v6962
        %v9091 = vpack.c.b16 %v6979, %v6963
        %v9092 = vpack.c.b16 %v6980, %v6964
        %v9093 = vpack.c.b16 %v6981, %v6965
        %v9094 = vpack.c.b16 %v6998, %v6982
        %v9095 = vpack.c.b16 %v6999, %v6983
        %v9096 = vpack.c.b16 %v7000, %v6984
        %v9097 = vpack.c.b16 %v7001, %v6985
        %v9098 = vpack.c.b16 %v7002, %v6986
        %v9099 = vpack.c.b16 %v7003, %v6987
        %v9100 = vpack.c.b16 %v7004, %v6988
        %v9101 = vpack.c.b16 %v7005, %v6989
        %v9102 = vpack.c.b16 %v7006, %v6990
        %v9103 = vpack.c.b16 %v7007, %v6991
        %v9104 = vpack.c.b16 %v7008, %v6992
        %v9105 = vpack.c.b16 %v7009, %v6993
        %v9106 = vpack.c.b16 %v7010, %v6994
        %v9107 = vpack.c.b16 %v7011, %v6995
        %v9108 = vpack.c.b16 %v7012, %v6996
        %v9109 = vpack.c.b16 %v7013, %v6997
        %v9110 = vpack.c.b16 %v7030, %v7014
        %v9111 = vpack.c.b16 %v7031, %v7015
        %v9112 = vpack.c.b16 %v7032, %v7016
        %v9113 = vpack.c.b16 %v7033, %v7017
        %v9114 = vpack.c.b16 %v7034, %v7018
        %v9115 = vpack.c.b16 %v7035, %v7019
        %v9116 = vpack.c.b16 %v7036, %v7020
        %v9117 = vpack.c.b16 %v7037, %v7021
        %v9118 = vpack.c.b16 %v7038, %v7022
        %v9119 = vpack.c.b16 %v7039, %v7023
        %v9120 = vpack.c.b16 %v7040, %v7024
        %v9121 = vpack.c.b16 %v7041, %v7025
        %v9122 = vpack.c.b16 %v7042, %v7026
        %v9123 = vpack.c.b16 %v7043, %v7027
        %v9124 = vpack.c.b16 %v7044, %v7028
        %v9125 = vpack.c.b16 %v7045, %v7029
        %v9126 = vpack.c.b16 %v7062, %v7046
        %v9127 = vpack.c.b16 %v7063, %v7047
        %v9128 = vpack.c.b16 %v7064, %v7048
        %v9129 = vpack.c.b16 %v7065, %v7049
        %v9130 = vpack.c.b16 %v7066, %v7050
        %v9131 = vpack.c.b16 %v7067, %v7051
        %v9132 = vpack.c.b16 %v7068, %v7052
        %v9133 = vpack.c.b16 %v7069, %v7053
        %v9134 = vpack.c.b16 %v7070, %v7054
        %v9135 = vpack.c.b16 %v7071, %v7055
        %v9136 = vpack.c.b16 %v7072, %v7056
        %v9137 = vpack.c.b16 %v7073, %v7057
        %v9138 = vpack.c.b16 %v7074, %v7058
        %v9139 = vpack.c.b16 %v7075, %v7059
        %v9140 = vpack.c.b16 %v7076, %v7060
        %v9141 = vpack.c.b16 %v7077, %v7061
        %v9142 = vpack.c.b16 %v7094, %v7078
        %v9143 = vpack.c.b16 %v7095, %v7079
        %v9144 = vpack.c.b16 %v7096, %v7080
        %v9145 = vpack.c.b16 %v7097, %v7081
        %v9146 = vpack.c.b16 %v7098, %v7082
        %v9147 = vpack.c.b16 %v7099, %v7083
        %v9148 = vpack.c.b16 %v7100, %v7084
        %v9149 = vpack.c.b16 %v7101, %v7085
        %v9150 = vpack.c.b16 %v7102, %v7086
        %v9151 = vpack.c.b16 %v7103, %v7087
        %v9152 = vpack.c.b16 %v7104, %v7088
        %v9153 = vpack.c.b16 %v7105, %v7089
        %v9154 = vpack.c.b16 %v7106, %v7090
        %v9155 = vpack.c.b16 %v7107, %v7091
        %v9156 = vpack.c.b16 %v7108, %v7092
        %v9157 = vpack.c.b16 %v7109, %v7093
        %v9158 = vpack.c.b16 %v7126, %v7110
        %v9159 = vpack.c.b16 %v7127, %v7111
        %v9160 = vpack.c.b16 %v7128, %v7112
        %v9161 = vpack.c.b16 %v7129, %v7113
        %v9162 = vpack.c.b16 %v7130, %v7114
        %v9163 = vpack.c.b16 %v7131, %v7115
        %v9164 = vpack.c.b16 %v7132, %v7116
        %v9165 = vpack.c.b16 %v7133, %v7117
        %v9166 = vpack.c.b16 %v7134, %v7118
        %v9167 = vpack.c.b16 %v7135, %v7119
        %v9168 = vpack.c.b16 %v7136, %v7120
        %v9169 = vpack.c.b16 %v7137, %v7121
        %v9170 = vpack.c.b16 %v7138, %v7122
        %v9171 = vpack.c.b16 %v7139, %v7123
        %v9172 = vpack.c.b16 %v7140, %v7124
        %v9173 = vpack.c.b16 %v7141, %v7125
        %v9174 = vpack.c.b16 %v7158, %v7142
        %v9175 = vpack.c.b16 %v7159, %v7143
        %v9176 = vpack.c.b16 %v7160, %v7144
        %v9177 = vpack.c.b16 %v7161, %v7145
        %v9178 = vpack.c.b16 %v7162, %v7146
        %v9179 = vpack.c.b16 %v7163, %v7147
        %v9180 = vpack.c.b16 %v7164, %v7148
        %v9181 = vpack.c.b16 %v7165, %v7149
        %v9182 = vpack.c.b16 %v7166, %v7150
        %v9183 = vpack.c.b16 %v7167, %v7151
        %v9184 = vpack.c.b16 %v7168, %v7152
        %v9185 = vpack.c.b16 %v7169, %v7153
        %v9186 = vpack.c.b16 %v7170, %v7154
        %v9187 = vpack.c.b16 %v7171, %v7155
        %v9188 = vpack.c.b16 %v7172, %v7156
        %v9189 = vpack.c.b16 %v7173, %v7157
        %v9190 = vpack.c.b16 %v7190, %v7174
        %v9191 = vpack.c.b16 %v7191, %v7175
        %v9192 = vpack.c.b16 %v7192, %v7176
        %v9193 = vpack.c.b16 %v7193, %v7177
        %v9194 = vpack.c.b16 %v7194, %v7178
        %v9195 = vpack.c.b16 %v7195, %v7179
        %v9196 = vpack.c.b16 %v7196, %v7180
        %v9197 = vpack.c.b16 %v7197, %v7181
        %v9198 = vpack.c.b16 %v7198, %v7182
        %v9199 = vpack.c.b16 %v7199, %v7183
        %v9200 = vpack.c.b16 %v7200, %v7184
        %v9201 = vpack.c.b16 %v7201, %v7185
        %v9202 = vpack.c.b16 %v7202, %v7186
        %v9203 = vpack.c.b16 %v7203, %v7187
        %v9204 = vpack.c.b16 %v7204, %v7188
        %v9205 = vpack.c.b16 %v7205, %v7189
        %v9206 = vpack.c.b16 %v7222, %v7206
        %v9207 = vpack.c.b16 %v7223, %v7207
        %v9208 = vpack.c.b16 %v7224, %v7208
        %v9209 = vpack.c.b16 %v7225, %v7209
        %v9210 = vpack.c.b16 %v7226, %v7210
        %v9211 = vpack.c.b16 %v7227, %v7211
        %v9212 = vpack.c.b16 %v7228, %v7212
        %v9213 = vpack.c.b16 %v7229, %v7213
        %v9214 = vpack.c.b16 %v7230, %v7214
        %v9215 = vpack.c.b16 %v7231, %v7215
        %v9216 = vpack.c.b16 %v7232, %v7216
        %v9217 = vpack.c.b16 %v7233, %v7217
        %v9218 = vpack.c.b16 %v7234, %v7218
        %v9219 = vpack.c.b16 %v7235, %v7219
        %v9220 = vpack.c.b16 %v7236, %v7220
        %v9221 = vpack.c.b16 %v7237, %v7221
        %v9222 = vpack.c.b16 %v7254, %v7238
        %v9223 = vpack.c.b16 %v7255, %v7239
        %v9224 = vpack.c.b16 %v7256, %v7240
        %v9225 = vpack.c.b16 %v7257, %v7241
        %v9226 = vpack.c.b16 %v7258, %v7242
        %v9227 = vpack.c.b16 %v7259, %v7243
        %v9228 = vpack.c.b16 %v7260, %v7244
        %v9229 = vpack.c.b16 %v7261, %v7245
        %v9230 = vpack.c.b16 %v7262, %v7246
        %v9231 = vpack.c.b16 %v7263, %v7247
        %v9232 = vpack.c.b16 %v7264, %v7248
        %v9233 = vpack.c.b16 %v7265, %v7249
        %v9234 = vpack.c.b16 %v7266, %v7250
        %v9235 = vpack.c.b16 %v7267, %v7251
        %v9236 = vpack.c.b16 %v7268, %v7252
        %v9237 = vpack.c.b16 %v7269, %v7253
        %v9238 = vpack.c.b16 %v7286, %v7270
        %v9239 = vpack.c.b16 %v7287, %v7271
        %v9240 = vpack.c.b16 %v7288, %v7272
        %v9241 = vpack.c.b16 %v7289, %v7273
        %v9242 = vpack.c.b16 %v7290, %v7274
        %v9243 = vpack.c.b16 %v7291, %v7275
        %v9244 = vpack.c.b16 %v7292, %v7276
        %v9245 = vpack.c.b16 %v7293, %v7277
        %v9246 = vpack.c.b16 %v7294, %v7278
        %v9247 = vpack.c.b16 %v7295, %v7279
        %v9248 = vpack.c.b16 %v7296, %v7280
        %v9249 = vpack.c.b16 %v7297, %v7281
        %v9250 = vpack.c.b16 %v7298, %v7282
        %v9251 = vpack.c.b16 %v7299, %v7283
        %v9252 = vpack.c.b16 %v7300, %v7284
        %v9253 = vpack.c.b16 %v7301, %v7285
        %v9254 = vpack.c.b16 %v7318, %v7302
        %v9255 = vpack.c.b16 %v7319, %v7303
        %v9256 = vpack.c.b16 %v7320, %v7304
        %v9257 = vpack.c.b16 %v7321, %v7305
        %v9258 = vpack.c.b16 %v7322, %v7306
        %v9259 = vpack.c.b16 %v7323, %v7307
        %v9260 = vpack.c.b16 %v7324, %v7308
        %v9261 = vpack.c.b16 %v7325, %v7309
        %v9262 = vpack.c.b16 %v7326, %v7310
        %v9263 = vpack.c.b16 %v7327, %v7311
        %v9264 = vpack.c.b16 %v7328, %v7312
        %v9265 = vpack.c.b16 %v7329, %v7313
        %v9266 = vpack.c.b16 %v7330, %v7314
        %v9267 = vpack.c.b16 %v7331, %v7315
        %v9268 = vpack.c.b16 %v7332, %v7316
        %v9269 = vpack.c.b16 %v7333, %v7317
        %v9270 = vpack.c.b16 %v7350, %v7334
        %v9271 = vpack.c.b16 %v7351, %v7335
        %v9272 = vpack.c.b16 %v7352, %v7336
        %v9273 = vpack.c.b16 %v7353, %v7337
        %v9274 = vpack.c.b16 %v7354, %v7338
        %v9275 = vpack.c.b16 %v7355, %v7339
        %v9276 = vpack.c.b16 %v7356, %v7340
        %v9277 = vpack.c.b16 %v7357, %v7341
        %v9278 = vpack.c.b16 %v7358, %v7342
        %v9279 = vpack.c.b16 %v7359, %v7343
        %v9280 = vpack.c.b16 %v7360, %v7344
        %v9281 = vpack.c.b16 %v7361, %v7345
        %v9282 = vpack.c.b16 %v7362, %v7346
        %v9283 = vpack.c.b16 %v7363, %v7347
        %v9284 = vpack.c.b16 %v7364, %v7348
        %v9285 = vpack.c.b16 %v7365, %v7349
        %v9286 = vpack.c.b16 %v7382, %v7366
        %v9287 = vpack.c.b16 %v7383, %v7367
        %v9288 = vpack.c.b16 %v7384, %v7368
        %v9289 = vpack.c.b16 %v7385, %v7369
        %v9290 = vpack.c.b16 %v7386, %v7370
        %v9291 = vpack.c.b16 %v7387, %v7371
        %v9292 = vpack.c.b16 %v7388, %v7372
        %v9293 = vpack.c.b16 %v7389, %v7373
        %v9294 = vpack.c.b16 %v7390, %v7374
        %v9295 = vpack.c.b16 %v7391, %v7375
        %v9296 = vpack.c.b16 %v7392, %v7376
        %v9297 = vpack.c.b16 %v7393, %v7377
        %v9298 = vpack.c.b16 %v7394, %v7378
        %v9299 = vpack.c.b16 %v7395, %v7379
        %v9300 = vpack.c.b16 %v7396, %v7380
        %v9301 = vpack.c.b16 %v7397, %v7381
        %v9302 = vpack.c.b16 %v7414, %v7398
        %v9303 = vpack.c.b16 %v7415, %v7399
        %v9304 = vpack.c.b16 %v7416, %v7400
        %v9305 = vpack.c.b16 %v7417, %v7401
        %v9306 = vpack.c.b16 %v7418, %v7402
        %v9307 = vpack.c.b16 %v7419, %v7403
        %v9308 = vpack.c.b16 %v7420, %v7404
        %v9309 = vpack.c.b16 %v7421, %v7405
        %v9310 = vpack.c.b16 %v7422, %v7406
        %v9311 = vpack.c.b16 %v7423, %v7407
        %v9312 = vpack.c.b16 %v7424, %v7408
        %v9313 = vpack.c.b16 %v7425, %v7409
        %v9314 = vpack.c.b16 %v7426, %v7410
        %v9315 = vpack.c.b16 %v7427, %v7411
        %v9316 = vpack.c.b16 %v7428, %v7412
        %v9317 = vpack.c.b16 %v7429, %v7413
        %v9318 = vpack.c.b16 %v7446, %v7430
        %v9319 = vpack.c.b16 %v7447, %v7431
        %v9320 = vpack.c.b16 %v7448, %v7432
        %v9321 = vpack.c.b16 %v7449, %v7433
        %v9322 = vpack.c.b16 %v7450, %v7434
        %v9323 = vpack.c.b16 %v7451, %v7435
        %v9324 = vpack.c.b16 %v7452, %v7436
        %v9325 = vpack.c.b16 %v7453, %v7437
        %v9326 = vpack.c.b16 %v7454, %v7438
        %v9327 = vpack.c.b16 %v7455, %v7439
        %v9328 = vpack.c.b16 %v7456, %v7440
        %v9329 = vpack.c.b16 %v7457, %v7441
        %v9330 = vpack.c.b16 %v7458, %v7442
        %v9331 = vpack.c.b16 %v7459, %v7443
        %v9332 = vpack.c.b16 %v7460, %v7444
        %v9333 = vpack.c.b16 %v7461, %v7445
        %v9334 = vpack.c.b16 %v7478, %v7462
        %v9335 = vpack.c.b16 %v7479, %v7463
        %v9336 = vpack.c.b16 %v7480, %v7464
        %v9337 = vpack.c.b16 %v7481, %v7465
        %v9338 = vpack.c.b16 %v7482, %v7466
        %v9339 = vpack.c.b16 %v7483, %v7467
        %v9340 = vpack.c.b16 %v7484, %v7468
        %v9341 = vpack.c.b16 %v7485, %v7469
        %v9342 = vpack.c.b16 %v7486, %v7470
        %v9343 = vpack.c.b16 %v7487, %v7471
        %v9344 = vpack.c.b16 %v7488, %v7472
        %v9345 = vpack.c.b16 %v7489, %v7473
        %v9346 = vpack.c.b16 %v7490, %v7474
        %v9347 = vpack.c.b16 %v7491, %v7475
        %v9348 = vpack.c.b16 %v7492, %v7476
        %v9349 = vpack.c.b16 %v7493, %v7477
        %v9350 = vpack.c.b16 %v7510, %v7494
        %v9351 = vpack.c.b16 %v7511, %v7495
        %v9352 = vpack.c.b16 %v7512, %v7496
        %v9353 = vpack.c.b16 %v7513, %v7497
        %v9354 = vpack.c.b16 %v7514, %v7498
        %v9355 = vpack.c.b16 %v7515, %v7499
        %v9356 = vpack.c.b16 %v7516, %v7500
        %v9357 = vpack.c.b16 %v7517, %v7501
        %v9358 = vpack.c.b16 %v7518, %v7502
        %v9359 = vpack.c.b16 %v7519, %v7503
        %v9360 = vpack.c.b16 %v7520, %v7504
        %v9361 = vpack.c.b16 %v7521, %v7505
        %v9362 = vpack.c.b16 %v7522, %v7506
        %v9363 = vpack.c.b16 %v7523, %v7507
        %v9364 = vpack.c.b16 %v7524, %v7508
        %v9365 = vpack.c.b16 %v7525, %v7509
        %v9366 = vpack.c.b16 %v7542, %v7526
        %v9367 = vpack.c.b16 %v7543, %v7527
        %v9368 = vpack.c.b16 %v7544, %v7528
        %v9369 = vpack.c.b16 %v7545, %v7529
        %v9370 = vpack.c.b16 %v7546, %v7530
        %v9371 = vpack.c.b16 %v7547, %v7531
        %v9372 = vpack.c.b16 %v7548, %v7532
        %v9373 = vpack.c.b16 %v7549, %v7533
        %v9374 = vpack.c.b16 %v7550, %v7534
        %v9375 = vpack.c.b16 %v7551, %v7535
        %v9376 = vpack.c.b16 %v7552, %v7536
        %v9377 = vpack.c.b16 %v7553, %v7537
        %v9378 = vpack.c.b16 %v7554, %v7538
        %v9379 = vpack.c.b16 %v7555, %v7539
        %v9380 = vpack.c.b16 %v7556, %v7540
        %v9381 = vpack.c.b16 %v7557, %v7541
        %v9382 = vpack.c.b16 %v7574, %v7558
        %v9383 = vpack.c.b16 %v7575, %v7559
        %v9384 = vpack.c.b16 %v7576, %v7560
        %v9385 = vpack.c.b16 %v7577, %v7561
        %v9386 = vpack.c.b16 %v7578, %v7562
        %v9387 = vpack.c.b16 %v7579, %v7563
        %v9388 = vpack.c.b16 %v7580, %v7564
        %v9389 = vpack.c.b16 %v7581, %v7565
        %v9390 = vpack.c.b16 %v7582, %v7566
        %v9391 = vpack.c.b16 %v7583, %v7567
        %v9392 = vpack.c.b16 %v7584, %v7568
        %v9393 = vpack.c.b16 %v7585, %v7569
        %v9394 = vpack.c.b16 %v7586, %v7570
        %v9395 = vpack.c.b16 %v7587, %v7571
        %v9396 = vpack.c.b16 %v7588, %v7572
        %v9397 = vpack.c.b16 %v7589, %v7573
        %v9398 = vpack.c.b16 %v7606, %v7590
        %v9399 = vpack.c.b16 %v7607, %v7591
        %v9400 = vpack.c.b16 %v7608, %v7592
        %v9401 = vpack.c.b16 %v7609, %v7593
        %v9402 = vpack.c.b16 %v7610, %v7594
        %v9403 = vpack.c.b16 %v7611, %v7595
        %v9404 = vpack.c.b16 %v7612, %v7596
        %v9405 = vpack.c.b16 %v7613, %v7597
        %v9406 = vpack.c.b16 %v7614, %v7598
        %v9407 = vpack.c.b16 %v7615, %v7599
        %v9408 = vpack.c.b16 %v7616, %v7600
        %v9409 = vpack.c.b16 %v7617, %v7601
        %v9410 = vpack.c.b16 %v7618, %v7602
        %v9411 = vpack.c.b16 %v7619, %v7603
        %v9412 = vpack.c.b16 %v7620, %v7604
        %v9413 = vpack.c.b16 %v7621, %v7605
        %11206 = vmatprep.subr.bf16.mxu0 %v7735
        %11207 = vmatpush1.bf16.msra.mxu0 %v7734
        %11208 = vmatprep.subr.bf16.mxu0 %v7719
        %11209 = vmatpush1.bf16.msra.mxu0 %v7718
        %11210 = vmatprep.subr.bf16.mxu0 %v7703
        %11211 = vmatpush1.bf16.msra.mxu0 %v7702
        %11212 = vmatprep.subr.bf16.mxu0 %v7687
        %11213 = vmatpush1.bf16.msra.mxu0 %v7686
        %11214 = vmatprep.subr.bf16.mxu0 %v7671
        %11215 = vmatpush1.bf16.msra.mxu0 %v7670
        %11216 = vmatprep.subr.bf16.mxu0 %v7655
        %11217 = vmatpush1.bf16.msra.mxu0 %v7654
        %11218 = vmatprep.subr.bf16.mxu0 %v7639
        %11219 = vmatpush1.bf16.msra.mxu0 %v7638
        %11220 = vmatprep.subr.bf16.mxu0 %v7623
        %11221 = vmatpush1.bf16.msra.mxu0 %v7622
        %11222 = vmatprep.subr.bf16.mxu0 %v7863
        %11223 = vmatpush2.bf16.msra.mxu0 %v7862
        %11224 = vmatprep.subr.bf16.mxu0 %v7847
        %11225 = vmatpush2.bf16.msra.mxu0 %v7846
        %11226 = vmatprep.subr.bf16.mxu0 %v7831
        %11227 = vmatpush2.bf16.msra.mxu0 %v7830
        %11228 = vmatprep.subr.bf16.mxu0 %v7815
        %11229 = vmatpush2.bf16.msra.mxu0 %v7814
        %11230 = vmatprep.subr.bf16.mxu0 %v7799
        %11231 = vmatpush2.bf16.msra.mxu0 %v7798
        %11232 = vmatprep.subr.bf16.mxu0 %v7783
        %11233 = vmatpush2.bf16.msra.mxu0 %v7782
        %11234 = vmatprep.subr.bf16.mxu0 %v7767
        %11235 = vmatpush2.bf16.msra.mxu0 %v7766
        %11236 = vmatprep.subr.bf16.mxu0 %v7751
        %11237 = vmatpush2.bf16.msra.mxu0 %v7750
        %11238 = vmatprep.mubr.bf16.mxu0 %v2219
        %11239 = vmatmul.mubr.bf16.gmra.mxu0 %v2218
        %v11240 = vpop.f32.mrf.mxu0
        %v11241 = vadd.f32 0.0, %v11240
        %v11242 = vpop.f32.mrf.mxu0
        %v11243 = vadd.f32 0.0, %v11242
        %v11244 = vpop.f32.mrf.mxu0
        %v11245 = vadd.f32 0.0, %v11244
        %v11246 = vpop.f32.mrf.mxu0
        %v11247 = vadd.f32 0.0, %v11246
        %11248 = vdwg.mxu0
        %11249 = vmatprep.subr.bf16.mxu0 %v7991
        %11250 = vmatpush1.bf16.msra.mxu0 %v7990
        %11251 = vmatprep.subr.bf16.mxu0 %v7975
        %11252 = vmatpush1.bf16.msra.mxu0 %v7974
        %11253 = vmatprep.subr.bf16.mxu0 %v7959
        %11254 = vmatpush1.bf16.msra.mxu0 %v7958
        %11255 = vmatprep.subr.bf16.mxu0 %v7943
        %11256 = vmatpush1.bf16.msra.mxu0 %v7942
        %11257 = vmatprep.subr.bf16.mxu0 %v7927
        %11258 = vmatpush1.bf16.msra.mxu0 %v7926
        %11259 = vmatprep.subr.bf16.mxu0 %v7911
        %11260 = vmatpush1.bf16.msra.mxu0 %v7910
        %11261 = vmatprep.subr.bf16.mxu0 %v7895
        %11262 = vmatpush1.bf16.msra.mxu0 %v7894
        %11263 = vmatprep.subr.bf16.mxu0 %v7879
        %11264 = vmatpush1.bf16.msra.mxu0 %v7878
        %11265 = vmatprep.subr.bf16.mxu0 %v8119
        %11266 = vmatpush2.bf16.msra.mxu0 %v8118
        %11267 = vmatprep.subr.bf16.mxu0 %v8103
        %11268 = vmatpush2.bf16.msra.mxu0 %v8102
        %11269 = vmatprep.subr.bf16.mxu0 %v8087
        %11270 = vmatpush2.bf16.msra.mxu0 %v8086
        %11271 = vmatprep.subr.bf16.mxu0 %v8071
        %11272 = vmatpush2.bf16.msra.mxu0 %v8070
        %11273 = vmatprep.subr.bf16.mxu0 %v8055
        %11274 = vmatpush2.bf16.msra.mxu0 %v8054
        %11275 = vmatprep.subr.bf16.mxu0 %v8039
        %11276 = vmatpush2.bf16.msra.mxu0 %v8038
        %11277 = vmatprep.subr.bf16.mxu0 %v8023
        %11278 = vmatpush2.bf16.msra.mxu0 %v8022
        %11279 = vmatprep.subr.bf16.mxu0 %v8007
        %11280 = vmatpush2.bf16.msra.mxu0 %v8006
        %11281 = vmatprep.mubr.bf16.mxu0 %v2221
        %11282 = vmatmul.mubr.bf16.gmra.mxu0 %v2220
        %v11283 = vpop.f32.mrf.mxu0
        %v11284 = vadd.f32 %v11241, %v11283
        %v11285 = vpop.f32.mrf.mxu0
        %v11286 = vadd.f32 %v11243, %v11285
        %v11287 = vpop.f32.mrf.mxu0
        %v11288 = vadd.f32 %v11245, %v11287
        %v11289 = vpop.f32.mrf.mxu0
        %v11290 = vadd.f32 %v11247, %v11289
        %11291 = vdwg.mxu0
        %11292 = vmatprep.subr.bf16.mxu0 %v8247
        %11293 = vmatpush1.bf16.msra.mxu0 %v8246
        %11294 = vmatprep.subr.bf16.mxu0 %v8231
        %11295 = vmatpush1.bf16.msra.mxu0 %v8230
        %11296 = vmatprep.subr.bf16.mxu0 %v8215
        %11297 = vmatpush1.bf16.msra.mxu0 %v8214
        %11298 = vmatprep.subr.bf16.mxu0 %v8199
        %11299 = vmatpush1.bf16.msra.mxu0 %v8198
        %11300 = vmatprep.subr.bf16.mxu0 %v8183
        %11301 = vmatpush1.bf16.msra.mxu0 %v8182
        %11302 = vmatprep.subr.bf16.mxu0 %v8167
        %11303 = vmatpush1.bf16.msra.mxu0 %v8166
        %11304 = vmatprep.subr.bf16.mxu0 %v8151
        %11305 = vmatpush1.bf16.msra.mxu0 %v8150
        %11306 = vmatprep.subr.bf16.mxu0 %v8135
        %11307 = vmatpush1.bf16.msra.mxu0 %v8134
        %11308 = vmatprep.subr.bf16.mxu0 %v8375
        %11309 = vmatpush2.bf16.msra.mxu0 %v8374
        %11310 = vmatprep.subr.bf16.mxu0 %v8359
        %11311 = vmatpush2.bf16.msra.mxu0 %v8358
        %11312 = vmatprep.subr.bf16.mxu0 %v8343
        %11313 = vmatpush2.bf16.msra.mxu0 %v8342
        %11314 = vmatprep.subr.bf16.mxu0 %v8327
        %11315 = vmatpush2.bf16.msra.mxu0 %v8326
        %11316 = vmatprep.subr.bf16.mxu0 %v8311
        %11317 = vmatpush2.bf16.msra.mxu0 %v8310
        %11318 = vmatprep.subr.bf16.mxu0 %v8295
        %11319 = vmatpush2.bf16.msra.mxu0 %v8294
        %11320 = vmatprep.subr.bf16.mxu0 %v8279
        %11321 = vmatpush2.bf16.msra.mxu0 %v8278
        %11322 = vmatprep.subr.bf16.mxu0 %v8263
        %11323 = vmatpush2.bf16.msra.mxu0 %v8262
        %11324 = vmatprep.mubr.bf16.mxu0 %v2223
        %11325 = vmatmul.mubr.bf16.gmra.mxu0 %v2222
        %v11326 = vpop.f32.mrf.mxu0
        %v11327 = vadd.f32 %v11284, %v11326
        %v11328 = vpop.f32.mrf.mxu0
        %v11329 = vadd.f32 %v11286, %v11328
        %v11330 = vpop.f32.mrf.mxu0
        %v11331 = vadd.f32 %v11288, %v11330
        %v11332 = vpop.f32.mrf.mxu0
        %v11333 = vadd.f32 %v11290, %v11332
        %11334 = vdwg.mxu0
        %11335 = vmatprep.subr.bf16.mxu0 %v8503
        %11336 = vmatpush1.bf16.msra.mxu0 %v8502
        %11337 = vmatprep.subr.bf16.mxu0 %v8487
        %11338 = vmatpush1.bf16.msra.mxu0 %v8486
        %11339 = vmatprep.subr.bf16.mxu0 %v8471
        %11340 = vmatpush1.bf16.msra.mxu0 %v8470
        %11341 = vmatprep.subr.bf16.mxu0 %v8455
        %11342 = vmatpush1.bf16.msra.mxu0 %v8454
        %11343 = vmatprep.subr.bf16.mxu0 %v8439
        %11344 = vmatpush1.bf16.msra.mxu0 %v8438
        %11345 = vmatprep.subr.bf16.mxu0 %v8423
        %11346 = vmatpush1.bf16.msra.mxu0 %v8422
        %11347 = vmatprep.subr.bf16.mxu0 %v8407
        %11348 = vmatpush1.bf16.msra.mxu0 %v8406
        %11349 = vmatprep.subr.bf16.mxu0 %v8391
        %11350 = vmatpush1.bf16.msra.mxu0 %v8390
        %11351 = vmatprep.subr.bf16.mxu0 %v8631
        %11352 = vmatpush2.bf16.msra.mxu0 %v8630
        %11353 = vmatprep.subr.bf16.mxu0 %v8615
        %11354 = vmatpush2.bf16.msra.mxu0 %v8614
        %11355 = vmatprep.subr.bf16.mxu0 %v8599
        %11356 = vmatpush2.bf16.msra.mxu0 %v8598
        %11357 = vmatprep.subr.bf16.mxu0 %v8583
        %11358 = vmatpush2.bf16.msra.mxu0 %v8582
        %11359 = vmatprep.subr.bf16.mxu0 %v8567
        %11360 = vmatpush2.bf16.msra.mxu0 %v8566
        %11361 = vmatprep.subr.bf16.mxu0 %v8551
        %11362 = vmatpush2.bf16.msra.mxu0 %v8550
        %11363 = vmatprep.subr.bf16.mxu0 %v8535
        %11364 = vmatpush2.bf16.msra.mxu0 %v8534
        %11365 = vmatprep.subr.bf16.mxu0 %v8519
        %11366 = vmatpush2.bf16.msra.mxu0 %v8518
        %11367 = vmatprep.mubr.bf16.mxu0 %v2225
        %11368 = vmatmul.mubr.bf16.gmra.mxu0 %v2224
        %v11369 = vpop.f32.mrf.mxu0
        %v11370 = vadd.f32 %v11327, %v11369
        %v11371 = vpop.f32.mrf.mxu0
        %v11372 = vadd.f32 %v11329, %v11371
        %v11373 = vpop.f32.mrf.mxu0
        %v11374 = vadd.f32 %v11331, %v11373
        %v11375 = vpop.f32.mrf.mxu0
        %v11376 = vadd.f32 %v11333, %v11375
        %11377 = vdwg.mxu0
        %11378 = vmatprep.subr.bf16.mxu0 %v8759
        %11379 = vmatpush1.bf16.msra.mxu0 %v8758
        %11380 = vmatprep.subr.bf16.mxu0 %v8743
        %11381 = vmatpush1.bf16.msra.mxu0 %v8742
        %11382 = vmatprep.subr.bf16.mxu0 %v8727
        %11383 = vmatpush1.bf16.msra.mxu0 %v8726
        %11384 = vmatprep.subr.bf16.mxu0 %v8711
        %11385 = vmatpush1.bf16.msra.mxu0 %v8710
        %11386 = vmatprep.subr.bf16.mxu0 %v8695
        %11387 = vmatpush1.bf16.msra.mxu0 %v8694
        %11388 = vmatprep.subr.bf16.mxu0 %v8679
        %11389 = vmatpush1.bf16.msra.mxu0 %v8678
        %11390 = vmatprep.subr.bf16.mxu0 %v8663
        %11391 = vmatpush1.bf16.msra.mxu0 %v8662
        %11392 = vmatprep.subr.bf16.mxu0 %v8647
        %11393 = vmatpush1.bf16.msra.mxu0 %v8646
        %11394 = vmatprep.subr.bf16.mxu0 %v8887
        %11395 = vmatpush2.bf16.msra.mxu0 %v8886
        %11396 = vmatprep.subr.bf16.mxu0 %v8871
        %11397 = vmatpush2.bf16.msra.mxu0 %v8870
        %11398 = vmatprep.subr.bf16.mxu0 %v8855
        %11399 = vmatpush2.bf16.msra.mxu0 %v8854
        %11400 = vmatprep.subr.bf16.mxu0 %v8839
        %11401 = vmatpush2.bf16.msra.mxu0 %v8838
        %11402 = vmatprep.subr.bf16.mxu0 %v8823
        %11403 = vmatpush2.bf16.msra.mxu0 %v8822
        %11404 = vmatprep.subr.bf16.mxu0 %v8807
        %11405 = vmatpush2.bf16.msra.mxu0 %v8806
        %11406 = vmatprep.subr.bf16.mxu0 %v8791
        %11407 = vmatpush2.bf16.msra.mxu0 %v8790
        %11408 = vmatprep.subr.bf16.mxu0 %v8775
        %11409 = vmatpush2.bf16.msra.mxu0 %v8774
        %11410 = vmatprep.mubr.bf16.mxu0 %v2227
        %11411 = vmatmul.mubr.bf16.gmra.mxu0 %v2226
        %v11412 = vpop.f32.mrf.mxu0
        %v11413 = vadd.f32 %v11370, %v11412
        %v11414 = vpop.f32.mrf.mxu0
        %v11415 = vadd.f32 %v11372, %v11414
        %v11416 = vpop.f32.mrf.mxu0
        %v11417 = vadd.f32 %v11374, %v11416
        %v11418 = vpop.f32.mrf.mxu0
        %v11419 = vadd.f32 %v11376, %v11418
        %11420 = vdwg.mxu0
        %11421 = vmatprep.subr.bf16.mxu0 %v9015
        %11422 = vmatpush1.bf16.msra.mxu0 %v9014
        %11423 = vmatprep.subr.bf16.mxu0 %v8999
        %11424 = vmatpush1.bf16.msra.mxu0 %v8998
        %11425 = vmatprep.subr.bf16.mxu0 %v8983
        %11426 = vmatpush1.bf16.msra.mxu0 %v8982
        %11427 = vmatprep.subr.bf16.mxu0 %v8967
        %11428 = vmatpush1.bf16.msra.mxu0 %v8966
        %11429 = vmatprep.subr.bf16.mxu0 %v8951
        %11430 = vmatpush1.bf16.msra.mxu0 %v8950
        %11431 = vmatprep.subr.bf16.mxu0 %v8935
        %11432 = vmatpush1.bf16.msra.mxu0 %v8934
        %11433 = vmatprep.subr.bf16.mxu0 %v8919
        %11434 = vmatpush1.bf16.msra.mxu0 %v8918
        %11435 = vmatprep.subr.bf16.mxu0 %v8903
        %11436 = vmatpush1.bf16.msra.mxu0 %v8902
        %11437 = vmatprep.subr.bf16.mxu0 %v9143
        %11438 = vmatpush2.bf16.msra.mxu0 %v9142
        %11439 = vmatprep.subr.bf16.mxu0 %v9127
        %11440 = vmatpush2.bf16.msra.mxu0 %v9126
        %11441 = vmatprep.subr.bf16.mxu0 %v9111
        %11442 = vmatpush2.bf16.msra.mxu0 %v9110
        %11443 = vmatprep.subr.bf16.mxu0 %v9095
        %11444 = vmatpush2.bf16.msra.mxu0 %v9094
        %11445 = vmatprep.subr.bf16.mxu0 %v9079
        %11446 = vmatpush2.bf16.msra.mxu0 %v9078
        %11447 = vmatprep.subr.bf16.mxu0 %v9063
        %11448 = vmatpush2.bf16.msra.mxu0 %v9062
        %11449 = vmatprep.subr.bf16.mxu0 %v9047
        %11450 = vmatpush2.bf16.msra.mxu0 %v9046
        %11451 = vmatprep.subr.bf16.mxu0 %v9031
        %11452 = vmatpush2.bf16.msra.mxu0 %v9030
        %11453 = vmatprep.mubr.bf16.mxu0 %v2229
        %11454 = vmatmul.mubr.bf16.gmra.mxu0 %v2228
        %v11455 = vpop.f32.mrf.mxu0
        %v11456 = vadd.f32 %v11413, %v11455
        %v11457 = vpop.f32.mrf.mxu0
        %v11458 = vadd.f32 %v11415, %v11457
        %v11459 = vpop.f32.mrf.mxu0
        %v11460 = vadd.f32 %v11417, %v11459
        %v11461 = vpop.f32.mrf.mxu0
        %v11462 = vadd.f32 %v11419, %v11461
        %11463 = vdwg.mxu0
        %11464 = vmatprep.subr.bf16.mxu0 %v9271
        %11465 = vmatpush1.bf16.msra.mxu0 %v9270
        %11466 = vmatprep.subr.bf16.mxu0 %v9255
        %11467 = vmatpush1.bf16.msra.mxu0 %v9254
        %11468 = vmatprep.subr.bf16.mxu0 %v9239
        %11469 = vmatpush1.bf16.msra.mxu0 %v9238
        %11470 = vmatprep.subr.bf16.mxu0 %v9223
        %11471 = vmatpush1.bf16.msra.mxu0 %v9222
        %11472 = vmatprep.subr.bf16.mxu0 %v9207
        %11473 = vmatpush1.bf16.msra.mxu0 %v9206
        %11474 = vmatprep.subr.bf16.mxu0 %v9191
        %11475 = vmatpush1.bf16.msra.mxu0 %v9190
        %11476 = vmatprep.subr.bf16.mxu0 %v9175
        %11477 = vmatpush1.bf16.msra.mxu0 %v9174
        %11478 = vmatprep.subr.bf16.mxu0 %v9159
        %11479 = vmatpush1.bf16.msra.mxu0 %v9158
        %11480 = vmatprep.subr.bf16.mxu0 %v9399
        %11481 = vmatpush2.bf16.msra.mxu0 %v9398
        %11482 = vmatprep.subr.bf16.mxu0 %v9383
        %11483 = vmatpush2.bf16.msra.mxu0 %v9382
        %11484 = vmatprep.subr.bf16.mxu0 %v9367
        %11485 = vmatpush2.bf16.msra.mxu0 %v9366
        %11486 = vmatprep.subr.bf16.mxu0 %v9351
        %11487 = vmatpush2.bf16.msra.mxu0 %v9350
        %11488 = vmatprep.subr.bf16.mxu0 %v9335
        %11489 = vmatpush2.bf16.msra.mxu0 %v9334
        %11490 = vmatprep.subr.bf16.mxu0 %v9319
        %11491 = vmatpush2.bf16.msra.mxu0 %v9318
        %11492 = vmatprep.subr.bf16.mxu0 %v9303
        %11493 = vmatpush2.bf16.msra.mxu0 %v9302
        %11494 = vmatprep.subr.bf16.mxu0 %v9287
        %11495 = vmatpush2.bf16.msra.mxu0 %v9286
        %11496 = vmatprep.mubr.bf16.mxu0 %v2231
        %11497 = vmatmul.mubr.bf16.gmra.mxu0 %v2230
        %v11498 = vpop.f32.mrf.mxu0
        %v11499 = vadd.f32 %v11456, %v11498
        %v11500 = vpop.f32.mrf.mxu0
        %v11501 = vadd.f32 %v11458, %v11500
        %v11502 = vpop.f32.mrf.mxu0
        %v11503 = vadd.f32 %v11460, %v11502
        %v11504 = vpop.f32.mrf.mxu0
        %v11505 = vadd.f32 %v11462, %v11504
        %11506 = vdwg.mxu0
        %11507 = vmatprep.subr.bf16.mxu0 %v7737
        %11508 = vmatpush1.bf16.msra.mxu0 %v7736
        %11509 = vmatprep.subr.bf16.mxu0 %v7721
        %11510 = vmatpush1.bf16.msra.mxu0 %v7720
        %11511 = vmatprep.subr.bf16.mxu0 %v7705
        %11512 = vmatpush1.bf16.msra.mxu0 %v7704
        %11513 = vmatprep.subr.bf16.mxu0 %v7689
        %11514 = vmatpush1.bf16.msra.mxu0 %v7688
        %11515 = vmatprep.subr.bf16.mxu0 %v7673
        %11516 = vmatpush1.bf16.msra.mxu0 %v7672
        %11517 = vmatprep.subr.bf16.mxu0 %v7657
        %11518 = vmatpush1.bf16.msra.mxu0 %v7656
        %11519 = vmatprep.subr.bf16.mxu0 %v7641
        %11520 = vmatpush1.bf16.msra.mxu0 %v7640
        %11521 = vmatprep.subr.bf16.mxu0 %v7625
        %11522 = vmatpush1.bf16.msra.mxu0 %v7624
        %11523 = vmatprep.subr.bf16.mxu0 %v7865
        %11524 = vmatpush2.bf16.msra.mxu0 %v7864
        %11525 = vmatprep.subr.bf16.mxu0 %v7849
        %11526 = vmatpush2.bf16.msra.mxu0 %v7848
        %11527 = vmatprep.subr.bf16.mxu0 %v7833
        %11528 = vmatpush2.bf16.msra.mxu0 %v7832
        %11529 = vmatprep.subr.bf16.mxu0 %v7817
        %11530 = vmatpush2.bf16.msra.mxu0 %v7816
        %11531 = vmatprep.subr.bf16.mxu0 %v7801
        %11532 = vmatpush2.bf16.msra.mxu0 %v7800
        %11533 = vmatprep.subr.bf16.mxu0 %v7785
        %11534 = vmatpush2.bf16.msra.mxu0 %v7784
        %11535 = vmatprep.subr.bf16.mxu0 %v7769
        %11536 = vmatpush2.bf16.msra.mxu0 %v7768
        %11537 = vmatprep.subr.bf16.mxu0 %v7753
        %11538 = vmatpush2.bf16.msra.mxu0 %v7752
        %11539 = vmatprep.mubr.bf16.mxu0 %v2219
        %11540 = vmatmul.mubr.bf16.gmra.mxu0 %v2218
        %v11541 = vpop.f32.mrf.mxu0
        %v11542 = vadd.f32 0.0, %v11541
        %v11543 = vpop.f32.mrf.mxu0
        %v11544 = vadd.f32 0.0, %v11543
        %v11545 = vpop.f32.mrf.mxu0
        %v11546 = vadd.f32 0.0, %v11545
        %v11547 = vpop.f32.mrf.mxu0
        %v11548 = vadd.f32 0.0, %v11547
        %11549 = vdwg.mxu0
        %11550 = vmatprep.subr.bf16.mxu0 %v7993
        %11551 = vmatpush1.bf16.msra.mxu0 %v7992
        %11552 = vmatprep.subr.bf16.mxu0 %v7977
        %11553 = vmatpush1.bf16.msra.mxu0 %v7976
        %11554 = vmatprep.subr.bf16.mxu0 %v7961
        %11555 = vmatpush1.bf16.msra.mxu0 %v7960
        %11556 = vmatprep.subr.bf16.mxu0 %v7945
        %11557 = vmatpush1.bf16.msra.mxu0 %v7944
        %11558 = vmatprep.subr.bf16.mxu0 %v7929
        %11559 = vmatpush1.bf16.msra.mxu0 %v7928
        %11560 = vmatprep.subr.bf16.mxu0 %v7913
        %11561 = vmatpush1.bf16.msra.mxu0 %v7912
        %11562 = vmatprep.subr.bf16.mxu0 %v7897
        %11563 = vmatpush1.bf16.msra.mxu0 %v7896
        %11564 = vmatprep.subr.bf16.mxu0 %v7881
        %11565 = vmatpush1.bf16.msra.mxu0 %v7880
        %11566 = vmatprep.subr.bf16.mxu0 %v8121
        %11567 = vmatpush2.bf16.msra.mxu0 %v8120
        %11568 = vmatprep.subr.bf16.mxu0 %v8105
        %11569 = vmatpush2.bf16.msra.mxu0 %v8104
        %11570 = vmatprep.subr.bf16.mxu0 %v8089
        %11571 = vmatpush2.bf16.msra.mxu0 %v8088
        %11572 = vmatprep.subr.bf16.mxu0 %v8073
        %11573 = vmatpush2.bf16.msra.mxu0 %v8072
        %11574 = vmatprep.subr.bf16.mxu0 %v8057
        %11575 = vmatpush2.bf16.msra.mxu0 %v8056
        %11576 = vmatprep.subr.bf16.mxu0 %v8041
        %11577 = vmatpush2.bf16.msra.mxu0 %v8040
        %11578 = vmatprep.subr.bf16.mxu0 %v8025
        %11579 = vmatpush2.bf16.msra.mxu0 %v8024
        %11580 = vmatprep.subr.bf16.mxu0 %v8009
        %11581 = vmatpush2.bf16.msra.mxu0 %v8008
        %11582 = vmatprep.mubr.bf16.mxu0 %v2221
        %11583 = vmatmul.mubr.bf16.gmra.mxu0 %v2220
        %v11584 = vpop.f32.mrf.mxu0
        %v11585 = vadd.f32 %v11542, %v11584
        %v11586 = vpop.f32.mrf.mxu0
        %v11587 = vadd.f32 %v11544, %v11586
        %v11588 = vpop.f32.mrf.mxu0
        %v11589 = vadd.f32 %v11546, %v11588
        %v11590 = vpop.f32.mrf.mxu0
        %v11591 = vadd.f32 %v11548, %v11590
        %11592 = vdwg.mxu0
        %11593 = vmatprep.subr.bf16.mxu0 %v8249
        %11594 = vmatpush1.bf16.msra.mxu0 %v8248
        %11595 = vmatprep.subr.bf16.mxu0 %v8233
        %11596 = vmatpush1.bf16.msra.mxu0 %v8232
        %11597 = vmatprep.subr.bf16.mxu0 %v8217
        %11598 = vmatpush1.bf16.msra.mxu0 %v8216
        %11599 = vmatprep.subr.bf16.mxu0 %v8201
        %11600 = vmatpush1.bf16.msra.mxu0 %v8200
        %11601 = vmatprep.subr.bf16.mxu0 %v8185
        %11602 = vmatpush1.bf16.msra.mxu0 %v8184
        %11603 = vmatprep.subr.bf16.mxu0 %v8169
        %11604 = vmatpush1.bf16.msra.mxu0 %v8168
        %11605 = vmatprep.subr.bf16.mxu0 %v8153
        %11606 = vmatpush1.bf16.msra.mxu0 %v8152
        %11607 = vmatprep.subr.bf16.mxu0 %v8137
        %11608 = vmatpush1.bf16.msra.mxu0 %v8136
        %11609 = vmatprep.subr.bf16.mxu0 %v8377
        %11610 = vmatpush2.bf16.msra.mxu0 %v8376
        %11611 = vmatprep.subr.bf16.mxu0 %v8361
        %11612 = vmatpush2.bf16.msra.mxu0 %v8360
        %11613 = vmatprep.subr.bf16.mxu0 %v8345
        %11614 = vmatpush2.bf16.msra.mxu0 %v8344
        %11615 = vmatprep.subr.bf16.mxu0 %v8329
        %11616 = vmatpush2.bf16.msra.mxu0 %v8328
        %11617 = vmatprep.subr.bf16.mxu0 %v8313
        %11618 = vmatpush2.bf16.msra.mxu0 %v8312
        %11619 = vmatprep.subr.bf16.mxu0 %v8297
        %11620 = vmatpush2.bf16.msra.mxu0 %v8296
        %11621 = vmatprep.subr.bf16.mxu0 %v8281
        %11622 = vmatpush2.bf16.msra.mxu0 %v8280
        %11623 = vmatprep.subr.bf16.mxu0 %v8265
        %11624 = vmatpush2.bf16.msra.mxu0 %v8264
        %11625 = vmatprep.mubr.bf16.mxu0 %v2223
        %11626 = vmatmul.mubr.bf16.gmra.mxu0 %v2222
        %v11627 = vpop.f32.mrf.mxu0
        %v11628 = vadd.f32 %v11585, %v11627
        %v11629 = vpop.f32.mrf.mxu0
        %v11630 = vadd.f32 %v11587, %v11629
        %v11631 = vpop.f32.mrf.mxu0
        %v11632 = vadd.f32 %v11589, %v11631
        %v11633 = vpop.f32.mrf.mxu0
        %v11634 = vadd.f32 %v11591, %v11633
        %11635 = vdwg.mxu0
        %11636 = vmatprep.subr.bf16.mxu0 %v8505
        %11637 = vmatpush1.bf16.msra.mxu0 %v8504
        %11638 = vmatprep.subr.bf16.mxu0 %v8489
        %11639 = vmatpush1.bf16.msra.mxu0 %v8488
        %11640 = vmatprep.subr.bf16.mxu0 %v8473
        %11641 = vmatpush1.bf16.msra.mxu0 %v8472
        %11642 = vmatprep.subr.bf16.mxu0 %v8457
        %11643 = vmatpush1.bf16.msra.mxu0 %v8456
        %11644 = vmatprep.subr.bf16.mxu0 %v8441
        %11645 = vmatpush1.bf16.msra.mxu0 %v8440
        %11646 = vmatprep.subr.bf16.mxu0 %v8425
        %11647 = vmatpush1.bf16.msra.mxu0 %v8424
        %11648 = vmatprep.subr.bf16.mxu0 %v8409
        %11649 = vmatpush1.bf16.msra.mxu0 %v8408
        %11650 = vmatprep.subr.bf16.mxu0 %v8393
        %11651 = vmatpush1.bf16.msra.mxu0 %v8392
        %11652 = vmatprep.subr.bf16.mxu0 %v8633
        %11653 = vmatpush2.bf16.msra.mxu0 %v8632
        %11654 = vmatprep.subr.bf16.mxu0 %v8617
        %11655 = vmatpush2.bf16.msra.mxu0 %v8616
        %11656 = vmatprep.subr.bf16.mxu0 %v8601
        %11657 = vmatpush2.bf16.msra.mxu0 %v8600
        %11658 = vmatprep.subr.bf16.mxu0 %v8585
        %11659 = vmatpush2.bf16.msra.mxu0 %v8584
        %11660 = vmatprep.subr.bf16.mxu0 %v8569
        %11661 = vmatpush2.bf16.msra.mxu0 %v8568
        %11662 = vmatprep.subr.bf16.mxu0 %v8553
        %11663 = vmatpush2.bf16.msra.mxu0 %v8552
        %11664 = vmatprep.subr.bf16.mxu0 %v8537
        %11665 = vmatpush2.bf16.msra.mxu0 %v8536
        %11666 = vmatprep.subr.bf16.mxu0 %v8521
        %11667 = vmatpush2.bf16.msra.mxu0 %v8520
        %11668 = vmatprep.mubr.bf16.mxu0 %v2225
        %11669 = vmatmul.mubr.bf16.gmra.mxu0 %v2224
        %v11670 = vpop.f32.mrf.mxu0
        %v11671 = vadd.f32 %v11628, %v11670
        %v11672 = vpop.f32.mrf.mxu0
        %v11673 = vadd.f32 %v11630, %v11672
        %v11674 = vpop.f32.mrf.mxu0
        %v11675 = vadd.f32 %v11632, %v11674
        %v11676 = vpop.f32.mrf.mxu0
        %v11677 = vadd.f32 %v11634, %v11676
        %11678 = vdwg.mxu0
        %11679 = vmatprep.subr.bf16.mxu0 %v8761
        %11680 = vmatpush1.bf16.msra.mxu0 %v8760
        %11681 = vmatprep.subr.bf16.mxu0 %v8745
        %11682 = vmatpush1.bf16.msra.mxu0 %v8744
        %11683 = vmatprep.subr.bf16.mxu0 %v8729
        %11684 = vmatpush1.bf16.msra.mxu0 %v8728
        %11685 = vmatprep.subr.bf16.mxu0 %v8713
        %11686 = vmatpush1.bf16.msra.mxu0 %v8712
        %11687 = vmatprep.subr.bf16.mxu0 %v8697
        %11688 = vmatpush1.bf16.msra.mxu0 %v8696
        %11689 = vmatprep.subr.bf16.mxu0 %v8681
        %11690 = vmatpush1.bf16.msra.mxu0 %v8680
        %11691 = vmatprep.subr.bf16.mxu0 %v8665
        %11692 = vmatpush1.bf16.msra.mxu0 %v8664
        %11693 = vmatprep.subr.bf16.mxu0 %v8649
        %11694 = vmatpush1.bf16.msra.mxu0 %v8648
        %11695 = vmatprep.subr.bf16.mxu0 %v8889
        %11696 = vmatpush2.bf16.msra.mxu0 %v8888
        %11697 = vmatprep.subr.bf16.mxu0 %v8873
        %11698 = vmatpush2.bf16.msra.mxu0 %v8872
        %11699 = vmatprep.subr.bf16.mxu0 %v8857
        %11700 = vmatpush2.bf16.msra.mxu0 %v8856
        %11701 = vmatprep.subr.bf16.mxu0 %v8841
        %11702 = vmatpush2.bf16.msra.mxu0 %v8840
        %11703 = vmatprep.subr.bf16.mxu0 %v8825
        %11704 = vmatpush2.bf16.msra.mxu0 %v8824
        %11705 = vmatprep.subr.bf16.mxu0 %v8809
        %11706 = vmatpush2.bf16.msra.mxu0 %v8808
        %11707 = vmatprep.subr.bf16.mxu0 %v8793
        %11708 = vmatpush2.bf16.msra.mxu0 %v8792
        %11709 = vmatprep.subr.bf16.mxu0 %v8777
        %11710 = vmatpush2.bf16.msra.mxu0 %v8776
        %11711 = vmatprep.mubr.bf16.mxu0 %v2227
        %11712 = vmatmul.mubr.bf16.gmra.mxu0 %v2226
        %v11713 = vpop.f32.mrf.mxu0
        %v11714 = vadd.f32 %v11671, %v11713
        %v11715 = vpop.f32.mrf.mxu0
        %v11716 = vadd.f32 %v11673, %v11715
        %v11717 = vpop.f32.mrf.mxu0
        %v11718 = vadd.f32 %v11675, %v11717
        %v11719 = vpop.f32.mrf.mxu0
        %v11720 = vadd.f32 %v11677, %v11719
        %11721 = vdwg.mxu0
        %11722 = vmatprep.subr.bf16.mxu0 %v9017
        %11723 = vmatpush1.bf16.msra.mxu0 %v9016
        %11724 = vmatprep.subr.bf16.mxu0 %v9001
        %11725 = vmatpush1.bf16.msra.mxu0 %v9000
        %11726 = vmatprep.subr.bf16.mxu0 %v8985
        %11727 = vmatpush1.bf16.msra.mxu0 %v8984
        %11728 = vmatprep.subr.bf16.mxu0 %v8969
        %11729 = vmatpush1.bf16.msra.mxu0 %v8968
        %11730 = vmatprep.subr.bf16.mxu0 %v8953
        %11731 = vmatpush1.bf16.msra.mxu0 %v8952
        %11732 = vmatprep.subr.bf16.mxu0 %v8937
        %11733 = vmatpush1.bf16.msra.mxu0 %v8936
        %11734 = vmatprep.subr.bf16.mxu0 %v8921
        %11735 = vmatpush1.bf16.msra.mxu0 %v8920
        %11736 = vmatprep.subr.bf16.mxu0 %v8905
        %11737 = vmatpush1.bf16.msra.mxu0 %v8904
        %11738 = vmatprep.subr.bf16.mxu0 %v9145
        %11739 = vmatpush2.bf16.msra.mxu0 %v9144
        %11740 = vmatprep.subr.bf16.mxu0 %v9129
        %11741 = vmatpush2.bf16.msra.mxu0 %v9128
        %11742 = vmatprep.subr.bf16.mxu0 %v9113
        %11743 = vmatpush2.bf16.msra.mxu0 %v9112
        %11744 = vmatprep.subr.bf16.mxu0 %v9097
        %11745 = vmatpush2.bf16.msra.mxu0 %v9096
        %11746 = vmatprep.subr.bf16.mxu0 %v9081
        %11747 = vmatpush2.bf16.msra.mxu0 %v9080
        %11748 = vmatprep.subr.bf16.mxu0 %v9065
        %11749 = vmatpush2.bf16.msra.mxu0 %v9064
        %11750 = vmatprep.subr.bf16.mxu0 %v9049
        %11751 = vmatpush2.bf16.msra.mxu0 %v9048
        %11752 = vmatprep.subr.bf16.mxu0 %v9033
        %11753 = vmatpush2.bf16.msra.mxu0 %v9032
        %11754 = vmatprep.mubr.bf16.mxu0 %v2229
        %11755 = vmatmul.mubr.bf16.gmra.mxu0 %v2228
        %v11756 = vpop.f32.mrf.mxu0
        %v11757 = vadd.f32 %v11714, %v11756
        %v11758 = vpop.f32.mrf.mxu0
        %v11759 = vadd.f32 %v11716, %v11758
        %v11760 = vpop.f32.mrf.mxu0
        %v11761 = vadd.f32 %v11718, %v11760
        %v11762 = vpop.f32.mrf.mxu0
        %v11763 = vadd.f32 %v11720, %v11762
        %11764 = vdwg.mxu0
        %11765 = vmatprep.subr.bf16.mxu0 %v9273
        %11766 = vmatpush1.bf16.msra.mxu0 %v9272
        %11767 = vmatprep.subr.bf16.mxu0 %v9257
        %11768 = vmatpush1.bf16.msra.mxu0 %v9256
        %11769 = vmatprep.subr.bf16.mxu0 %v9241
        %11770 = vmatpush1.bf16.msra.mxu0 %v9240
        %11771 = vmatprep.subr.bf16.mxu0 %v9225
        %11772 = vmatpush1.bf16.msra.mxu0 %v9224
        %11773 = vmatprep.subr.bf16.mxu0 %v9209
        %11774 = vmatpush1.bf16.msra.mxu0 %v9208
        %11775 = vmatprep.subr.bf16.mxu0 %v9193
        %11776 = vmatpush1.bf16.msra.mxu0 %v9192
        %11777 = vmatprep.subr.bf16.mxu0 %v9177
        %11778 = vmatpush1.bf16.msra.mxu0 %v9176
        %11779 = vmatprep.subr.bf16.mxu0 %v9161
        %11780 = vmatpush1.bf16.msra.mxu0 %v9160
        %11781 = vmatprep.subr.bf16.mxu0 %v9401
        %11782 = vmatpush2.bf16.msra.mxu0 %v9400
        %11783 = vmatprep.subr.bf16.mxu0 %v9385
        %11784 = vmatpush2.bf16.msra.mxu0 %v9384
        %11785 = vmatprep.subr.bf16.mxu0 %v9369
        %11786 = vmatpush2.bf16.msra.mxu0 %v9368
        %11787 = vmatprep.subr.bf16.mxu0 %v9353
        %11788 = vmatpush2.bf16.msra.mxu0 %v9352
        %11789 = vmatprep.subr.bf16.mxu0 %v9337
        %11790 = vmatpush2.bf16.msra.mxu0 %v9336
        %11791 = vmatprep.subr.bf16.mxu0 %v9321
        %11792 = vmatpush2.bf16.msra.mxu0 %v9320
        %11793 = vmatprep.subr.bf16.mxu0 %v9305
        %11794 = vmatpush2.bf16.msra.mxu0 %v9304
        %11795 = vmatprep.subr.bf16.mxu0 %v9289
        %11796 = vmatpush2.bf16.msra.mxu0 %v9288
        %11797 = vmatprep.mubr.bf16.mxu0 %v2231
        %11798 = vmatmul.mubr.bf16.gmra.mxu0 %v2230
        %v11799 = vpop.f32.mrf.mxu0
        %v11800 = vadd.f32 %v11757, %v11799
        %v11801 = vpop.f32.mrf.mxu0
        %v11802 = vadd.f32 %v11759, %v11801
        %v11803 = vpop.f32.mrf.mxu0
        %v11804 = vadd.f32 %v11761, %v11803
        %v11805 = vpop.f32.mrf.mxu0
        %v11806 = vadd.f32 %v11763, %v11805
        %11807 = vdwg.mxu0
        %11808 = vmatprep.subr.bf16.mxu0 %v7739
        %11809 = vmatpush1.bf16.msra.mxu0 %v7738
        %11810 = vmatprep.subr.bf16.mxu0 %v7723
        %11811 = vmatpush1.bf16.msra.mxu0 %v7722
        %11812 = vmatprep.subr.bf16.mxu0 %v7707
        %11813 = vmatpush1.bf16.msra.mxu0 %v7706
        %11814 = vmatprep.subr.bf16.mxu0 %v7691
        %11815 = vmatpush1.bf16.msra.mxu0 %v7690
        %11816 = vmatprep.subr.bf16.mxu0 %v7675
        %11817 = vmatpush1.bf16.msra.mxu0 %v7674
        %11818 = vmatprep.subr.bf16.mxu0 %v7659
        %11819 = vmatpush1.bf16.msra.mxu0 %v7658
        %11820 = vmatprep.subr.bf16.mxu0 %v7643
        %11821 = vmatpush1.bf16.msra.mxu0 %v7642
        %11822 = vmatprep.subr.bf16.mxu0 %v7627
        %11823 = vmatpush1.bf16.msra.mxu0 %v7626
        %11824 = vmatprep.subr.bf16.mxu0 %v7867
        %11825 = vmatpush2.bf16.msra.mxu0 %v7866
        %11826 = vmatprep.subr.bf16.mxu0 %v7851
        %11827 = vmatpush2.bf16.msra.mxu0 %v7850
        %11828 = vmatprep.subr.bf16.mxu0 %v7835
        %11829 = vmatpush2.bf16.msra.mxu0 %v7834
        %11830 = vmatprep.subr.bf16.mxu0 %v7819
        %11831 = vmatpush2.bf16.msra.mxu0 %v7818
        %11832 = vmatprep.subr.bf16.mxu0 %v7803
        %11833 = vmatpush2.bf16.msra.mxu0 %v7802
        %11834 = vmatprep.subr.bf16.mxu0 %v7787
        %11835 = vmatpush2.bf16.msra.mxu0 %v7786
        %11836 = vmatprep.subr.bf16.mxu0 %v7771
        %11837 = vmatpush2.bf16.msra.mxu0 %v7770
        %11838 = vmatprep.subr.bf16.mxu0 %v7755
        %11839 = vmatpush2.bf16.msra.mxu0 %v7754
        %11840 = vmatprep.mubr.bf16.mxu0 %v2219
        %11841 = vmatmul.mubr.bf16.gmra.mxu0 %v2218
        %v11842 = vpop.f32.mrf.mxu0
        %v11843 = vadd.f32 0.0, %v11842
        %v11844 = vpop.f32.mrf.mxu0
        %v11845 = vadd.f32 0.0, %v11844
        %v11846 = vpop.f32.mrf.mxu0
        %v11847 = vadd.f32 0.0, %v11846
        %v11848 = vpop.f32.mrf.mxu0
        %v11849 = vadd.f32 0.0, %v11848
        %11850 = vdwg.mxu0
        %11851 = vmatprep.subr.bf16.mxu0 %v7995
        %11852 = vmatpush1.bf16.msra.mxu0 %v7994
        %11853 = vmatprep.subr.bf16.mxu0 %v7979
        %11854 = vmatpush1.bf16.msra.mxu0 %v7978
        %11855 = vmatprep.subr.bf16.mxu0 %v7963
        %11856 = vmatpush1.bf16.msra.mxu0 %v7962
        %11857 = vmatprep.subr.bf16.mxu0 %v7947
        %11858 = vmatpush1.bf16.msra.mxu0 %v7946
        %11859 = vmatprep.subr.bf16.mxu0 %v7931
        %11860 = vmatpush1.bf16.msra.mxu0 %v7930
        %11861 = vmatprep.subr.bf16.mxu0 %v7915
        %11862 = vmatpush1.bf16.msra.mxu0 %v7914
        %11863 = vmatprep.subr.bf16.mxu0 %v7899
        %11864 = vmatpush1.bf16.msra.mxu0 %v7898
        %11865 = vmatprep.subr.bf16.mxu0 %v7883
        %11866 = vmatpush1.bf16.msra.mxu0 %v7882
        %11867 = vmatprep.subr.bf16.mxu0 %v8123
        %11868 = vmatpush2.bf16.msra.mxu0 %v8122
        %11869 = vmatprep.subr.bf16.mxu0 %v8107
        %11870 = vmatpush2.bf16.msra.mxu0 %v8106
        %11871 = vmatprep.subr.bf16.mxu0 %v8091
        %11872 = vmatpush2.bf16.msra.mxu0 %v8090
        %11873 = vmatprep.subr.bf16.mxu0 %v8075
        %11874 = vmatpush2.bf16.msra.mxu0 %v8074
        %11875 = vmatprep.subr.bf16.mxu0 %v8059
        %11876 = vmatpush2.bf16.msra.mxu0 %v8058
        %11877 = vmatprep.subr.bf16.mxu0 %v8043
        %11878 = vmatpush2.bf16.msra.mxu0 %v8042
        %11879 = vmatprep.subr.bf16.mxu0 %v8027
        %11880 = vmatpush2.bf16.msra.mxu0 %v8026
        %11881 = vmatprep.subr.bf16.mxu0 %v8011
        %11882 = vmatpush2.bf16.msra.mxu0 %v8010
        %11883 = vmatprep.mubr.bf16.mxu0 %v2221
        %11884 = vmatmul.mubr.bf16.gmra.mxu0 %v2220
        %v11885 = vpop.f32.mrf.mxu0
        %v11886 = vadd.f32 %v11843, %v11885
        %v11887 = vpop.f32.mrf.mxu0
        %v11888 = vadd.f32 %v11845, %v11887
        %v11889 = vpop.f32.mrf.mxu0
        %v11890 = vadd.f32 %v11847, %v11889
        %v11891 = vpop.f32.mrf.mxu0
        %v11892 = vadd.f32 %v11849, %v11891
        %11893 = vdwg.mxu0
        %11894 = vmatprep.subr.bf16.mxu0 %v8251
        %11895 = vmatpush1.bf16.msra.mxu0 %v8250
        %11896 = vmatprep.subr.bf16.mxu0 %v8235
        %11897 = vmatpush1.bf16.msra.mxu0 %v8234
        %11898 = vmatprep.subr.bf16.mxu0 %v8219
        %11899 = vmatpush1.bf16.msra.mxu0 %v8218
        %11900 = vmatprep.subr.bf16.mxu0 %v8203
        %11901 = vmatpush1.bf16.msra.mxu0 %v8202
        %11902 = vmatprep.subr.bf16.mxu0 %v8187
        %11903 = vmatpush1.bf16.msra.mxu0 %v8186
        %11904 = vmatprep.subr.bf16.mxu0 %v8171
        %11905 = vmatpush1.bf16.msra.mxu0 %v8170
        %11906 = vmatprep.subr.bf16.mxu0 %v8155
        %11907 = vmatpush1.bf16.msra.mxu0 %v8154
        %11908 = vmatprep.subr.bf16.mxu0 %v8139
        %11909 = vmatpush1.bf16.msra.mxu0 %v8138
        %11910 = vmatprep.subr.bf16.mxu0 %v8379
        %11911 = vmatpush2.bf16.msra.mxu0 %v8378
        %11912 = vmatprep.subr.bf16.mxu0 %v8363
        %11913 = vmatpush2.bf16.msra.mxu0 %v8362
        %11914 = vmatprep.subr.bf16.mxu0 %v8347
        %11915 = vmatpush2.bf16.msra.mxu0 %v8346
        %11916 = vmatprep.subr.bf16.mxu0 %v8331
        %11917 = vmatpush2.bf16.msra.mxu0 %v8330
        %11918 = vmatprep.subr.bf16.mxu0 %v8315
        %11919 = vmatpush2.bf16.msra.mxu0 %v8314
        %11920 = vmatprep.subr.bf16.mxu0 %v8299
        %11921 = vmatpush2.bf16.msra.mxu0 %v8298
        %11922 = vmatprep.subr.bf16.mxu0 %v8283
        %11923 = vmatpush2.bf16.msra.mxu0 %v8282
        %11924 = vmatprep.subr.bf16.mxu0 %v8267
        %11925 = vmatpush2.bf16.msra.mxu0 %v8266
        %11926 = vmatprep.mubr.bf16.mxu0 %v2223
        %11927 = vmatmul.mubr.bf16.gmra.mxu0 %v2222
        %v11928 = vpop.f32.mrf.mxu0
        %v11929 = vadd.f32 %v11886, %v11928
        %v11930 = vpop.f32.mrf.mxu0
        %v11931 = vadd.f32 %v11888, %v11930
        %v11932 = vpop.f32.mrf.mxu0
        %v11933 = vadd.f32 %v11890, %v11932
        %v11934 = vpop.f32.mrf.mxu0
        %v11935 = vadd.f32 %v11892, %v11934
        %11936 = vdwg.mxu0
        %11937 = vmatprep.subr.bf16.mxu0 %v8507
        %11938 = vmatpush1.bf16.msra.mxu0 %v8506
        %11939 = vmatprep.subr.bf16.mxu0 %v8491
        %11940 = vmatpush1.bf16.msra.mxu0 %v8490
        %11941 = vmatprep.subr.bf16.mxu0 %v8475
        %11942 = vmatpush1.bf16.msra.mxu0 %v8474
        %11943 = vmatprep.subr.bf16.mxu0 %v8459
        %11944 = vmatpush1.bf16.msra.mxu0 %v8458
        %11945 = vmatprep.subr.bf16.mxu0 %v8443
        %11946 = vmatpush1.bf16.msra.mxu0 %v8442
        %11947 = vmatprep.subr.bf16.mxu0 %v8427
        %11948 = vmatpush1.bf16.msra.mxu0 %v8426
        %11949 = vmatprep.subr.bf16.mxu0 %v8411
        %11950 = vmatpush1.bf16.msra.mxu0 %v8410
        %11951 = vmatprep.subr.bf16.mxu0 %v8395
        %11952 = vmatpush1.bf16.msra.mxu0 %v8394
        %11953 = vmatprep.subr.bf16.mxu0 %v8635
        %11954 = vmatpush2.bf16.msra.mxu0 %v8634
        %11955 = vmatprep.subr.bf16.mxu0 %v8619
        %11956 = vmatpush2.bf16.msra.mxu0 %v8618
        %11957 = vmatprep.subr.bf16.mxu0 %v8603
        %11958 = vmatpush2.bf16.msra.mxu0 %v8602
        %11959 = vmatprep.subr.bf16.mxu0 %v8587
        %11960 = vmatpush2.bf16.msra.mxu0 %v8586
        %11961 = vmatprep.subr.bf16.mxu0 %v8571
        %11962 = vmatpush2.bf16.msra.mxu0 %v8570
        %11963 = vmatprep.subr.bf16.mxu0 %v8555
        %11964 = vmatpush2.bf16.msra.mxu0 %v8554
        %11965 = vmatprep.subr.bf16.mxu0 %v8539
        %11966 = vmatpush2.bf16.msra.mxu0 %v8538
        %11967 = vmatprep.subr.bf16.mxu0 %v8523
        %11968 = vmatpush2.bf16.msra.mxu0 %v8522
        %11969 = vmatprep.mubr.bf16.mxu0 %v2225
        %11970 = vmatmul.mubr.bf16.gmra.mxu0 %v2224
        %v11971 = vpop.f32.mrf.mxu0
        %v11972 = vadd.f32 %v11929, %v11971
        %v11973 = vpop.f32.mrf.mxu0
        %v11974 = vadd.f32 %v11931, %v11973
        %v11975 = vpop.f32.mrf.mxu0
        %v11976 = vadd.f32 %v11933, %v11975
        %v11977 = vpop.f32.mrf.mxu0
        %v11978 = vadd.f32 %v11935, %v11977
        %11979 = vdwg.mxu0
        %11980 = vmatprep.subr.bf16.mxu0 %v8763
        %11981 = vmatpush1.bf16.msra.mxu0 %v8762
        %11982 = vmatprep.subr.bf16.mxu0 %v8747
        %11983 = vmatpush1.bf16.msra.mxu0 %v8746
        %11984 = vmatprep.subr.bf16.mxu0 %v8731
        %11985 = vmatpush1.bf16.msra.mxu0 %v8730
        %11986 = vmatprep.subr.bf16.mxu0 %v8715
        %11987 = vmatpush1.bf16.msra.mxu0 %v8714
        %11988 = vmatprep.subr.bf16.mxu0 %v8699
        %11989 = vmatpush1.bf16.msra.mxu0 %v8698
        %11990 = vmatprep.subr.bf16.mxu0 %v8683
        %11991 = vmatpush1.bf16.msra.mxu0 %v8682
        %11992 = vmatprep.subr.bf16.mxu0 %v8667
        %11993 = vmatpush1.bf16.msra.mxu0 %v8666
        %11994 = vmatprep.subr.bf16.mxu0 %v8651
        %11995 = vmatpush1.bf16.msra.mxu0 %v8650
        %11996 = vmatprep.subr.bf16.mxu0 %v8891
        %11997 = vmatpush2.bf16.msra.mxu0 %v8890
        %11998 = vmatprep.subr.bf16.mxu0 %v8875
        %11999 = vmatpush2.bf16.msra.mxu0 %v8874
        %12000 = vmatprep.subr.bf16.mxu0 %v8859
        %12001 = vmatpush2.bf16.msra.mxu0 %v8858
        %12002 = vmatprep.subr.bf16.mxu0 %v8843
        %12003 = vmatpush2.bf16.msra.mxu0 %v8842
        %12004 = vmatprep.subr.bf16.mxu0 %v8827
        %12005 = vmatpush2.bf16.msra.mxu0 %v8826
        %12006 = vmatprep.subr.bf16.mxu0 %v8811
        %12007 = vmatpush2.bf16.msra.mxu0 %v8810
        %12008 = vmatprep.subr.bf16.mxu0 %v8795
        %12009 = vmatpush2.bf16.msra.mxu0 %v8794
        %12010 = vmatprep.subr.bf16.mxu0 %v8779
        %12011 = vmatpush2.bf16.msra.mxu0 %v8778
        %12012 = vmatprep.mubr.bf16.mxu0 %v2227
        %12013 = vmatmul.mubr.bf16.gmra.mxu0 %v2226
        %v12014 = vpop.f32.mrf.mxu0
        %v12015 = vadd.f32 %v11972, %v12014
        %v12016 = vpop.f32.mrf.mxu0
        %v12017 = vadd.f32 %v11974, %v12016
        %v12018 = vpop.f32.mrf.mxu0
        %v12019 = vadd.f32 %v11976, %v12018
        %v12020 = vpop.f32.mrf.mxu0
        %v12021 = vadd.f32 %v11978, %v12020
        %12022 = vdwg.mxu0
        %12023 = vmatprep.subr.bf16.mxu0 %v9019
        %12024 = vmatpush1.bf16.msra.mxu0 %v9018
        %12025 = vmatprep.subr.bf16.mxu0 %v9003
        %12026 = vmatpush1.bf16.msra.mxu0 %v9002
        %12027 = vmatprep.subr.bf16.mxu0 %v8987
        %12028 = vmatpush1.bf16.msra.mxu0 %v8986
        %12029 = vmatprep.subr.bf16.mxu0 %v8971
        %12030 = vmatpush1.bf16.msra.mxu0 %v8970
        %12031 = vmatprep.subr.bf16.mxu0 %v8955
        %12032 = vmatpush1.bf16.msra.mxu0 %v8954
        %12033 = vmatprep.subr.bf16.mxu0 %v8939
        %12034 = vmatpush1.bf16.msra.mxu0 %v8938
        %12035 = vmatprep.subr.bf16.mxu0 %v8923
        %12036 = vmatpush1.bf16.msra.mxu0 %v8922
        %12037 = vmatprep.subr.bf16.mxu0 %v8907
        %12038 = vmatpush1.bf16.msra.mxu0 %v8906
        %12039 = vmatprep.subr.bf16.mxu0 %v9147
        %12040 = vmatpush2.bf16.msra.mxu0 %v9146
        %12041 = vmatprep.subr.bf16.mxu0 %v9131
        %12042 = vmatpush2.bf16.msra.mxu0 %v9130
        %12043 = vmatprep.subr.bf16.mxu0 %v9115
        %12044 = vmatpush2.bf16.msra.mxu0 %v9114
        %12045 = vmatprep.subr.bf16.mxu0 %v9099
        %12046 = vmatpush2.bf16.msra.mxu0 %v9098
        %12047 = vmatprep.subr.bf16.mxu0 %v9083
        %12048 = vmatpush2.bf16.msra.mxu0 %v9082
        %12049 = vmatprep.subr.bf16.mxu0 %v9067
        %12050 = vmatpush2.bf16.msra.mxu0 %v9066
        %12051 = vmatprep.subr.bf16.mxu0 %v9051
        %12052 = vmatpush2.bf16.msra.mxu0 %v9050
        %12053 = vmatprep.subr.bf16.mxu0 %v9035
        %12054 = vmatpush2.bf16.msra.mxu0 %v9034
        %12055 = vmatprep.mubr.bf16.mxu0 %v2229
        %12056 = vmatmul.mubr.bf16.gmra.mxu0 %v2228
        %v12057 = vpop.f32.mrf.mxu0
        %v12058 = vadd.f32 %v12015, %v12057
        %v12059 = vpop.f32.mrf.mxu0
        %v12060 = vadd.f32 %v12017, %v12059
        %v12061 = vpop.f32.mrf.mxu0
        %v12062 = vadd.f32 %v12019, %v12061
        %v12063 = vpop.f32.mrf.mxu0
        %v12064 = vadd.f32 %v12021, %v12063
        %12065 = vdwg.mxu0
        %12066 = vmatprep.subr.bf16.mxu0 %v9275
        %12067 = vmatpush1.bf16.msra.mxu0 %v9274
        %12068 = vmatprep.subr.bf16.mxu0 %v9259
        %12069 = vmatpush1.bf16.msra.mxu0 %v9258
        %12070 = vmatprep.subr.bf16.mxu0 %v9243
        %12071 = vmatpush1.bf16.msra.mxu0 %v9242
        %12072 = vmatprep.subr.bf16.mxu0 %v9227
        %12073 = vmatpush1.bf16.msra.mxu0 %v9226
        %12074 = vmatprep.subr.bf16.mxu0 %v9211
        %12075 = vmatpush1.bf16.msra.mxu0 %v9210
        %12076 = vmatprep.subr.bf16.mxu0 %v9195
        %12077 = vmatpush1.bf16.msra.mxu0 %v9194
        %12078 = vmatprep.subr.bf16.mxu0 %v9179
        %12079 = vmatpush1.bf16.msra.mxu0 %v9178
        %12080 = vmatprep.subr.bf16.mxu0 %v9163
        %12081 = vmatpush1.bf16.msra.mxu0 %v9162
        %12082 = vmatprep.subr.bf16.mxu0 %v9403
        %12083 = vmatpush2.bf16.msra.mxu0 %v9402
        %12084 = vmatprep.subr.bf16.mxu0 %v9387
        %12085 = vmatpush2.bf16.msra.mxu0 %v9386
        %12086 = vmatprep.subr.bf16.mxu0 %v9371
        %12087 = vmatpush2.bf16.msra.mxu0 %v9370
        %12088 = vmatprep.subr.bf16.mxu0 %v9355
        %12089 = vmatpush2.bf16.msra.mxu0 %v9354
        %12090 = vmatprep.subr.bf16.mxu0 %v9339
        %12091 = vmatpush2.bf16.msra.mxu0 %v9338
        %12092 = vmatprep.subr.bf16.mxu0 %v9323
        %12093 = vmatpush2.bf16.msra.mxu0 %v9322
        %12094 = vmatprep.subr.bf16.mxu0 %v9307
        %12095 = vmatpush2.bf16.msra.mxu0 %v9306
        %12096 = vmatprep.subr.bf16.mxu0 %v9291
        %12097 = vmatpush2.bf16.msra.mxu0 %v9290
        %12098 = vmatprep.mubr.bf16.mxu0 %v2231
        %12099 = vmatmul.mubr.bf16.gmra.mxu0 %v2230
        %v12100 = vpop.f32.mrf.mxu0
        %v12101 = vadd.f32 %v12058, %v12100
        %v12102 = vpop.f32.mrf.mxu0
        %v12103 = vadd.f32 %v12060, %v12102
        %v12104 = vpop.f32.mrf.mxu0
        %v12105 = vadd.f32 %v12062, %v12104
        %v12106 = vpop.f32.mrf.mxu0
        %v12107 = vadd.f32 %v12064, %v12106
        %12108 = vdwg.mxu0
        %12109 = vmatprep.subr.bf16.mxu0 %v7741
        %12110 = vmatpush1.bf16.msra.mxu0 %v7740
        %12111 = vmatprep.subr.bf16.mxu0 %v7725
        %12112 = vmatpush1.bf16.msra.mxu0 %v7724
        %12113 = vmatprep.subr.bf16.mxu0 %v7709
        %12114 = vmatpush1.bf16.msra.mxu0 %v7708
        %12115 = vmatprep.subr.bf16.mxu0 %v7693
        %12116 = vmatpush1.bf16.msra.mxu0 %v7692
        %12117 = vmatprep.subr.bf16.mxu0 %v7677
        %12118 = vmatpush1.bf16.msra.mxu0 %v7676
        %12119 = vmatprep.subr.bf16.mxu0 %v7661
        %12120 = vmatpush1.bf16.msra.mxu0 %v7660
        %12121 = vmatprep.subr.bf16.mxu0 %v7645
        %12122 = vmatpush1.bf16.msra.mxu0 %v7644
        %12123 = vmatprep.subr.bf16.mxu0 %v7629
        %12124 = vmatpush1.bf16.msra.mxu0 %v7628
        %12125 = vmatprep.subr.bf16.mxu0 %v7869
        %12126 = vmatpush2.bf16.msra.mxu0 %v7868
        %12127 = vmatprep.subr.bf16.mxu0 %v7853
        %12128 = vmatpush2.bf16.msra.mxu0 %v7852
        %12129 = vmatprep.subr.bf16.mxu0 %v7837
        %12130 = vmatpush2.bf16.msra.mxu0 %v7836
        %12131 = vmatprep.subr.bf16.mxu0 %v7821
        %12132 = vmatpush2.bf16.msra.mxu0 %v7820
        %12133 = vmatprep.subr.bf16.mxu0 %v7805
        %12134 = vmatpush2.bf16.msra.mxu0 %v7804
        %12135 = vmatprep.subr.bf16.mxu0 %v7789
        %12136 = vmatpush2.bf16.msra.mxu0 %v7788
        %12137 = vmatprep.subr.bf16.mxu0 %v7773
        %12138 = vmatpush2.bf16.msra.mxu0 %v7772
        %12139 = vmatprep.subr.bf16.mxu0 %v7757
        %12140 = vmatpush2.bf16.msra.mxu0 %v7756
        %12141 = vmatprep.mubr.bf16.mxu0 %v2219
        %12142 = vmatmul.mubr.bf16.gmra.mxu0 %v2218
        %v12143 = vpop.f32.mrf.mxu0
        %v12144 = vadd.f32 0.0, %v12143
        %v12145 = vpop.f32.mrf.mxu0
        %v12146 = vadd.f32 0.0, %v12145
        %v12147 = vpop.f32.mrf.mxu0
        %v12148 = vadd.f32 0.0, %v12147
        %v12149 = vpop.f32.mrf.mxu0
        %v12150 = vadd.f32 0.0, %v12149
        %12151 = vdwg.mxu0
        %12152 = vmatprep.subr.bf16.mxu0 %v7997
        %12153 = vmatpush1.bf16.msra.mxu0 %v7996
        %12154 = vmatprep.subr.bf16.mxu0 %v7981
        %12155 = vmatpush1.bf16.msra.mxu0 %v7980
        %12156 = vmatprep.subr.bf16.mxu0 %v7965
        %12157 = vmatpush1.bf16.msra.mxu0 %v7964
        %12158 = vmatprep.subr.bf16.mxu0 %v7949
        %12159 = vmatpush1.bf16.msra.mxu0 %v7948
        %12160 = vmatprep.subr.bf16.mxu0 %v7933
        %12161 = vmatpush1.bf16.msra.mxu0 %v7932
        %12162 = vmatprep.subr.bf16.mxu0 %v7917
        %12163 = vmatpush1.bf16.msra.mxu0 %v7916
        %12164 = vmatprep.subr.bf16.mxu0 %v7901
        %12165 = vmatpush1.bf16.msra.mxu0 %v7900
        %12166 = vmatprep.subr.bf16.mxu0 %v7885
        %12167 = vmatpush1.bf16.msra.mxu0 %v7884
        %12168 = vmatprep.subr.bf16.mxu0 %v8125
        %12169 = vmatpush2.bf16.msra.mxu0 %v8124
        %12170 = vmatprep.subr.bf16.mxu0 %v8109
        %12171 = vmatpush2.bf16.msra.mxu0 %v8108
        %12172 = vmatprep.subr.bf16.mxu0 %v8093
        %12173 = vmatpush2.bf16.msra.mxu0 %v8092
        %12174 = vmatprep.subr.bf16.mxu0 %v8077
        %12175 = vmatpush2.bf16.msra.mxu0 %v8076
        %12176 = vmatprep.subr.bf16.mxu0 %v8061
        %12177 = vmatpush2.bf16.msra.mxu0 %v8060
        %12178 = vmatprep.subr.bf16.mxu0 %v8045
        %12179 = vmatpush2.bf16.msra.mxu0 %v8044
        %12180 = vmatprep.subr.bf16.mxu0 %v8029
        %12181 = vmatpush2.bf16.msra.mxu0 %v8028
        %12182 = vmatprep.subr.bf16.mxu0 %v8013
        %12183 = vmatpush2.bf16.msra.mxu0 %v8012
        %12184 = vmatprep.mubr.bf16.mxu0 %v2221
        %12185 = vmatmul.mubr.bf16.gmra.mxu0 %v2220
        %v12186 = vpop.f32.mrf.mxu0
        %v12187 = vadd.f32 %v12144, %v12186
        %v12188 = vpop.f32.mrf.mxu0
        %v12189 = vadd.f32 %v12146, %v12188
        %v12190 = vpop.f32.mrf.mxu0
        %v12191 = vadd.f32 %v12148, %v12190
        %v12192 = vpop.f32.mrf.mxu0
        %v12193 = vadd.f32 %v12150, %v12192
        %12194 = vdwg.mxu0
        %12195 = vmatprep.subr.bf16.mxu0 %v8253
        %12196 = vmatpush1.bf16.msra.mxu0 %v8252
        %12197 = vmatprep.subr.bf16.mxu0 %v8237
        %12198 = vmatpush1.bf16.msra.mxu0 %v8236
        %12199 = vmatprep.subr.bf16.mxu0 %v8221
        %12200 = vmatpush1.bf16.msra.mxu0 %v8220
        %12201 = vmatprep.subr.bf16.mxu0 %v8205
        %12202 = vmatpush1.bf16.msra.mxu0 %v8204
        %12203 = vmatprep.subr.bf16.mxu0 %v8189
        %12204 = vmatpush1.bf16.msra.mxu0 %v8188
        %12205 = vmatprep.subr.bf16.mxu0 %v8173
        %12206 = vmatpush1.bf16.msra.mxu0 %v8172
        %12207 = vmatprep.subr.bf16.mxu0 %v8157
        %12208 = vmatpush1.bf16.msra.mxu0 %v8156
        %12209 = vmatprep.subr.bf16.mxu0 %v8141
        %12210 = vmatpush1.bf16.msra.mxu0 %v8140
        %12211 = vmatprep.subr.bf16.mxu0 %v8381
        %12212 = vmatpush2.bf16.msra.mxu0 %v8380
        %12213 = vmatprep.subr.bf16.mxu0 %v8365
        %12214 = vmatpush2.bf16.msra.mxu0 %v8364
        %12215 = vmatprep.subr.bf16.mxu0 %v8349
        %12216 = vmatpush2.bf16.msra.mxu0 %v8348
        %12217 = vmatprep.subr.bf16.mxu0 %v8333
        %12218 = vmatpush2.bf16.msra.mxu0 %v8332
        %12219 = vmatprep.subr.bf16.mxu0 %v8317
        %12220 = vmatpush2.bf16.msra.mxu0 %v8316
        %12221 = vmatprep.subr.bf16.mxu0 %v8301
        %12222 = vmatpush2.bf16.msra.mxu0 %v8300
        %12223 = vmatprep.subr.bf16.mxu0 %v8285
        %12224 = vmatpush2.bf16.msra.mxu0 %v8284
        %12225 = vmatprep.subr.bf16.mxu0 %v8269
        %12226 = vmatpush2.bf16.msra.mxu0 %v8268
        %12227 = vmatprep.mubr.bf16.mxu0 %v2223
        %12228 = vmatmul.mubr.bf16.gmra.mxu0 %v2222
        %v12229 = vpop.f32.mrf.mxu0
        %v12230 = vadd.f32 %v12187, %v12229
        %v12231 = vpop.f32.mrf.mxu0
        %v12232 = vadd.f32 %v12189, %v12231
        %v12233 = vpop.f32.mrf.mxu0
        %v12234 = vadd.f32 %v12191, %v12233
        %v12235 = vpop.f32.mrf.mxu0
        %v12236 = vadd.f32 %v12193, %v12235
        %12237 = vdwg.mxu0
        %12238 = vmatprep.subr.bf16.mxu0 %v8509
        %12239 = vmatpush1.bf16.msra.mxu0 %v8508
        %12240 = vmatprep.subr.bf16.mxu0 %v8493
        %12241 = vmatpush1.bf16.msra.mxu0 %v8492
        %12242 = vmatprep.subr.bf16.mxu0 %v8477
        %12243 = vmatpush1.bf16.msra.mxu0 %v8476
        %12244 = vmatprep.subr.bf16.mxu0 %v8461
        %12245 = vmatpush1.bf16.msra.mxu0 %v8460
        %12246 = vmatprep.subr.bf16.mxu0 %v8445
        %12247 = vmatpush1.bf16.msra.mxu0 %v8444
        %12248 = vmatprep.subr.bf16.mxu0 %v8429
        %12249 = vmatpush1.bf16.msra.mxu0 %v8428
        %12250 = vmatprep.subr.bf16.mxu0 %v8413
        %12251 = vmatpush1.bf16.msra.mxu0 %v8412
        %12252 = vmatprep.subr.bf16.mxu0 %v8397
        %12253 = vmatpush1.bf16.msra.mxu0 %v8396
        %12254 = vmatprep.subr.bf16.mxu0 %v8637
        %12255 = vmatpush2.bf16.msra.mxu0 %v8636
        %12256 = vmatprep.subr.bf16.mxu0 %v8621
        %12257 = vmatpush2.bf16.msra.mxu0 %v8620
        %12258 = vmatprep.subr.bf16.mxu0 %v8605
        %12259 = vmatpush2.bf16.msra.mxu0 %v8604
        %12260 = vmatprep.subr.bf16.mxu0 %v8589
        %12261 = vmatpush2.bf16.msra.mxu0 %v8588
        %12262 = vmatprep.subr.bf16.mxu0 %v8573
        %12263 = vmatpush2.bf16.msra.mxu0 %v8572
        %12264 = vmatprep.subr.bf16.mxu0 %v8557
        %12265 = vmatpush2.bf16.msra.mxu0 %v8556
        %12266 = vmatprep.subr.bf16.mxu0 %v8541
        %12267 = vmatpush2.bf16.msra.mxu0 %v8540
        %12268 = vmatprep.subr.bf16.mxu0 %v8525
        %12269 = vmatpush2.bf16.msra.mxu0 %v8524
        %12270 = vmatprep.mubr.bf16.mxu0 %v2225
        %12271 = vmatmul.mubr.bf16.gmra.mxu0 %v2224
        %v12272 = vpop.f32.mrf.mxu0
        %v12273 = vadd.f32 %v12230, %v12272
        %v12274 = vpop.f32.mrf.mxu0
        %v12275 = vadd.f32 %v12232, %v12274
        %v12276 = vpop.f32.mrf.mxu0
        %v12277 = vadd.f32 %v12234, %v12276
        %v12278 = vpop.f32.mrf.mxu0
        %v12279 = vadd.f32 %v12236, %v12278
        %12280 = vdwg.mxu0
        %12281 = vmatprep.subr.bf16.mxu0 %v8765
        %12282 = vmatpush1.bf16.msra.mxu0 %v8764
        %12283 = vmatprep.subr.bf16.mxu0 %v8749
        %12284 = vmatpush1.bf16.msra.mxu0 %v8748
        %12285 = vmatprep.subr.bf16.mxu0 %v8733
        %12286 = vmatpush1.bf16.msra.mxu0 %v8732
        %12287 = vmatprep.subr.bf16.mxu0 %v8717
        %12288 = vmatpush1.bf16.msra.mxu0 %v8716
        %12289 = vmatprep.subr.bf16.mxu0 %v8701
        %12290 = vmatpush1.bf16.msra.mxu0 %v8700
        %12291 = vmatprep.subr.bf16.mxu0 %v8685
        %12292 = vmatpush1.bf16.msra.mxu0 %v8684
        %12293 = vmatprep.subr.bf16.mxu0 %v8669
        %12294 = vmatpush1.bf16.msra.mxu0 %v8668
        %12295 = vmatprep.subr.bf16.mxu0 %v8653
        %12296 = vmatpush1.bf16.msra.mxu0 %v8652
        %12297 = vmatprep.subr.bf16.mxu0 %v8893
        %12298 = vmatpush2.bf16.msra.mxu0 %v8892
        %12299 = vmatprep.subr.bf16.mxu0 %v8877
        %12300 = vmatpush2.bf16.msra.mxu0 %v8876
        %12301 = vmatprep.subr.bf16.mxu0 %v8861
        %12302 = vmatpush2.bf16.msra.mxu0 %v8860
        %12303 = vmatprep.subr.bf16.mxu0 %v8845
        %12304 = vmatpush2.bf16.msra.mxu0 %v8844
        %12305 = vmatprep.subr.bf16.mxu0 %v8829
        %12306 = vmatpush2.bf16.msra.mxu0 %v8828
        %12307 = vmatprep.subr.bf16.mxu0 %v8813
        %12308 = vmatpush2.bf16.msra.mxu0 %v8812
        %12309 = vmatprep.subr.bf16.mxu0 %v8797
        %12310 = vmatpush2.bf16.msra.mxu0 %v8796
        %12311 = vmatprep.subr.bf16.mxu0 %v8781
        %12312 = vmatpush2.bf16.msra.mxu0 %v8780
        %12313 = vmatprep.mubr.bf16.mxu0 %v2227
        %12314 = vmatmul.mubr.bf16.gmra.mxu0 %v2226
        %v12315 = vpop.f32.mrf.mxu0
        %v12316 = vadd.f32 %v12273, %v12315
        %v12317 = vpop.f32.mrf.mxu0
        %v12318 = vadd.f32 %v12275, %v12317
        %v12319 = vpop.f32.mrf.mxu0
        %v12320 = vadd.f32 %v12277, %v12319
        %v12321 = vpop.f32.mrf.mxu0
        %v12322 = vadd.f32 %v12279, %v12321
        %12323 = vdwg.mxu0
        %12324 = vmatprep.subr.bf16.mxu0 %v9021
        %12325 = vmatpush1.bf16.msra.mxu0 %v9020
        %12326 = vmatprep.subr.bf16.mxu0 %v9005
        %12327 = vmatpush1.bf16.msra.mxu0 %v9004
        %12328 = vmatprep.subr.bf16.mxu0 %v8989
        %12329 = vmatpush1.bf16.msra.mxu0 %v8988
        %12330 = vmatprep.subr.bf16.mxu0 %v8973
        %12331 = vmatpush1.bf16.msra.mxu0 %v8972
        %12332 = vmatprep.subr.bf16.mxu0 %v8957
        %12333 = vmatpush1.bf16.msra.mxu0 %v8956
        %12334 = vmatprep.subr.bf16.mxu0 %v8941
        %12335 = vmatpush1.bf16.msra.mxu0 %v8940
        %12336 = vmatprep.subr.bf16.mxu0 %v8925
        %12337 = vmatpush1.bf16.msra.mxu0 %v8924
        %12338 = vmatprep.subr.bf16.mxu0 %v8909
        %12339 = vmatpush1.bf16.msra.mxu0 %v8908
        %12340 = vmatprep.subr.bf16.mxu0 %v9149
        %12341 = vmatpush2.bf16.msra.mxu0 %v9148
        %12342 = vmatprep.subr.bf16.mxu0 %v9133
        %12343 = vmatpush2.bf16.msra.mxu0 %v9132
        %12344 = vmatprep.subr.bf16.mxu0 %v9117
        %12345 = vmatpush2.bf16.msra.mxu0 %v9116
        %12346 = vmatprep.subr.bf16.mxu0 %v9101
        %12347 = vmatpush2.bf16.msra.mxu0 %v9100
        %12348 = vmatprep.subr.bf16.mxu0 %v9085
        %12349 = vmatpush2.bf16.msra.mxu0 %v9084
        %12350 = vmatprep.subr.bf16.mxu0 %v9069
        %12351 = vmatpush2.bf16.msra.mxu0 %v9068
        %12352 = vmatprep.subr.bf16.mxu0 %v9053
        %12353 = vmatpush2.bf16.msra.mxu0 %v9052
        %12354 = vmatprep.subr.bf16.mxu0 %v9037
        %12355 = vmatpush2.bf16.msra.mxu0 %v9036
        %12356 = vmatprep.mubr.bf16.mxu0 %v2229
        %12357 = vmatmul.mubr.bf16.gmra.mxu0 %v2228
        %v12358 = vpop.f32.mrf.mxu0
        %v12359 = vadd.f32 %v12316, %v12358
        %v12360 = vpop.f32.mrf.mxu0
        %v12361 = vadd.f32 %v12318, %v12360
        %v12362 = vpop.f32.mrf.mxu0
        %v12363 = vadd.f32 %v12320, %v12362
        %v12364 = vpop.f32.mrf.mxu0
        %v12365 = vadd.f32 %v12322, %v12364
        %12366 = vdwg.mxu0
        %12367 = vmatprep.subr.bf16.mxu0 %v9277
        %12368 = vmatpush1.bf16.msra.mxu0 %v9276
        %12369 = vmatprep.subr.bf16.mxu0 %v9261
        %12370 = vmatpush1.bf16.msra.mxu0 %v9260
        %12371 = vmatprep.subr.bf16.mxu0 %v9245
        %12372 = vmatpush1.bf16.msra.mxu0 %v9244
        %12373 = vmatprep.subr.bf16.mxu0 %v9229
        %12374 = vmatpush1.bf16.msra.mxu0 %v9228
        %12375 = vmatprep.subr.bf16.mxu0 %v9213
        %12376 = vmatpush1.bf16.msra.mxu0 %v9212
        %12377 = vmatprep.subr.bf16.mxu0 %v9197
        %12378 = vmatpush1.bf16.msra.mxu0 %v9196
        %12379 = vmatprep.subr.bf16.mxu0 %v9181
        %12380 = vmatpush1.bf16.msra.mxu0 %v9180
        %12381 = vmatprep.subr.bf16.mxu0 %v9165
        %12382 = vmatpush1.bf16.msra.mxu0 %v9164
        %12383 = vmatprep.subr.bf16.mxu0 %v9405
        %12384 = vmatpush2.bf16.msra.mxu0 %v9404
        %12385 = vmatprep.subr.bf16.mxu0 %v9389
        %12386 = vmatpush2.bf16.msra.mxu0 %v9388
        %12387 = vmatprep.subr.bf16.mxu0 %v9373
        %12388 = vmatpush2.bf16.msra.mxu0 %v9372
        %12389 = vmatprep.subr.bf16.mxu0 %v9357
        %12390 = vmatpush2.bf16.msra.mxu0 %v9356
        %12391 = vmatprep.subr.bf16.mxu0 %v9341
        %12392 = vmatpush2.bf16.msra.mxu0 %v9340
        %12393 = vmatprep.subr.bf16.mxu0 %v9325
        %12394 = vmatpush2.bf16.msra.mxu0 %v9324
        %12395 = vmatprep.subr.bf16.mxu0 %v9309
        %12396 = vmatpush2.bf16.msra.mxu0 %v9308
        %12397 = vmatprep.subr.bf16.mxu0 %v9293
        %12398 = vmatpush2.bf16.msra.mxu0 %v9292
        %12399 = vmatprep.mubr.bf16.mxu0 %v2231
        %12400 = vmatmul.mubr.bf16.gmra.mxu0 %v2230
        %v12401 = vpop.f32.mrf.mxu0
        %v12402 = vadd.f32 %v12359, %v12401
        %v12403 = vpop.f32.mrf.mxu0
        %v12404 = vadd.f32 %v12361, %v12403
        %v12405 = vpop.f32.mrf.mxu0
        %v12406 = vadd.f32 %v12363, %v12405
        %v12407 = vpop.f32.mrf.mxu0
        %v12408 = vadd.f32 %v12365, %v12407
        %12409 = vdwg.mxu0
        %12410 = vmatprep.subr.bf16.mxu0 %v7743
        %12411 = vmatpush1.bf16.msra.mxu0 %v7742
        %12412 = vmatprep.subr.bf16.mxu0 %v7727
        %12413 = vmatpush1.bf16.msra.mxu0 %v7726
        %12414 = vmatprep.subr.bf16.mxu0 %v7711
        %12415 = vmatpush1.bf16.msra.mxu0 %v7710
        %12416 = vmatprep.subr.bf16.mxu0 %v7695
        %12417 = vmatpush1.bf16.msra.mxu0 %v7694
        %12418 = vmatprep.subr.bf16.mxu0 %v7679
        %12419 = vmatpush1.bf16.msra.mxu0 %v7678
        %12420 = vmatprep.subr.bf16.mxu0 %v7663
        %12421 = vmatpush1.bf16.msra.mxu0 %v7662
        %12422 = vmatprep.subr.bf16.mxu0 %v7647
        %12423 = vmatpush1.bf16.msra.mxu0 %v7646
        %12424 = vmatprep.subr.bf16.mxu0 %v7631
        %12425 = vmatpush1.bf16.msra.mxu0 %v7630
        %12426 = vmatprep.subr.bf16.mxu0 %v7871
        %12427 = vmatpush2.bf16.msra.mxu0 %v7870
        %12428 = vmatprep.subr.bf16.mxu0 %v7855
        %12429 = vmatpush2.bf16.msra.mxu0 %v7854
        %12430 = vmatprep.subr.bf16.mxu0 %v7839
        %12431 = vmatpush2.bf16.msra.mxu0 %v7838
        %12432 = vmatprep.subr.bf16.mxu0 %v7823
        %12433 = vmatpush2.bf16.msra.mxu0 %v7822
        %12434 = vmatprep.subr.bf16.mxu0 %v7807
        %12435 = vmatpush2.bf16.msra.mxu0 %v7806
        %12436 = vmatprep.subr.bf16.mxu0 %v7791
        %12437 = vmatpush2.bf16.msra.mxu0 %v7790
        %12438 = vmatprep.subr.bf16.mxu0 %v7775
        %12439 = vmatpush2.bf16.msra.mxu0 %v7774
        %12440 = vmatprep.subr.bf16.mxu0 %v7759
        %12441 = vmatpush2.bf16.msra.mxu0 %v7758
        %12442 = vmatprep.mubr.bf16.mxu0 %v2219
        %12443 = vmatmul.mubr.bf16.gmra.mxu0 %v2218
        %v12444 = vpop.f32.mrf.mxu0
        %v12445 = vadd.f32 0.0, %v12444
        %v12446 = vpop.f32.mrf.mxu0
        %v12447 = vadd.f32 0.0, %v12446
        %v12448 = vpop.f32.mrf.mxu0
        %v12449 = vadd.f32 0.0, %v12448
        %v12450 = vpop.f32.mrf.mxu0
        %v12451 = vadd.f32 0.0, %v12450
        %12452 = vdwg.mxu0
        %12453 = vmatprep.subr.bf16.mxu0 %v7999
        %12454 = vmatpush1.bf16.msra.mxu0 %v7998
        %12455 = vmatprep.subr.bf16.mxu0 %v7983
        %12456 = vmatpush1.bf16.msra.mxu0 %v7982
        %12457 = vmatprep.subr.bf16.mxu0 %v7967
        %12458 = vmatpush1.bf16.msra.mxu0 %v7966
        %12459 = vmatprep.subr.bf16.mxu0 %v7951
        %12460 = vmatpush1.bf16.msra.mxu0 %v7950
        %12461 = vmatprep.subr.bf16.mxu0 %v7935
        %12462 = vmatpush1.bf16.msra.mxu0 %v7934
        %12463 = vmatprep.subr.bf16.mxu0 %v7919
        %12464 = vmatpush1.bf16.msra.mxu0 %v7918
        %12465 = vmatprep.subr.bf16.mxu0 %v7903
        %12466 = vmatpush1.bf16.msra.mxu0 %v7902
        %12467 = vmatprep.subr.bf16.mxu0 %v7887
        %12468 = vmatpush1.bf16.msra.mxu0 %v7886
        %12469 = vmatprep.subr.bf16.mxu0 %v8127
        %12470 = vmatpush2.bf16.msra.mxu0 %v8126
        %12471 = vmatprep.subr.bf16.mxu0 %v8111
        %12472 = vmatpush2.bf16.msra.mxu0 %v8110
        %12473 = vmatprep.subr.bf16.mxu0 %v8095
        %12474 = vmatpush2.bf16.msra.mxu0 %v8094
        %12475 = vmatprep.subr.bf16.mxu0 %v8079
        %12476 = vmatpush2.bf16.msra.mxu0 %v8078
        %12477 = vmatprep.subr.bf16.mxu0 %v8063
        %12478 = vmatpush2.bf16.msra.mxu0 %v8062
        %12479 = vmatprep.subr.bf16.mxu0 %v8047
        %12480 = vmatpush2.bf16.msra.mxu0 %v8046
        %12481 = vmatprep.subr.bf16.mxu0 %v8031
        %12482 = vmatpush2.bf16.msra.mxu0 %v8030
        %12483 = vmatprep.subr.bf16.mxu0 %v8015
        %12484 = vmatpush2.bf16.msra.mxu0 %v8014
        %12485 = vmatprep.mubr.bf16.mxu0 %v2221
        %12486 = vmatmul.mubr.bf16.gmra.mxu0 %v2220
        %v12487 = vpop.f32.mrf.mxu0
        %v12488 = vadd.f32 %v12445, %v12487
        %v12489 = vpop.f32.mrf.mxu0
        %v12490 = vadd.f32 %v12447, %v12489
        %v12491 = vpop.f32.mrf.mxu0
        %v12492 = vadd.f32 %v12449, %v12491
        %v12493 = vpop.f32.mrf.mxu0
        %v12494 = vadd.f32 %v12451, %v12493
        %12495 = vdwg.mxu0
        %12496 = vmatprep.subr.bf16.mxu0 %v8255
        %12497 = vmatpush1.bf16.msra.mxu0 %v8254
        %12498 = vmatprep.subr.bf16.mxu0 %v8239
        %12499 = vmatpush1.bf16.msra.mxu0 %v8238
        %12500 = vmatprep.subr.bf16.mxu0 %v8223
        %12501 = vmatpush1.bf16.msra.mxu0 %v8222
        %12502 = vmatprep.subr.bf16.mxu0 %v8207
        %12503 = vmatpush1.bf16.msra.mxu0 %v8206
        %12504 = vmatprep.subr.bf16.mxu0 %v8191
        %12505 = vmatpush1.bf16.msra.mxu0 %v8190
        %12506 = vmatprep.subr.bf16.mxu0 %v8175
        %12507 = vmatpush1.bf16.msra.mxu0 %v8174
        %12508 = vmatprep.subr.bf16.mxu0 %v8159
        %12509 = vmatpush1.bf16.msra.mxu0 %v8158
        %12510 = vmatprep.subr.bf16.mxu0 %v8143
        %12511 = vmatpush1.bf16.msra.mxu0 %v8142
        %12512 = vmatprep.subr.bf16.mxu0 %v8383
        %12513 = vmatpush2.bf16.msra.mxu0 %v8382
        %12514 = vmatprep.subr.bf16.mxu0 %v8367
        %12515 = vmatpush2.bf16.msra.mxu0 %v8366
        %12516 = vmatprep.subr.bf16.mxu0 %v8351
        %12517 = vmatpush2.bf16.msra.mxu0 %v8350
        %12518 = vmatprep.subr.bf16.mxu0 %v8335
        %12519 = vmatpush2.bf16.msra.mxu0 %v8334
        %12520 = vmatprep.subr.bf16.mxu0 %v8319
        %12521 = vmatpush2.bf16.msra.mxu0 %v8318
        %12522 = vmatprep.subr.bf16.mxu0 %v8303
        %12523 = vmatpush2.bf16.msra.mxu0 %v8302
        %12524 = vmatprep.subr.bf16.mxu0 %v8287
        %12525 = vmatpush2.bf16.msra.mxu0 %v8286
        %12526 = vmatprep.subr.bf16.mxu0 %v8271
        %12527 = vmatpush2.bf16.msra.mxu0 %v8270
        %12528 = vmatprep.mubr.bf16.mxu0 %v2223
        %12529 = vmatmul.mubr.bf16.gmra.mxu0 %v2222
        %v12530 = vpop.f32.mrf.mxu0
        %v12531 = vadd.f32 %v12488, %v12530
        %v12532 = vpop.f32.mrf.mxu0
        %v12533 = vadd.f32 %v12490, %v12532
        %v12534 = vpop.f32.mrf.mxu0
        %v12535 = vadd.f32 %v12492, %v12534
        %v12536 = vpop.f32.mrf.mxu0
        %v12537 = vadd.f32 %v12494, %v12536
        %12538 = vdwg.mxu0
        %12539 = vmatprep.subr.bf16.mxu0 %v8511
        %12540 = vmatpush1.bf16.msra.mxu0 %v8510
        %12541 = vmatprep.subr.bf16.mxu0 %v8495
        %12542 = vmatpush1.bf16.msra.mxu0 %v8494
        %12543 = vmatprep.subr.bf16.mxu0 %v8479
        %12544 = vmatpush1.bf16.msra.mxu0 %v8478
        %12545 = vmatprep.subr.bf16.mxu0 %v8463
        %12546 = vmatpush1.bf16.msra.mxu0 %v8462
        %12547 = vmatprep.subr.bf16.mxu0 %v8447
        %12548 = vmatpush1.bf16.msra.mxu0 %v8446
        %12549 = vmatprep.subr.bf16.mxu0 %v8431
        %12550 = vmatpush1.bf16.msra.mxu0 %v8430
        %12551 = vmatprep.subr.bf16.mxu0 %v8415
        %12552 = vmatpush1.bf16.msra.mxu0 %v8414
        %12553 = vmatprep.subr.bf16.mxu0 %v8399
        %12554 = vmatpush1.bf16.msra.mxu0 %v8398
        %12555 = vmatprep.subr.bf16.mxu0 %v8639
        %12556 = vmatpush2.bf16.msra.mxu0 %v8638
        %12557 = vmatprep.subr.bf16.mxu0 %v8623
        %12558 = vmatpush2.bf16.msra.mxu0 %v8622
        %12559 = vmatprep.subr.bf16.mxu0 %v8607
        %12560 = vmatpush2.bf16.msra.mxu0 %v8606
        %12561 = vmatprep.subr.bf16.mxu0 %v8591
        %12562 = vmatpush2.bf16.msra.mxu0 %v8590
        %12563 = vmatprep.subr.bf16.mxu0 %v8575
        %12564 = vmatpush2.bf16.msra.mxu0 %v8574
        %12565 = vmatprep.subr.bf16.mxu0 %v8559
        %12566 = vmatpush2.bf16.msra.mxu0 %v8558
        %12567 = vmatprep.subr.bf16.mxu0 %v8543
        %12568 = vmatpush2.bf16.msra.mxu0 %v8542
        %12569 = vmatprep.subr.bf16.mxu0 %v8527
        %12570 = vmatpush2.bf16.msra.mxu0 %v8526
        %12571 = vmatprep.mubr.bf16.mxu0 %v2225
        %12572 = vmatmul.mubr.bf16.gmra.mxu0 %v2224
        %v12573 = vpop.f32.mrf.mxu0
        %v12574 = vadd.f32 %v12531, %v12573
        %v12575 = vpop.f32.mrf.mxu0
        %v12576 = vadd.f32 %v12533, %v12575
        %v12577 = vpop.f32.mrf.mxu0
        %v12578 = vadd.f32 %v12535, %v12577
        %v12579 = vpop.f32.mrf.mxu0
        %v12580 = vadd.f32 %v12537, %v12579
        %12581 = vdwg.mxu0
        %12582 = vmatprep.subr.bf16.mxu0 %v8767
        %12583 = vmatpush1.bf16.msra.mxu0 %v8766
        %12584 = vmatprep.subr.bf16.mxu0 %v8751
        %12585 = vmatpush1.bf16.msra.mxu0 %v8750
        %12586 = vmatprep.subr.bf16.mxu0 %v8735
        %12587 = vmatpush1.bf16.msra.mxu0 %v8734
        %12588 = vmatprep.subr.bf16.mxu0 %v8719
        %12589 = vmatpush1.bf16.msra.mxu0 %v8718
        %12590 = vmatprep.subr.bf16.mxu0 %v8703
        %12591 = vmatpush1.bf16.msra.mxu0 %v8702
        %12592 = vmatprep.subr.bf16.mxu0 %v8687
        %12593 = vmatpush1.bf16.msra.mxu0 %v8686
        %12594 = vmatprep.subr.bf16.mxu0 %v8671
        %12595 = vmatpush1.bf16.msra.mxu0 %v8670
        %12596 = vmatprep.subr.bf16.mxu0 %v8655
        %12597 = vmatpush1.bf16.msra.mxu0 %v8654
        %12598 = vmatprep.subr.bf16.mxu0 %v8895
        %12599 = vmatpush2.bf16.msra.mxu0 %v8894
        %12600 = vmatprep.subr.bf16.mxu0 %v8879
        %12601 = vmatpush2.bf16.msra.mxu0 %v8878
        %12602 = vmatprep.subr.bf16.mxu0 %v8863
        %12603 = vmatpush2.bf16.msra.mxu0 %v8862
        %12604 = vmatprep.subr.bf16.mxu0 %v8847
        %12605 = vmatpush2.bf16.msra.mxu0 %v8846
        %12606 = vmatprep.subr.bf16.mxu0 %v8831
        %12607 = vmatpush2.bf16.msra.mxu0 %v8830
        %12608 = vmatprep.subr.bf16.mxu0 %v8815
        %12609 = vmatpush2.bf16.msra.mxu0 %v8814
        %12610 = vmatprep.subr.bf16.mxu0 %v8799
        %12611 = vmatpush2.bf16.msra.mxu0 %v8798
        %12612 = vmatprep.subr.bf16.mxu0 %v8783
        %12613 = vmatpush2.bf16.msra.mxu0 %v8782
        %12614 = vmatprep.mubr.bf16.mxu0 %v2227
        %12615 = vmatmul.mubr.bf16.gmra.mxu0 %v2226
        %v12616 = vpop.f32.mrf.mxu0
        %v12617 = vadd.f32 %v12574, %v12616
        %v12618 = vpop.f32.mrf.mxu0
        %v12619 = vadd.f32 %v12576, %v12618
        %v12620 = vpop.f32.mrf.mxu0
        %v12621 = vadd.f32 %v12578, %v12620
        %v12622 = vpop.f32.mrf.mxu0
        %v12623 = vadd.f32 %v12580, %v12622
        %12624 = vdwg.mxu0
        %12625 = vmatprep.subr.bf16.mxu0 %v9023
        %12626 = vmatpush1.bf16.msra.mxu0 %v9022
        %12627 = vmatprep.subr.bf16.mxu0 %v9007
        %12628 = vmatpush1.bf16.msra.mxu0 %v9006
        %12629 = vmatprep.subr.bf16.mxu0 %v8991
        %12630 = vmatpush1.bf16.msra.mxu0 %v8990
        %12631 = vmatprep.subr.bf16.mxu0 %v8975
        %12632 = vmatpush1.bf16.msra.mxu0 %v8974
        %12633 = vmatprep.subr.bf16.mxu0 %v8959
        %12634 = vmatpush1.bf16.msra.mxu0 %v8958
        %12635 = vmatprep.subr.bf16.mxu0 %v8943
        %12636 = vmatpush1.bf16.msra.mxu0 %v8942
        %12637 = vmatprep.subr.bf16.mxu0 %v8927
        %12638 = vmatpush1.bf16.msra.mxu0 %v8926
        %12639 = vmatprep.subr.bf16.mxu0 %v8911
        %12640 = vmatpush1.bf16.msra.mxu0 %v8910
        %12641 = vmatprep.subr.bf16.mxu0 %v9151
        %12642 = vmatpush2.bf16.msra.mxu0 %v9150
        %12643 = vmatprep.subr.bf16.mxu0 %v9135
        %12644 = vmatpush2.bf16.msra.mxu0 %v9134
        %12645 = vmatprep.subr.bf16.mxu0 %v9119
        %12646 = vmatpush2.bf16.msra.mxu0 %v9118
        %12647 = vmatprep.subr.bf16.mxu0 %v9103
        %12648 = vmatpush2.bf16.msra.mxu0 %v9102
        %12649 = vmatprep.subr.bf16.mxu0 %v9087
        %12650 = vmatpush2.bf16.msra.mxu0 %v9086
        %12651 = vmatprep.subr.bf16.mxu0 %v9071
        %12652 = vmatpush2.bf16.msra.mxu0 %v9070
        %12653 = vmatprep.subr.bf16.mxu0 %v9055
        %12654 = vmatpush2.bf16.msra.mxu0 %v9054
        %12655 = vmatprep.subr.bf16.mxu0 %v9039
        %12656 = vmatpush2.bf16.msra.mxu0 %v9038
        %12657 = vmatprep.mubr.bf16.mxu0 %v2229
        %12658 = vmatmul.mubr.bf16.gmra.mxu0 %v2228
        %v12659 = vpop.f32.mrf.mxu0
        %v12660 = vadd.f32 %v12617, %v12659
        %v12661 = vpop.f32.mrf.mxu0
        %v12662 = vadd.f32 %v12619, %v12661
        %v12663 = vpop.f32.mrf.mxu0
        %v12664 = vadd.f32 %v12621, %v12663
        %v12665 = vpop.f32.mrf.mxu0
        %v12666 = vadd.f32 %v12623, %v12665
        %12667 = vdwg.mxu0
        %12668 = vmatprep.subr.bf16.mxu0 %v9279
        %12669 = vmatpush1.bf16.msra.mxu0 %v9278
        %12670 = vmatprep.subr.bf16.mxu0 %v9263
        %12671 = vmatpush1.bf16.msra.mxu0 %v9262
        %12672 = vmatprep.subr.bf16.mxu0 %v9247
        %12673 = vmatpush1.bf16.msra.mxu0 %v9246
        %12674 = vmatprep.subr.bf16.mxu0 %v9231
        %12675 = vmatpush1.bf16.msra.mxu0 %v9230
        %12676 = vmatprep.subr.bf16.mxu0 %v9215
        %12677 = vmatpush1.bf16.msra.mxu0 %v9214
        %12678 = vmatprep.subr.bf16.mxu0 %v9199
        %12679 = vmatpush1.bf16.msra.mxu0 %v9198
        %12680 = vmatprep.subr.bf16.mxu0 %v9183
        %12681 = vmatpush1.bf16.msra.mxu0 %v9182
        %12682 = vmatprep.subr.bf16.mxu0 %v9167
        %12683 = vmatpush1.bf16.msra.mxu0 %v9166
        %12684 = vmatprep.subr.bf16.mxu0 %v9407
        %12685 = vmatpush2.bf16.msra.mxu0 %v9406
        %12686 = vmatprep.subr.bf16.mxu0 %v9391
        %12687 = vmatpush2.bf16.msra.mxu0 %v9390
        %12688 = vmatprep.subr.bf16.mxu0 %v9375
        %12689 = vmatpush2.bf16.msra.mxu0 %v9374
        %12690 = vmatprep.subr.bf16.mxu0 %v9359
        %12691 = vmatpush2.bf16.msra.mxu0 %v9358
        %12692 = vmatprep.subr.bf16.mxu0 %v9343
        %12693 = vmatpush2.bf16.msra.mxu0 %v9342
        %12694 = vmatprep.subr.bf16.mxu0 %v9327
        %12695 = vmatpush2.bf16.msra.mxu0 %v9326
        %12696 = vmatprep.subr.bf16.mxu0 %v9311
        %12697 = vmatpush2.bf16.msra.mxu0 %v9310
        %12698 = vmatprep.subr.bf16.mxu0 %v9295
        %12699 = vmatpush2.bf16.msra.mxu0 %v9294
        %12700 = vmatprep.mubr.bf16.mxu0 %v2231
        %12701 = vmatmul.mubr.bf16.gmra.mxu0 %v2230
        %v12702 = vpop.f32.mrf.mxu0
        %v12703 = vadd.f32 %v12660, %v12702
        %v12704 = vpop.f32.mrf.mxu0
        %v12705 = vadd.f32 %v12662, %v12704
        %v12706 = vpop.f32.mrf.mxu0
        %v12707 = vadd.f32 %v12664, %v12706
        %v12708 = vpop.f32.mrf.mxu0
        %v12709 = vadd.f32 %v12666, %v12708
        %12710 = vdwg.mxu0
        %12711 = vmatprep.subr.bf16.mxu0 %v7745
        %12712 = vmatpush1.bf16.msra.mxu0 %v7744
        %12713 = vmatprep.subr.bf16.mxu0 %v7729
        %12714 = vmatpush1.bf16.msra.mxu0 %v7728
        %12715 = vmatprep.subr.bf16.mxu0 %v7713
        %12716 = vmatpush1.bf16.msra.mxu0 %v7712
        %12717 = vmatprep.subr.bf16.mxu0 %v7697
        %12718 = vmatpush1.bf16.msra.mxu0 %v7696
        %12719 = vmatprep.subr.bf16.mxu0 %v7681
        %12720 = vmatpush1.bf16.msra.mxu0 %v7680
        %12721 = vmatprep.subr.bf16.mxu0 %v7665
        %12722 = vmatpush1.bf16.msra.mxu0 %v7664
        %12723 = vmatprep.subr.bf16.mxu0 %v7649
        %12724 = vmatpush1.bf16.msra.mxu0 %v7648
        %12725 = vmatprep.subr.bf16.mxu0 %v7633
        %12726 = vmatpush1.bf16.msra.mxu0 %v7632
        %12727 = vmatprep.subr.bf16.mxu0 %v7873
        %12728 = vmatpush2.bf16.msra.mxu0 %v7872
        %12729 = vmatprep.subr.bf16.mxu0 %v7857
        %12730 = vmatpush2.bf16.msra.mxu0 %v7856
        %12731 = vmatprep.subr.bf16.mxu0 %v7841
        %12732 = vmatpush2.bf16.msra.mxu0 %v7840
        %12733 = vmatprep.subr.bf16.mxu0 %v7825
        %12734 = vmatpush2.bf16.msra.mxu0 %v7824
        %12735 = vmatprep.subr.bf16.mxu0 %v7809
        %12736 = vmatpush2.bf16.msra.mxu0 %v7808
        %12737 = vmatprep.subr.bf16.mxu0 %v7793
        %12738 = vmatpush2.bf16.msra.mxu0 %v7792
        %12739 = vmatprep.subr.bf16.mxu0 %v7777
        %12740 = vmatpush2.bf16.msra.mxu0 %v7776
        %12741 = vmatprep.subr.bf16.mxu0 %v7761
        %12742 = vmatpush2.bf16.msra.mxu0 %v7760
        %12743 = vmatprep.mubr.bf16.mxu0 %v2219
        %12744 = vmatmul.mubr.bf16.gmra.mxu0 %v2218
        %v12745 = vpop.f32.mrf.mxu0
        %v12746 = vadd.f32 0.0, %v12745
        %v12747 = vpop.f32.mrf.mxu0
        %v12748 = vadd.f32 0.0, %v12747
        %v12749 = vpop.f32.mrf.mxu0
        %v12750 = vadd.f32 0.0, %v12749
        %v12751 = vpop.f32.mrf.mxu0
        %v12752 = vadd.f32 0.0, %v12751
        %12753 = vdwg.mxu0
        %12754 = vmatprep.subr.bf16.mxu0 %v8001
        %12755 = vmatpush1.bf16.msra.mxu0 %v8000
        %12756 = vmatprep.subr.bf16.mxu0 %v7985
        %12757 = vmatpush1.bf16.msra.mxu0 %v7984
        %12758 = vmatprep.subr.bf16.mxu0 %v7969
        %12759 = vmatpush1.bf16.msra.mxu0 %v7968
        %12760 = vmatprep.subr.bf16.mxu0 %v7953
        %12761 = vmatpush1.bf16.msra.mxu0 %v7952
        %12762 = vmatprep.subr.bf16.mxu0 %v7937
        %12763 = vmatpush1.bf16.msra.mxu0 %v7936
        %12764 = vmatprep.subr.bf16.mxu0 %v7921
        %12765 = vmatpush1.bf16.msra.mxu0 %v7920
        %12766 = vmatprep.subr.bf16.mxu0 %v7905
        %12767 = vmatpush1.bf16.msra.mxu0 %v7904
        %12768 = vmatprep.subr.bf16.mxu0 %v7889
        %12769 = vmatpush1.bf16.msra.mxu0 %v7888
        %12770 = vmatprep.subr.bf16.mxu0 %v8129
        %12771 = vmatpush2.bf16.msra.mxu0 %v8128
        %12772 = vmatprep.subr.bf16.mxu0 %v8113
        %12773 = vmatpush2.bf16.msra.mxu0 %v8112
        %12774 = vmatprep.subr.bf16.mxu0 %v8097
        %12775 = vmatpush2.bf16.msra.mxu0 %v8096
        %12776 = vmatprep.subr.bf16.mxu0 %v8081
        %12777 = vmatpush2.bf16.msra.mxu0 %v8080
        %12778 = vmatprep.subr.bf16.mxu0 %v8065
        %12779 = vmatpush2.bf16.msra.mxu0 %v8064
        %12780 = vmatprep.subr.bf16.mxu0 %v8049
        %12781 = vmatpush2.bf16.msra.mxu0 %v8048
        %12782 = vmatprep.subr.bf16.mxu0 %v8033
        %12783 = vmatpush2.bf16.msra.mxu0 %v8032
        %12784 = vmatprep.subr.bf16.mxu0 %v8017
        %12785 = vmatpush2.bf16.msra.mxu0 %v8016
        %12786 = vmatprep.mubr.bf16.mxu0 %v2221
        %12787 = vmatmul.mubr.bf16.gmra.mxu0 %v2220
        %v12788 = vpop.f32.mrf.mxu0
        %v12789 = vadd.f32 %v12746, %v12788
        %v12790 = vpop.f32.mrf.mxu0
        %v12791 = vadd.f32 %v12748, %v12790
        %v12792 = vpop.f32.mrf.mxu0
        %v12793 = vadd.f32 %v12750, %v12792
        %v12794 = vpop.f32.mrf.mxu0
        %v12795 = vadd.f32 %v12752, %v12794
        %12796 = vdwg.mxu0
        %12797 = vmatprep.subr.bf16.mxu0 %v8257
        %12798 = vmatpush1.bf16.msra.mxu0 %v8256
        %12799 = vmatprep.subr.bf16.mxu0 %v8241
        %12800 = vmatpush1.bf16.msra.mxu0 %v8240
        %12801 = vmatprep.subr.bf16.mxu0 %v8225
        %12802 = vmatpush1.bf16.msra.mxu0 %v8224
        %12803 = vmatprep.subr.bf16.mxu0 %v8209
        %12804 = vmatpush1.bf16.msra.mxu0 %v8208
        %12805 = vmatprep.subr.bf16.mxu0 %v8193
        %12806 = vmatpush1.bf16.msra.mxu0 %v8192
        %12807 = vmatprep.subr.bf16.mxu0 %v8177
        %12808 = vmatpush1.bf16.msra.mxu0 %v8176
        %12809 = vmatprep.subr.bf16.mxu0 %v8161
        %12810 = vmatpush1.bf16.msra.mxu0 %v8160
        %12811 = vmatprep.subr.bf16.mxu0 %v8145
        %12812 = vmatpush1.bf16.msra.mxu0 %v8144
        %12813 = vmatprep.subr.bf16.mxu0 %v8385
        %12814 = vmatpush2.bf16.msra.mxu0 %v8384
        %12815 = vmatprep.subr.bf16.mxu0 %v8369
        %12816 = vmatpush2.bf16.msra.mxu0 %v8368
        %12817 = vmatprep.subr.bf16.mxu0 %v8353
        %12818 = vmatpush2.bf16.msra.mxu0 %v8352
        %12819 = vmatprep.subr.bf16.mxu0 %v8337
        %12820 = vmatpush2.bf16.msra.mxu0 %v8336
        %12821 = vmatprep.subr.bf16.mxu0 %v8321
        %12822 = vmatpush2.bf16.msra.mxu0 %v8320
        %12823 = vmatprep.subr.bf16.mxu0 %v8305
        %12824 = vmatpush2.bf16.msra.mxu0 %v8304
        %12825 = vmatprep.subr.bf16.mxu0 %v8289
        %12826 = vmatpush2.bf16.msra.mxu0 %v8288
        %12827 = vmatprep.subr.bf16.mxu0 %v8273
        %12828 = vmatpush2.bf16.msra.mxu0 %v8272
        %12829 = vmatprep.mubr.bf16.mxu0 %v2223
        %12830 = vmatmul.mubr.bf16.gmra.mxu0 %v2222
        %v12831 = vpop.f32.mrf.mxu0
        %v12832 = vadd.f32 %v12789, %v12831
        %v12833 = vpop.f32.mrf.mxu0
        %v12834 = vadd.f32 %v12791, %v12833
        %v12835 = vpop.f32.mrf.mxu0
        %v12836 = vadd.f32 %v12793, %v12835
        %v12837 = vpop.f32.mrf.mxu0
        %v12838 = vadd.f32 %v12795, %v12837
        %12839 = vdwg.mxu0
        %12840 = vmatprep.subr.bf16.mxu0 %v8513
        %12841 = vmatpush1.bf16.msra.mxu0 %v8512
        %12842 = vmatprep.subr.bf16.mxu0 %v8497
        %12843 = vmatpush1.bf16.msra.mxu0 %v8496
        %12844 = vmatprep.subr.bf16.mxu0 %v8481
        %12845 = vmatpush1.bf16.msra.mxu0 %v8480
        %12846 = vmatprep.subr.bf16.mxu0 %v8465
        %12847 = vmatpush1.bf16.msra.mxu0 %v8464
        %12848 = vmatprep.subr.bf16.mxu0 %v8449
        %12849 = vmatpush1.bf16.msra.mxu0 %v8448
        %12850 = vmatprep.subr.bf16.mxu0 %v8433
        %12851 = vmatpush1.bf16.msra.mxu0 %v8432
        %12852 = vmatprep.subr.bf16.mxu0 %v8417
        %12853 = vmatpush1.bf16.msra.mxu0 %v8416
        %12854 = vmatprep.subr.bf16.mxu0 %v8401
        %12855 = vmatpush1.bf16.msra.mxu0 %v8400
        %12856 = vmatprep.subr.bf16.mxu0 %v8641
        %12857 = vmatpush2.bf16.msra.mxu0 %v8640
        %12858 = vmatprep.subr.bf16.mxu0 %v8625
        %12859 = vmatpush2.bf16.msra.mxu0 %v8624
        %12860 = vmatprep.subr.bf16.mxu0 %v8609
        %12861 = vmatpush2.bf16.msra.mxu0 %v8608
        %12862 = vmatprep.subr.bf16.mxu0 %v8593
        %12863 = vmatpush2.bf16.msra.mxu0 %v8592
        %12864 = vmatprep.subr.bf16.mxu0 %v8577
        %12865 = vmatpush2.bf16.msra.mxu0 %v8576
        %12866 = vmatprep.subr.bf16.mxu0 %v8561
        %12867 = vmatpush2.bf16.msra.mxu0 %v8560
        %12868 = vmatprep.subr.bf16.mxu0 %v8545
        %12869 = vmatpush2.bf16.msra.mxu0 %v8544
        %12870 = vmatprep.subr.bf16.mxu0 %v8529
        %12871 = vmatpush2.bf16.msra.mxu0 %v8528
        %12872 = vmatprep.mubr.bf16.mxu0 %v2225
        %12873 = vmatmul.mubr.bf16.gmra.mxu0 %v2224
        %v12874 = vpop.f32.mrf.mxu0
        %v12875 = vadd.f32 %v12832, %v12874
        %v12876 = vpop.f32.mrf.mxu0
        %v12877 = vadd.f32 %v12834, %v12876
        %v12878 = vpop.f32.mrf.mxu0
        %v12879 = vadd.f32 %v12836, %v12878
        %v12880 = vpop.f32.mrf.mxu0
        %v12881 = vadd.f32 %v12838, %v12880
        %12882 = vdwg.mxu0
        %12883 = vmatprep.subr.bf16.mxu0 %v8769
        %12884 = vmatpush1.bf16.msra.mxu0 %v8768
        %12885 = vmatprep.subr.bf16.mxu0 %v8753
        %12886 = vmatpush1.bf16.msra.mxu0 %v8752
        %12887 = vmatprep.subr.bf16.mxu0 %v8737
        %12888 = vmatpush1.bf16.msra.mxu0 %v8736
        %12889 = vmatprep.subr.bf16.mxu0 %v8721
        %12890 = vmatpush1.bf16.msra.mxu0 %v8720
        %12891 = vmatprep.subr.bf16.mxu0 %v8705
        %12892 = vmatpush1.bf16.msra.mxu0 %v8704
        %12893 = vmatprep.subr.bf16.mxu0 %v8689
        %12894 = vmatpush1.bf16.msra.mxu0 %v8688
        %12895 = vmatprep.subr.bf16.mxu0 %v8673
        %12896 = vmatpush1.bf16.msra.mxu0 %v8672
        %12897 = vmatprep.subr.bf16.mxu0 %v8657
        %12898 = vmatpush1.bf16.msra.mxu0 %v8656
        %12899 = vmatprep.subr.bf16.mxu0 %v8897
        %12900 = vmatpush2.bf16.msra.mxu0 %v8896
        %12901 = vmatprep.subr.bf16.mxu0 %v8881
        %12902 = vmatpush2.bf16.msra.mxu0 %v8880
        %12903 = vmatprep.subr.bf16.mxu0 %v8865
        %12904 = vmatpush2.bf16.msra.mxu0 %v8864
        %12905 = vmatprep.subr.bf16.mxu0 %v8849
        %12906 = vmatpush2.bf16.msra.mxu0 %v8848
        %12907 = vmatprep.subr.bf16.mxu0 %v8833
        %12908 = vmatpush2.bf16.msra.mxu0 %v8832
        %12909 = vmatprep.subr.bf16.mxu0 %v8817
        %12910 = vmatpush2.bf16.msra.mxu0 %v8816
        %12911 = vmatprep.subr.bf16.mxu0 %v8801
        %12912 = vmatpush2.bf16.msra.mxu0 %v8800
        %12913 = vmatprep.subr.bf16.mxu0 %v8785
        %12914 = vmatpush2.bf16.msra.mxu0 %v8784
        %12915 = vmatprep.mubr.bf16.mxu0 %v2227
        %12916 = vmatmul.mubr.bf16.gmra.mxu0 %v2226
        %v12917 = vpop.f32.mrf.mxu0
        %v12918 = vadd.f32 %v12875, %v12917
        %v12919 = vpop.f32.mrf.mxu0
        %v12920 = vadd.f32 %v12877, %v12919
        %v12921 = vpop.f32.mrf.mxu0
        %v12922 = vadd.f32 %v12879, %v12921
        %v12923 = vpop.f32.mrf.mxu0
        %v12924 = vadd.f32 %v12881, %v12923
        %12925 = vdwg.mxu0
        %12926 = vmatprep.subr.bf16.mxu0 %v9025
        %12927 = vmatpush1.bf16.msra.mxu0 %v9024
        %12928 = vmatprep.subr.bf16.mxu0 %v9009
        %12929 = vmatpush1.bf16.msra.mxu0 %v9008
        %12930 = vmatprep.subr.bf16.mxu0 %v8993
        %12931 = vmatpush1.bf16.msra.mxu0 %v8992
        %12932 = vmatprep.subr.bf16.mxu0 %v8977
        %12933 = vmatpush1.bf16.msra.mxu0 %v8976
        %12934 = vmatprep.subr.bf16.mxu0 %v8961
        %12935 = vmatpush1.bf16.msra.mxu0 %v8960
        %12936 = vmatprep.subr.bf16.mxu0 %v8945
        %12937 = vmatpush1.bf16.msra.mxu0 %v8944
        %12938 = vmatprep.subr.bf16.mxu0 %v8929
        %12939 = vmatpush1.bf16.msra.mxu0 %v8928
        %12940 = vmatprep.subr.bf16.mxu0 %v8913
        %12941 = vmatpush1.bf16.msra.mxu0 %v8912
        %12942 = vmatprep.subr.bf16.mxu0 %v9153
        %12943 = vmatpush2.bf16.msra.mxu0 %v9152
        %12944 = vmatprep.subr.bf16.mxu0 %v9137
        %12945 = vmatpush2.bf16.msra.mxu0 %v9136
        %12946 = vmatprep.subr.bf16.mxu0 %v9121
        %12947 = vmatpush2.bf16.msra.mxu0 %v9120
        %12948 = vmatprep.subr.bf16.mxu0 %v9105
        %12949 = vmatpush2.bf16.msra.mxu0 %v9104
        %12950 = vmatprep.subr.bf16.mxu0 %v9089
        %12951 = vmatpush2.bf16.msra.mxu0 %v9088
        %12952 = vmatprep.subr.bf16.mxu0 %v9073
        %12953 = vmatpush2.bf16.msra.mxu0 %v9072
        %12954 = vmatprep.subr.bf16.mxu0 %v9057
        %12955 = vmatpush2.bf16.msra.mxu0 %v9056
        %12956 = vmatprep.subr.bf16.mxu0 %v9041
        %12957 = vmatpush2.bf16.msra.mxu0 %v9040
        %12958 = vmatprep.mubr.bf16.mxu0 %v2229
        %12959 = vmatmul.mubr.bf16.gmra.mxu0 %v2228
        %v12960 = vpop.f32.mrf.mxu0
        %v12961 = vadd.f32 %v12918, %v12960
        %v12962 = vpop.f32.mrf.mxu0
        %v12963 = vadd.f32 %v12920, %v12962
        %v12964 = vpop.f32.mrf.mxu0
        %v12965 = vadd.f32 %v12922, %v12964
        %v12966 = vpop.f32.mrf.mxu0
        %v12967 = vadd.f32 %v12924, %v12966
        %12968 = vdwg.mxu0
        %12969 = vmatprep.subr.bf16.mxu0 %v9281
        %12970 = vmatpush1.bf16.msra.mxu0 %v9280
        %12971 = vmatprep.subr.bf16.mxu0 %v9265
        %12972 = vmatpush1.bf16.msra.mxu0 %v9264
        %12973 = vmatprep.subr.bf16.mxu0 %v9249
        %12974 = vmatpush1.bf16.msra.mxu0 %v9248
        %12975 = vmatprep.subr.bf16.mxu0 %v9233
        %12976 = vmatpush1.bf16.msra.mxu0 %v9232
        %12977 = vmatprep.subr.bf16.mxu0 %v9217
        %12978 = vmatpush1.bf16.msra.mxu0 %v9216
        %12979 = vmatprep.subr.bf16.mxu0 %v9201
        %12980 = vmatpush1.bf16.msra.mxu0 %v9200
        %12981 = vmatprep.subr.bf16.mxu0 %v9185
        %12982 = vmatpush1.bf16.msra.mxu0 %v9184
        %12983 = vmatprep.subr.bf16.mxu0 %v9169
        %12984 = vmatpush1.bf16.msra.mxu0 %v9168
        %12985 = vmatprep.subr.bf16.mxu0 %v9409
        %12986 = vmatpush2.bf16.msra.mxu0 %v9408
        %12987 = vmatprep.subr.bf16.mxu0 %v9393
        %12988 = vmatpush2.bf16.msra.mxu0 %v9392
        %12989 = vmatprep.subr.bf16.mxu0 %v9377
        %12990 = vmatpush2.bf16.msra.mxu0 %v9376
        %12991 = vmatprep.subr.bf16.mxu0 %v9361
        %12992 = vmatpush2.bf16.msra.mxu0 %v9360
        %12993 = vmatprep.subr.bf16.mxu0 %v9345
        %12994 = vmatpush2.bf16.msra.mxu0 %v9344
        %12995 = vmatprep.subr.bf16.mxu0 %v9329
        %12996 = vmatpush2.bf16.msra.mxu0 %v9328
        %12997 = vmatprep.subr.bf16.mxu0 %v9313
        %12998 = vmatpush2.bf16.msra.mxu0 %v9312
        %12999 = vmatprep.subr.bf16.mxu0 %v9297
        %13000 = vmatpush2.bf16.msra.mxu0 %v9296
        %13001 = vmatprep.mubr.bf16.mxu0 %v2231
        %13002 = vmatmul.mubr.bf16.gmra.mxu0 %v2230
        %v13003 = vpop.f32.mrf.mxu0
        %v13004 = vadd.f32 %v12961, %v13003
        %v13005 = vpop.f32.mrf.mxu0
        %v13006 = vadd.f32 %v12963, %v13005
        %v13007 = vpop.f32.mrf.mxu0
        %v13008 = vadd.f32 %v12965, %v13007
        %v13009 = vpop.f32.mrf.mxu0
        %v13010 = vadd.f32 %v12967, %v13009
        %13011 = vdwg.mxu0
        %13012 = vmatprep.subr.bf16.mxu0 %v7747
        %13013 = vmatpush1.bf16.msra.mxu0 %v7746
        %13014 = vmatprep.subr.bf16.mxu0 %v7731
        %13015 = vmatpush1.bf16.msra.mxu0 %v7730
        %13016 = vmatprep.subr.bf16.mxu0 %v7715
        %13017 = vmatpush1.bf16.msra.mxu0 %v7714
        %13018 = vmatprep.subr.bf16.mxu0 %v7699
        %13019 = vmatpush1.bf16.msra.mxu0 %v7698
        %13020 = vmatprep.subr.bf16.mxu0 %v7683
        %13021 = vmatpush1.bf16.msra.mxu0 %v7682
        %13022 = vmatprep.subr.bf16.mxu0 %v7667
        %13023 = vmatpush1.bf16.msra.mxu0 %v7666
        %13024 = vmatprep.subr.bf16.mxu0 %v7651
        %13025 = vmatpush1.bf16.msra.mxu0 %v7650
        %13026 = vmatprep.subr.bf16.mxu0 %v7635
        %13027 = vmatpush1.bf16.msra.mxu0 %v7634
        %13028 = vmatprep.subr.bf16.mxu0 %v7875
        %13029 = vmatpush2.bf16.msra.mxu0 %v7874
        %13030 = vmatprep.subr.bf16.mxu0 %v7859
        %13031 = vmatpush2.bf16.msra.mxu0 %v7858
        %13032 = vmatprep.subr.bf16.mxu0 %v7843
        %13033 = vmatpush2.bf16.msra.mxu0 %v7842
        %13034 = vmatprep.subr.bf16.mxu0 %v7827
        %13035 = vmatpush2.bf16.msra.mxu0 %v7826
        %13036 = vmatprep.subr.bf16.mxu0 %v7811
        %13037 = vmatpush2.bf16.msra.mxu0 %v7810
        %13038 = vmatprep.subr.bf16.mxu0 %v7795
        %13039 = vmatpush2.bf16.msra.mxu0 %v7794
        %13040 = vmatprep.subr.bf16.mxu0 %v7779
        %13041 = vmatpush2.bf16.msra.mxu0 %v7778
        %13042 = vmatprep.subr.bf16.mxu0 %v7763
        %13043 = vmatpush2.bf16.msra.mxu0 %v7762
        %13044 = vmatprep.mubr.bf16.mxu0 %v2219
        %13045 = vmatmul.mubr.bf16.gmra.mxu0 %v2218
        %v13046 = vpop.f32.mrf.mxu0
        %v13047 = vadd.f32 0.0, %v13046
        %v13048 = vpop.f32.mrf.mxu0
        %v13049 = vadd.f32 0.0, %v13048
        %v13050 = vpop.f32.mrf.mxu0
        %v13051 = vadd.f32 0.0, %v13050
        %v13052 = vpop.f32.mrf.mxu0
        %v13053 = vadd.f32 0.0, %v13052
        %13054 = vdwg.mxu0
        %13055 = vmatprep.subr.bf16.mxu0 %v8003
        %13056 = vmatpush1.bf16.msra.mxu0 %v8002
        %13057 = vmatprep.subr.bf16.mxu0 %v7987
        %13058 = vmatpush1.bf16.msra.mxu0 %v7986
        %13059 = vmatprep.subr.bf16.mxu0 %v7971
        %13060 = vmatpush1.bf16.msra.mxu0 %v7970
        %13061 = vmatprep.subr.bf16.mxu0 %v7955
        %13062 = vmatpush1.bf16.msra.mxu0 %v7954
        %13063 = vmatprep.subr.bf16.mxu0 %v7939
        %13064 = vmatpush1.bf16.msra.mxu0 %v7938
        %13065 = vmatprep.subr.bf16.mxu0 %v7923
        %13066 = vmatpush1.bf16.msra.mxu0 %v7922
        %13067 = vmatprep.subr.bf16.mxu0 %v7907
        %13068 = vmatpush1.bf16.msra.mxu0 %v7906
        %13069 = vmatprep.subr.bf16.mxu0 %v7891
        %13070 = vmatpush1.bf16.msra.mxu0 %v7890
        %13071 = vmatprep.subr.bf16.mxu0 %v8131
        %13072 = vmatpush2.bf16.msra.mxu0 %v8130
        %13073 = vmatprep.subr.bf16.mxu0 %v8115
        %13074 = vmatpush2.bf16.msra.mxu0 %v8114
        %13075 = vmatprep.subr.bf16.mxu0 %v8099
        %13076 = vmatpush2.bf16.msra.mxu0 %v8098
        %13077 = vmatprep.subr.bf16.mxu0 %v8083
        %13078 = vmatpush2.bf16.msra.mxu0 %v8082
        %13079 = vmatprep.subr.bf16.mxu0 %v8067
        %13080 = vmatpush2.bf16.msra.mxu0 %v8066
        %13081 = vmatprep.subr.bf16.mxu0 %v8051
        %13082 = vmatpush2.bf16.msra.mxu0 %v8050
        %13083 = vmatprep.subr.bf16.mxu0 %v8035
        %13084 = vmatpush2.bf16.msra.mxu0 %v8034
        %13085 = vmatprep.subr.bf16.mxu0 %v8019
        %13086 = vmatpush2.bf16.msra.mxu0 %v8018
        %13087 = vmatprep.mubr.bf16.mxu0 %v2221
        %13088 = vmatmul.mubr.bf16.gmra.mxu0 %v2220
        %v13089 = vpop.f32.mrf.mxu0
        %v13090 = vadd.f32 %v13047, %v13089
        %v13091 = vpop.f32.mrf.mxu0
        %v13092 = vadd.f32 %v13049, %v13091
        %v13093 = vpop.f32.mrf.mxu0
        %v13094 = vadd.f32 %v13051, %v13093
        %v13095 = vpop.f32.mrf.mxu0
        %v13096 = vadd.f32 %v13053, %v13095
        %13097 = vdwg.mxu0
        %13098 = vmatprep.subr.bf16.mxu0 %v8259
        %13099 = vmatpush1.bf16.msra.mxu0 %v8258
        %13100 = vmatprep.subr.bf16.mxu0 %v8243
        %13101 = vmatpush1.bf16.msra.mxu0 %v8242
        %13102 = vmatprep.subr.bf16.mxu0 %v8227
        %13103 = vmatpush1.bf16.msra.mxu0 %v8226
        %13104 = vmatprep.subr.bf16.mxu0 %v8211
        %13105 = vmatpush1.bf16.msra.mxu0 %v8210
        %13106 = vmatprep.subr.bf16.mxu0 %v8195
        %13107 = vmatpush1.bf16.msra.mxu0 %v8194
        %13108 = vmatprep.subr.bf16.mxu0 %v8179
        %13109 = vmatpush1.bf16.msra.mxu0 %v8178
        %13110 = vmatprep.subr.bf16.mxu0 %v8163
        %13111 = vmatpush1.bf16.msra.mxu0 %v8162
        %13112 = vmatprep.subr.bf16.mxu0 %v8147
        %13113 = vmatpush1.bf16.msra.mxu0 %v8146
        %13114 = vmatprep.subr.bf16.mxu0 %v8387
        %13115 = vmatpush2.bf16.msra.mxu0 %v8386
        %13116 = vmatprep.subr.bf16.mxu0 %v8371
        %13117 = vmatpush2.bf16.msra.mxu0 %v8370
        %13118 = vmatprep.subr.bf16.mxu0 %v8355
        %13119 = vmatpush2.bf16.msra.mxu0 %v8354
        %13120 = vmatprep.subr.bf16.mxu0 %v8339
        %13121 = vmatpush2.bf16.msra.mxu0 %v8338
        %13122 = vmatprep.subr.bf16.mxu0 %v8323
        %13123 = vmatpush2.bf16.msra.mxu0 %v8322
        %13124 = vmatprep.subr.bf16.mxu0 %v8307
        %13125 = vmatpush2.bf16.msra.mxu0 %v8306
        %13126 = vmatprep.subr.bf16.mxu0 %v8291
        %13127 = vmatpush2.bf16.msra.mxu0 %v8290
        %13128 = vmatprep.subr.bf16.mxu0 %v8275
        %13129 = vmatpush2.bf16.msra.mxu0 %v8274
        %13130 = vmatprep.mubr.bf16.mxu0 %v2223
        %13131 = vmatmul.mubr.bf16.gmra.mxu0 %v2222
        %v13132 = vpop.f32.mrf.mxu0
        %v13133 = vadd.f32 %v13090, %v13132
        %v13134 = vpop.f32.mrf.mxu0
        %v13135 = vadd.f32 %v13092, %v13134
        %v13136 = vpop.f32.mrf.mxu0
        %v13137 = vadd.f32 %v13094, %v13136
        %v13138 = vpop.f32.mrf.mxu0
        %v13139 = vadd.f32 %v13096, %v13138
        %13140 = vdwg.mxu0
        %13141 = vmatprep.subr.bf16.mxu0 %v8515
        %13142 = vmatpush1.bf16.msra.mxu0 %v8514
        %13143 = vmatprep.subr.bf16.mxu0 %v8499
        %13144 = vmatpush1.bf16.msra.mxu0 %v8498
        %13145 = vmatprep.subr.bf16.mxu0 %v8483
        %13146 = vmatpush1.bf16.msra.mxu0 %v8482
        %13147 = vmatprep.subr.bf16.mxu0 %v8467
        %13148 = vmatpush1.bf16.msra.mxu0 %v8466
        %13149 = vmatprep.subr.bf16.mxu0 %v8451
        %13150 = vmatpush1.bf16.msra.mxu0 %v8450
        %13151 = vmatprep.subr.bf16.mxu0 %v8435
        %13152 = vmatpush1.bf16.msra.mxu0 %v8434
        %13153 = vmatprep.subr.bf16.mxu0 %v8419
        %13154 = vmatpush1.bf16.msra.mxu0 %v8418
        %13155 = vmatprep.subr.bf16.mxu0 %v8403
        %13156 = vmatpush1.bf16.msra.mxu0 %v8402
        %13157 = vmatprep.subr.bf16.mxu0 %v8643
        %13158 = vmatpush2.bf16.msra.mxu0 %v8642
        %13159 = vmatprep.subr.bf16.mxu0 %v8627
        %13160 = vmatpush2.bf16.msra.mxu0 %v8626
        %13161 = vmatprep.subr.bf16.mxu0 %v8611
        %13162 = vmatpush2.bf16.msra.mxu0 %v8610
        %13163 = vmatprep.subr.bf16.mxu0 %v8595
        %13164 = vmatpush2.bf16.msra.mxu0 %v8594
        %13165 = vmatprep.subr.bf16.mxu0 %v8579
        %13166 = vmatpush2.bf16.msra.mxu0 %v8578
        %13167 = vmatprep.subr.bf16.mxu0 %v8563
        %13168 = vmatpush2.bf16.msra.mxu0 %v8562
        %13169 = vmatprep.subr.bf16.mxu0 %v8547
        %13170 = vmatpush2.bf16.msra.mxu0 %v8546
        %13171 = vmatprep.subr.bf16.mxu0 %v8531
        %13172 = vmatpush2.bf16.msra.mxu0 %v8530
        %13173 = vmatprep.mubr.bf16.mxu0 %v2225
        %13174 = vmatmul.mubr.bf16.gmra.mxu0 %v2224
        %v13175 = vpop.f32.mrf.mxu0
        %v13176 = vadd.f32 %v13133, %v13175
        %v13177 = vpop.f32.mrf.mxu0
        %v13178 = vadd.f32 %v13135, %v13177
        %v13179 = vpop.f32.mrf.mxu0
        %v13180 = vadd.f32 %v13137, %v13179
        %v13181 = vpop.f32.mrf.mxu0
        %v13182 = vadd.f32 %v13139, %v13181
        %13183 = vdwg.mxu0
        %13184 = vmatprep.subr.bf16.mxu0 %v8771
        %13185 = vmatpush1.bf16.msra.mxu0 %v8770
        %13186 = vmatprep.subr.bf16.mxu0 %v8755
        %13187 = vmatpush1.bf16.msra.mxu0 %v8754
        %13188 = vmatprep.subr.bf16.mxu0 %v8739
        %13189 = vmatpush1.bf16.msra.mxu0 %v8738
        %13190 = vmatprep.subr.bf16.mxu0 %v8723
        %13191 = vmatpush1.bf16.msra.mxu0 %v8722
        %13192 = vmatprep.subr.bf16.mxu0 %v8707
        %13193 = vmatpush1.bf16.msra.mxu0 %v8706
        %13194 = vmatprep.subr.bf16.mxu0 %v8691
        %13195 = vmatpush1.bf16.msra.mxu0 %v8690
        %13196 = vmatprep.subr.bf16.mxu0 %v8675
        %13197 = vmatpush1.bf16.msra.mxu0 %v8674
        %13198 = vmatprep.subr.bf16.mxu0 %v8659
        %13199 = vmatpush1.bf16.msra.mxu0 %v8658
        %13200 = vmatprep.subr.bf16.mxu0 %v8899
        %13201 = vmatpush2.bf16.msra.mxu0 %v8898
        %13202 = vmatprep.subr.bf16.mxu0 %v8883
        %13203 = vmatpush2.bf16.msra.mxu0 %v8882
        %13204 = vmatprep.subr.bf16.mxu0 %v8867
        %13205 = vmatpush2.bf16.msra.mxu0 %v8866
        %13206 = vmatprep.subr.bf16.mxu0 %v8851
        %13207 = vmatpush2.bf16.msra.mxu0 %v8850
        %13208 = vmatprep.subr.bf16.mxu0 %v8835
        %13209 = vmatpush2.bf16.msra.mxu0 %v8834
        %13210 = vmatprep.subr.bf16.mxu0 %v8819
        %13211 = vmatpush2.bf16.msra.mxu0 %v8818
        %13212 = vmatprep.subr.bf16.mxu0 %v8803
        %13213 = vmatpush2.bf16.msra.mxu0 %v8802
        %13214 = vmatprep.subr.bf16.mxu0 %v8787
        %13215 = vmatpush2.bf16.msra.mxu0 %v8786
        %13216 = vmatprep.mubr.bf16.mxu0 %v2227
        %13217 = vmatmul.mubr.bf16.gmra.mxu0 %v2226
        %v13218 = vpop.f32.mrf.mxu0
        %v13219 = vadd.f32 %v13176, %v13218
        %v13220 = vpop.f32.mrf.mxu0
        %v13221 = vadd.f32 %v13178, %v13220
        %v13222 = vpop.f32.mrf.mxu0
        %v13223 = vadd.f32 %v13180, %v13222
        %v13224 = vpop.f32.mrf.mxu0
        %v13225 = vadd.f32 %v13182, %v13224
        %13226 = vdwg.mxu0
        %13227 = vmatprep.subr.bf16.mxu0 %v9027
        %13228 = vmatpush1.bf16.msra.mxu0 %v9026
        %13229 = vmatprep.subr.bf16.mxu0 %v9011
        %13230 = vmatpush1.bf16.msra.mxu0 %v9010
        %13231 = vmatprep.subr.bf16.mxu0 %v8995
        %13232 = vmatpush1.bf16.msra.mxu0 %v8994
        %13233 = vmatprep.subr.bf16.mxu0 %v8979
        %13234 = vmatpush1.bf16.msra.mxu0 %v8978
        %13235 = vmatprep.subr.bf16.mxu0 %v8963
        %13236 = vmatpush1.bf16.msra.mxu0 %v8962
        %13237 = vmatprep.subr.bf16.mxu0 %v8947
        %13238 = vmatpush1.bf16.msra.mxu0 %v8946
        %13239 = vmatprep.subr.bf16.mxu0 %v8931
        %13240 = vmatpush1.bf16.msra.mxu0 %v8930
        %13241 = vmatprep.subr.bf16.mxu0 %v8915
        %13242 = vmatpush1.bf16.msra.mxu0 %v8914
        %13243 = vmatprep.subr.bf16.mxu0 %v9155
        %13244 = vmatpush2.bf16.msra.mxu0 %v9154
        %13245 = vmatprep.subr.bf16.mxu0 %v9139
        %13246 = vmatpush2.bf16.msra.mxu0 %v9138
        %13247 = vmatprep.subr.bf16.mxu0 %v9123
        %13248 = vmatpush2.bf16.msra.mxu0 %v9122
        %13249 = vmatprep.subr.bf16.mxu0 %v9107
        %13250 = vmatpush2.bf16.msra.mxu0 %v9106
        %13251 = vmatprep.subr.bf16.mxu0 %v9091
        %13252 = vmatpush2.bf16.msra.mxu0 %v9090
        %13253 = vmatprep.subr.bf16.mxu0 %v9075
        %13254 = vmatpush2.bf16.msra.mxu0 %v9074
        %13255 = vmatprep.subr.bf16.mxu0 %v9059
        %13256 = vmatpush2.bf16.msra.mxu0 %v9058
        %13257 = vmatprep.subr.bf16.mxu0 %v9043
        %13258 = vmatpush2.bf16.msra.mxu0 %v9042
        %13259 = vmatprep.mubr.bf16.mxu0 %v2229
        %13260 = vmatmul.mubr.bf16.gmra.mxu0 %v2228
        %v13261 = vpop.f32.mrf.mxu0
        %v13262 = vadd.f32 %v13219, %v13261
        %v13263 = vpop.f32.mrf.mxu0
        %v13264 = vadd.f32 %v13221, %v13263
        %v13265 = vpop.f32.mrf.mxu0
        %v13266 = vadd.f32 %v13223, %v13265
        %v13267 = vpop.f32.mrf.mxu0
        %v13268 = vadd.f32 %v13225, %v13267
        %13269 = vdwg.mxu0
        %13270 = vmatprep.subr.bf16.mxu0 %v9283
        %13271 = vmatpush1.bf16.msra.mxu0 %v9282
        %13272 = vmatprep.subr.bf16.mxu0 %v9267
        %13273 = vmatpush1.bf16.msra.mxu0 %v9266
        %13274 = vmatprep.subr.bf16.mxu0 %v9251
        %13275 = vmatpush1.bf16.msra.mxu0 %v9250
        %13276 = vmatprep.subr.bf16.mxu0 %v9235
        %13277 = vmatpush1.bf16.msra.mxu0 %v9234
        %13278 = vmatprep.subr.bf16.mxu0 %v9219
        %13279 = vmatpush1.bf16.msra.mxu0 %v9218
        %13280 = vmatprep.subr.bf16.mxu0 %v9203
        %13281 = vmatpush1.bf16.msra.mxu0 %v9202
        %13282 = vmatprep.subr.bf16.mxu0 %v9187
        %13283 = vmatpush1.bf16.msra.mxu0 %v9186
        %13284 = vmatprep.subr.bf16.mxu0 %v9171
        %13285 = vmatpush1.bf16.msra.mxu0 %v9170
        %13286 = vmatprep.subr.bf16.mxu0 %v9411
        %13287 = vmatpush2.bf16.msra.mxu0 %v9410
        %13288 = vmatprep.subr.bf16.mxu0 %v9395
        %13289 = vmatpush2.bf16.msra.mxu0 %v9394
        %13290 = vmatprep.subr.bf16.mxu0 %v9379
        %13291 = vmatpush2.bf16.msra.mxu0 %v9378
        %13292 = vmatprep.subr.bf16.mxu0 %v9363
        %13293 = vmatpush2.bf16.msra.mxu0 %v9362
        %13294 = vmatprep.subr.bf16.mxu0 %v9347
        %13295 = vmatpush2.bf16.msra.mxu0 %v9346
        %13296 = vmatprep.subr.bf16.mxu0 %v9331
        %13297 = vmatpush2.bf16.msra.mxu0 %v9330
        %13298 = vmatprep.subr.bf16.mxu0 %v9315
        %13299 = vmatpush2.bf16.msra.mxu0 %v9314
        %13300 = vmatprep.subr.bf16.mxu0 %v9299
        %13301 = vmatpush2.bf16.msra.mxu0 %v9298
        %13302 = vmatprep.mubr.bf16.mxu0 %v2231
        %13303 = vmatmul.mubr.bf16.gmra.mxu0 %v2230
        %v13304 = vpop.f32.mrf.mxu0
        %v13305 = vadd.f32 %v13262, %v13304
        %v13306 = vpop.f32.mrf.mxu0
        %v13307 = vadd.f32 %v13264, %v13306
        %v13308 = vpop.f32.mrf.mxu0
        %v13309 = vadd.f32 %v13266, %v13308
        %v13310 = vpop.f32.mrf.mxu0
        %v13311 = vadd.f32 %v13268, %v13310
        %13312 = vdwg.mxu0
        %13313 = vmatprep.subr.bf16.mxu0 %v7749
        %13314 = vmatpush1.bf16.msra.mxu0 %v7748
        %13315 = vmatprep.subr.bf16.mxu0 %v7733
        %13316 = vmatpush1.bf16.msra.mxu0 %v7732
        %13317 = vmatprep.subr.bf16.mxu0 %v7717
        %13318 = vmatpush1.bf16.msra.mxu0 %v7716
        %13319 = vmatprep.subr.bf16.mxu0 %v7701
        %13320 = vmatpush1.bf16.msra.mxu0 %v7700
        %13321 = vmatprep.subr.bf16.mxu0 %v7685
        %13322 = vmatpush1.bf16.msra.mxu0 %v7684
        %13323 = vmatprep.subr.bf16.mxu0 %v7669
        %13324 = vmatpush1.bf16.msra.mxu0 %v7668
        %13325 = vmatprep.subr.bf16.mxu0 %v7653
        %13326 = vmatpush1.bf16.msra.mxu0 %v7652
        %13327 = vmatprep.subr.bf16.mxu0 %v7637
        %13328 = vmatpush1.bf16.msra.mxu0 %v7636
        %13329 = vmatprep.subr.bf16.mxu0 %v7877
        %13330 = vmatpush2.bf16.msra.mxu0 %v7876
        %13331 = vmatprep.subr.bf16.mxu0 %v7861
        %13332 = vmatpush2.bf16.msra.mxu0 %v7860
        %13333 = vmatprep.subr.bf16.mxu0 %v7845
        %13334 = vmatpush2.bf16.msra.mxu0 %v7844
        %13335 = vmatprep.subr.bf16.mxu0 %v7829
        %13336 = vmatpush2.bf16.msra.mxu0 %v7828
        %13337 = vmatprep.subr.bf16.mxu0 %v7813
        %13338 = vmatpush2.bf16.msra.mxu0 %v7812
        %13339 = vmatprep.subr.bf16.mxu0 %v7797
        %13340 = vmatpush2.bf16.msra.mxu0 %v7796
        %13341 = vmatprep.subr.bf16.mxu0 %v7781
        %13342 = vmatpush2.bf16.msra.mxu0 %v7780
        %13343 = vmatprep.subr.bf16.mxu0 %v7765
        %13344 = vmatpush2.bf16.msra.mxu0 %v7764
        %13345 = vmatprep.mubr.bf16.mxu0 %v2219
        %13346 = vmatmul.mubr.bf16.gmra.mxu0 %v2218
        %v13347 = vpop.f32.mrf.mxu0
        %v13348 = vadd.f32 0.0, %v13347
        %v13349 = vpop.f32.mrf.mxu0
        %v13350 = vadd.f32 0.0, %v13349
        %v13351 = vpop.f32.mrf.mxu0
        %v13352 = vadd.f32 0.0, %v13351
        %v13353 = vpop.f32.mrf.mxu0
        %v13354 = vadd.f32 0.0, %v13353
        %13355 = vdwg.mxu0
        %13356 = vmatprep.subr.bf16.mxu0 %v8005
        %13357 = vmatpush1.bf16.msra.mxu0 %v8004
        %13358 = vmatprep.subr.bf16.mxu0 %v7989
        %13359 = vmatpush1.bf16.msra.mxu0 %v7988
        %13360 = vmatprep.subr.bf16.mxu0 %v7973
        %13361 = vmatpush1.bf16.msra.mxu0 %v7972
        %13362 = vmatprep.subr.bf16.mxu0 %v7957
        %13363 = vmatpush1.bf16.msra.mxu0 %v7956
        %13364 = vmatprep.subr.bf16.mxu0 %v7941
        %13365 = vmatpush1.bf16.msra.mxu0 %v7940
        %13366 = vmatprep.subr.bf16.mxu0 %v7925
        %13367 = vmatpush1.bf16.msra.mxu0 %v7924
        %13368 = vmatprep.subr.bf16.mxu0 %v7909
        %13369 = vmatpush1.bf16.msra.mxu0 %v7908
        %13370 = vmatprep.subr.bf16.mxu0 %v7893
        %13371 = vmatpush1.bf16.msra.mxu0 %v7892
        %13372 = vmatprep.subr.bf16.mxu0 %v8133
        %13373 = vmatpush2.bf16.msra.mxu0 %v8132
        %13374 = vmatprep.subr.bf16.mxu0 %v8117
        %13375 = vmatpush2.bf16.msra.mxu0 %v8116
        %13376 = vmatprep.subr.bf16.mxu0 %v8101
        %13377 = vmatpush2.bf16.msra.mxu0 %v8100
        %13378 = vmatprep.subr.bf16.mxu0 %v8085
        %13379 = vmatpush2.bf16.msra.mxu0 %v8084
        %13380 = vmatprep.subr.bf16.mxu0 %v8069
        %13381 = vmatpush2.bf16.msra.mxu0 %v8068
        %13382 = vmatprep.subr.bf16.mxu0 %v8053
        %13383 = vmatpush2.bf16.msra.mxu0 %v8052
        %13384 = vmatprep.subr.bf16.mxu0 %v8037
        %13385 = vmatpush2.bf16.msra.mxu0 %v8036
        %13386 = vmatprep.subr.bf16.mxu0 %v8021
        %13387 = vmatpush2.bf16.msra.mxu0 %v8020
        %13388 = vmatprep.mubr.bf16.mxu0 %v2221
        %13389 = vmatmul.mubr.bf16.gmra.mxu0 %v2220
        %v13390 = vpop.f32.mrf.mxu0
        %v13391 = vadd.f32 %v13348, %v13390
        %v13392 = vpop.f32.mrf.mxu0
        %v13393 = vadd.f32 %v13350, %v13392
        %v13394 = vpop.f32.mrf.mxu0
        %v13395 = vadd.f32 %v13352, %v13394
        %v13396 = vpop.f32.mrf.mxu0
        %v13397 = vadd.f32 %v13354, %v13396
        %13398 = vdwg.mxu0
        %13399 = vmatprep.subr.bf16.mxu0 %v8261
        %13400 = vmatpush1.bf16.msra.mxu0 %v8260
        %13401 = vmatprep.subr.bf16.mxu0 %v8245
        %13402 = vmatpush1.bf16.msra.mxu0 %v8244
        %13403 = vmatprep.subr.bf16.mxu0 %v8229
        %13404 = vmatpush1.bf16.msra.mxu0 %v8228
        %13405 = vmatprep.subr.bf16.mxu0 %v8213
        %13406 = vmatpush1.bf16.msra.mxu0 %v8212
        %13407 = vmatprep.subr.bf16.mxu0 %v8197
        %13408 = vmatpush1.bf16.msra.mxu0 %v8196
        %13409 = vmatprep.subr.bf16.mxu0 %v8181
        %13410 = vmatpush1.bf16.msra.mxu0 %v8180
        %13411 = vmatprep.subr.bf16.mxu0 %v8165
        %13412 = vmatpush1.bf16.msra.mxu0 %v8164
        %13413 = vmatprep.subr.bf16.mxu0 %v8149
        %13414 = vmatpush1.bf16.msra.mxu0 %v8148
        %13415 = vmatprep.subr.bf16.mxu0 %v8389
        %13416 = vmatpush2.bf16.msra.mxu0 %v8388
        %13417 = vmatprep.subr.bf16.mxu0 %v8373
        %13418 = vmatpush2.bf16.msra.mxu0 %v8372
        %13419 = vmatprep.subr.bf16.mxu0 %v8357
        %13420 = vmatpush2.bf16.msra.mxu0 %v8356
        %13421 = vmatprep.subr.bf16.mxu0 %v8341
        %13422 = vmatpush2.bf16.msra.mxu0 %v8340
        %13423 = vmatprep.subr.bf16.mxu0 %v8325
        %13424 = vmatpush2.bf16.msra.mxu0 %v8324
        %13425 = vmatprep.subr.bf16.mxu0 %v8309
        %13426 = vmatpush2.bf16.msra.mxu0 %v8308
        %13427 = vmatprep.subr.bf16.mxu0 %v8293
        %13428 = vmatpush2.bf16.msra.mxu0 %v8292
        %13429 = vmatprep.subr.bf16.mxu0 %v8277
        %13430 = vmatpush2.bf16.msra.mxu0 %v8276
        %13431 = vmatprep.mubr.bf16.mxu0 %v2223
        %13432 = vmatmul.mubr.bf16.gmra.mxu0 %v2222
        %v13433 = vpop.f32.mrf.mxu0
        %v13434 = vadd.f32 %v13391, %v13433
        %v13435 = vpop.f32.mrf.mxu0
        %v13436 = vadd.f32 %v13393, %v13435
        %v13437 = vpop.f32.mrf.mxu0
        %v13438 = vadd.f32 %v13395, %v13437
        %v13439 = vpop.f32.mrf.mxu0
        %v13440 = vadd.f32 %v13397, %v13439
        %13441 = vdwg.mxu0
        %13442 = vmatprep.subr.bf16.mxu0 %v8517
        %13443 = vmatpush1.bf16.msra.mxu0 %v8516
        %13444 = vmatprep.subr.bf16.mxu0 %v8501
        %13445 = vmatpush1.bf16.msra.mxu0 %v8500
        %13446 = vmatprep.subr.bf16.mxu0 %v8485
        %13447 = vmatpush1.bf16.msra.mxu0 %v8484
        %13448 = vmatprep.subr.bf16.mxu0 %v8469
        %13449 = vmatpush1.bf16.msra.mxu0 %v8468
        %13450 = vmatprep.subr.bf16.mxu0 %v8453
        %13451 = vmatpush1.bf16.msra.mxu0 %v8452
        %13452 = vmatprep.subr.bf16.mxu0 %v8437
        %13453 = vmatpush1.bf16.msra.mxu0 %v8436
        %13454 = vmatprep.subr.bf16.mxu0 %v8421
        %13455 = vmatpush1.bf16.msra.mxu0 %v8420
        %13456 = vmatprep.subr.bf16.mxu0 %v8405
        %13457 = vmatpush1.bf16.msra.mxu0 %v8404
        %13458 = vmatprep.subr.bf16.mxu0 %v8645
        %13459 = vmatpush2.bf16.msra.mxu0 %v8644
        %13460 = vmatprep.subr.bf16.mxu0 %v8629
        %13461 = vmatpush2.bf16.msra.mxu0 %v8628
        %13462 = vmatprep.subr.bf16.mxu0 %v8613
        %13463 = vmatpush2.bf16.msra.mxu0 %v8612
        %13464 = vmatprep.subr.bf16.mxu0 %v8597
        %13465 = vmatpush2.bf16.msra.mxu0 %v8596
        %13466 = vmatprep.subr.bf16.mxu0 %v8581
        %13467 = vmatpush2.bf16.msra.mxu0 %v8580
        %13468 = vmatprep.subr.bf16.mxu0 %v8565
        %13469 = vmatpush2.bf16.msra.mxu0 %v8564
        %13470 = vmatprep.subr.bf16.mxu0 %v8549
        %13471 = vmatpush2.bf16.msra.mxu0 %v8548
        %13472 = vmatprep.subr.bf16.mxu0 %v8533
        %13473 = vmatpush2.bf16.msra.mxu0 %v8532
        %13474 = vmatprep.mubr.bf16.mxu0 %v2225
        %13475 = vmatmul.mubr.bf16.gmra.mxu0 %v2224
        %v13476 = vpop.f32.mrf.mxu0
        %v13477 = vadd.f32 %v13434, %v13476
        %v13478 = vpop.f32.mrf.mxu0
        %v13479 = vadd.f32 %v13436, %v13478
        %v13480 = vpop.f32.mrf.mxu0
        %v13481 = vadd.f32 %v13438, %v13480
        %v13482 = vpop.f32.mrf.mxu0
        %v13483 = vadd.f32 %v13440, %v13482
        %13484 = vdwg.mxu0
        %13485 = vmatprep.subr.bf16.mxu0 %v8773
        %13486 = vmatpush1.bf16.msra.mxu0 %v8772
        %13487 = vmatprep.subr.bf16.mxu0 %v8757
        %13488 = vmatpush1.bf16.msra.mxu0 %v8756
        %13489 = vmatprep.subr.bf16.mxu0 %v8741
        %13490 = vmatpush1.bf16.msra.mxu0 %v8740
        %13491 = vmatprep.subr.bf16.mxu0 %v8725
        %13492 = vmatpush1.bf16.msra.mxu0 %v8724
        %13493 = vmatprep.subr.bf16.mxu0 %v8709
        %13494 = vmatpush1.bf16.msra.mxu0 %v8708
        %13495 = vmatprep.subr.bf16.mxu0 %v8693
        %13496 = vmatpush1.bf16.msra.mxu0 %v8692
        %13497 = vmatprep.subr.bf16.mxu0 %v8677
        %13498 = vmatpush1.bf16.msra.mxu0 %v8676
        %13499 = vmatprep.subr.bf16.mxu0 %v8661
        %13500 = vmatpush1.bf16.msra.mxu0 %v8660
        %13501 = vmatprep.subr.bf16.mxu0 %v8901
        %13502 = vmatpush2.bf16.msra.mxu0 %v8900
        %13503 = vmatprep.subr.bf16.mxu0 %v8885
        %13504 = vmatpush2.bf16.msra.mxu0 %v8884
        %13505 = vmatprep.subr.bf16.mxu0 %v8869
        %13506 = vmatpush2.bf16.msra.mxu0 %v8868
        %13507 = vmatprep.subr.bf16.mxu0 %v8853
        %13508 = vmatpush2.bf16.msra.mxu0 %v8852
        %13509 = vmatprep.subr.bf16.mxu0 %v8837
        %13510 = vmatpush2.bf16.msra.mxu0 %v8836
        %13511 = vmatprep.subr.bf16.mxu0 %v8821
        %13512 = vmatpush2.bf16.msra.mxu0 %v8820
        %13513 = vmatprep.subr.bf16.mxu0 %v8805
        %13514 = vmatpush2.bf16.msra.mxu0 %v8804
        %13515 = vmatprep.subr.bf16.mxu0 %v8789
        %13516 = vmatpush2.bf16.msra.mxu0 %v8788
        %13517 = vmatprep.mubr.bf16.mxu0 %v2227
        %13518 = vmatmul.mubr.bf16.gmra.mxu0 %v2226
        %v13519 = vpop.f32.mrf.mxu0
        %v13520 = vadd.f32 %v13477, %v13519
        %v13521 = vpop.f32.mrf.mxu0
        %v13522 = vadd.f32 %v13479, %v13521
        %v13523 = vpop.f32.mrf.mxu0
        %v13524 = vadd.f32 %v13481, %v13523
        %v13525 = vpop.f32.mrf.mxu0
        %v13526 = vadd.f32 %v13483, %v13525
        %13527 = vdwg.mxu0
        %13528 = vmatprep.subr.bf16.mxu0 %v9029
        %13529 = vmatpush1.bf16.msra.mxu0 %v9028
        %13530 = vmatprep.subr.bf16.mxu0 %v9013
        %13531 = vmatpush1.bf16.msra.mxu0 %v9012
        %13532 = vmatprep.subr.bf16.mxu0 %v8997
        %13533 = vmatpush1.bf16.msra.mxu0 %v8996
        %13534 = vmatprep.subr.bf16.mxu0 %v8981
        %13535 = vmatpush1.bf16.msra.mxu0 %v8980
        %13536 = vmatprep.subr.bf16.mxu0 %v8965
        %13537 = vmatpush1.bf16.msra.mxu0 %v8964
        %13538 = vmatprep.subr.bf16.mxu0 %v8949
        %13539 = vmatpush1.bf16.msra.mxu0 %v8948
        %13540 = vmatprep.subr.bf16.mxu0 %v8933
        %13541 = vmatpush1.bf16.msra.mxu0 %v8932
        %13542 = vmatprep.subr.bf16.mxu0 %v8917
        %13543 = vmatpush1.bf16.msra.mxu0 %v8916
        %13544 = vmatprep.subr.bf16.mxu0 %v9157
        %13545 = vmatpush2.bf16.msra.mxu0 %v9156
        %13546 = vmatprep.subr.bf16.mxu0 %v9141
        %13547 = vmatpush2.bf16.msra.mxu0 %v9140
        %13548 = vmatprep.subr.bf16.mxu0 %v9125
        %13549 = vmatpush2.bf16.msra.mxu0 %v9124
        %13550 = vmatprep.subr.bf16.mxu0 %v9109
        %13551 = vmatpush2.bf16.msra.mxu0 %v9108
        %13552 = vmatprep.subr.bf16.mxu0 %v9093
        %13553 = vmatpush2.bf16.msra.mxu0 %v9092
        %13554 = vmatprep.subr.bf16.mxu0 %v9077
        %13555 = vmatpush2.bf16.msra.mxu0 %v9076
        %13556 = vmatprep.subr.bf16.mxu0 %v9061
        %13557 = vmatpush2.bf16.msra.mxu0 %v9060
        %13558 = vmatprep.subr.bf16.mxu0 %v9045
        %13559 = vmatpush2.bf16.msra.mxu0 %v9044
        %13560 = vmatprep.mubr.bf16.mxu0 %v2229
        %13561 = vmatmul.mubr.bf16.gmra.mxu0 %v2228
        %v13562 = vpop.f32.mrf.mxu0
        %v13563 = vadd.f32 %v13520, %v13562
        %v13564 = vpop.f32.mrf.mxu0
        %v13565 = vadd.f32 %v13522, %v13564
        %v13566 = vpop.f32.mrf.mxu0
        %v13567 = vadd.f32 %v13524, %v13566
        %v13568 = vpop.f32.mrf.mxu0
        %v13569 = vadd.f32 %v13526, %v13568
        %13570 = vdwg.mxu0
        %13571 = vmatprep.subr.bf16.mxu0 %v9285
        %13572 = vmatpush1.bf16.msra.mxu0 %v9284
        %13573 = vmatprep.subr.bf16.mxu0 %v9269
        %13574 = vmatpush1.bf16.msra.mxu0 %v9268
        %13575 = vmatprep.subr.bf16.mxu0 %v9253
        %13576 = vmatpush1.bf16.msra.mxu0 %v9252
        %13577 = vmatprep.subr.bf16.mxu0 %v9237
        %13578 = vmatpush1.bf16.msra.mxu0 %v9236
        %13579 = vmatprep.subr.bf16.mxu0 %v9221
        %13580 = vmatpush1.bf16.msra.mxu0 %v9220
        %13581 = vmatprep.subr.bf16.mxu0 %v9205
        %13582 = vmatpush1.bf16.msra.mxu0 %v9204
        %13583 = vmatprep.subr.bf16.mxu0 %v9189
        %13584 = vmatpush1.bf16.msra.mxu0 %v9188
        %13585 = vmatprep.subr.bf16.mxu0 %v9173
        %13586 = vmatpush1.bf16.msra.mxu0 %v9172
        %13587 = vmatprep.subr.bf16.mxu0 %v9413
        %13588 = vmatpush2.bf16.msra.mxu0 %v9412
        %13589 = vmatprep.subr.bf16.mxu0 %v9397
        %13590 = vmatpush2.bf16.msra.mxu0 %v9396
        %13591 = vmatprep.subr.bf16.mxu0 %v9381
        %13592 = vmatpush2.bf16.msra.mxu0 %v9380
        %13593 = vmatprep.subr.bf16.mxu0 %v9365
        %13594 = vmatpush2.bf16.msra.mxu0 %v9364
        %13595 = vmatprep.subr.bf16.mxu0 %v9349
        %13596 = vmatpush2.bf16.msra.mxu0 %v9348
        %13597 = vmatprep.subr.bf16.mxu0 %v9333
        %13598 = vmatpush2.bf16.msra.mxu0 %v9332
        %13599 = vmatprep.subr.bf16.mxu0 %v9317
        %13600 = vmatpush2.bf16.msra.mxu0 %v9316
        %13601 = vmatprep.subr.bf16.mxu0 %v9301
        %13602 = vmatpush2.bf16.msra.mxu0 %v9300
        %13603 = vmatprep.mubr.bf16.mxu0 %v2231
        %13604 = vmatmul.mubr.bf16.gmra.mxu0 %v2230
        %v13605 = vpop.f32.mrf.mxu0
        %v13606 = vadd.f32 %v13563, %v13605
        %v13607 = vpop.f32.mrf.mxu0
        %v13608 = vadd.f32 %v13565, %v13607
        %v13609 = vpop.f32.mrf.mxu0
        %v13610 = vadd.f32 %v13567, %v13609
        %v13611 = vpop.f32.mrf.mxu0
        %v13612 = vadd.f32 %v13569, %v13611
        %13613 = vdwg.mxu0
        %v13614 = vadd.f32 %v338, %v11499
        %v13615 = vadd.f32 %v339, %v11501
        %v13616 = vadd.f32 %v340, %v11800
        %v13617 = vadd.f32 %v341, %v11802
        %v13618 = vadd.f32 %v342, %v12101
        %v13619 = vadd.f32 %v343, %v12103
        %v13620 = vadd.f32 %v344, %v12402
        %v13621 = vadd.f32 %v345, %v12404
        %v13622 = vadd.f32 %v346, %v12703
        %v13623 = vadd.f32 %v347, %v12705
        %v13624 = vadd.f32 %v348, %v13004
        %v13625 = vadd.f32 %v349, %v13006
        %v13626 = vadd.f32 %v350, %v13305
        %v13627 = vadd.f32 %v351, %v13307
        %v13628 = vadd.f32 %v352, %v13606
        %v13629 = vadd.f32 %v353, %v13608
        %v13630 = vadd.f32 %v354, %v11503
        %v13631 = vadd.f32 %v355, %v11505
        %v13632 = vadd.f32 %v356, %v11804
        %v13633 = vadd.f32 %v357, %v11806
        %v13634 = vadd.f32 %v358, %v12105
        %v13635 = vadd.f32 %v359, %v12107
        %v13636 = vadd.f32 %v360, %v12406
        %v13637 = vadd.f32 %v361, %v12408
        %v13638 = vadd.f32 %v362, %v12707
        %v13639 = vadd.f32 %v363, %v12709
        %v13640 = vadd.f32 %v364, %v13008
        %v13641 = vadd.f32 %v365, %v13010
        %v13642 = vadd.f32 %v366, %v13309
        %v13643 = vadd.f32 %v367, %v13311
        %v13644 = vadd.f32 %v368, %v13610
        %v13645 = vadd.f32 %v369, %v13612
        %13646 = vst [vmem:[#allocation2] sm:$0xff] %v13614
        %13647 = vst [vmem:[#allocation2 + $0x8] sm:$0xff] %v13615
        %13648 = vst [vmem:[#allocation2 + $0x10] sm:$0xff] %v13616
        %13649 = vst [vmem:[#allocation2 + $0x18] sm:$0xff] %v13617
        %13650 = vst [vmem:[#allocation2 + $0x20] sm:$0xff] %v13618
        %13651 = vst [vmem:[#allocation2 + $0x28] sm:$0xff] %v13619
        %13652 = vst [vmem:[#allocation2 + $0x30] sm:$0xff] %v13620
        %13653 = vst [vmem:[#allocation2 + $0x38] sm:$0xff] %v13621
        %13654 = vst [vmem:[#allocation2 + $0x40] sm:$0xff] %v13622
        %13655 = vst [vmem:[#allocation2 + $0x48] sm:$0xff] %v13623
        %13656 = vst [vmem:[#allocation2 + $0x50] sm:$0xff] %v13624
        %13657 = vst [vmem:[#allocation2 + $0x58] sm:$0xff] %v13625
        %13658 = vst [vmem:[#allocation2 + $0x60] sm:$0xff] %v13626
        %13659 = vst [vmem:[#allocation2 + $0x68] sm:$0xff] %v13627
        %13660 = vst [vmem:[#allocation2 + $0x70] sm:$0xff] %v13628
        %13661 = vst [vmem:[#allocation2 + $0x78] sm:$0xff] %v13629
        %13662 = vst [vmem:[#allocation2 + $0x80] sm:$0xff] %v13630
        %13663 = vst [vmem:[#allocation2 + $0x88] sm:$0xff] %v13631
        %13664 = vst [vmem:[#allocation2 + $0x90] sm:$0xff] %v13632
        %13665 = vst [vmem:[#allocation2 + $0x98] sm:$0xff] %v13633
        %13666 = vst [vmem:[#allocation2 + $0xa0] sm:$0xff] %v13634
        %13667 = vst [vmem:[#allocation2 + $0xa8] sm:$0xff] %v13635
        %13668 = vst [vmem:[#allocation2 + $0xb0] sm:$0xff] %v13636
        %13669 = vst [vmem:[#allocation2 + $0xb8] sm:$0xff] %v13637
        %13670 = vst [vmem:[#allocation2 + $0xc0] sm:$0xff] %v13638
        %13671 = vst [vmem:[#allocation2 + $0xc8] sm:$0xff] %v13639
        %13672 = vst [vmem:[#allocation2 + $0xd0] sm:$0xff] %v13640
        %13673 = vst [vmem:[#allocation2 + $0xd8] sm:$0xff] %v13641
        %13674 = vst [vmem:[#allocation2 + $0xe0] sm:$0xff] %v13642
        %13675 = vst [vmem:[#allocation2 + $0xe8] sm:$0xff] %v13643
        %13676 = vst [vmem:[#allocation2 + $0xf0] sm:$0xff] %v13644
        %13677 = vst [vmem:[#allocation2 + $0xf8] sm:$0xff] %v13645
        %p13678 = scmp.eq.s32.totalorder %s30, 13
        // Predicated region
        $region49: #{tpu_custom_call.1} parent=31 // pred_check
          %p13679 = pneg %p13678
        $region50: #{tpu_custom_call.1} parent=31 // pred_check_branch
          %13681 = sbr.rel (%p13679) target = $region52
        $region51: #{tpu_custom_call.1} parent=31 // pred_region
          %v13682 = vld [vmem:[#allocation2] sm:$0xff]
          %v13683 = vld [vmem:[#allocation2 + $0x8] sm:$0xff]
          %v13684 = vld [vmem:[#allocation2 + $0x10] sm:$0xff]
          %v13685 = vld [vmem:[#allocation2 + $0x18] sm:$0xff]
          %v13686 = vld [vmem:[#allocation2 + $0x20] sm:$0xff]
          %v13687 = vld [vmem:[#allocation2 + $0x28] sm:$0xff]
          %v13688 = vld [vmem:[#allocation2 + $0x30] sm:$0xff]
          %v13689 = vld [vmem:[#allocation2 + $0x38] sm:$0xff]
          %v13690 = vld [vmem:[#allocation2 + $0x40] sm:$0xff]
          %v13691 = vld [vmem:[#allocation2 + $0x48] sm:$0xff]
          %v13692 = vld [vmem:[#allocation2 + $0x50] sm:$0xff]
          %v13693 = vld [vmem:[#allocation2 + $0x58] sm:$0xff]
          %v13694 = vld [vmem:[#allocation2 + $0x60] sm:$0xff]
          %v13695 = vld [vmem:[#allocation2 + $0x68] sm:$0xff]
          %v13696 = vld [vmem:[#allocation2 + $0x70] sm:$0xff]
          %v13697 = vld [vmem:[#allocation2 + $0x78] sm:$0xff]
          %v13698 = vld [vmem:[#allocation2 + $0x80] sm:$0xff]
          %v13699 = vld [vmem:[#allocation2 + $0x88] sm:$0xff]
          %v13700 = vld [vmem:[#allocation2 + $0x90] sm:$0xff]
          %v13701 = vld [vmem:[#allocation2 + $0x98] sm:$0xff]
          %v13702 = vld [vmem:[#allocation2 + $0xa0] sm:$0xff]
          %v13703 = vld [vmem:[#allocation2 + $0xa8] sm:$0xff]
          %v13704 = vld [vmem:[#allocation2 + $0xb0] sm:$0xff]
          %v13705 = vld [vmem:[#allocation2 + $0xb8] sm:$0xff]
          %v13706 = vld [vmem:[#allocation2 + $0xc0] sm:$0xff]
          %v13707 = vld [vmem:[#allocation2 + $0xc8] sm:$0xff]
          %v13708 = vld [vmem:[#allocation2 + $0xd0] sm:$0xff]
          %v13709 = vld [vmem:[#allocation2 + $0xd8] sm:$0xff]
          %v13710 = vld [vmem:[#allocation2 + $0xe0] sm:$0xff]
          %v13711 = vld [vmem:[#allocation2 + $0xe8] sm:$0xff]
          %v13712 = vld [vmem:[#allocation2 + $0xf0] sm:$0xff]
          %v13713 = vld [vmem:[#allocation2 + $0xf8] sm:$0xff]
          %v13714 = vld [vmem:[%s262] sm:$0xff]
          %v13715 = vld [vmem:[%s262 + $0x8] sm:$0xff]
          %v13718 = vlaneseq
          %v13719 = vshrl.u32 %v13718, 7
          %v13720 = vsub.s32 0, %v13719
          %v13721 = vrot.slane %v13714, %v13720
          %v13722 = vlaneseq
          %v13723 = vshrl.u32 %v13722, 7
          %v13724 = vsub.s32 1, %v13723
          %v13725 = vrot.slane %v13714, %v13724
          %v13726 = vlaneseq
          %v13727 = vshrl.u32 %v13726, 7
          %v13728 = vsub.s32 2, %v13727
          %v13729 = vrot.slane %v13714, %v13728
          %v13730 = vlaneseq
          %v13731 = vshrl.u32 %v13730, 7
          %v13732 = vsub.s32 3, %v13731
          %v13733 = vrot.slane %v13714, %v13732
          %v13734 = vlaneseq
          %v13735 = vshrl.u32 %v13734, 7
          %v13736 = vsub.s32 4, %v13735
          %v13737 = vrot.slane %v13714, %v13736
          %v13738 = vlaneseq
          %v13739 = vshrl.u32 %v13738, 7
          %v13740 = vsub.s32 5, %v13739
          %v13741 = vrot.slane %v13714, %v13740
          %v13742 = vlaneseq
          %v13743 = vshrl.u32 %v13742, 7
          %v13744 = vsub.s32 6, %v13743
          %v13745 = vrot.slane %v13714, %v13744
          %v13746 = vlaneseq
          %v13747 = vshrl.u32 %v13746, 7
          %v13748 = vsub.s32 7, %v13747
          %v13749 = vrot.slane %v13714, %v13748
          %v13750 = vlaneseq
          %v13751 = vshrl.u32 %v13750, 7
          %v13752 = vsub.s32 0, %v13751
          %v13753 = vrot.slane %v13715, %v13752
          %v13754 = vlaneseq
          %v13755 = vshrl.u32 %v13754, 7
          %v13756 = vsub.s32 1, %v13755
          %v13757 = vrot.slane %v13715, %v13756
          %v13758 = vlaneseq
          %v13759 = vshrl.u32 %v13758, 7
          %v13760 = vsub.s32 2, %v13759
          %v13761 = vrot.slane %v13715, %v13760
          %v13762 = vlaneseq
          %v13763 = vshrl.u32 %v13762, 7
          %v13764 = vsub.s32 3, %v13763
          %v13765 = vrot.slane %v13715, %v13764
          %v13766 = vlaneseq
          %v13767 = vshrl.u32 %v13766, 7
          %v13768 = vsub.s32 4, %v13767
          %v13769 = vrot.slane %v13715, %v13768
          %v13770 = vlaneseq
          %v13771 = vshrl.u32 %v13770, 7
          %v13772 = vsub.s32 5, %v13771
          %v13773 = vrot.slane %v13715, %v13772
          %v13774 = vlaneseq
          %v13775 = vshrl.u32 %v13774, 7
          %v13776 = vsub.s32 6, %v13775
          %v13777 = vrot.slane %v13715, %v13776
          %v13778 = vlaneseq
          %v13779 = vshrl.u32 %v13778, 7
          %v13780 = vsub.s32 7, %v13779
          %v13781 = vrot.slane %v13715, %v13780
          %v13798 = vadd.f32 %v13682, %v13721
          %v13799 = vadd.f32 %v13683, %v13725
          %v13800 = vadd.f32 %v13684, %v13729
          %v13801 = vadd.f32 %v13685, %v13733
          %v13802 = vadd.f32 %v13686, %v13737
          %v13803 = vadd.f32 %v13687, %v13741
          %v13804 = vadd.f32 %v13688, %v13745
          %v13805 = vadd.f32 %v13689, %v13749
          %v13806 = vadd.f32 %v13690, %v13753
          %v13807 = vadd.f32 %v13691, %v13757
          %v13808 = vadd.f32 %v13692, %v13761
          %v13809 = vadd.f32 %v13693, %v13765
          %v13810 = vadd.f32 %v13694, %v13769
          %v13811 = vadd.f32 %v13695, %v13773
          %v13812 = vadd.f32 %v13696, %v13777
          %v13813 = vadd.f32 %v13697, %v13781
          %v13814 = vadd.f32 %v13698, %v13721
          %v13815 = vadd.f32 %v13699, %v13725
          %v13816 = vadd.f32 %v13700, %v13729
          %v13817 = vadd.f32 %v13701, %v13733
          %v13818 = vadd.f32 %v13702, %v13737
          %v13819 = vadd.f32 %v13703, %v13741
          %v13820 = vadd.f32 %v13704, %v13745
          %v13821 = vadd.f32 %v13705, %v13749
          %v13822 = vadd.f32 %v13706, %v13753
          %v13823 = vadd.f32 %v13707, %v13757
          %v13824 = vadd.f32 %v13708, %v13761
          %v13825 = vadd.f32 %v13709, %v13765
          %v13826 = vadd.f32 %v13710, %v13769
          %v13827 = vadd.f32 %v13711, %v13773
          %v13828 = vadd.f32 %v13712, %v13777
          %v13829 = vadd.f32 %v13713, %v13781
          %v13830 = vmax.f32 %v13798, 0.0
          %v13831 = vmax.f32 %v13799, 0.0
          %v13832 = vmax.f32 %v13800, 0.0
          %v13833 = vmax.f32 %v13801, 0.0
          %v13834 = vmax.f32 %v13802, 0.0
          %v13835 = vmax.f32 %v13803, 0.0
          %v13836 = vmax.f32 %v13804, 0.0
          %v13837 = vmax.f32 %v13805, 0.0
          %v13838 = vmax.f32 %v13806, 0.0
          %v13839 = vmax.f32 %v13807, 0.0
          %v13840 = vmax.f32 %v13808, 0.0
          %v13841 = vmax.f32 %v13809, 0.0
          %v13842 = vmax.f32 %v13810, 0.0
          %v13843 = vmax.f32 %v13811, 0.0
          %v13844 = vmax.f32 %v13812, 0.0
          %v13845 = vmax.f32 %v13813, 0.0
          %v13846 = vmax.f32 %v13814, 0.0
          %v13847 = vmax.f32 %v13815, 0.0
          %v13848 = vmax.f32 %v13816, 0.0
          %v13849 = vmax.f32 %v13817, 0.0
          %v13850 = vmax.f32 %v13818, 0.0
          %v13851 = vmax.f32 %v13819, 0.0
          %v13852 = vmax.f32 %v13820, 0.0
          %v13853 = vmax.f32 %v13821, 0.0
          %v13854 = vmax.f32 %v13822, 0.0
          %v13855 = vmax.f32 %v13823, 0.0
          %v13856 = vmax.f32 %v13824, 0.0
          %v13857 = vmax.f32 %v13825, 0.0
          %v13858 = vmax.f32 %v13826, 0.0
          %v13859 = vmax.f32 %v13827, 0.0
          %v13860 = vmax.f32 %v13828, 0.0
          %v13861 = vmax.f32 %v13829, 0.0
          %13862 = vst [vmem:[%s294] sm:$0xff] %v13830
          %13863 = vst [vmem:[%s294 + $0x8] sm:$0xff] %v13831
          %13864 = vst [vmem:[%s294 + $0x10] sm:$0xff] %v13832
          %13865 = vst [vmem:[%s294 + $0x18] sm:$0xff] %v13833
          %13866 = vst [vmem:[%s294 + $0x20] sm:$0xff] %v13834
          %13867 = vst [vmem:[%s294 + $0x28] sm:$0xff] %v13835
          %13868 = vst [vmem:[%s294 + $0x30] sm:$0xff] %v13836
          %13869 = vst [vmem:[%s294 + $0x38] sm:$0xff] %v13837
          %13870 = vst [vmem:[%s294 + $0x40] sm:$0xff] %v13838
          %13871 = vst [vmem:[%s294 + $0x48] sm:$0xff] %v13839
          %13872 = vst [vmem:[%s294 + $0x50] sm:$0xff] %v13840
          %13873 = vst [vmem:[%s294 + $0x58] sm:$0xff] %v13841
          %13874 = vst [vmem:[%s294 + $0x60] sm:$0xff] %v13842
          %13875 = vst [vmem:[%s294 + $0x68] sm:$0xff] %v13843
          %13876 = vst [vmem:[%s294 + $0x70] sm:$0xff] %v13844
          %13877 = vst [vmem:[%s294 + $0x78] sm:$0xff] %v13845
          %13878 = vst [vmem:[%s294 + $0x80] sm:$0xff] %v13846
          %13879 = vst [vmem:[%s294 + $0x88] sm:$0xff] %v13847
          %13880 = vst [vmem:[%s294 + $0x90] sm:$0xff] %v13848
          %13881 = vst [vmem:[%s294 + $0x98] sm:$0xff] %v13849
          %13882 = vst [vmem:[%s294 + $0xa0] sm:$0xff] %v13850
          %13883 = vst [vmem:[%s294 + $0xa8] sm:$0xff] %v13851
          %13884 = vst [vmem:[%s294 + $0xb0] sm:$0xff] %v13852
          %13885 = vst [vmem:[%s294 + $0xb8] sm:$0xff] %v13853
          %13886 = vst [vmem:[%s294 + $0xc0] sm:$0xff] %v13854
          %13887 = vst [vmem:[%s294 + $0xc8] sm:$0xff] %v13855
          %13888 = vst [vmem:[%s294 + $0xd0] sm:$0xff] %v13856
          %13889 = vst [vmem:[%s294 + $0xd8] sm:$0xff] %v13857
          %13890 = vst [vmem:[%s294 + $0xe0] sm:$0xff] %v13858
          %13891 = vst [vmem:[%s294 + $0xe8] sm:$0xff] %v13859
          %13892 = vst [vmem:[%s294 + $0xf0] sm:$0xff] %v13860
          %13893 = vst [vmem:[%s294 + $0xf8] sm:$0xff] %v13861
        $region52: #{tpu_custom_call.1} parent=31 // pred_fallthru
          _
        %s13894 = sand.u32 %s134, 1
        %s13895 = scalar_lea.sflag [#allocation5], %s13894
        %s13896 = sand.u32 %s134, 1
        %s13897 = smul.addr %s13896, 256
        %s13898 = scalar_lea.vmem [#allocation9], %s13897
        // Predicated region
        $region53: #{tpu_custom_call.1} parent=31 // pred_check
          %p13899 = pneg %p144
        $region54: #{tpu_custom_call.1} parent=31 // pred_check_branch
          %13901 = sbr.rel (%p13899) target = $region56
        $region55: #{tpu_custom_call.1} parent=31 // pred_region
          %s13902 = smul.u32 2, %s28
          %s13903 = smul.u32 16, %s29
          %s13905 = ssub.s32 4096, 4096
          %13906 = vsyncadd %s13895, %s13905
          %s13907 = smul.addr %s13902, 32
          %s13908 = sadd.s32 %s13903, %s13907
          %s13909 = smul.addr %s13908, 128
          %s13910 = scalar_lea.hbm %s3, %s13909
          %s13911 = sshll.u32 %s13898, 4
          %s13912 = int_to_ptr.vmem [resolvable:$true] %s13911
          %13917 = dma.vmem_to_hbm [thread:$0]  %s13912, 4096, %s13910, %s13895, 2048, 4096, 128
        $region56: #{tpu_custom_call.1} parent=31 // pred_fallthru
          _
      $region32: #{tpu_custom_call.1} parent=5 // pred_fallthru
        _
      %p13918 = scmp.le.s32.totalorder 2, %s18
      // Predicated region
      $region57: #{tpu_custom_call.1} parent=5 // pred_check
        %p13919 = pneg %p13918
      $region58: #{tpu_custom_call.1} parent=5 // pred_check_branch
        %13921 = sbr.rel (%p13919) target = $region60
      $region59: #{tpu_custom_call.1} parent=5 // pred_region
        %s13922 = ssub.s32 %s18, 2
        // Predicated region
        $region61: #{tpu_custom_call.1} parent=59 // pred_check
          %p13923 = pneg %p150
        $region62: #{tpu_custom_call.1} parent=59 // pred_check_branch
          %13925 = sbr.rel (%p13923) target = $region64
        $region63: #{tpu_custom_call.1} parent=59 // pred_region
          %s13926 = sand.u32 %s135, 1
          %s13927 = scalar_lea.sflag [#allocation5], %s13926
          %s13928 = sand.u32 %s135, 1
          %s13929 = smul.addr %s13928, 256
          %s13930 = scalar_lea.vmem [#allocation9], %s13929
          %13931 = dma.done %s13927, 4096
        $region64: #{tpu_custom_call.1} parent=59 // pred_fallthru
          _
      $region60: #{tpu_custom_call.1} parent=5 // pred_fallthru
        _
    $region6: #{tpu_custom_call.1} parent=1 // loop_footer
      %s22 = sadd.s32 1, %s18
    $region7: #{tpu_custom_call.1} parent=1 // loop_footer_branch
      %17 = sbr.rel target = $region3
    $region8: #{tpu_custom_call.1} parent=1 // loop_exit
      _
    %13932 = vsyncpa [#allocation4], 1
    %s13933 = scalar_lea.sflag [#allocation4], 1
    %13934 = vsyncpa %s13933, 1
    %13935 = vsyncpa [#allocation7], 1
    %s13936 = scalar_lea.sflag [#allocation7], 1
    %13937 = vsyncpa %s13936, 1
    %13938 = vsyncpa [#allocation5], 1
    %s13939 = scalar_lea.sflag [#allocation5], 1
    %13940 = vsyncpa %s13939, 1

</llo_original>
